<compile_context>
chip_gen: v7x
topology: tpu7x:2x2x1
jax: 0.10.0
libtpu: 0.0.40
codegen_flags: <defaults>
</compile_context>

<pallas_src>
import jax
import jax.numpy as jnp
from jax import lax
from jax.experimental import pallas as pl
from jax.experimental.pallas import tpu as pltpu

L = 31          # sequence length (implied by Linear(31*ch2, fc1))
CH1 = 16
CH2 = 32
FC1 = 128
NCLS = 51
OUTP = 128      # lane-padded output width (unmasked store); wrapper slices to NCLS
H1 = 512        # L*CH1 = 496 padded to a 128-lane multiple
H2 = 1024       # L*CH2 = 992 padded to a 128-lane multiple
EPS = 1e-5


def net_kernel(x_ref,       # (TM, L)      raw input rows (no pre-padding)
               slab_ref,    # (8, H2)      packed small params (see prepare_params)
               w1t_ref,     # (L, H1)      conv1 as banded matrix (padding folded in)
               w2t_ref,     # (H1, H2)     conv2 as banded matrix
               kfc1_ref,    # (H2, FC1)    fc1 weight (flatten-order matched, row-padded)
               kfc2_ref,    # (FC1, OUTP)  fc2 weight, zero cols beyond NCLS
               out_ref):    # (TM, OUTP)
    x = x_ref[...]                                       # (TM, L)

    s1 = slab_ref[0:1, :H1]                              # folded BN1 scale (tile-aligned slice)
    t1 = slab_ref[1:2, :H1]                              # folded BN1 shift
    s2 = slab_ref[2:3, :]                                # folded BN2 scale
    t2 = slab_ref[3:4, :]                                # folded BN2 shift
    bfc1 = slab_ref[4:5, :FC1]
    bfc2 = slab_ref[5:6, :OUTP]

    # ---- Conv1d(1 -> CH1, k=3, pad=1) + BN1 + ReLU : one MXU matmul ----
    y1 = jnp.dot(x, w1t_ref[...], preferred_element_type=jnp.float32)      # (TM, H1)
    y1 = jnp.maximum(y1 * s1 + t1, 0.0)

    # ---- Conv1d(CH1 -> CH2, k=3, pad=1) + BN2 + ReLU : one MXU matmul ----
    y2 = jnp.dot(y1, w2t_ref[...], preferred_element_type=jnp.float32)     # (TM, H2)
    y2 = jnp.maximum(y2 * s2 + t2, 0.0)

    # ---- Flatten + Linear(31*CH2 -> FC1) + ReLU : one MXU matmul ----
    h = jnp.dot(y2, kfc1_ref[...], preferred_element_type=jnp.float32)     # (TM, FC1)
    h = jnp.maximum(h + bfc1, 0.0)

    # ---- Linear(FC1 -> 51), lane-padded to OUTP ----
    out = jnp.dot(h, kfc2_ref[...], preferred_element_type=jnp.float32) + bfc2
    out_ref[...] = out.astype(out_ref.dtype)


def make_params(key):
    ks = jax.random.split(key, 16)
    p = {}
    p['w1'] = 0.3 * jax.random.normal(ks[0], (CH1, 1, 3), jnp.float32)
    p['b1'] = 0.1 * jax.random.normal(ks[1], (CH1,), jnp.float32)
    p['g1'] = 1.0 + 0.1 * jax.random.normal(ks[2], (CH1,), jnp.float32)
    p['be1'] = 0.1 * jax.random.normal(ks[3], (CH1,), jnp.float32)
    p['m1'] = 0.1 * jax.random.normal(ks[4], (CH1,), jnp.float32)
    p['v1'] = 1.0 + 0.05 * jnp.abs(jax.random.normal(ks[5], (CH1,), jnp.float32))

    p['w2'] = 0.1 * jax.random.normal(ks[6], (CH2, CH1, 3), jnp.float32)
    p['b2'] = 0.1 * jax.random.normal(ks[7], (CH2,), jnp.float32)
    p['g2'] = 1.0 + 0.1 * jax.random.normal(ks[8], (CH2,), jnp.float32)
    p['be2'] = 0.1 * jax.random.normal(ks[9], (CH2,), jnp.float32)
    p['m2'] = 0.1 * jax.random.normal(ks[10], (CH2,), jnp.float32)
    p['v2'] = 1.0 + 0.05 * jnp.abs(jax.random.normal(ks[11], (CH2,), jnp.float32))

    p['wfc1'] = 0.05 * jax.random.normal(ks[12], (FC1, L * CH2), jnp.float32)
    p['bfc1'] = 0.1 * jax.random.normal(ks[13], (FC1,), jnp.float32)
    p['wfc2'] = 0.1 * jax.random.normal(ks[14], (NCLS, FC1), jnp.float32)
    p['bfc2'] = 0.1 * jax.random.normal(ks[15], (NCLS,), jnp.float32)
    return p


def prepare_params(p):
    """One-time weight prep (hoisted out of the per-call forward path)."""
    # Fold conv bias + eval-mode BN into per-channel scale / shift.
    s1 = p['g1'] / jnp.sqrt(p['v1'] + EPS)
    t1 = p['be1'] + s1 * (p['b1'] - p['m1'])
    s2 = p['g2'] / jnp.sqrt(p['v2'] + EPS)
    t2 = p['be2'] + s2 * (p['b2'] - p['m2'])

    # conv1 as a banded (L, H1) matrix acting directly on the UNPADDED input row:
    #   y1[n, q*CH1+c] = sum_m x[n, m] * W1T[m, q*CH1+c]
    #   W1T[m, q*CH1+c] = w1[c, m-q+1] if 0 <= m-q+1 <= 2 else 0
    # (the zero padding at the sequence edges is encoded by the band cutoff).
    w1 = p['w1'][:, 0, :]                                        # (CH1, 3) [c, k]
    m_i = jnp.arange(L)[:, None]                                 # (L, 1)
    q_i = jnp.repeat(jnp.arange(L), CH1)[None, :]                # (1, L*CH1)
    c_i = jnp.tile(jnp.arange(CH1), L)[None, :]                  # (1, L*CH1)
    k1 = m_i - q_i + 1
    band1 = jnp.where((k1 >= 0) & (k1 <= 2),
                      w1[c_i, jnp.clip(k1, 0, 2)], 0.0).astype(jnp.float32)
    w1t = jnp.zeros((L, H1), jnp.float32).at[:, :L * CH1].set(band1)

    # conv2 as a banded (H1, H2) matrix:
    #   y2[n, t*CH2+d] = sum_{q,c} y1[n, q*CH1+c] * W2T[q*CH1+c, t*CH2+d]
    #   W2T[q*CH1+c, t*CH2+d] = w2[d, c, q-t+1] if 0 <= q-t+1 <= 2 else 0
    w2 = p['w2']                                                 # (CH2, CH1, 3) [d, c, k]
    q_r = jnp.repeat(jnp.arange(L), CH1)[:, None]                # (L*CH1, 1)
    c_r = jnp.tile(jnp.arange(CH1), L)[:, None]                  # (L*CH1, 1)
    d_c = jnp.tile(jnp.arange(CH2), L)[None, :]                  # (1, L*CH2)
    t_c = jnp.repeat(jnp.arange(L), CH2)[None, :]                # (1, L*CH2)
    k2 = q_r - t_c + 1
    band2 = jnp.where((k2 >= 0) & (k2 <= 2),
                      w2[d_c, c_r, jnp.clip(k2, 0, 2)], 0.0).astype(jnp.float32)
    w2t = jnp.zeros((H1, H2), jnp.float32).at[:L * CH1, :L * CH2].set(band2)

    # fc1: kernel row order t*CH2+d; PyTorch flatten of (N, CH2, L) reads column
    # d*L+t of wfc1.  Rows beyond L*CH2 are zero (padded y2 lanes).
    kfc1_core = jnp.transpose(p['wfc1'].reshape(FC1, CH2, L), (2, 1, 0)).reshape(L * CH2, FC1)
    kfc1 = jnp.zeros((H2, FC1), jnp.float32).at[:L * CH2, :].set(kfc1_core)

    # fc2 padded to OUTP lanes (zero cols beyond NCLS) for an unmasked output store.
    kfc2 = jnp.zeros((FC1, OUTP), jnp.float32).at[:, :NCLS].set(p['wfc2'].T)

    # Pack all small per-lane params into one (8, H2) slab -> single resident buffer.
    slab = jnp.zeros((8, H2), jnp.float32)
    slab = slab.at[0, :L * CH1].set(jnp.tile(s1, L))
    slab = slab.at[1, :L * CH1].set(jnp.tile(t1, L))
    slab = slab.at[2, :L * CH2].set(jnp.tile(s2, L))
    slab = slab.at[3, :L * CH2].set(jnp.tile(t2, L))
    slab = slab.at[4, :FC1].set(p['bfc1'])
    slab = slab.at[5, :NCLS].set(p['bfc2'])

    return {'slab': slab, 'w1t': w1t, 'w2t': w2t, 'kfc1': kfc1, 'kfc2': kfc2}


def net_pallas(x_ncl, prep, *, tile_m=256):
    """x_ncl: (batch, 1, L) float32 (PyTorch NCL layout). Returns (batch, NCLS)."""
    n = x_ncl.shape[0]
    x = x_ncl[:, 0, :]                                   # (n, L)
    n_pad = pl.cdiv(n, tile_m) * tile_m
    if n_pad != n:
        x = jnp.pad(x, ((0, n_pad - n), (0, 0)))
    grid = (n_pad // tile_m,)

    # Advisory cost so XLA can schedule surrounding ops around this call.
    mm_flops = 2 * n_pad * (L * H1 + H1 * H2 + H2 * FC1 + FC1 * OUTP)
    weight_bytes = 4 * (L * H1 + H1 * H2 + H2 * FC1 + FC1 * OUTP + 8 * H2)
    io_bytes = 4 * (n_pad * L + n_pad * OUTP)
    cost = pl.CostEstimate(flops=mm_flops, transcendentals=0,
                           bytes_accessed=weight_bytes + io_bytes)

    const = lambda i: (0, 0)   # weights: same block every grid step -> single HBM->VMEM DMA
    out = pl.pallas_call(
        net_kernel,
        out_shape=jax.ShapeDtypeStruct((n_pad, OUTP), jnp.float32),
        grid=grid,
        in_specs=[
            pl.BlockSpec((tile_m, L), lambda i: (i, 0)),     # batch tile of the input
            pl.BlockSpec((8, H2), const),                    # packed scale/shift/bias slab
            pl.BlockSpec((L, H1), const),                    # conv1 band
            pl.BlockSpec((H1, H2), const),                   # conv2 band
            pl.BlockSpec((H2, FC1), const),                  # fc1
            pl.BlockSpec((FC1, OUTP), const),                # fc2
        ],
        out_specs=pl.BlockSpec((tile_m, OUTP), lambda i: (i, 0)),
        compiler_params=pltpu.CompilerParams(
            dimension_semantics=("parallel",)),              # v7x: shard batch over 2 TCs
        cost_estimate=cost,
    )(x, prep['slab'], prep['w1t'], prep['w2t'], prep['kfc1'], prep['kfc2'])
    return out[:n, :NCLS]


def net_reference(x_ncl, p):
    """Pure-JAX reference matching the PyTorch forward (eval-mode BN)."""
    n = x_ncl.shape[0]
    dn = ('NCH', 'OIH', 'NCH')
    y = lax.conv_general_dilated(x_ncl, p['w1'], (1,), ((1, 1),),
                                 dimension_numbers=dn) + p['b1'][None, :, None]
    y = (p['g1'][None, :, None] * (y - p['m1'][None, :, None])
         / jnp.sqrt(p['v1'] + EPS)[None, :, None] + p['be1'][None, :, None])
    y = jnp.maximum(y, 0.0)
    y = lax.conv_general_dilated(y, p['w2'], (1,), ((1, 1),),
                                 dimension_numbers=dn) + p['b2'][None, :, None]
    y = (p['g2'][None, :, None] * (y - p['m2'][None, :, None])
         / jnp.sqrt(p['v2'] + EPS)[None, :, None] + p['be2'][None, :, None])
    y = jnp.maximum(y, 0.0)
    y = y.reshape(n, CH2 * L)                            # channel-major flatten (PyTorch)
    y = jnp.maximum(y @ p['wfc1'].T + p['bfc1'], 0.0)
    return y @ p['wfc2'].T + p['bfc2']


def pick_tile_m():
    # 256 rows fills the 256x256 MXU on v6e/v7x; 128 matches v5's 128x128 MXU.
    try:
        if "v5" in jax.devices()[0].device_kind.lower():
            return 128
    except Exception:
        pass
    return 256


if __name__ == "__main__":
    key = jax.random.PRNGKey(0)
    kx, kp = jax.random.split(key)

    tile_m = pick_tile_m()
    batch = 512                                           # multiple of both tile sizes
    x = jax.random.normal(kx, (batch, 1, L), jnp.float32)  # PyTorch NCL input
    params = make_params(kp)

    prep = prepare_params(params)                         # one-time (hoisted) weight prep
    fwd = jax.jit(net_pallas, static_argnames=("tile_m",))

    out = jax.block_until_ready(fwd(x, prep, tile_m=tile_m))
    ref = jax.block_until_ready(net_reference(x, params))
    if not jnp.allclose(out, ref, atol=1e-4, rtol=1e-4):
        raise AssertionError(f"mismatch: max abs err {jnp.max(jnp.abs(out - ref))}")

    print("KERNEL_OK")
</pallas_src>

<mosaic_0001>
module attributes {stable_mosaic.version = 11 : i64} {
  func.func @net_kernel(%arg0: i32, %arg1: memref<256x31xf32, #tpu.memory_space<vmem>>, %arg2: memref<8x1024xf32, #tpu.memory_space<vmem>>, %arg3: memref<31x512xf32, #tpu.memory_space<vmem>>, %arg4: memref<512x1024xf32, #tpu.memory_space<vmem>>, %arg5: memref<1024x128xf32, #tpu.memory_space<vmem>>, %arg6: memref<128x128xf32, #tpu.memory_space<vmem>>, %arg7: memref<256x128xf32, #tpu.memory_space<vmem>>) attributes {dimension_semantics = [#tpu.dimension_semantics<parallel>], iteration_bounds = array<i64: 2>, scalar_prefetch = 0 : i64, scratch_operands = 0 : i64, tpu.core_type = #tpu.core_type<tc>, window_params = [{transform_indices = @transform_0, window_bounds = array<i64: 256, 31>}, {pipeline_mode = #tpu.pipeline_mode<synchronous>, transform_indices = @transform_1, window_bounds = array<i64: 8, 1024>}, {pipeline_mode = #tpu.pipeline_mode<synchronous>, transform_indices = @transform_2, window_bounds = array<i64: 31, 512>}, {pipeline_mode = #tpu.pipeline_mode<synchronous>, transform_indices = @transform_3, window_bounds = array<i64: 512, 1024>}, {pipeline_mode = #tpu.pipeline_mode<synchronous>, transform_indices = @transform_4, window_bounds = array<i64: 1024, 128>}, {pipeline_mode = #tpu.pipeline_mode<synchronous>, transform_indices = @transform_5, window_bounds = array<i64: 128, 128>}, {transform_indices = @transform_6, window_bounds = array<i64: 256, 128>}]} {
    %c0 = arith.constant 0 : index
    %c0_0 = arith.constant 0 : index
    %0 = vector.load %arg1[%c0, %c0_0] : memref<256x31xf32, #tpu.memory_space<vmem>>, vector<256x31xf32>
    %c0_1 = arith.constant 0 : index
    %c0_2 = arith.constant 0 : index
    %1 = vector.load %arg2[%c0_1, %c0_2] : memref<8x1024xf32, #tpu.memory_space<vmem>>, vector<1x512xf32>
    %c1 = arith.constant 1 : index
    %c0_3 = arith.constant 0 : index
    %2 = vector.load %arg2[%c1, %c0_3] : memref<8x1024xf32, #tpu.memory_space<vmem>>, vector<1x512xf32>
    %c2 = arith.constant 2 : index
    %c0_4 = arith.constant 0 : index
    %3 = vector.load %arg2[%c2, %c0_4] : memref<8x1024xf32, #tpu.memory_space<vmem>>, vector<1x1024xf32>
    %c3 = arith.constant 3 : index
    %c0_5 = arith.constant 0 : index
    %4 = vector.load %arg2[%c3, %c0_5] : memref<8x1024xf32, #tpu.memory_space<vmem>>, vector<1x1024xf32>
    %c4 = arith.constant 4 : index
    %c0_6 = arith.constant 0 : index
    %5 = vector.load %arg2[%c4, %c0_6] : memref<8x1024xf32, #tpu.memory_space<vmem>>, vector<1x128xf32>
    %c5 = arith.constant 5 : index
    %c0_7 = arith.constant 0 : index
    %6 = vector.load %arg2[%c5, %c0_7] : memref<8x1024xf32, #tpu.memory_space<vmem>>, vector<1x128xf32>
    %c0_8 = arith.constant 0 : index
    %c0_9 = arith.constant 0 : index
    %7 = vector.load %arg3[%c0_8, %c0_9] : memref<31x512xf32, #tpu.memory_space<vmem>>, vector<31x512xf32>
    %cst = arith.constant dense<0.000000e+00> : vector<256x512xf32>
    %8 = tpu.matmul %0, %7, %cst {dimension_numbers = #tpu.dot_dimension_numbers<[1], [0], [0], [1], [0, 0, 1, 1], [], []>} : vector<256x31xf32>, vector<31x512xf32>, vector<256x512xf32> -> vector<256x512xf32>
    %9 = vector.broadcast %1 : vector<1x512xf32> to vector<256x512xf32>
    %10 = arith.mulf %8, %9 : vector<256x512xf32>
    %11 = vector.broadcast %2 : vector<1x512xf32> to vector<256x512xf32>
    %12 = arith.addf %10, %11 : vector<256x512xf32>
    %cst_10 = arith.constant 0.000000e+00 : f32
    %13 = vector.broadcast %cst_10 : f32 to vector<256x512xf32>
    %14 = arith.maximumf %12, %13 : vector<256x512xf32>
    %c0_11 = arith.constant 0 : index
    %c0_12 = arith.constant 0 : index
    %15 = vector.load %arg4[%c0_11, %c0_12] : memref<512x1024xf32, #tpu.memory_space<vmem>>, vector<512x1024xf32>
    %cst_13 = arith.constant dense<0.000000e+00> : vector<256x1024xf32>
    %16 = tpu.matmul %14, %15, %cst_13 {dimension_numbers = #tpu.dot_dimension_numbers<[1], [0], [0], [1], [0, 0, 1, 1], [], []>} : vector<256x512xf32>, vector<512x1024xf32>, vector<256x1024xf32> -> vector<256x1024xf32>
    %17 = vector.broadcast %3 : vector<1x1024xf32> to vector<256x1024xf32>
    %18 = arith.mulf %16, %17 : vector<256x1024xf32>
    %19 = vector.broadcast %4 : vector<1x1024xf32> to vector<256x1024xf32>
    %20 = arith.addf %18, %19 : vector<256x1024xf32>
    %cst_14 = arith.constant 0.000000e+00 : f32
    %21 = vector.broadcast %cst_14 : f32 to vector<256x1024xf32>
    %22 = arith.maximumf %20, %21 : vector<256x1024xf32>
    %c0_15 = arith.constant 0 : index
    %c0_16 = arith.constant 0 : index
    %23 = vector.load %arg5[%c0_15, %c0_16] : memref<1024x128xf32, #tpu.memory_space<vmem>>, vector<1024x128xf32>
    %cst_17 = arith.constant dense<0.000000e+00> : vector<256x128xf32>
    %24 = tpu.matmul %22, %23, %cst_17 {dimension_numbers = #tpu.dot_dimension_numbers<[1], [0], [0], [1], [0, 0, 1, 1], [], []>} : vector<256x1024xf32>, vector<1024x128xf32>, vector<256x128xf32> -> vector<256x128xf32>
    %25 = vector.broadcast %5 : vector<1x128xf32> to vector<256x128xf32>
    %26 = arith.addf %24, %25 : vector<256x128xf32>
    %cst_18 = arith.constant 0.000000e+00 : f32
    %27 = vector.broadcast %cst_18 : f32 to vector<256x128xf32>
    %28 = arith.maximumf %26, %27 : vector<256x128xf32>
    %c0_19 = arith.constant 0 : index
    %c0_20 = arith.constant 0 : index
    %29 = vector.load %arg6[%c0_19, %c0_20] : memref<128x128xf32, #tpu.memory_space<vmem>>, vector<128x128xf32>
    %cst_21 = arith.constant dense<0.000000e+00> : vector<256x128xf32>
    %30 = tpu.matmul %28, %29, %cst_21 {dimension_numbers = #tpu.dot_dimension_numbers<[1], [0], [0], [1], [0, 0, 1, 1], [], []>} : vector<256x128xf32>, vector<128x128xf32>, vector<256x128xf32> -> vector<256x128xf32>
    %31 = vector.broadcast %6 : vector<1x128xf32> to vector<256x128xf32>
    %32 = arith.addf %30, %31 : vector<256x128xf32>
    %c0_22 = arith.constant 0 : index
    %c0_23 = arith.constant 0 : index
    %33 = vector.load %arg7[%c0_22, %c0_23] : memref<256x128xf32, #tpu.memory_space<vmem>>, vector<256x128xf32>
    tpu.vector_store %arg7[%c0_22, %c0_23], %32 {strides = array<i32>} : memref<256x128xf32, #tpu.memory_space<vmem>>, vector<256x128xf32>,
    return
  }
  func.func @transform_0(%arg0: i32) -> (i32, i32) {
    %c0_i32 = arith.constant 0 : i32
    %c0_i32_0 = arith.constant 0 : i32
    return %arg0, %c0_i32 : i32, i32
  }
  func.func @transform_1(%arg0: i32) -> (i32, i32) {
    %c0_i32 = arith.constant 0 : i32
    %c0_i32_0 = arith.constant 0 : i32
    %c0_i32_1 = arith.constant 0 : i32
    return %c0_i32, %c0_i32_0 : i32, i32
  }
  func.func @transform_2(%arg0: i32) -> (i32, i32) {
    %c0_i32 = arith.constant 0 : i32
    %c0_i32_0 = arith.constant 0 : i32
    %c0_i32_1 = arith.constant 0 : i32
    return %c0_i32, %c0_i32_0 : i32, i32
  }
  func.func @transform_3(%arg0: i32) -> (i32, i32) {
    %c0_i32 = arith.constant 0 : i32
    %c0_i32_0 = arith.constant 0 : i32
    %c0_i32_1 = arith.constant 0 : i32
    return %c0_i32, %c0_i32_0 : i32, i32
  }
  func.func @transform_4(%arg0: i32) -> (i32, i32) {
    %c0_i32 = arith.constant 0 : i32
    %c0_i32_0 = arith.constant 0 : i32
    %c0_i32_1 = arith.constant 0 : i32
    return %c0_i32, %c0_i32_0 : i32, i32
  }
  func.func @transform_5(%arg0: i32) -> (i32, i32) {
    %c0_i32 = arith.constant 0 : i32
    %c0_i32_0 = arith.constant 0 : i32
    %c0_i32_1 = arith.constant 0 : i32
    return %c0_i32, %c0_i32_0 : i32, i32
  }
  func.func @transform_6(%arg0: i32) -> (i32, i32) {
    %c0_i32 = arith.constant 0 : i32
    %c0_i32_0 = arith.constant 0 : i32
    return %arg0, %c0_i32 : i32, i32
  }
}

</mosaic_0001>

<llo_original>
// kernel: net_pallas.1
$region0: #{net_pallas.1}
  #allocation0 [shape = 'u32[]', space=smem, size = 0x4, offset = 0x4, fixed_abs, tag = 'smem constant byte address 0x4 - core index']
  #allocation1 [shape = 'u32[144,128]{1,0:T(1,128)}', space=vmem, size = 0x12000, scoped, tag = 'internal scratch']
  %s0 = inlined_call_operand.vmem [shape: f32[512,31], index: 0, kind: input, shape index: {}]
  %s1 = inlined_call_operand.hbm [shape: f32[8,1024], index: 1, kind: input, shape index: {}]
  %s2 = inlined_call_operand.hbm [shape: f32[31,512], index: 2, kind: input, shape index: {}]
  %s3 = inlined_call_operand.hbm [shape: f32[512,1024], index: 3, kind: input, shape index: {}]
  %s4 = inlined_call_operand.hbm [shape: f32[1024,128], index: 4, kind: input, shape index: {}]
  %s5 = inlined_call_operand.hbm [shape: f32[128,128], index: 5, kind: input, shape index: {}]
  %s6 = inlined_call_operand.vmem [shape: f32[512,128], index: 6, kind: output, shape index: {}]
  %s7 = sld [smem:[#allocation0]]
  $region77: #{net_pallas.1} parent=0
    _
  %s9 = ssub.s32 1, %s7
  %s10 = scalar_select 0, %s9, %s7
  $region1: #{net_pallas.1} parent=0
    #allocation2 [shape = 'u8[32768]{0}', space=vmem, size = 0x8000, scoped, tag = 'input window, operand 1, single buffered']
    #allocation3 [shape = 's32[2]{0}', space=sflag, size = 0x8, scoped, tag = 'scoped memory for net_pallas.1']
    #allocation4 [shape = 'u8[65536]{0}', space=vmem, size = 0x10000, scoped, tag = 'input window, operand 2, single buffered']
    #allocation5 [shape = 's32[1]{0}', space=sflag, size = 0x4, scoped, tag = 'scoped memory for net_pallas.1']
    #allocation6 [shape = 'u8[2097152]{0}', space=vmem, size = 0x200000, scoped, tag = 'input window, operand 3, single buffered']
    #allocation7 [shape = 'u8[524288]{0}', space=vmem, size = 0x80000, scoped, tag = 'input window, operand 4, single buffered']
    #allocation8 [shape = 's32[1]{0}', space=sflag, size = 0x4, scoped, tag = 'scoped memory for net_pallas.1']
    #allocation9 [shape = 'u8[65536]{0}', space=vmem, size = 0x10000, scoped, tag = 'input window, operand 5, single buffered']
    %11 = vsyncpa [#allocation3], 0
    %12 = vsyncpa [#allocation5], 0
    %13 = vsyncpa [#allocation8], 0
    loop: start=0, step=1, limit=4
    $region2: #{net_pallas.1} parent=1 // loop_pre_header
      _
    $region3: #{net_pallas.1} parent=1 // loop_header
      %s15 = sphi 0, %s19
      %p16 = scmp.ge.s32.totalorder %s15, 4
      %s25 = sphi 0, %s27
      %s28 = sphi 0, %s25
      %s29 = sphi 0, %s28
      %s45 = sphi 0, %s29
      %s49 = sphi 0, %s49
      %s51 = sphi 0, %s49
      %s52 = sphi 0, %s51
      %s66 = sphi 0, %s52
      %s70 = sphi 0, %s70
      %s72 = sphi 0, %s70
      %s73 = sphi 0, %s72
      %s87 = sphi 0, %s73
      %s91 = sphi 0, %s91
      %s93 = sphi 0, %s91
      %s94 = sphi 0, %s93
      %s108 = sphi 0, %s94
      %s112 = sphi 0, %s112
      %s114 = sphi 0, %s112
      %s115 = sphi 0, %s114
      %s129 = sphi 0, %s115
      %s133 = sphi 0, %s133
      %s135 = sphi 0, %s133
      %s136 = sphi 0, %s135
      %s150 = sphi 0, %s136
      %s156 = sphi 0, %s158
      %s159 = sphi 0, %s156
      %s160 = sphi 0, %s159
      %s176 = sphi 0, %s160
    $region4: #{net_pallas.1} parent=1 // loop_header_branch
      %18 = sbr.rel (%p16) target = $region8
    $region5: #{net_pallas.1} parent=1 // loop_body
      %s20 = ssub.s32 %s15, 1
      %s21 = ssub.s32 %s15, 2
      %s22 = sadd.s32 %s15, 1
      %s23 = ssub.s32 %s15, %s22
      %p24 = scmp.eq.s32.totalorder %s23, 0
      %s26 = sadd.s32 %s25, 1
      %s27 = scalar_select %p24, %s25, %s26
      %p30 = pneg %p24
      %p31 = scmp.eq.s32.totalorder %s15, 1
      %p32 = por %p30, %p31
      %p33 = scmp.ne.s32.totalorder %s25, %s28
      %p34 = scmp.eq.s32.totalorder %s15, 0
      %p35 = por %p33, %p34
      %p36 = scmp.ne.s32.totalorder %s25, %s28
      %p37 = scmp.eq.s32.totalorder %s20, 1
      %p38 = por %p36, %p37
      %p39 = scmp.ne.s32.totalorder %s28, %s29
      %p40 = scmp.eq.s32.totalorder %s20, 0
      %p41 = por %p39, %p40
      %p42 = scmp.ne.s32.totalorder %s28, %s29
      %p43 = scmp.eq.s32.totalorder %s21, 1
      %p44 = por %p42, %p43
      %p46 = scmp.ne.s32.totalorder %s29, %s45
      %p47 = scmp.eq.s32.totalorder %s21, 0
      %p48 = por %p46, %p47
      %s50 = sadd.s32 %s49, 1
      %p53 = scmp.eq.s32.totalorder %s15, 1
      %p54 = scmp.ne.s32.totalorder %s49, %s51
      %p55 = scmp.eq.s32.totalorder %s15, 0
      %p56 = por %p54, %p55
      %p57 = scmp.ne.s32.totalorder %s49, %s51
      %p58 = scmp.eq.s32.totalorder %s20, 1
      %p59 = por %p57, %p58
      %p60 = scmp.ne.s32.totalorder %s51, %s52
      %p61 = scmp.eq.s32.totalorder %s20, 0
      %p62 = por %p60, %p61
      %p63 = scmp.ne.s32.totalorder %s51, %s52
      %p64 = scmp.eq.s32.totalorder %s21, 1
      %p65 = por %p63, %p64
      %p67 = scmp.ne.s32.totalorder %s52, %s66
      %p68 = scmp.eq.s32.totalorder %s21, 0
      %p69 = por %p67, %p68
      %s71 = sadd.s32 %s70, 1
      %p74 = scmp.eq.s32.totalorder %s15, 1
      %p75 = scmp.ne.s32.totalorder %s70, %s72
      %p76 = scmp.eq.s32.totalorder %s15, 0
      %p77 = por %p75, %p76
      %p78 = scmp.ne.s32.totalorder %s70, %s72
      %p79 = scmp.eq.s32.totalorder %s20, 1
      %p80 = por %p78, %p79
      %p81 = scmp.ne.s32.totalorder %s72, %s73
      %p82 = scmp.eq.s32.totalorder %s20, 0
      %p83 = por %p81, %p82
      %p84 = scmp.ne.s32.totalorder %s72, %s73
      %p85 = scmp.eq.s32.totalorder %s21, 1
      %p86 = por %p84, %p85
      %p88 = scmp.ne.s32.totalorder %s73, %s87
      %p89 = scmp.eq.s32.totalorder %s21, 0
      %p90 = por %p88, %p89
      %s92 = sadd.s32 %s91, 1
      %p95 = scmp.eq.s32.totalorder %s15, 1
      %p96 = scmp.ne.s32.totalorder %s91, %s93
      %p97 = scmp.eq.s32.totalorder %s15, 0
      %p98 = por %p96, %p97
      %p99 = scmp.ne.s32.totalorder %s91, %s93
      %p100 = scmp.eq.s32.totalorder %s20, 1
      %p101 = por %p99, %p100
      %p102 = scmp.ne.s32.totalorder %s93, %s94
      %p103 = scmp.eq.s32.totalorder %s20, 0
      %p104 = por %p102, %p103
      %p105 = scmp.ne.s32.totalorder %s93, %s94
      %p106 = scmp.eq.s32.totalorder %s21, 1
      %p107 = por %p105, %p106
      %p109 = scmp.ne.s32.totalorder %s94, %s108
      %p110 = scmp.eq.s32.totalorder %s21, 0
      %p111 = por %p109, %p110
      %s113 = sadd.s32 %s112, 1
      %p116 = scmp.eq.s32.totalorder %s15, 1
      %p117 = scmp.ne.s32.totalorder %s112, %s114
      %p118 = scmp.eq.s32.totalorder %s15, 0
      %p119 = por %p117, %p118
      %p120 = scmp.ne.s32.totalorder %s112, %s114
      %p121 = scmp.eq.s32.totalorder %s20, 1
      %p122 = por %p120, %p121
      %p123 = scmp.ne.s32.totalorder %s114, %s115
      %p124 = scmp.eq.s32.totalorder %s20, 0
      %p125 = por %p123, %p124
      %p126 = scmp.ne.s32.totalorder %s114, %s115
      %p127 = scmp.eq.s32.totalorder %s21, 1
      %p128 = por %p126, %p127
      %p130 = scmp.ne.s32.totalorder %s115, %s129
      %p131 = scmp.eq.s32.totalorder %s21, 0
      %p132 = por %p130, %p131
      %s134 = sadd.s32 %s133, 1
      %p137 = scmp.eq.s32.totalorder %s15, 1
      %p138 = scmp.ne.s32.totalorder %s133, %s135
      %p139 = scmp.eq.s32.totalorder %s15, 0
      %p140 = por %p138, %p139
      %p141 = scmp.ne.s32.totalorder %s133, %s135
      %p142 = scmp.eq.s32.totalorder %s20, 1
      %p143 = por %p141, %p142
      %p144 = scmp.ne.s32.totalorder %s135, %s136
      %p145 = scmp.eq.s32.totalorder %s20, 0
      %p146 = por %p144, %p145
      %p147 = scmp.ne.s32.totalorder %s135, %s136
      %p148 = scmp.eq.s32.totalorder %s21, 1
      %p149 = por %p147, %p148
      %p151 = scmp.ne.s32.totalorder %s136, %s150
      %p152 = scmp.eq.s32.totalorder %s21, 0
      %p153 = por %p151, %p152
      %s154 = ssub.s32 %s15, %s22
      %p155 = scmp.eq.s32.totalorder %s154, 0
      %s157 = sadd.s32 %s156, 1
      %s158 = scalar_select %p155, %s156, %s157
      %p161 = pneg %p155
      %p162 = scmp.eq.s32.totalorder %s15, 1
      %p163 = por %p161, %p162
      %p164 = scmp.ne.s32.totalorder %s156, %s159
      %p165 = scmp.eq.s32.totalorder %s15, 0
      %p166 = por %p164, %p165
      %p167 = scmp.ne.s32.totalorder %s156, %s159
      %p168 = scmp.eq.s32.totalorder %s20, 1
      %p169 = por %p167, %p168
      %p170 = scmp.ne.s32.totalorder %s159, %s160
      %p171 = scmp.eq.s32.totalorder %s20, 0
      %p172 = por %p170, %p171
      %p173 = scmp.ne.s32.totalorder %s159, %s160
      %p174 = scmp.eq.s32.totalorder %s21, 1
      %p175 = por %p173, %p174
      %p177 = scmp.ne.s32.totalorder %s160, %s176
      %p178 = scmp.eq.s32.totalorder %s21, 0
      %p179 = por %p177, %p178
      %p180 = scmp.le.s32.totalorder 1, %s15
      %p181 = scmp.lt.s32.totalorder %s15, 3
      %p182 = pnand %p180, %p181
      %p183 = pneg %p182
      // Predicated region
      $region9: #{net_pallas.1} parent=5 // pred_check
        _
      $region10: #{net_pallas.1} parent=5 // pred_check_branch
        %185 = sbr.rel (%p182) target = $region12
      $region11: #{net_pallas.1} parent=5 // pred_region
        %s186 = ssub.s32 %s15, 1
        // Predicated region
        $region13: #{net_pallas.1} parent=11 // pred_check
          %p187 = pneg %p62
        $region14: #{net_pallas.1} parent=11 // pred_check_branch
          %189 = sbr.rel (%p187) target = $region16
        $region15: #{net_pallas.1} parent=11 // pred_region
          %s191 = ssub.s32 1024, 1024
          %192 = vsyncadd [#allocation3], %s191
          %s194 = sshll.u32 [#allocation2], 4
          %s195 = int_to_ptr.vmem [resolvable:$true] %s194
          %197 = dma.hbm_to_vmem [thread:$0]  %s1, 1024, %s195, [#allocation3]
        $region16: #{net_pallas.1} parent=11 // pred_fallthru
          _
        // Predicated region
        $region17: #{net_pallas.1} parent=11 // pred_check
          %p198 = pneg %p83
        $region18: #{net_pallas.1} parent=11 // pred_check_branch
          %200 = sbr.rel (%p198) target = $region20
        $region19: #{net_pallas.1} parent=11 // pred_region
          %s202 = ssub.s32 2048, 2048
          %203 = vsyncadd [#allocation5], %s202
          %s204 = sshll.u32 [#allocation4], 4
          %s205 = int_to_ptr.vmem [resolvable:$true] %s204
          %210 = dma.hbm_to_vmem [thread:$0]  %s2, 2048, %s205, [#allocation5], 512, 512, 32
        $region20: #{net_pallas.1} parent=11 // pred_fallthru
          _
        // Predicated region
        $region21: #{net_pallas.1} parent=11 // pred_check
          %p211 = pneg %p104
        $region22: #{net_pallas.1} parent=11 // pred_check_branch
          %213 = sbr.rel (%p211) target = $region24
        $region23: #{net_pallas.1} parent=11 // pred_region
          %s215 = ssub.s32 65536, 65536
          %216 = vsyncadd [#allocation5], %s215
          %s217 = sshll.u32 [#allocation6], 4
          %s218 = int_to_ptr.vmem [resolvable:$true] %s217
          %223 = dma.hbm_to_vmem [thread:$0]  %s3, 65536, %s218, [#allocation5], 1024, 1024, 64
        $region24: #{net_pallas.1} parent=11 // pred_fallthru
          _
        // Predicated region
        $region25: #{net_pallas.1} parent=11 // pred_check
          %p224 = pneg %p125
        $region26: #{net_pallas.1} parent=11 // pred_check_branch
          %226 = sbr.rel (%p224) target = $region28
        $region27: #{net_pallas.1} parent=11 // pred_region
          %s228 = ssub.s32 16384, 16384
          %229 = vsyncadd [#allocation8], %s228
          %s230 = sshll.u32 [#allocation7], 4
          %s231 = int_to_ptr.vmem [resolvable:$true] %s230
          %236 = dma.hbm_to_vmem [thread:$0]  %s4, 16384, %s231, [#allocation8], 128, 128, 8
        $region28: #{net_pallas.1} parent=11 // pred_fallthru
          _
        // Predicated region
        $region29: #{net_pallas.1} parent=11 // pred_check
          %p237 = pneg %p146
        $region30: #{net_pallas.1} parent=11 // pred_check_branch
          %239 = sbr.rel (%p237) target = $region32
        $region31: #{net_pallas.1} parent=11 // pred_region
          %s241 = ssub.s32 2048, 2048
          %242 = vsyncadd [#allocation8], %s241
          %s243 = sshll.u32 [#allocation9], 4
          %s244 = int_to_ptr.vmem [resolvable:$true] %s243
          %249 = dma.hbm_to_vmem [thread:$0]  %s5, 2048, %s244, [#allocation8], 128, 128, 8
        $region32: #{net_pallas.1} parent=11 // pred_fallthru
          _
      $region12: #{net_pallas.1} parent=5 // pred_fallthru
        _
      %p250 = scmp.lt.s32.totalorder %s15, 2
      // Predicated region
      $region33: #{net_pallas.1} parent=5 // pred_check
        %p251 = pneg %p250
      $region34: #{net_pallas.1} parent=5 // pred_check_branch
        %253 = sbr.rel (%p251) target = $region36
      $region35: #{net_pallas.1} parent=5 // pred_region
        // Predicated region
        $region37: #{net_pallas.1} parent=35 // pred_check
          %p254 = pneg %p35
        $region38: #{net_pallas.1} parent=35 // pred_check_branch
          %256 = sbr.rel (%p254) target = $region40
        $region39: #{net_pallas.1} parent=35 // pred_region
          %s257 = smul.u32 32, %s15
          %p258 = scmp.lt.s32.totalorder %s257, 63
          %s259 = scalar_select %p258, %s257, 63
          %s260 = smul.addr %s259, 8
          %s261 = scalar_lea.vmem %s0, %s260
          %s262 = smul.u32 32, %s15
        $region40: #{net_pallas.1} parent=35 // pred_fallthru
          _
      $region36: #{net_pallas.1} parent=5 // pred_fallthru
        _
      %p263 = scmp.le.s32.totalorder 1, %s15
      %p264 = scmp.lt.s32.totalorder %s15, 3
      %p265 = pnand %p263, %p264
      %p266 = pneg %p265
      // Predicated region
      $region41: #{net_pallas.1} parent=5 // pred_check
        _
      $region42: #{net_pallas.1} parent=5 // pred_check_branch
        %268 = sbr.rel (%p265) target = $region44
      $region43: #{net_pallas.1} parent=5 // pred_region
        %s269 = ssub.s32 %s15, 1
        // Predicated region
        $region45: #{net_pallas.1} parent=43 // pred_check
          %p270 = pneg %p62
        $region46: #{net_pallas.1} parent=43 // pred_check_branch
          %272 = sbr.rel (%p270) target = $region48
        $region47: #{net_pallas.1} parent=43 // pred_region
          %273 = dma.done [#allocation3], 1024
        $region48: #{net_pallas.1} parent=43 // pred_fallthru
          _
        // Predicated region
        $region49: #{net_pallas.1} parent=43 // pred_check
          %p274 = pneg %p83
        $region50: #{net_pallas.1} parent=43 // pred_check_branch
          %276 = sbr.rel (%p274) target = $region52
        $region51: #{net_pallas.1} parent=43 // pred_region
          %277 = dma.done [#allocation5], 2048
        $region52: #{net_pallas.1} parent=43 // pred_fallthru
          _
        // Predicated region
        $region53: #{net_pallas.1} parent=43 // pred_check
          %p278 = pneg %p104
        $region54: #{net_pallas.1} parent=43 // pred_check_branch
          %280 = sbr.rel (%p278) target = $region56
        $region55: #{net_pallas.1} parent=43 // pred_region
          %281 = dma.done [#allocation5], 65536
        $region56: #{net_pallas.1} parent=43 // pred_fallthru
          _
        // Predicated region
        $region57: #{net_pallas.1} parent=43 // pred_check
          %p282 = pneg %p125
        $region58: #{net_pallas.1} parent=43 // pred_check_branch
          %284 = sbr.rel (%p282) target = $region60
        $region59: #{net_pallas.1} parent=43 // pred_region
          %285 = dma.done [#allocation8], 16384
        $region60: #{net_pallas.1} parent=43 // pred_fallthru
          _
        // Predicated region
        $region61: #{net_pallas.1} parent=43 // pred_check
          %p286 = pneg %p146
        $region62: #{net_pallas.1} parent=43 // pred_check_branch
          %288 = sbr.rel (%p286) target = $region64
        $region63: #{net_pallas.1} parent=43 // pred_region
          %289 = dma.done [#allocation8], 2048
        $region64: #{net_pallas.1} parent=43 // pred_fallthru
          _
        %s290 = smul.u32 32, %s20
        %p291 = scmp.lt.s32.totalorder %s290, 63
        %s292 = scalar_select %p291, %s290, 63
        %s293 = smul.addr %s292, 8
        %s294 = scalar_lea.vmem %s0, %s293
        %p295 = pneg %p41
        %p296 = pneg %p38
        %p297 = pneg %p62
        %p298 = pneg %p59
        %p299 = pneg %p83
        %p300 = pneg %p80
        %p301 = pneg %p104
        %p302 = pneg %p101
        %p303 = pneg %p125
        %p304 = pneg %p122
        %p305 = pneg %p146
        %p306 = pneg %p143
        %p307 = pneg %p172
        %p308 = pneg %p169
        %s309 = smul.u32 32, %s20
        %p310 = scmp.lt.s32.totalorder %s309, 63
        %s311 = scalar_select %p310, %s309, 63
        %s312 = smul.addr %s311, 8
        %s313 = scalar_lea.vmem %s6, %s312
        %s314 = smul.u32 32, %s20
        %p315 = scmp.lt.s32.totalorder %s314, 63
        %s316 = scalar_select %p315, %s314, 63
        %s317 = smul.addr %s316, 8
        %s318 = scalar_lea.vmem %s0, %s317
        %s319 = smul.u32 32, %s20
        %s320 = smul.u32 32, %s20
        %p321 = scmp.lt.s32.totalorder %s320, 63
        %s322 = scalar_select %p321, %s320, 63
        %s323 = smul.addr %s322, 8
        %s324 = scalar_lea.vmem %s6, %s323
        %s325 = smul.u32 32, %s20
        %v326 = vld [vmem:[%s318] sm:$0xff]
        %v327 = vld [vmem:[%s318 + $0x8] sm:$0xff]
        %v328 = vld [vmem:[%s318 + $0x10] sm:$0xff]
        %v329 = vld [vmem:[%s318 + $0x18] sm:$0xff]
        %v330 = vld [vmem:[%s318 + $0x20] sm:$0xff]
        %v331 = vld [vmem:[%s318 + $0x28] sm:$0xff]
        %v332 = vld [vmem:[%s318 + $0x30] sm:$0xff]
        %v333 = vld [vmem:[%s318 + $0x38] sm:$0xff]
        %v334 = vld [vmem:[%s318 + $0x40] sm:$0xff]
        %v335 = vld [vmem:[%s318 + $0x48] sm:$0xff]
        %v336 = vld [vmem:[%s318 + $0x50] sm:$0xff]
        %v337 = vld [vmem:[%s318 + $0x58] sm:$0xff]
        %v338 = vld [vmem:[%s318 + $0x60] sm:$0xff]
        %v339 = vld [vmem:[%s318 + $0x68] sm:$0xff]
        %v340 = vld [vmem:[%s318 + $0x70] sm:$0xff]
        %v341 = vld [vmem:[%s318 + $0x78] sm:$0xff]
        %v342 = vld [vmem:[%s318 + $0x80] sm:$0xff]
        %v343 = vld [vmem:[%s318 + $0x88] sm:$0xff]
        %v344 = vld [vmem:[%s318 + $0x90] sm:$0xff]
        %v345 = vld [vmem:[%s318 + $0x98] sm:$0xff]
        %v346 = vld [vmem:[%s318 + $0xa0] sm:$0xff]
        %v347 = vld [vmem:[%s318 + $0xa8] sm:$0xff]
        %v348 = vld [vmem:[%s318 + $0xb0] sm:$0xff]
        %v349 = vld [vmem:[%s318 + $0xb8] sm:$0xff]
        %v350 = vld [vmem:[%s318 + $0xc0] sm:$0xff]
        %v351 = vld [vmem:[%s318 + $0xc8] sm:$0xff]
        %v352 = vld [vmem:[%s318 + $0xd0] sm:$0xff]
        %v353 = vld [vmem:[%s318 + $0xd8] sm:$0xff]
        %v354 = vld [vmem:[%s318 + $0xe0] sm:$0xff]
        %v355 = vld [vmem:[%s318 + $0xe8] sm:$0xff]
        %v356 = vld [vmem:[%s318 + $0xf0] sm:$0xff]
        %v357 = vld [vmem:[%s318 + $0xf8] sm:$0xff]
        %v358 = vld [vmem:[#allocation2] ss:$8 sm:$0xf]
        %s359 = scalar_lea.vmem [#allocation2], 1
        %v360 = vld [vmem:[%s359] ss:$8 sm:$0xf]
        %s361 = scalar_lea.vmem [#allocation2], 2
        %v362 = vld [vmem:[%s361] ss:$8 sm:$0xf]
        %v363 = vld [vmem:[%s361] ss:$8 sm:$0xf0]
        %v364 = vor.u32 %v362, %v363
        %s365 = scalar_lea.vmem [#allocation2], 3
        %v366 = vld [vmem:[%s365] ss:$8 sm:$0xf]
        %v367 = vld [vmem:[%s365] ss:$8 sm:$0xf0]
        %v368 = vor.u32 %v366, %v367
        %v369 = vld [vmem:[#allocation2 + $0x4] ss:$0 sm:$0xff]
        %v370 = vld [vmem:[#allocation2 + $0x5] ss:$0 sm:$0xff]
        %v371 = vld [vmem:[#allocation4] sm:$0xff]
        %v372 = vld [vmem:[#allocation4 + $0x8] sm:$0xff]
        %v373 = vld [vmem:[#allocation4 + $0x10] sm:$0xff]
        %v374 = vld [vmem:[#allocation4 + $0x18] sm:$0xff]
        %v375 = vld [vmem:[#allocation4 + $0x20] sm:$0xff]
        %v376 = vld [vmem:[#allocation4 + $0x28] sm:$0xff]
        %v377 = vld [vmem:[#allocation4 + $0x30] sm:$0xff]
        %v378 = vld [vmem:[#allocation4 + $0x38] sm:$0xff]
        %v379 = vld [vmem:[#allocation4 + $0x40] sm:$0xff]
        %v380 = vld [vmem:[#allocation4 + $0x48] sm:$0xff]
        %v381 = vld [vmem:[#allocation4 + $0x50] sm:$0xff]
        %v382 = vld [vmem:[#allocation4 + $0x58] sm:$0xff]
        %v383 = vld [vmem:[#allocation4 + $0x60] sm:$0x7f]
        %v384 = vld [vmem:[#allocation4 + $0x68] sm:$0x7f]
        %v385 = vld [vmem:[#allocation4 + $0x70] sm:$0x7f]
        %v386 = vld [vmem:[#allocation4 + $0x78] sm:$0x7f]
        %vm387 = vcmask 252928
        %v389 = vsel %vm387, %v326, 0
        %v392 = vsel %vm387, %v327, 0
        %v395 = vsel %vm387, %v328, 0
        %v398 = vsel %vm387, %v329, 0
        %v401 = vsel %vm387, %v330, 0
        %v404 = vsel %vm387, %v331, 0
        %v407 = vsel %vm387, %v332, 0
        %v410 = vsel %vm387, %v333, 0
        %v413 = vsel %vm387, %v334, 0
        %v416 = vsel %vm387, %v335, 0
        %v419 = vsel %vm387, %v336, 0
        %v422 = vsel %vm387, %v337, 0
        %v425 = vsel %vm387, %v338, 0
        %v428 = vsel %vm387, %v339, 0
        %v431 = vsel %vm387, %v340, 0
        %v434 = vsel %vm387, %v341, 0
        %v437 = vsel %vm387, %v342, 0
        %v440 = vsel %vm387, %v343, 0
        %v443 = vsel %vm387, %v344, 0
        %v446 = vsel %vm387, %v345, 0
        %v449 = vsel %vm387, %v346, 0
        %v452 = vsel %vm387, %v347, 0
        %v455 = vsel %vm387, %v348, 0
        %v458 = vsel %vm387, %v349, 0
        %v461 = vsel %vm387, %v350, 0
        %v464 = vsel %vm387, %v351, 0
        %v467 = vsel %vm387, %v352, 0
        %v470 = vsel %vm387, %v353, 0
        %v473 = vsel %vm387, %v354, 0
        %v476 = vsel %vm387, %v355, 0
        %v479 = vsel %vm387, %v356, 0
        %v482 = vsel %vm387, %v357, 0
        %vm484 = vcmask 1046528
        %v486 = vsel %vm484, %v383, 0
        %v489 = vsel %vm484, %v384, 0
        %v492 = vsel %vm484, %v385, 0
        %v495 = vsel %vm484, %v386, 0
        %497 = vmatprep.subr.mxu0 %v372
        %498 = vmatpush1.msra.mxu0 %v371
        %499 = vmatprep.subr.mxu0 %v376
        %500 = vmatpush1.msra.mxu0 %v375
        %501 = vmatprep.subr.mxu0 %v380
        %502 = vmatpush1.msra.mxu0 %v379
        %503 = vmatprep.subr.mxu0 %v489
        %504 = vmatpush1.msra.mxu0 %v486
        %505 = vmatprep.subr.mxu0 0.0
        %506 = vmatpush1.msra.mxu0 0.0
        %507 = vmatprep.subr.mxu0 0.0
        %508 = vmatpush1.msra.mxu0 0.0
        %509 = vmatprep.subr.mxu0 0.0
        %510 = vmatpush1.msra.mxu0 0.0
        %511 = vmatprep.subr.mxu0 0.0
        %512 = vmatpush1.msra.mxu0 0.0
        %513 = vmatprep.subr.mxu0 0.0
        %514 = vmatpush1.msra.mxu0 0.0
        %515 = vmatprep.subr.mxu0 0.0
        %516 = vmatpush1.msra.mxu0 0.0
        %517 = vmatprep.subr.mxu0 0.0
        %518 = vmatpush1.msra.mxu0 0.0
        %519 = vmatprep.subr.mxu0 0.0
        %520 = vmatpush1.msra.mxu0 0.0
        %521 = vmatprep.subr.mxu0 0.0
        %522 = vmatpush1.msra.mxu0 0.0
        %523 = vmatprep.subr.mxu0 0.0
        %524 = vmatpush1.msra.mxu0 0.0
        %525 = vmatprep.subr.mxu0 0.0
        %526 = vmatpush1.msra.mxu0 0.0
        %527 = vmatprep.subr.mxu0 0.0
        %528 = vmatpush1.msra.mxu0 0.0
        %529 = vmatprep.subr.mxu0 0.0
        %530 = vmatpush1.msra.mxu0 0.0
        %531 = vmatprep.subr.mxu0 0.0
        %532 = vmatpush1.msra.mxu0 0.0
        %533 = vmatprep.subr.mxu0 0.0
        %534 = vmatpush1.msra.mxu0 0.0
        %535 = vmatprep.subr.mxu0 0.0
        %536 = vmatpush1.msra.mxu0 0.0
        %537 = vmatprep.subr.mxu0 0.0
        %538 = vmatpush1.msra.mxu0 0.0
        %539 = vmatprep.subr.mxu0 0.0
        %540 = vmatpush1.msra.mxu0 0.0
        %541 = vmatprep.subr.mxu0 0.0
        %542 = vmatpush1.msra.mxu0 0.0
        %543 = vmatprep.subr.mxu0 0.0
        %544 = vmatpush1.msra.mxu0 0.0
        %545 = vmatprep.subr.mxu0 0.0
        %546 = vmatpush1.msra.mxu0 0.0
        %547 = vmatprep.subr.mxu0 0.0
        %548 = vmatpush1.msra.mxu0 0.0
        %549 = vmatprep.subr.mxu0 0.0
        %550 = vmatpush1.msra.mxu0 0.0
        %551 = vmatprep.subr.mxu0 0.0
        %552 = vmatpush1.msra.mxu0 0.0
        %553 = vmatprep.subr.mxu0 0.0
        %554 = vmatpush1.msra.mxu0 0.0
        %555 = vmatprep.subr.mxu0 0.0
        %556 = vmatpush1.msra.mxu0 0.0
        %557 = vmatprep.subr.mxu0 0.0
        %558 = vmatpush1.msra.mxu0 0.0
        %559 = vmatprep.subr.mxu0 0.0
        %560 = vmatpush1.msra.mxu0 0.0
        %561 = vmatprep.mubr.f32.mxu0 0.0
        %562 = vmatmul.mubr.f32.gmra.mrb[0].mxu0 %v389
        %v563 = vpop.f32.mrb[0].mxu0
        %v564 = vadd.f32 0.0, %v563
        %v565 = vpop.f32.mrb[0].mxu0
        %v566 = vadd.f32 0.0, %v565
        %567 = vmatprep.mubr.f32.mxu0 0.0
        %568 = vmatmul.mubr.f32.gmra.mrb[0].mxu0 %v392
        %v569 = vpop.f32.mrb[0].mxu0
        %v570 = vadd.f32 0.0, %v569
        %v571 = vpop.f32.mrb[0].mxu0
        %v572 = vadd.f32 0.0, %v571
        %573 = vmatprep.mubr.f32.mxu0 0.0
        %574 = vmatmul.mubr.f32.gmra.mrb[0].mxu0 %v395
        %v575 = vpop.f32.mrb[0].mxu0
        %v576 = vadd.f32 0.0, %v575
        %v577 = vpop.f32.mrb[0].mxu0
        %v578 = vadd.f32 0.0, %v577
        %579 = vmatprep.mubr.f32.mxu0 0.0
        %580 = vmatmul.mubr.f32.gmra.mrb[0].mxu0 %v398
        %v581 = vpop.f32.mrb[0].mxu0
        %v582 = vadd.f32 0.0, %v581
        %v583 = vpop.f32.mrb[0].mxu0
        %v584 = vadd.f32 0.0, %v583
        %585 = vmatprep.mubr.f32.mxu0 0.0
        %586 = vmatmul.mubr.f32.gmra.mrb[0].mxu0 %v401
        %v587 = vpop.f32.mrb[0].mxu0
        %v588 = vadd.f32 0.0, %v587
        %v589 = vpop.f32.mrb[0].mxu0
        %v590 = vadd.f32 0.0, %v589
        %591 = vmatprep.mubr.f32.mxu0 0.0
        %592 = vmatmul.mubr.f32.gmra.mrb[0].mxu0 %v404
        %v593 = vpop.f32.mrb[0].mxu0
        %v594 = vadd.f32 0.0, %v593
        %v595 = vpop.f32.mrb[0].mxu0
        %v596 = vadd.f32 0.0, %v595
        %597 = vmatprep.mubr.f32.mxu0 0.0
        %598 = vmatmul.mubr.f32.gmra.mrb[0].mxu0 %v407
        %v599 = vpop.f32.mrb[0].mxu0
        %v600 = vadd.f32 0.0, %v599
        %v601 = vpop.f32.mrb[0].mxu0
        %v602 = vadd.f32 0.0, %v601
        %603 = vmatprep.mubr.f32.mxu0 0.0
        %604 = vmatmul.mubr.f32.gmra.mrb[0].mxu0 %v410
        %v605 = vpop.f32.mrb[0].mxu0
        %v606 = vadd.f32 0.0, %v605
        %v607 = vpop.f32.mrb[0].mxu0
        %v608 = vadd.f32 0.0, %v607
        %609 = vmatprep.mubr.f32.mxu0 0.0
        %610 = vmatmul.mubr.f32.gmra.mrb[0].mxu0 %v413
        %v611 = vpop.f32.mrb[0].mxu0
        %v612 = vadd.f32 0.0, %v611
        %v613 = vpop.f32.mrb[0].mxu0
        %v614 = vadd.f32 0.0, %v613
        %615 = vmatprep.mubr.f32.mxu0 0.0
        %616 = vmatmul.mubr.f32.gmra.mrb[0].mxu0 %v416
        %v617 = vpop.f32.mrb[0].mxu0
        %v618 = vadd.f32 0.0, %v617
        %v619 = vpop.f32.mrb[0].mxu0
        %v620 = vadd.f32 0.0, %v619
        %621 = vmatprep.mubr.f32.mxu0 0.0
        %622 = vmatmul.mubr.f32.gmra.mrb[0].mxu0 %v419
        %v623 = vpop.f32.mrb[0].mxu0
        %v624 = vadd.f32 0.0, %v623
        %v625 = vpop.f32.mrb[0].mxu0
        %v626 = vadd.f32 0.0, %v625
        %627 = vmatprep.mubr.f32.mxu0 0.0
        %628 = vmatmul.mubr.f32.gmra.mrb[0].mxu0 %v422
        %v629 = vpop.f32.mrb[0].mxu0
        %v630 = vadd.f32 0.0, %v629
        %v631 = vpop.f32.mrb[0].mxu0
        %v632 = vadd.f32 0.0, %v631
        %633 = vmatprep.mubr.f32.mxu0 0.0
        %634 = vmatmul.mubr.f32.gmra.mrb[0].mxu0 %v425
        %v635 = vpop.f32.mrb[0].mxu0
        %v636 = vadd.f32 0.0, %v635
        %v637 = vpop.f32.mrb[0].mxu0
        %v638 = vadd.f32 0.0, %v637
        %639 = vmatprep.mubr.f32.mxu0 0.0
        %640 = vmatmul.mubr.f32.gmra.mrb[0].mxu0 %v428
        %v641 = vpop.f32.mrb[0].mxu0
        %v642 = vadd.f32 0.0, %v641
        %v643 = vpop.f32.mrb[0].mxu0
        %v644 = vadd.f32 0.0, %v643
        %645 = vmatprep.mubr.f32.mxu0 0.0
        %646 = vmatmul.mubr.f32.gmra.mrb[0].mxu0 %v431
        %v647 = vpop.f32.mrb[0].mxu0
        %v648 = vadd.f32 0.0, %v647
        %v649 = vpop.f32.mrb[0].mxu0
        %v650 = vadd.f32 0.0, %v649
        %651 = vmatprep.mubr.f32.mxu0 0.0
        %652 = vmatmul.mubr.f32.gmra.mrb[0].mxu0 %v434
        %v653 = vpop.f32.mrb[0].mxu0
        %v654 = vadd.f32 0.0, %v653
        %v655 = vpop.f32.mrb[0].mxu0
        %v656 = vadd.f32 0.0, %v655
        %657 = vmatprep.mubr.f32.mxu0 0.0
        %658 = vmatmul.mubr.f32.gmra.mrb[0].mxu0 %v437
        %v659 = vpop.f32.mrb[0].mxu0
        %v660 = vadd.f32 0.0, %v659
        %v661 = vpop.f32.mrb[0].mxu0
        %v662 = vadd.f32 0.0, %v661
        %663 = vmatprep.mubr.f32.mxu0 0.0
        %664 = vmatmul.mubr.f32.gmra.mrb[0].mxu0 %v440
        %v665 = vpop.f32.mrb[0].mxu0
        %v666 = vadd.f32 0.0, %v665
        %v667 = vpop.f32.mrb[0].mxu0
        %v668 = vadd.f32 0.0, %v667
        %669 = vmatprep.mubr.f32.mxu0 0.0
        %670 = vmatmul.mubr.f32.gmra.mrb[0].mxu0 %v443
        %v671 = vpop.f32.mrb[0].mxu0
        %v672 = vadd.f32 0.0, %v671
        %v673 = vpop.f32.mrb[0].mxu0
        %v674 = vadd.f32 0.0, %v673
        %675 = vmatprep.mubr.f32.mxu0 0.0
        %676 = vmatmul.mubr.f32.gmra.mrb[0].mxu0 %v446
        %v677 = vpop.f32.mrb[0].mxu0
        %v678 = vadd.f32 0.0, %v677
        %v679 = vpop.f32.mrb[0].mxu0
        %v680 = vadd.f32 0.0, %v679
        %681 = vmatprep.mubr.f32.mxu0 0.0
        %682 = vmatmul.mubr.f32.gmra.mrb[0].mxu0 %v449
        %v683 = vpop.f32.mrb[0].mxu0
        %v684 = vadd.f32 0.0, %v683
        %v685 = vpop.f32.mrb[0].mxu0
        %v686 = vadd.f32 0.0, %v685
        %687 = vmatprep.mubr.f32.mxu0 0.0
        %688 = vmatmul.mubr.f32.gmra.mrb[0].mxu0 %v452
        %v689 = vpop.f32.mrb[0].mxu0
        %v690 = vadd.f32 0.0, %v689
        %v691 = vpop.f32.mrb[0].mxu0
        %v692 = vadd.f32 0.0, %v691
        %693 = vmatprep.mubr.f32.mxu0 0.0
        %694 = vmatmul.mubr.f32.gmra.mrb[0].mxu0 %v455
        %v695 = vpop.f32.mrb[0].mxu0
        %v696 = vadd.f32 0.0, %v695
        %v697 = vpop.f32.mrb[0].mxu0
        %v698 = vadd.f32 0.0, %v697
        %699 = vmatprep.mubr.f32.mxu0 0.0
        %700 = vmatmul.mubr.f32.gmra.mrb[0].mxu0 %v458
        %v701 = vpop.f32.mrb[0].mxu0
        %v702 = vadd.f32 0.0, %v701
        %v703 = vpop.f32.mrb[0].mxu0
        %v704 = vadd.f32 0.0, %v703
        %705 = vmatprep.mubr.f32.mxu0 0.0
        %706 = vmatmul.mubr.f32.gmra.mrb[0].mxu0 %v461
        %v707 = vpop.f32.mrb[0].mxu0
        %v708 = vadd.f32 0.0, %v707
        %v709 = vpop.f32.mrb[0].mxu0
        %v710 = vadd.f32 0.0, %v709
        %711 = vmatprep.mubr.f32.mxu0 0.0
        %712 = vmatmul.mubr.f32.gmra.mrb[0].mxu0 %v464
        %v713 = vpop.f32.mrb[0].mxu0
        %v714 = vadd.f32 0.0, %v713
        %v715 = vpop.f32.mrb[0].mxu0
        %v716 = vadd.f32 0.0, %v715
        %717 = vmatprep.mubr.f32.mxu0 0.0
        %718 = vmatmul.mubr.f32.gmra.mrb[0].mxu0 %v467
        %v719 = vpop.f32.mrb[0].mxu0
        %v720 = vadd.f32 0.0, %v719
        %v721 = vpop.f32.mrb[0].mxu0
        %v722 = vadd.f32 0.0, %v721
        %723 = vmatprep.mubr.f32.mxu0 0.0
        %724 = vmatmul.mubr.f32.gmra.mrb[0].mxu0 %v470
        %v725 = vpop.f32.mrb[0].mxu0
        %v726 = vadd.f32 0.0, %v725
        %v727 = vpop.f32.mrb[0].mxu0
        %v728 = vadd.f32 0.0, %v727
        %729 = vmatprep.mubr.f32.mxu0 0.0
        %730 = vmatmul.mubr.f32.gmra.mrb[0].mxu0 %v473
        %v731 = vpop.f32.mrb[0].mxu0
        %v732 = vadd.f32 0.0, %v731
        %v733 = vpop.f32.mrb[0].mxu0
        %v734 = vadd.f32 0.0, %v733
        %735 = vmatprep.mubr.f32.mxu0 0.0
        %736 = vmatmul.mubr.f32.gmra.mrb[0].mxu0 %v476
        %v737 = vpop.f32.mrb[0].mxu0
        %v738 = vadd.f32 0.0, %v737
        %v739 = vpop.f32.mrb[0].mxu0
        %v740 = vadd.f32 0.0, %v739
        %741 = vmatprep.mubr.f32.mxu0 0.0
        %742 = vmatmul.mubr.f32.gmra.mrb[0].mxu0 %v479
        %v743 = vpop.f32.mrb[0].mxu0
        %v744 = vadd.f32 0.0, %v743
        %v745 = vpop.f32.mrb[0].mxu0
        %v746 = vadd.f32 0.0, %v745
        %747 = vmatprep.mubr.f32.mxu0 0.0
        %748 = vmatmul.mubr.f32.gmra.mrb[0].mxu0 %v482
        %v749 = vpop.f32.mrb[0].mxu0
        %v750 = vadd.f32 0.0, %v749
        %v751 = vpop.f32.mrb[0].mxu0
        %v752 = vadd.f32 0.0, %v751
        %753 = vdwg.mxu0
        %754 = vmatprep.subr.mxu0 %v374
        %755 = vmatpush1.msra.mxu0 %v373
        %756 = vmatprep.subr.mxu0 %v378
        %757 = vmatpush1.msra.mxu0 %v377
        %758 = vmatprep.subr.mxu0 %v382
        %759 = vmatpush1.msra.mxu0 %v381
        %760 = vmatprep.subr.mxu0 %v495
        %761 = vmatpush1.msra.mxu0 %v492
        %762 = vmatprep.subr.mxu0 0.0
        %763 = vmatpush1.msra.mxu0 0.0
        %764 = vmatprep.subr.mxu0 0.0
        %765 = vmatpush1.msra.mxu0 0.0
        %766 = vmatprep.subr.mxu0 0.0
        %767 = vmatpush1.msra.mxu0 0.0
        %768 = vmatprep.subr.mxu0 0.0
        %769 = vmatpush1.msra.mxu0 0.0
        %770 = vmatprep.subr.mxu0 0.0
        %771 = vmatpush1.msra.mxu0 0.0
        %772 = vmatprep.subr.mxu0 0.0
        %773 = vmatpush1.msra.mxu0 0.0
        %774 = vmatprep.subr.mxu0 0.0
        %775 = vmatpush1.msra.mxu0 0.0
        %776 = vmatprep.subr.mxu0 0.0
        %777 = vmatpush1.msra.mxu0 0.0
        %778 = vmatprep.subr.mxu0 0.0
        %779 = vmatpush1.msra.mxu0 0.0
        %780 = vmatprep.subr.mxu0 0.0
        %781 = vmatpush1.msra.mxu0 0.0
        %782 = vmatprep.subr.mxu0 0.0
        %783 = vmatpush1.msra.mxu0 0.0
        %784 = vmatprep.subr.mxu0 0.0
        %785 = vmatpush1.msra.mxu0 0.0
        %786 = vmatprep.subr.mxu0 0.0
        %787 = vmatpush1.msra.mxu0 0.0
        %788 = vmatprep.subr.mxu0 0.0
        %789 = vmatpush1.msra.mxu0 0.0
        %790 = vmatprep.subr.mxu0 0.0
        %791 = vmatpush1.msra.mxu0 0.0
        %792 = vmatprep.subr.mxu0 0.0
        %793 = vmatpush1.msra.mxu0 0.0
        %794 = vmatprep.subr.mxu0 0.0
        %795 = vmatpush1.msra.mxu0 0.0
        %796 = vmatprep.subr.mxu0 0.0
        %797 = vmatpush1.msra.mxu0 0.0
        %798 = vmatprep.subr.mxu0 0.0
        %799 = vmatpush1.msra.mxu0 0.0
        %800 = vmatprep.subr.mxu0 0.0
        %801 = vmatpush1.msra.mxu0 0.0
        %802 = vmatprep.subr.mxu0 0.0
        %803 = vmatpush1.msra.mxu0 0.0
        %804 = vmatprep.subr.mxu0 0.0
        %805 = vmatpush1.msra.mxu0 0.0
        %806 = vmatprep.subr.mxu0 0.0
        %807 = vmatpush1.msra.mxu0 0.0
        %808 = vmatprep.subr.mxu0 0.0
        %809 = vmatpush1.msra.mxu0 0.0
        %810 = vmatprep.subr.mxu0 0.0
        %811 = vmatpush1.msra.mxu0 0.0
        %812 = vmatprep.subr.mxu0 0.0
        %813 = vmatpush1.msra.mxu0 0.0
        %814 = vmatprep.subr.mxu0 0.0
        %815 = vmatpush1.msra.mxu0 0.0
        %816 = vmatprep.subr.mxu0 0.0
        %817 = vmatpush1.msra.mxu0 0.0
        %818 = vmatprep.mubr.f32.mxu0 0.0
        %819 = vmatmul.mubr.f32.gmra.mrb[0].mxu0 %v389
        %v820 = vpop.f32.mrb[0].mxu0
        %v821 = vadd.f32 0.0, %v820
        %v822 = vpop.f32.mrb[0].mxu0
        %v823 = vadd.f32 0.0, %v822
        %824 = vmatprep.mubr.f32.mxu0 0.0
        %825 = vmatmul.mubr.f32.gmra.mrb[0].mxu0 %v392
        %v826 = vpop.f32.mrb[0].mxu0
        %v827 = vadd.f32 0.0, %v826
        %v828 = vpop.f32.mrb[0].mxu0
        %v829 = vadd.f32 0.0, %v828
        %830 = vmatprep.mubr.f32.mxu0 0.0
        %831 = vmatmul.mubr.f32.gmra.mrb[0].mxu0 %v395
        %v832 = vpop.f32.mrb[0].mxu0
        %v833 = vadd.f32 0.0, %v832
        %v834 = vpop.f32.mrb[0].mxu0
        %v835 = vadd.f32 0.0, %v834
        %836 = vmatprep.mubr.f32.mxu0 0.0
        %837 = vmatmul.mubr.f32.gmra.mrb[0].mxu0 %v398
        %v838 = vpop.f32.mrb[0].mxu0
        %v839 = vadd.f32 0.0, %v838
        %v840 = vpop.f32.mrb[0].mxu0
        %v841 = vadd.f32 0.0, %v840
        %842 = vmatprep.mubr.f32.mxu0 0.0
        %843 = vmatmul.mubr.f32.gmra.mrb[0].mxu0 %v401
        %v844 = vpop.f32.mrb[0].mxu0
        %v845 = vadd.f32 0.0, %v844
        %v846 = vpop.f32.mrb[0].mxu0
        %v847 = vadd.f32 0.0, %v846
        %848 = vmatprep.mubr.f32.mxu0 0.0
        %849 = vmatmul.mubr.f32.gmra.mrb[0].mxu0 %v404
        %v850 = vpop.f32.mrb[0].mxu0
        %v851 = vadd.f32 0.0, %v850
        %v852 = vpop.f32.mrb[0].mxu0
        %v853 = vadd.f32 0.0, %v852
        %854 = vmatprep.mubr.f32.mxu0 0.0
        %855 = vmatmul.mubr.f32.gmra.mrb[0].mxu0 %v407
        %v856 = vpop.f32.mrb[0].mxu0
        %v857 = vadd.f32 0.0, %v856
        %v858 = vpop.f32.mrb[0].mxu0
        %v859 = vadd.f32 0.0, %v858
        %860 = vmatprep.mubr.f32.mxu0 0.0
        %861 = vmatmul.mubr.f32.gmra.mrb[0].mxu0 %v410
        %v862 = vpop.f32.mrb[0].mxu0
        %v863 = vadd.f32 0.0, %v862
        %v864 = vpop.f32.mrb[0].mxu0
        %v865 = vadd.f32 0.0, %v864
        %866 = vmatprep.mubr.f32.mxu0 0.0
        %867 = vmatmul.mubr.f32.gmra.mrb[0].mxu0 %v413
        %v868 = vpop.f32.mrb[0].mxu0
        %v869 = vadd.f32 0.0, %v868
        %v870 = vpop.f32.mrb[0].mxu0
        %v871 = vadd.f32 0.0, %v870
        %872 = vmatprep.mubr.f32.mxu0 0.0
        %873 = vmatmul.mubr.f32.gmra.mrb[0].mxu0 %v416
        %v874 = vpop.f32.mrb[0].mxu0
        %v875 = vadd.f32 0.0, %v874
        %v876 = vpop.f32.mrb[0].mxu0
        %v877 = vadd.f32 0.0, %v876
        %878 = vmatprep.mubr.f32.mxu0 0.0
        %879 = vmatmul.mubr.f32.gmra.mrb[0].mxu0 %v419
        %v880 = vpop.f32.mrb[0].mxu0
        %v881 = vadd.f32 0.0, %v880
        %v882 = vpop.f32.mrb[0].mxu0
        %v883 = vadd.f32 0.0, %v882
        %884 = vmatprep.mubr.f32.mxu0 0.0
        %885 = vmatmul.mubr.f32.gmra.mrb[0].mxu0 %v422
        %v886 = vpop.f32.mrb[0].mxu0
        %v887 = vadd.f32 0.0, %v886
        %v888 = vpop.f32.mrb[0].mxu0
        %v889 = vadd.f32 0.0, %v888
        %890 = vmatprep.mubr.f32.mxu0 0.0
        %891 = vmatmul.mubr.f32.gmra.mrb[0].mxu0 %v425
        %v892 = vpop.f32.mrb[0].mxu0
        %v893 = vadd.f32 0.0, %v892
        %v894 = vpop.f32.mrb[0].mxu0
        %v895 = vadd.f32 0.0, %v894
        %896 = vmatprep.mubr.f32.mxu0 0.0
        %897 = vmatmul.mubr.f32.gmra.mrb[0].mxu0 %v428
        %v898 = vpop.f32.mrb[0].mxu0
        %v899 = vadd.f32 0.0, %v898
        %v900 = vpop.f32.mrb[0].mxu0
        %v901 = vadd.f32 0.0, %v900
        %902 = vmatprep.mubr.f32.mxu0 0.0
        %903 = vmatmul.mubr.f32.gmra.mrb[0].mxu0 %v431
        %v904 = vpop.f32.mrb[0].mxu0
        %v905 = vadd.f32 0.0, %v904
        %v906 = vpop.f32.mrb[0].mxu0
        %v907 = vadd.f32 0.0, %v906
        %908 = vmatprep.mubr.f32.mxu0 0.0
        %909 = vmatmul.mubr.f32.gmra.mrb[0].mxu0 %v434
        %v910 = vpop.f32.mrb[0].mxu0
        %v911 = vadd.f32 0.0, %v910
        %v912 = vpop.f32.mrb[0].mxu0
        %v913 = vadd.f32 0.0, %v912
        %914 = vmatprep.mubr.f32.mxu0 0.0
        %915 = vmatmul.mubr.f32.gmra.mrb[0].mxu0 %v437
        %v916 = vpop.f32.mrb[0].mxu0
        %v917 = vadd.f32 0.0, %v916
        %v918 = vpop.f32.mrb[0].mxu0
        %v919 = vadd.f32 0.0, %v918
        %920 = vmatprep.mubr.f32.mxu0 0.0
        %921 = vmatmul.mubr.f32.gmra.mrb[0].mxu0 %v440
        %v922 = vpop.f32.mrb[0].mxu0
        %v923 = vadd.f32 0.0, %v922
        %v924 = vpop.f32.mrb[0].mxu0
        %v925 = vadd.f32 0.0, %v924
        %926 = vmatprep.mubr.f32.mxu0 0.0
        %927 = vmatmul.mubr.f32.gmra.mrb[0].mxu0 %v443
        %v928 = vpop.f32.mrb[0].mxu0
        %v929 = vadd.f32 0.0, %v928
        %v930 = vpop.f32.mrb[0].mxu0
        %v931 = vadd.f32 0.0, %v930
        %932 = vmatprep.mubr.f32.mxu0 0.0
        %933 = vmatmul.mubr.f32.gmra.mrb[0].mxu0 %v446
        %v934 = vpop.f32.mrb[0].mxu0
        %v935 = vadd.f32 0.0, %v934
        %v936 = vpop.f32.mrb[0].mxu0
        %v937 = vadd.f32 0.0, %v936
        %938 = vmatprep.mubr.f32.mxu0 0.0
        %939 = vmatmul.mubr.f32.gmra.mrb[0].mxu0 %v449
        %v940 = vpop.f32.mrb[0].mxu0
        %v941 = vadd.f32 0.0, %v940
        %v942 = vpop.f32.mrb[0].mxu0
        %v943 = vadd.f32 0.0, %v942
        %944 = vmatprep.mubr.f32.mxu0 0.0
        %945 = vmatmul.mubr.f32.gmra.mrb[0].mxu0 %v452
        %v946 = vpop.f32.mrb[0].mxu0
        %v947 = vadd.f32 0.0, %v946
        %v948 = vpop.f32.mrb[0].mxu0
        %v949 = vadd.f32 0.0, %v948
        %950 = vmatprep.mubr.f32.mxu0 0.0
        %951 = vmatmul.mubr.f32.gmra.mrb[0].mxu0 %v455
        %v952 = vpop.f32.mrb[0].mxu0
        %v953 = vadd.f32 0.0, %v952
        %v954 = vpop.f32.mrb[0].mxu0
        %v955 = vadd.f32 0.0, %v954
        %956 = vmatprep.mubr.f32.mxu0 0.0
        %957 = vmatmul.mubr.f32.gmra.mrb[0].mxu0 %v458
        %v958 = vpop.f32.mrb[0].mxu0
        %v959 = vadd.f32 0.0, %v958
        %v960 = vpop.f32.mrb[0].mxu0
        %v961 = vadd.f32 0.0, %v960
        %962 = vmatprep.mubr.f32.mxu0 0.0
        %963 = vmatmul.mubr.f32.gmra.mrb[0].mxu0 %v461
        %v964 = vpop.f32.mrb[0].mxu0
        %v965 = vadd.f32 0.0, %v964
        %v966 = vpop.f32.mrb[0].mxu0
        %v967 = vadd.f32 0.0, %v966
        %968 = vmatprep.mubr.f32.mxu0 0.0
        %969 = vmatmul.mubr.f32.gmra.mrb[0].mxu0 %v464
        %v970 = vpop.f32.mrb[0].mxu0
        %v971 = vadd.f32 0.0, %v970
        %v972 = vpop.f32.mrb[0].mxu0
        %v973 = vadd.f32 0.0, %v972
        %974 = vmatprep.mubr.f32.mxu0 0.0
        %975 = vmatmul.mubr.f32.gmra.mrb[0].mxu0 %v467
        %v976 = vpop.f32.mrb[0].mxu0
        %v977 = vadd.f32 0.0, %v976
        %v978 = vpop.f32.mrb[0].mxu0
        %v979 = vadd.f32 0.0, %v978
        %980 = vmatprep.mubr.f32.mxu0 0.0
        %981 = vmatmul.mubr.f32.gmra.mrb[0].mxu0 %v470
        %v982 = vpop.f32.mrb[0].mxu0
        %v983 = vadd.f32 0.0, %v982
        %v984 = vpop.f32.mrb[0].mxu0
        %v985 = vadd.f32 0.0, %v984
        %986 = vmatprep.mubr.f32.mxu0 0.0
        %987 = vmatmul.mubr.f32.gmra.mrb[0].mxu0 %v473
        %v988 = vpop.f32.mrb[0].mxu0
        %v989 = vadd.f32 0.0, %v988
        %v990 = vpop.f32.mrb[0].mxu0
        %v991 = vadd.f32 0.0, %v990
        %992 = vmatprep.mubr.f32.mxu0 0.0
        %993 = vmatmul.mubr.f32.gmra.mrb[0].mxu0 %v476
        %v994 = vpop.f32.mrb[0].mxu0
        %v995 = vadd.f32 0.0, %v994
        %v996 = vpop.f32.mrb[0].mxu0
        %v997 = vadd.f32 0.0, %v996
        %998 = vmatprep.mubr.f32.mxu0 0.0
        %999 = vmatmul.mubr.f32.gmra.mrb[0].mxu0 %v479
        %v1000 = vpop.f32.mrb[0].mxu0
        %v1001 = vadd.f32 0.0, %v1000
        %v1002 = vpop.f32.mrb[0].mxu0
        %v1003 = vadd.f32 0.0, %v1002
        %1004 = vmatprep.mubr.f32.mxu0 0.0
        %1005 = vmatmul.mubr.f32.gmra.mrb[0].mxu0 %v482
        %v1006 = vpop.f32.mrb[0].mxu0
        %v1007 = vadd.f32 0.0, %v1006
        %v1008 = vpop.f32.mrb[0].mxu0
        %v1009 = vadd.f32 0.0, %v1008
        %1010 = vdwg.mxu0
        %v1012 = vlaneseq
        %v1013 = vshrl.u32 %v1012, 7
        %v1014 = vsub.s32 0, %v1013
        %v1015 = vrot.slane %v358, %v1014
        %v1016 = vlaneseq
        %v1017 = vshrl.u32 %v1016, 7
        %v1018 = vsub.s32 1, %v1017
        %v1019 = vrot.slane %v358, %v1018
        %v1020 = vlaneseq
        %v1021 = vshrl.u32 %v1020, 7
        %v1022 = vsub.s32 2, %v1021
        %v1023 = vrot.slane %v358, %v1022
        %v1024 = vlaneseq
        %v1025 = vshrl.u32 %v1024, 7
        %v1026 = vsub.s32 3, %v1025
        %v1027 = vrot.slane %v358, %v1026
        %v1032 = vmul.f32 %v564, %v1015
        %v1033 = vmul.f32 %v566, %v1019
        %v1034 = vmul.f32 %v821, %v1023
        %v1035 = vmul.f32 %v823, %v1027
        %v1036 = vmul.f32 %v570, %v1015
        %v1037 = vmul.f32 %v572, %v1019
        %v1038 = vmul.f32 %v827, %v1023
        %v1039 = vmul.f32 %v829, %v1027
        %v1040 = vmul.f32 %v576, %v1015
        %v1041 = vmul.f32 %v578, %v1019
        %v1042 = vmul.f32 %v833, %v1023
        %v1043 = vmul.f32 %v835, %v1027
        %v1044 = vmul.f32 %v582, %v1015
        %v1045 = vmul.f32 %v584, %v1019
        %v1046 = vmul.f32 %v839, %v1023
        %v1047 = vmul.f32 %v841, %v1027
        %v1048 = vmul.f32 %v588, %v1015
        %v1049 = vmul.f32 %v590, %v1019
        %v1050 = vmul.f32 %v845, %v1023
        %v1051 = vmul.f32 %v847, %v1027
        %v1052 = vmul.f32 %v594, %v1015
        %v1053 = vmul.f32 %v596, %v1019
        %v1054 = vmul.f32 %v851, %v1023
        %v1055 = vmul.f32 %v853, %v1027
        %v1056 = vmul.f32 %v600, %v1015
        %v1057 = vmul.f32 %v602, %v1019
        %v1058 = vmul.f32 %v857, %v1023
        %v1059 = vmul.f32 %v859, %v1027
        %v1060 = vmul.f32 %v606, %v1015
        %v1061 = vmul.f32 %v608, %v1019
        %v1062 = vmul.f32 %v863, %v1023
        %v1063 = vmul.f32 %v865, %v1027
        %v1064 = vmul.f32 %v612, %v1015
        %v1065 = vmul.f32 %v614, %v1019
        %v1066 = vmul.f32 %v869, %v1023
        %v1067 = vmul.f32 %v871, %v1027
        %v1068 = vmul.f32 %v618, %v1015
        %v1069 = vmul.f32 %v620, %v1019
        %v1070 = vmul.f32 %v875, %v1023
        %v1071 = vmul.f32 %v877, %v1027
        %v1072 = vmul.f32 %v624, %v1015
        %v1073 = vmul.f32 %v626, %v1019
        %v1074 = vmul.f32 %v881, %v1023
        %v1075 = vmul.f32 %v883, %v1027
        %v1076 = vmul.f32 %v630, %v1015
        %v1077 = vmul.f32 %v632, %v1019
        %v1078 = vmul.f32 %v887, %v1023
        %v1079 = vmul.f32 %v889, %v1027
        %v1080 = vmul.f32 %v636, %v1015
        %v1081 = vmul.f32 %v638, %v1019
        %v1082 = vmul.f32 %v893, %v1023
        %v1083 = vmul.f32 %v895, %v1027
        %v1084 = vmul.f32 %v642, %v1015
        %v1085 = vmul.f32 %v644, %v1019
        %v1086 = vmul.f32 %v899, %v1023
        %v1087 = vmul.f32 %v901, %v1027
        %v1088 = vmul.f32 %v648, %v1015
        %v1089 = vmul.f32 %v650, %v1019
        %v1090 = vmul.f32 %v905, %v1023
        %v1091 = vmul.f32 %v907, %v1027
        %v1092 = vmul.f32 %v654, %v1015
        %v1093 = vmul.f32 %v656, %v1019
        %v1094 = vmul.f32 %v911, %v1023
        %v1095 = vmul.f32 %v913, %v1027
        %v1096 = vmul.f32 %v660, %v1015
        %v1097 = vmul.f32 %v662, %v1019
        %v1098 = vmul.f32 %v917, %v1023
        %v1099 = vmul.f32 %v919, %v1027
        %v1100 = vmul.f32 %v666, %v1015
        %v1101 = vmul.f32 %v668, %v1019
        %v1102 = vmul.f32 %v923, %v1023
        %v1103 = vmul.f32 %v925, %v1027
        %v1104 = vmul.f32 %v672, %v1015
        %v1105 = vmul.f32 %v674, %v1019
        %v1106 = vmul.f32 %v929, %v1023
        %v1107 = vmul.f32 %v931, %v1027
        %v1108 = vmul.f32 %v678, %v1015
        %v1109 = vmul.f32 %v680, %v1019
        %v1110 = vmul.f32 %v935, %v1023
        %v1111 = vmul.f32 %v937, %v1027
        %v1112 = vmul.f32 %v684, %v1015
        %v1113 = vmul.f32 %v686, %v1019
        %v1114 = vmul.f32 %v941, %v1023
        %v1115 = vmul.f32 %v943, %v1027
        %v1116 = vmul.f32 %v690, %v1015
        %v1117 = vmul.f32 %v692, %v1019
        %v1118 = vmul.f32 %v947, %v1023
        %v1119 = vmul.f32 %v949, %v1027
        %v1120 = vmul.f32 %v696, %v1015
        %v1121 = vmul.f32 %v698, %v1019
        %v1122 = vmul.f32 %v953, %v1023
        %v1123 = vmul.f32 %v955, %v1027
        %v1124 = vmul.f32 %v702, %v1015
        %v1125 = vmul.f32 %v704, %v1019
        %v1126 = vmul.f32 %v959, %v1023
        %v1127 = vmul.f32 %v961, %v1027
        %v1128 = vmul.f32 %v708, %v1015
        %v1129 = vmul.f32 %v710, %v1019
        %v1130 = vmul.f32 %v965, %v1023
        %v1131 = vmul.f32 %v967, %v1027
        %v1132 = vmul.f32 %v714, %v1015
        %v1133 = vmul.f32 %v716, %v1019
        %v1134 = vmul.f32 %v971, %v1023
        %v1135 = vmul.f32 %v973, %v1027
        %v1136 = vmul.f32 %v720, %v1015
        %v1137 = vmul.f32 %v722, %v1019
        %v1138 = vmul.f32 %v977, %v1023
        %v1139 = vmul.f32 %v979, %v1027
        %v1140 = vmul.f32 %v726, %v1015
        %v1141 = vmul.f32 %v728, %v1019
        %v1142 = vmul.f32 %v983, %v1023
        %v1143 = vmul.f32 %v985, %v1027
        %v1144 = vmul.f32 %v732, %v1015
        %v1145 = vmul.f32 %v734, %v1019
        %v1146 = vmul.f32 %v989, %v1023
        %v1147 = vmul.f32 %v991, %v1027
        %v1148 = vmul.f32 %v738, %v1015
        %v1149 = vmul.f32 %v740, %v1019
        %v1150 = vmul.f32 %v995, %v1023
        %v1151 = vmul.f32 %v997, %v1027
        %v1152 = vmul.f32 %v744, %v1015
        %v1153 = vmul.f32 %v746, %v1019
        %v1154 = vmul.f32 %v1001, %v1023
        %v1155 = vmul.f32 %v1003, %v1027
        %v1156 = vmul.f32 %v750, %v1015
        %v1157 = vmul.f32 %v752, %v1019
        %v1158 = vmul.f32 %v1007, %v1023
        %v1159 = vmul.f32 %v1009, %v1027
        %v1161 = vlaneseq
        %v1162 = vshrl.u32 %v1161, 7
        %v1163 = vsub.s32 0, %v1162
        %v1164 = vrot.slane %v360, %v1163
        %v1165 = vlaneseq
        %v1166 = vshrl.u32 %v1165, 7
        %v1167 = vsub.s32 1, %v1166
        %v1168 = vrot.slane %v360, %v1167
        %v1169 = vlaneseq
        %v1170 = vshrl.u32 %v1169, 7
        %v1171 = vsub.s32 2, %v1170
        %v1172 = vrot.slane %v360, %v1171
        %v1173 = vlaneseq
        %v1174 = vshrl.u32 %v1173, 7
        %v1175 = vsub.s32 3, %v1174
        %v1176 = vrot.slane %v360, %v1175
        %v1181 = vadd.f32 %v1032, %v1164
        %v1182 = vadd.f32 %v1033, %v1168
        %v1183 = vadd.f32 %v1034, %v1172
        %v1184 = vadd.f32 %v1035, %v1176
        %v1185 = vadd.f32 %v1036, %v1164
        %v1186 = vadd.f32 %v1037, %v1168
        %v1187 = vadd.f32 %v1038, %v1172
        %v1188 = vadd.f32 %v1039, %v1176
        %v1189 = vadd.f32 %v1040, %v1164
        %v1190 = vadd.f32 %v1041, %v1168
        %v1191 = vadd.f32 %v1042, %v1172
        %v1192 = vadd.f32 %v1043, %v1176
        %v1193 = vadd.f32 %v1044, %v1164
        %v1194 = vadd.f32 %v1045, %v1168
        %v1195 = vadd.f32 %v1046, %v1172
        %v1196 = vadd.f32 %v1047, %v1176
        %v1197 = vadd.f32 %v1048, %v1164
        %v1198 = vadd.f32 %v1049, %v1168
        %v1199 = vadd.f32 %v1050, %v1172
        %v1200 = vadd.f32 %v1051, %v1176
        %v1201 = vadd.f32 %v1052, %v1164
        %v1202 = vadd.f32 %v1053, %v1168
        %v1203 = vadd.f32 %v1054, %v1172
        %v1204 = vadd.f32 %v1055, %v1176
        %v1205 = vadd.f32 %v1056, %v1164
        %v1206 = vadd.f32 %v1057, %v1168
        %v1207 = vadd.f32 %v1058, %v1172
        %v1208 = vadd.f32 %v1059, %v1176
        %v1209 = vadd.f32 %v1060, %v1164
        %v1210 = vadd.f32 %v1061, %v1168
        %v1211 = vadd.f32 %v1062, %v1172
        %v1212 = vadd.f32 %v1063, %v1176
        %v1213 = vadd.f32 %v1064, %v1164
        %v1214 = vadd.f32 %v1065, %v1168
        %v1215 = vadd.f32 %v1066, %v1172
        %v1216 = vadd.f32 %v1067, %v1176
        %v1217 = vadd.f32 %v1068, %v1164
        %v1218 = vadd.f32 %v1069, %v1168
        %v1219 = vadd.f32 %v1070, %v1172
        %v1220 = vadd.f32 %v1071, %v1176
        %v1221 = vadd.f32 %v1072, %v1164
        %v1222 = vadd.f32 %v1073, %v1168
        %v1223 = vadd.f32 %v1074, %v1172
        %v1224 = vadd.f32 %v1075, %v1176
        %v1225 = vadd.f32 %v1076, %v1164
        %v1226 = vadd.f32 %v1077, %v1168
        %v1227 = vadd.f32 %v1078, %v1172
        %v1228 = vadd.f32 %v1079, %v1176
        %v1229 = vadd.f32 %v1080, %v1164
        %v1230 = vadd.f32 %v1081, %v1168
        %v1231 = vadd.f32 %v1082, %v1172
        %v1232 = vadd.f32 %v1083, %v1176
        %v1233 = vadd.f32 %v1084, %v1164
        %v1234 = vadd.f32 %v1085, %v1168
        %v1235 = vadd.f32 %v1086, %v1172
        %v1236 = vadd.f32 %v1087, %v1176
        %v1237 = vadd.f32 %v1088, %v1164
        %v1238 = vadd.f32 %v1089, %v1168
        %v1239 = vadd.f32 %v1090, %v1172
        %v1240 = vadd.f32 %v1091, %v1176
        %v1241 = vadd.f32 %v1092, %v1164
        %v1242 = vadd.f32 %v1093, %v1168
        %v1243 = vadd.f32 %v1094, %v1172
        %v1244 = vadd.f32 %v1095, %v1176
        %v1245 = vadd.f32 %v1096, %v1164
        %v1246 = vadd.f32 %v1097, %v1168
        %v1247 = vadd.f32 %v1098, %v1172
        %v1248 = vadd.f32 %v1099, %v1176
        %v1249 = vadd.f32 %v1100, %v1164
        %v1250 = vadd.f32 %v1101, %v1168
        %v1251 = vadd.f32 %v1102, %v1172
        %v1252 = vadd.f32 %v1103, %v1176
        %v1253 = vadd.f32 %v1104, %v1164
        %v1254 = vadd.f32 %v1105, %v1168
        %v1255 = vadd.f32 %v1106, %v1172
        %v1256 = vadd.f32 %v1107, %v1176
        %v1257 = vadd.f32 %v1108, %v1164
        %v1258 = vadd.f32 %v1109, %v1168
        %v1259 = vadd.f32 %v1110, %v1172
        %v1260 = vadd.f32 %v1111, %v1176
        %v1261 = vadd.f32 %v1112, %v1164
        %v1262 = vadd.f32 %v1113, %v1168
        %v1263 = vadd.f32 %v1114, %v1172
        %v1264 = vadd.f32 %v1115, %v1176
        %v1265 = vadd.f32 %v1116, %v1164
        %v1266 = vadd.f32 %v1117, %v1168
        %v1267 = vadd.f32 %v1118, %v1172
        %v1268 = vadd.f32 %v1119, %v1176
        %v1269 = vadd.f32 %v1120, %v1164
        %v1270 = vadd.f32 %v1121, %v1168
        %v1271 = vadd.f32 %v1122, %v1172
        %v1272 = vadd.f32 %v1123, %v1176
        %v1273 = vadd.f32 %v1124, %v1164
        %v1274 = vadd.f32 %v1125, %v1168
        %v1275 = vadd.f32 %v1126, %v1172
        %v1276 = vadd.f32 %v1127, %v1176
        %v1277 = vadd.f32 %v1128, %v1164
        %v1278 = vadd.f32 %v1129, %v1168
        %v1279 = vadd.f32 %v1130, %v1172
        %v1280 = vadd.f32 %v1131, %v1176
        %v1281 = vadd.f32 %v1132, %v1164
        %v1282 = vadd.f32 %v1133, %v1168
        %v1283 = vadd.f32 %v1134, %v1172
        %v1284 = vadd.f32 %v1135, %v1176
        %v1285 = vadd.f32 %v1136, %v1164
        %v1286 = vadd.f32 %v1137, %v1168
        %v1287 = vadd.f32 %v1138, %v1172
        %v1288 = vadd.f32 %v1139, %v1176
        %v1289 = vadd.f32 %v1140, %v1164
        %v1290 = vadd.f32 %v1141, %v1168
        %v1291 = vadd.f32 %v1142, %v1172
        %v1292 = vadd.f32 %v1143, %v1176
        %v1293 = vadd.f32 %v1144, %v1164
        %v1294 = vadd.f32 %v1145, %v1168
        %v1295 = vadd.f32 %v1146, %v1172
        %v1296 = vadd.f32 %v1147, %v1176
        %v1297 = vadd.f32 %v1148, %v1164
        %v1298 = vadd.f32 %v1149, %v1168
        %v1299 = vadd.f32 %v1150, %v1172
        %v1300 = vadd.f32 %v1151, %v1176
        %v1301 = vadd.f32 %v1152, %v1164
        %v1302 = vadd.f32 %v1153, %v1168
        %v1303 = vadd.f32 %v1154, %v1172
        %v1304 = vadd.f32 %v1155, %v1176
        %v1305 = vadd.f32 %v1156, %v1164
        %v1306 = vadd.f32 %v1157, %v1168
        %v1307 = vadd.f32 %v1158, %v1172
        %v1308 = vadd.f32 %v1159, %v1176
        %v1309 = vmax.f32 %v1181, 0.0
        %v1310 = vmax.f32 %v1182, 0.0
        %v1311 = vmax.f32 %v1183, 0.0
        %v1312 = vmax.f32 %v1184, 0.0
        %v1313 = vmax.f32 %v1185, 0.0
        %v1314 = vmax.f32 %v1186, 0.0
        %v1315 = vmax.f32 %v1187, 0.0
        %v1316 = vmax.f32 %v1188, 0.0
        %v1317 = vmax.f32 %v1189, 0.0
        %v1318 = vmax.f32 %v1190, 0.0
        %v1319 = vmax.f32 %v1191, 0.0
        %v1320 = vmax.f32 %v1192, 0.0
        %v1321 = vmax.f32 %v1193, 0.0
        %v1322 = vmax.f32 %v1194, 0.0
        %v1323 = vmax.f32 %v1195, 0.0
        %v1324 = vmax.f32 %v1196, 0.0
        %v1325 = vmax.f32 %v1197, 0.0
        %v1326 = vmax.f32 %v1198, 0.0
        %v1327 = vmax.f32 %v1199, 0.0
        %v1328 = vmax.f32 %v1200, 0.0
        %v1329 = vmax.f32 %v1201, 0.0
        %v1330 = vmax.f32 %v1202, 0.0
        %v1331 = vmax.f32 %v1203, 0.0
        %v1332 = vmax.f32 %v1204, 0.0
        %v1333 = vmax.f32 %v1205, 0.0
        %v1334 = vmax.f32 %v1206, 0.0
        %v1335 = vmax.f32 %v1207, 0.0
        %v1336 = vmax.f32 %v1208, 0.0
        %v1337 = vmax.f32 %v1209, 0.0
        %v1338 = vmax.f32 %v1210, 0.0
        %v1339 = vmax.f32 %v1211, 0.0
        %v1340 = vmax.f32 %v1212, 0.0
        %v1341 = vmax.f32 %v1213, 0.0
        %v1342 = vmax.f32 %v1214, 0.0
        %v1343 = vmax.f32 %v1215, 0.0
        %v1344 = vmax.f32 %v1216, 0.0
        %v1345 = vmax.f32 %v1217, 0.0
        %v1346 = vmax.f32 %v1218, 0.0
        %v1347 = vmax.f32 %v1219, 0.0
        %v1348 = vmax.f32 %v1220, 0.0
        %v1349 = vmax.f32 %v1221, 0.0
        %v1350 = vmax.f32 %v1222, 0.0
        %v1351 = vmax.f32 %v1223, 0.0
        %v1352 = vmax.f32 %v1224, 0.0
        %v1353 = vmax.f32 %v1225, 0.0
        %v1354 = vmax.f32 %v1226, 0.0
        %v1355 = vmax.f32 %v1227, 0.0
        %v1356 = vmax.f32 %v1228, 0.0
        %v1357 = vmax.f32 %v1229, 0.0
        %v1358 = vmax.f32 %v1230, 0.0
        %v1359 = vmax.f32 %v1231, 0.0
        %v1360 = vmax.f32 %v1232, 0.0
        %v1361 = vmax.f32 %v1233, 0.0
        %v1362 = vmax.f32 %v1234, 0.0
        %v1363 = vmax.f32 %v1235, 0.0
        %v1364 = vmax.f32 %v1236, 0.0
        %v1365 = vmax.f32 %v1237, 0.0
        %v1366 = vmax.f32 %v1238, 0.0
        %v1367 = vmax.f32 %v1239, 0.0
        %v1368 = vmax.f32 %v1240, 0.0
        %v1369 = vmax.f32 %v1241, 0.0
        %v1370 = vmax.f32 %v1242, 0.0
        %v1371 = vmax.f32 %v1243, 0.0
        %v1372 = vmax.f32 %v1244, 0.0
        %v1373 = vmax.f32 %v1245, 0.0
        %v1374 = vmax.f32 %v1246, 0.0
        %v1375 = vmax.f32 %v1247, 0.0
        %v1376 = vmax.f32 %v1248, 0.0
        %v1377 = vmax.f32 %v1249, 0.0
        %v1378 = vmax.f32 %v1250, 0.0
        %v1379 = vmax.f32 %v1251, 0.0
        %v1380 = vmax.f32 %v1252, 0.0
        %v1381 = vmax.f32 %v1253, 0.0
        %v1382 = vmax.f32 %v1254, 0.0
        %v1383 = vmax.f32 %v1255, 0.0
        %v1384 = vmax.f32 %v1256, 0.0
        %v1385 = vmax.f32 %v1257, 0.0
        %v1386 = vmax.f32 %v1258, 0.0
        %v1387 = vmax.f32 %v1259, 0.0
        %v1388 = vmax.f32 %v1260, 0.0
        %v1389 = vmax.f32 %v1261, 0.0
        %v1390 = vmax.f32 %v1262, 0.0
        %v1391 = vmax.f32 %v1263, 0.0
        %v1392 = vmax.f32 %v1264, 0.0
        %v1393 = vmax.f32 %v1265, 0.0
        %v1394 = vmax.f32 %v1266, 0.0
        %v1395 = vmax.f32 %v1267, 0.0
        %v1396 = vmax.f32 %v1268, 0.0
        %v1397 = vmax.f32 %v1269, 0.0
        %v1398 = vmax.f32 %v1270, 0.0
        %v1399 = vmax.f32 %v1271, 0.0
        %v1400 = vmax.f32 %v1272, 0.0
        %v1401 = vmax.f32 %v1273, 0.0
        %v1402 = vmax.f32 %v1274, 0.0
        %v1403 = vmax.f32 %v1275, 0.0
        %v1404 = vmax.f32 %v1276, 0.0
        %v1405 = vmax.f32 %v1277, 0.0
        %v1406 = vmax.f32 %v1278, 0.0
        %v1407 = vmax.f32 %v1279, 0.0
        %v1408 = vmax.f32 %v1280, 0.0
        %v1409 = vmax.f32 %v1281, 0.0
        %v1410 = vmax.f32 %v1282, 0.0
        %v1411 = vmax.f32 %v1283, 0.0
        %v1412 = vmax.f32 %v1284, 0.0
        %v1413 = vmax.f32 %v1285, 0.0
        %v1414 = vmax.f32 %v1286, 0.0
        %v1415 = vmax.f32 %v1287, 0.0
        %v1416 = vmax.f32 %v1288, 0.0
        %v1417 = vmax.f32 %v1289, 0.0
        %v1418 = vmax.f32 %v1290, 0.0
        %v1419 = vmax.f32 %v1291, 0.0
        %v1420 = vmax.f32 %v1292, 0.0
        %v1421 = vmax.f32 %v1293, 0.0
        %v1422 = vmax.f32 %v1294, 0.0
        %v1423 = vmax.f32 %v1295, 0.0
        %v1424 = vmax.f32 %v1296, 0.0
        %v1425 = vmax.f32 %v1297, 0.0
        %v1426 = vmax.f32 %v1298, 0.0
        %v1427 = vmax.f32 %v1299, 0.0
        %v1428 = vmax.f32 %v1300, 0.0
        %v1429 = vmax.f32 %v1301, 0.0
        %v1430 = vmax.f32 %v1302, 0.0
        %v1431 = vmax.f32 %v1303, 0.0
        %v1432 = vmax.f32 %v1304, 0.0
        %v1433 = vmax.f32 %v1305, 0.0
        %v1434 = vmax.f32 %v1306, 0.0
        %v1435 = vmax.f32 %v1307, 0.0
        %v1436 = vmax.f32 %v1308, 0.0
        %v1437 = vld [vmem:[#allocation6] sm:$0xff]
        %v1438 = vld [vmem:[#allocation6 + $0x8] sm:$0xff]
        %v1439 = vld [vmem:[#allocation6 + $0x10] sm:$0xff]
        %v1440 = vld [vmem:[#allocation6 + $0x18] sm:$0xff]
        %v1441 = vld [vmem:[#allocation6 + $0x20] sm:$0xff]
        %v1442 = vld [vmem:[#allocation6 + $0x28] sm:$0xff]
        %v1443 = vld [vmem:[#allocation6 + $0x30] sm:$0xff]
        %v1444 = vld [vmem:[#allocation6 + $0x38] sm:$0xff]
        %v1445 = vld [vmem:[#allocation6 + $0x40] sm:$0xff]
        %v1446 = vld [vmem:[#allocation6 + $0x48] sm:$0xff]
        %v1447 = vld [vmem:[#allocation6 + $0x50] sm:$0xff]
        %v1448 = vld [vmem:[#allocation6 + $0x58] sm:$0xff]
        %v1449 = vld [vmem:[#allocation6 + $0x60] sm:$0xff]
        %v1450 = vld [vmem:[#allocation6 + $0x68] sm:$0xff]
        %v1451 = vld [vmem:[#allocation6 + $0x70] sm:$0xff]
        %v1452 = vld [vmem:[#allocation6 + $0x78] sm:$0xff]
        %v1453 = vld [vmem:[#allocation6 + $0x80] sm:$0xff]
        %v1454 = vld [vmem:[#allocation6 + $0x88] sm:$0xff]
        %v1455 = vld [vmem:[#allocation6 + $0x90] sm:$0xff]
        %v1456 = vld [vmem:[#allocation6 + $0x98] sm:$0xff]
        %v1457 = vld [vmem:[#allocation6 + $0xa0] sm:$0xff]
        %v1458 = vld [vmem:[#allocation6 + $0xa8] sm:$0xff]
        %v1459 = vld [vmem:[#allocation6 + $0xb0] sm:$0xff]
        %v1460 = vld [vmem:[#allocation6 + $0xb8] sm:$0xff]
        %v1461 = vld [vmem:[#allocation6 + $0xc0] sm:$0xff]
        %v1462 = vld [vmem:[#allocation6 + $0xc8] sm:$0xff]
        %v1463 = vld [vmem:[#allocation6 + $0xd0] sm:$0xff]
        %v1464 = vld [vmem:[#allocation6 + $0xd8] sm:$0xff]
        %v1465 = vld [vmem:[#allocation6 + $0xe0] sm:$0xff]
        %v1466 = vld [vmem:[#allocation6 + $0xe8] sm:$0xff]
        %v1467 = vld [vmem:[#allocation6 + $0xf0] sm:$0xff]
        %v1468 = vld [vmem:[#allocation6 + $0xf8] sm:$0xff]
        %v1469 = vld [vmem:[#allocation6 + $0x100] sm:$0xff]
        %v1470 = vld [vmem:[#allocation6 + $0x108] sm:$0xff]
        %v1471 = vld [vmem:[#allocation6 + $0x110] sm:$0xff]
        %v1472 = vld [vmem:[#allocation6 + $0x118] sm:$0xff]
        %v1473 = vld [vmem:[#allocation6 + $0x120] sm:$0xff]
        %v1474 = vld [vmem:[#allocation6 + $0x128] sm:$0xff]
        %v1475 = vld [vmem:[#allocation6 + $0x130] sm:$0xff]
        %v1476 = vld [vmem:[#allocation6 + $0x138] sm:$0xff]
        %v1477 = vld [vmem:[#allocation6 + $0x140] sm:$0xff]
        %v1478 = vld [vmem:[#allocation6 + $0x148] sm:$0xff]
        %v1479 = vld [vmem:[#allocation6 + $0x150] sm:$0xff]
        %v1480 = vld [vmem:[#allocation6 + $0x158] sm:$0xff]
        %v1481 = vld [vmem:[#allocation6 + $0x160] sm:$0xff]
        %v1482 = vld [vmem:[#allocation6 + $0x168] sm:$0xff]
        %v1483 = vld [vmem:[#allocation6 + $0x170] sm:$0xff]
        %v1484 = vld [vmem:[#allocation6 + $0x178] sm:$0xff]
        %v1485 = vld [vmem:[#allocation6 + $0x180] sm:$0xff]
        %v1486 = vld [vmem:[#allocation6 + $0x188] sm:$0xff]
        %v1487 = vld [vmem:[#allocation6 + $0x190] sm:$0xff]
        %v1488 = vld [vmem:[#allocation6 + $0x198] sm:$0xff]
        %v1489 = vld [vmem:[#allocation6 + $0x1a0] sm:$0xff]
        %v1490 = vld [vmem:[#allocation6 + $0x1a8] sm:$0xff]
        %v1491 = vld [vmem:[#allocation6 + $0x1b0] sm:$0xff]
        %v1492 = vld [vmem:[#allocation6 + $0x1b8] sm:$0xff]
        %v1493 = vld [vmem:[#allocation6 + $0x1c0] sm:$0xff]
        %v1494 = vld [vmem:[#allocation6 + $0x1c8] sm:$0xff]
        %v1495 = vld [vmem:[#allocation6 + $0x1d0] sm:$0xff]
        %v1496 = vld [vmem:[#allocation6 + $0x1d8] sm:$0xff]
        %v1497 = vld [vmem:[#allocation6 + $0x1e0] sm:$0xff]
        %v1498 = vld [vmem:[#allocation6 + $0x1e8] sm:$0xff]
        %v1499 = vld [vmem:[#allocation6 + $0x1f0] sm:$0xff]
        %v1500 = vld [vmem:[#allocation6 + $0x1f8] sm:$0xff]
        %v1501 = vld [vmem:[#allocation6 + $0x200] sm:$0xff]
        %v1502 = vld [vmem:[#allocation6 + $0x208] sm:$0xff]
        %v1503 = vld [vmem:[#allocation6 + $0x210] sm:$0xff]
        %v1504 = vld [vmem:[#allocation6 + $0x218] sm:$0xff]
        %v1505 = vld [vmem:[#allocation6 + $0x220] sm:$0xff]
        %v1506 = vld [vmem:[#allocation6 + $0x228] sm:$0xff]
        %v1507 = vld [vmem:[#allocation6 + $0x230] sm:$0xff]
        %v1508 = vld [vmem:[#allocation6 + $0x238] sm:$0xff]
        %v1509 = vld [vmem:[#allocation6 + $0x240] sm:$0xff]
        %v1510 = vld [vmem:[#allocation6 + $0x248] sm:$0xff]
        %v1511 = vld [vmem:[#allocation6 + $0x250] sm:$0xff]
        %v1512 = vld [vmem:[#allocation6 + $0x258] sm:$0xff]
        %v1513 = vld [vmem:[#allocation6 + $0x260] sm:$0xff]
        %v1514 = vld [vmem:[#allocation6 + $0x268] sm:$0xff]
        %v1515 = vld [vmem:[#allocation6 + $0x270] sm:$0xff]
        %v1516 = vld [vmem:[#allocation6 + $0x278] sm:$0xff]
        %v1517 = vld [vmem:[#allocation6 + $0x280] sm:$0xff]
        %v1518 = vld [vmem:[#allocation6 + $0x288] sm:$0xff]
        %v1519 = vld [vmem:[#allocation6 + $0x290] sm:$0xff]
        %v1520 = vld [vmem:[#allocation6 + $0x298] sm:$0xff]
        %v1521 = vld [vmem:[#allocation6 + $0x2a0] sm:$0xff]
        %v1522 = vld [vmem:[#allocation6 + $0x2a8] sm:$0xff]
        %v1523 = vld [vmem:[#allocation6 + $0x2b0] sm:$0xff]
        %v1524 = vld [vmem:[#allocation6 + $0x2b8] sm:$0xff]
        %v1525 = vld [vmem:[#allocation6 + $0x2c0] sm:$0xff]
        %v1526 = vld [vmem:[#allocation6 + $0x2c8] sm:$0xff]
        %v1527 = vld [vmem:[#allocation6 + $0x2d0] sm:$0xff]
        %v1528 = vld [vmem:[#allocation6 + $0x2d8] sm:$0xff]
        %v1529 = vld [vmem:[#allocation6 + $0x2e0] sm:$0xff]
        %v1530 = vld [vmem:[#allocation6 + $0x2e8] sm:$0xff]
        %v1531 = vld [vmem:[#allocation6 + $0x2f0] sm:$0xff]
        %v1532 = vld [vmem:[#allocation6 + $0x2f8] sm:$0xff]
        %v1533 = vld [vmem:[#allocation6 + $0x300] sm:$0xff]
        %v1534 = vld [vmem:[#allocation6 + $0x308] sm:$0xff]
        %v1535 = vld [vmem:[#allocation6 + $0x310] sm:$0xff]
        %v1536 = vld [vmem:[#allocation6 + $0x318] sm:$0xff]
        %v1537 = vld [vmem:[#allocation6 + $0x320] sm:$0xff]
        %v1538 = vld [vmem:[#allocation6 + $0x328] sm:$0xff]
        %v1539 = vld [vmem:[#allocation6 + $0x330] sm:$0xff]
        %v1540 = vld [vmem:[#allocation6 + $0x338] sm:$0xff]
        %v1541 = vld [vmem:[#allocation6 + $0x340] sm:$0xff]
        %v1542 = vld [vmem:[#allocation6 + $0x348] sm:$0xff]
        %v1543 = vld [vmem:[#allocation6 + $0x350] sm:$0xff]
        %v1544 = vld [vmem:[#allocation6 + $0x358] sm:$0xff]
        %v1545 = vld [vmem:[#allocation6 + $0x360] sm:$0xff]
        %v1546 = vld [vmem:[#allocation6 + $0x368] sm:$0xff]
        %v1547 = vld [vmem:[#allocation6 + $0x370] sm:$0xff]
        %v1548 = vld [vmem:[#allocation6 + $0x378] sm:$0xff]
        %v1549 = vld [vmem:[#allocation6 + $0x380] sm:$0xff]
        %v1550 = vld [vmem:[#allocation6 + $0x388] sm:$0xff]
        %v1551 = vld [vmem:[#allocation6 + $0x390] sm:$0xff]
        %v1552 = vld [vmem:[#allocation6 + $0x398] sm:$0xff]
        %v1553 = vld [vmem:[#allocation6 + $0x3a0] sm:$0xff]
        %v1554 = vld [vmem:[#allocation6 + $0x3a8] sm:$0xff]
        %v1555 = vld [vmem:[#allocation6 + $0x3b0] sm:$0xff]
        %v1556 = vld [vmem:[#allocation6 + $0x3b8] sm:$0xff]
        %v1557 = vld [vmem:[#allocation6 + $0x3c0] sm:$0xff]
        %v1558 = vld [vmem:[#allocation6 + $0x3c8] sm:$0xff]
        %v1559 = vld [vmem:[#allocation6 + $0x3d0] sm:$0xff]
        %v1560 = vld [vmem:[#allocation6 + $0x3d8] sm:$0xff]
        %v1561 = vld [vmem:[#allocation6 + $0x3e0] sm:$0xff]
        %v1562 = vld [vmem:[#allocation6 + $0x3e8] sm:$0xff]
        %v1563 = vld [vmem:[#allocation6 + $0x3f0] sm:$0xff]
        %v1564 = vld [vmem:[#allocation6 + $0x3f8] sm:$0xff]
        %v1565 = vld [vmem:[#allocation6 + $0x400] sm:$0xff]
        %v1566 = vld [vmem:[#allocation6 + $0x408] sm:$0xff]
        %v1567 = vld [vmem:[#allocation6 + $0x410] sm:$0xff]
        %v1568 = vld [vmem:[#allocation6 + $0x418] sm:$0xff]
        %v1569 = vld [vmem:[#allocation6 + $0x420] sm:$0xff]
        %v1570 = vld [vmem:[#allocation6 + $0x428] sm:$0xff]
        %v1571 = vld [vmem:[#allocation6 + $0x430] sm:$0xff]
        %v1572 = vld [vmem:[#allocation6 + $0x438] sm:$0xff]
        %v1573 = vld [vmem:[#allocation6 + $0x440] sm:$0xff]
        %v1574 = vld [vmem:[#allocation6 + $0x448] sm:$0xff]
        %v1575 = vld [vmem:[#allocation6 + $0x450] sm:$0xff]
        %v1576 = vld [vmem:[#allocation6 + $0x458] sm:$0xff]
        %v1577 = vld [vmem:[#allocation6 + $0x460] sm:$0xff]
        %v1578 = vld [vmem:[#allocation6 + $0x468] sm:$0xff]
        %v1579 = vld [vmem:[#allocation6 + $0x470] sm:$0xff]
        %v1580 = vld [vmem:[#allocation6 + $0x478] sm:$0xff]
        %v1581 = vld [vmem:[#allocation6 + $0x480] sm:$0xff]
        %v1582 = vld [vmem:[#allocation6 + $0x488] sm:$0xff]
        %v1583 = vld [vmem:[#allocation6 + $0x490] sm:$0xff]
        %v1584 = vld [vmem:[#allocation6 + $0x498] sm:$0xff]
        %v1585 = vld [vmem:[#allocation6 + $0x4a0] sm:$0xff]
        %v1586 = vld [vmem:[#allocation6 + $0x4a8] sm:$0xff]
        %v1587 = vld [vmem:[#allocation6 + $0x4b0] sm:$0xff]
        %v1588 = vld [vmem:[#allocation6 + $0x4b8] sm:$0xff]
        %v1589 = vld [vmem:[#allocation6 + $0x4c0] sm:$0xff]
        %v1590 = vld [vmem:[#allocation6 + $0x4c8] sm:$0xff]
        %v1591 = vld [vmem:[#allocation6 + $0x4d0] sm:$0xff]
        %v1592 = vld [vmem:[#allocation6 + $0x4d8] sm:$0xff]
        %v1593 = vld [vmem:[#allocation6 + $0x4e0] sm:$0xff]
        %v1594 = vld [vmem:[#allocation6 + $0x4e8] sm:$0xff]
        %v1595 = vld [vmem:[#allocation6 + $0x4f0] sm:$0xff]
        %v1596 = vld [vmem:[#allocation6 + $0x4f8] sm:$0xff]
        %v1597 = vld [vmem:[#allocation6 + $0x500] sm:$0xff]
        %v1598 = vld [vmem:[#allocation6 + $0x508] sm:$0xff]
        %v1599 = vld [vmem:[#allocation6 + $0x510] sm:$0xff]
        %v1600 = vld [vmem:[#allocation6 + $0x518] sm:$0xff]
        %v1601 = vld [vmem:[#allocation6 + $0x520] sm:$0xff]
        %v1602 = vld [vmem:[#allocation6 + $0x528] sm:$0xff]
        %v1603 = vld [vmem:[#allocation6 + $0x530] sm:$0xff]
        %v1604 = vld [vmem:[#allocation6 + $0x538] sm:$0xff]
        %v1605 = vld [vmem:[#allocation6 + $0x540] sm:$0xff]
        %v1606 = vld [vmem:[#allocation6 + $0x548] sm:$0xff]
        %v1607 = vld [vmem:[#allocation6 + $0x550] sm:$0xff]
        %v1608 = vld [vmem:[#allocation6 + $0x558] sm:$0xff]
        %v1609 = vld [vmem:[#allocation6 + $0x560] sm:$0xff]
        %v1610 = vld [vmem:[#allocation6 + $0x568] sm:$0xff]
        %v1611 = vld [vmem:[#allocation6 + $0x570] sm:$0xff]
        %v1612 = vld [vmem:[#allocation6 + $0x578] sm:$0xff]
        %v1613 = vld [vmem:[#allocation6 + $0x580] sm:$0xff]
        %v1614 = vld [vmem:[#allocation6 + $0x588] sm:$0xff]
        %v1615 = vld [vmem:[#allocation6 + $0x590] sm:$0xff]
        %v1616 = vld [vmem:[#allocation6 + $0x598] sm:$0xff]
        %v1617 = vld [vmem:[#allocation6 + $0x5a0] sm:$0xff]
        %v1618 = vld [vmem:[#allocation6 + $0x5a8] sm:$0xff]
        %v1619 = vld [vmem:[#allocation6 + $0x5b0] sm:$0xff]
        %v1620 = vld [vmem:[#allocation6 + $0x5b8] sm:$0xff]
        %v1621 = vld [vmem:[#allocation6 + $0x5c0] sm:$0xff]
        %v1622 = vld [vmem:[#allocation6 + $0x5c8] sm:$0xff]
        %v1623 = vld [vmem:[#allocation6 + $0x5d0] sm:$0xff]
        %v1624 = vld [vmem:[#allocation6 + $0x5d8] sm:$0xff]
        %v1625 = vld [vmem:[#allocation6 + $0x5e0] sm:$0xff]
        %v1626 = vld [vmem:[#allocation6 + $0x5e8] sm:$0xff]
        %v1627 = vld [vmem:[#allocation6 + $0x5f0] sm:$0xff]
        %v1628 = vld [vmem:[#allocation6 + $0x5f8] sm:$0xff]
        %v1629 = vld [vmem:[#allocation6 + $0x600] sm:$0xff]
        %v1630 = vld [vmem:[#allocation6 + $0x608] sm:$0xff]
        %v1631 = vld [vmem:[#allocation6 + $0x610] sm:$0xff]
        %v1632 = vld [vmem:[#allocation6 + $0x618] sm:$0xff]
        %v1633 = vld [vmem:[#allocation6 + $0x620] sm:$0xff]
        %v1634 = vld [vmem:[#allocation6 + $0x628] sm:$0xff]
        %v1635 = vld [vmem:[#allocation6 + $0x630] sm:$0xff]
        %v1636 = vld [vmem:[#allocation6 + $0x638] sm:$0xff]
        %v1637 = vld [vmem:[#allocation6 + $0x640] sm:$0xff]
        %v1638 = vld [vmem:[#allocation6 + $0x648] sm:$0xff]
        %v1639 = vld [vmem:[#allocation6 + $0x650] sm:$0xff]
        %v1640 = vld [vmem:[#allocation6 + $0x658] sm:$0xff]
        %v1641 = vld [vmem:[#allocation6 + $0x660] sm:$0xff]
        %v1642 = vld [vmem:[#allocation6 + $0x668] sm:$0xff]
        %v1643 = vld [vmem:[#allocation6 + $0x670] sm:$0xff]
        %v1644 = vld [vmem:[#allocation6 + $0x678] sm:$0xff]
        %v1645 = vld [vmem:[#allocation6 + $0x680] sm:$0xff]
        %v1646 = vld [vmem:[#allocation6 + $0x688] sm:$0xff]
        %v1647 = vld [vmem:[#allocation6 + $0x690] sm:$0xff]
        %v1648 = vld [vmem:[#allocation6 + $0x698] sm:$0xff]
        %v1649 = vld [vmem:[#allocation6 + $0x6a0] sm:$0xff]
        %v1650 = vld [vmem:[#allocation6 + $0x6a8] sm:$0xff]
        %v1651 = vld [vmem:[#allocation6 + $0x6b0] sm:$0xff]
        %v1652 = vld [vmem:[#allocation6 + $0x6b8] sm:$0xff]
        %v1653 = vld [vmem:[#allocation6 + $0x6c0] sm:$0xff]
        %v1654 = vld [vmem:[#allocation6 + $0x6c8] sm:$0xff]
        %v1655 = vld [vmem:[#allocation6 + $0x6d0] sm:$0xff]
        %v1656 = vld [vmem:[#allocation6 + $0x6d8] sm:$0xff]
        %v1657 = vld [vmem:[#allocation6 + $0x6e0] sm:$0xff]
        %v1658 = vld [vmem:[#allocation6 + $0x6e8] sm:$0xff]
        %v1659 = vld [vmem:[#allocation6 + $0x6f0] sm:$0xff]
        %v1660 = vld [vmem:[#allocation6 + $0x6f8] sm:$0xff]
        %v1661 = vld [vmem:[#allocation6 + $0x700] sm:$0xff]
        %v1662 = vld [vmem:[#allocation6 + $0x708] sm:$0xff]
        %v1663 = vld [vmem:[#allocation6 + $0x710] sm:$0xff]
        %v1664 = vld [vmem:[#allocation6 + $0x718] sm:$0xff]
        %v1665 = vld [vmem:[#allocation6 + $0x720] sm:$0xff]
        %v1666 = vld [vmem:[#allocation6 + $0x728] sm:$0xff]
        %v1667 = vld [vmem:[#allocation6 + $0x730] sm:$0xff]
        %v1668 = vld [vmem:[#allocation6 + $0x738] sm:$0xff]
        %v1669 = vld [vmem:[#allocation6 + $0x740] sm:$0xff]
        %v1670 = vld [vmem:[#allocation6 + $0x748] sm:$0xff]
        %v1671 = vld [vmem:[#allocation6 + $0x750] sm:$0xff]
        %v1672 = vld [vmem:[#allocation6 + $0x758] sm:$0xff]
        %v1673 = vld [vmem:[#allocation6 + $0x760] sm:$0xff]
        %v1674 = vld [vmem:[#allocation6 + $0x768] sm:$0xff]
        %v1675 = vld [vmem:[#allocation6 + $0x770] sm:$0xff]
        %v1676 = vld [vmem:[#allocation6 + $0x778] sm:$0xff]
        %v1677 = vld [vmem:[#allocation6 + $0x780] sm:$0xff]
        %v1678 = vld [vmem:[#allocation6 + $0x788] sm:$0xff]
        %v1679 = vld [vmem:[#allocation6 + $0x790] sm:$0xff]
        %v1680 = vld [vmem:[#allocation6 + $0x798] sm:$0xff]
        %v1681 = vld [vmem:[#allocation6 + $0x7a0] sm:$0xff]
        %v1682 = vld [vmem:[#allocation6 + $0x7a8] sm:$0xff]
        %v1683 = vld [vmem:[#allocation6 + $0x7b0] sm:$0xff]
        %v1684 = vld [vmem:[#allocation6 + $0x7b8] sm:$0xff]
        %v1685 = vld [vmem:[#allocation6 + $0x7c0] sm:$0xff]
        %v1686 = vld [vmem:[#allocation6 + $0x7c8] sm:$0xff]
        %v1687 = vld [vmem:[#allocation6 + $0x7d0] sm:$0xff]
        %v1688 = vld [vmem:[#allocation6 + $0x7d8] sm:$0xff]
        %v1689 = vld [vmem:[#allocation6 + $0x7e0] sm:$0xff]
        %v1690 = vld [vmem:[#allocation6 + $0x7e8] sm:$0xff]
        %v1691 = vld [vmem:[#allocation6 + $0x7f0] sm:$0xff]
        %v1692 = vld [vmem:[#allocation6 + $0x7f8] sm:$0xff]
        %v1693 = vld [vmem:[#allocation6 + $0x800] sm:$0xff]
        %v1694 = vld [vmem:[#allocation6 + $0x808] sm:$0xff]
        %v1695 = vld [vmem:[#allocation6 + $0x810] sm:$0xff]
        %v1696 = vld [vmem:[#allocation6 + $0x818] sm:$0xff]
        %v1697 = vld [vmem:[#allocation6 + $0x820] sm:$0xff]
        %v1698 = vld [vmem:[#allocation6 + $0x828] sm:$0xff]
        %v1699 = vld [vmem:[#allocation6 + $0x830] sm:$0xff]
        %v1700 = vld [vmem:[#allocation6 + $0x838] sm:$0xff]
        %v1701 = vld [vmem:[#allocation6 + $0x840] sm:$0xff]
        %v1702 = vld [vmem:[#allocation6 + $0x848] sm:$0xff]
        %v1703 = vld [vmem:[#allocation6 + $0x850] sm:$0xff]
        %v1704 = vld [vmem:[#allocation6 + $0x858] sm:$0xff]
        %v1705 = vld [vmem:[#allocation6 + $0x860] sm:$0xff]
        %v1706 = vld [vmem:[#allocation6 + $0x868] sm:$0xff]
        %v1707 = vld [vmem:[#allocation6 + $0x870] sm:$0xff]
        %v1708 = vld [vmem:[#allocation6 + $0x878] sm:$0xff]
        %v1709 = vld [vmem:[#allocation6 + $0x880] sm:$0xff]
        %v1710 = vld [vmem:[#allocation6 + $0x888] sm:$0xff]
        %v1711 = vld [vmem:[#allocation6 + $0x890] sm:$0xff]
        %v1712 = vld [vmem:[#allocation6 + $0x898] sm:$0xff]
        %v1713 = vld [vmem:[#allocation6 + $0x8a0] sm:$0xff]
        %v1714 = vld [vmem:[#allocation6 + $0x8a8] sm:$0xff]
        %v1715 = vld [vmem:[#allocation6 + $0x8b0] sm:$0xff]
        %v1716 = vld [vmem:[#allocation6 + $0x8b8] sm:$0xff]
        %v1717 = vld [vmem:[#allocation6 + $0x8c0] sm:$0xff]
        %v1718 = vld [vmem:[#allocation6 + $0x8c8] sm:$0xff]
        %v1719 = vld [vmem:[#allocation6 + $0x8d0] sm:$0xff]
        %v1720 = vld [vmem:[#allocation6 + $0x8d8] sm:$0xff]
        %v1721 = vld [vmem:[#allocation6 + $0x8e0] sm:$0xff]
        %v1722 = vld [vmem:[#allocation6 + $0x8e8] sm:$0xff]
        %v1723 = vld [vmem:[#allocation6 + $0x8f0] sm:$0xff]
        %v1724 = vld [vmem:[#allocation6 + $0x8f8] sm:$0xff]
        %v1725 = vld [vmem:[#allocation6 + $0x900] sm:$0xff]
        %v1726 = vld [vmem:[#allocation6 + $0x908] sm:$0xff]
        %v1727 = vld [vmem:[#allocation6 + $0x910] sm:$0xff]
        %v1728 = vld [vmem:[#allocation6 + $0x918] sm:$0xff]
        %v1729 = vld [vmem:[#allocation6 + $0x920] sm:$0xff]
        %v1730 = vld [vmem:[#allocation6 + $0x928] sm:$0xff]
        %v1731 = vld [vmem:[#allocation6 + $0x930] sm:$0xff]
        %v1732 = vld [vmem:[#allocation6 + $0x938] sm:$0xff]
        %v1733 = vld [vmem:[#allocation6 + $0x940] sm:$0xff]
        %v1734 = vld [vmem:[#allocation6 + $0x948] sm:$0xff]
        %v1735 = vld [vmem:[#allocation6 + $0x950] sm:$0xff]
        %v1736 = vld [vmem:[#allocation6 + $0x958] sm:$0xff]
        %v1737 = vld [vmem:[#allocation6 + $0x960] sm:$0xff]
        %v1738 = vld [vmem:[#allocation6 + $0x968] sm:$0xff]
        %v1739 = vld [vmem:[#allocation6 + $0x970] sm:$0xff]
        %v1740 = vld [vmem:[#allocation6 + $0x978] sm:$0xff]
        %v1741 = vld [vmem:[#allocation6 + $0x980] sm:$0xff]
        %v1742 = vld [vmem:[#allocation6 + $0x988] sm:$0xff]
        %v1743 = vld [vmem:[#allocation6 + $0x990] sm:$0xff]
        %v1744 = vld [vmem:[#allocation6 + $0x998] sm:$0xff]
        %v1745 = vld [vmem:[#allocation6 + $0x9a0] sm:$0xff]
        %v1746 = vld [vmem:[#allocation6 + $0x9a8] sm:$0xff]
        %v1747 = vld [vmem:[#allocation6 + $0x9b0] sm:$0xff]
        %v1748 = vld [vmem:[#allocation6 + $0x9b8] sm:$0xff]
        %v1749 = vld [vmem:[#allocation6 + $0x9c0] sm:$0xff]
        %v1750 = vld [vmem:[#allocation6 + $0x9c8] sm:$0xff]
        %v1751 = vld [vmem:[#allocation6 + $0x9d0] sm:$0xff]
        %v1752 = vld [vmem:[#allocation6 + $0x9d8] sm:$0xff]
        %v1753 = vld [vmem:[#allocation6 + $0x9e0] sm:$0xff]
        %v1754 = vld [vmem:[#allocation6 + $0x9e8] sm:$0xff]
        %v1755 = vld [vmem:[#allocation6 + $0x9f0] sm:$0xff]
        %v1756 = vld [vmem:[#allocation6 + $0x9f8] sm:$0xff]
        %v1757 = vld [vmem:[#allocation6 + $0xa00] sm:$0xff]
        %v1758 = vld [vmem:[#allocation6 + $0xa08] sm:$0xff]
        %v1759 = vld [vmem:[#allocation6 + $0xa10] sm:$0xff]
        %v1760 = vld [vmem:[#allocation6 + $0xa18] sm:$0xff]
        %v1761 = vld [vmem:[#allocation6 + $0xa20] sm:$0xff]
        %v1762 = vld [vmem:[#allocation6 + $0xa28] sm:$0xff]
        %v1763 = vld [vmem:[#allocation6 + $0xa30] sm:$0xff]
        %v1764 = vld [vmem:[#allocation6 + $0xa38] sm:$0xff]
        %v1765 = vld [vmem:[#allocation6 + $0xa40] sm:$0xff]
        %v1766 = vld [vmem:[#allocation6 + $0xa48] sm:$0xff]
        %v1767 = vld [vmem:[#allocation6 + $0xa50] sm:$0xff]
        %v1768 = vld [vmem:[#allocation6 + $0xa58] sm:$0xff]
        %v1769 = vld [vmem:[#allocation6 + $0xa60] sm:$0xff]
        %v1770 = vld [vmem:[#allocation6 + $0xa68] sm:$0xff]
        %v1771 = vld [vmem:[#allocation6 + $0xa70] sm:$0xff]
        %v1772 = vld [vmem:[#allocation6 + $0xa78] sm:$0xff]
        %v1773 = vld [vmem:[#allocation6 + $0xa80] sm:$0xff]
        %v1774 = vld [vmem:[#allocation6 + $0xa88] sm:$0xff]
        %v1775 = vld [vmem:[#allocation6 + $0xa90] sm:$0xff]
        %v1776 = vld [vmem:[#allocation6 + $0xa98] sm:$0xff]
        %v1777 = vld [vmem:[#allocation6 + $0xaa0] sm:$0xff]
        %v1778 = vld [vmem:[#allocation6 + $0xaa8] sm:$0xff]
        %v1779 = vld [vmem:[#allocation6 + $0xab0] sm:$0xff]
        %v1780 = vld [vmem:[#allocation6 + $0xab8] sm:$0xff]
        %v1781 = vld [vmem:[#allocation6 + $0xac0] sm:$0xff]
        %v1782 = vld [vmem:[#allocation6 + $0xac8] sm:$0xff]
        %v1783 = vld [vmem:[#allocation6 + $0xad0] sm:$0xff]
        %v1784 = vld [vmem:[#allocation6 + $0xad8] sm:$0xff]
        %v1785 = vld [vmem:[#allocation6 + $0xae0] sm:$0xff]
        %v1786 = vld [vmem:[#allocation6 + $0xae8] sm:$0xff]
        %v1787 = vld [vmem:[#allocation6 + $0xaf0] sm:$0xff]
        %v1788 = vld [vmem:[#allocation6 + $0xaf8] sm:$0xff]
        %v1789 = vld [vmem:[#allocation6 + $0xb00] sm:$0xff]
        %v1790 = vld [vmem:[#allocation6 + $0xb08] sm:$0xff]
        %v1791 = vld [vmem:[#allocation6 + $0xb10] sm:$0xff]
        %v1792 = vld [vmem:[#allocation6 + $0xb18] sm:$0xff]
        %v1793 = vld [vmem:[#allocation6 + $0xb20] sm:$0xff]
        %v1794 = vld [vmem:[#allocation6 + $0xb28] sm:$0xff]
        %v1795 = vld [vmem:[#allocation6 + $0xb30] sm:$0xff]
        %v1796 = vld [vmem:[#allocation6 + $0xb38] sm:$0xff]
        %v1797 = vld [vmem:[#allocation6 + $0xb40] sm:$0xff]
        %v1798 = vld [vmem:[#allocation6 + $0xb48] sm:$0xff]
        %v1799 = vld [vmem:[#allocation6 + $0xb50] sm:$0xff]
        %v1800 = vld [vmem:[#allocation6 + $0xb58] sm:$0xff]
        %v1801 = vld [vmem:[#allocation6 + $0xb60] sm:$0xff]
        %v1802 = vld [vmem:[#allocation6 + $0xb68] sm:$0xff]
        %v1803 = vld [vmem:[#allocation6 + $0xb70] sm:$0xff]
        %v1804 = vld [vmem:[#allocation6 + $0xb78] sm:$0xff]
        %v1805 = vld [vmem:[#allocation6 + $0xb80] sm:$0xff]
        %v1806 = vld [vmem:[#allocation6 + $0xb88] sm:$0xff]
        %v1807 = vld [vmem:[#allocation6 + $0xb90] sm:$0xff]
        %v1808 = vld [vmem:[#allocation6 + $0xb98] sm:$0xff]
        %v1809 = vld [vmem:[#allocation6 + $0xba0] sm:$0xff]
        %v1810 = vld [vmem:[#allocation6 + $0xba8] sm:$0xff]
        %v1811 = vld [vmem:[#allocation6 + $0xbb0] sm:$0xff]
        %v1812 = vld [vmem:[#allocation6 + $0xbb8] sm:$0xff]
        %v1813 = vld [vmem:[#allocation6 + $0xbc0] sm:$0xff]
        %v1814 = vld [vmem:[#allocation6 + $0xbc8] sm:$0xff]
        %v1815 = vld [vmem:[#allocation6 + $0xbd0] sm:$0xff]
        %v1816 = vld [vmem:[#allocation6 + $0xbd8] sm:$0xff]
        %v1817 = vld [vmem:[#allocation6 + $0xbe0] sm:$0xff]
        %v1818 = vld [vmem:[#allocation6 + $0xbe8] sm:$0xff]
        %v1819 = vld [vmem:[#allocation6 + $0xbf0] sm:$0xff]
        %v1820 = vld [vmem:[#allocation6 + $0xbf8] sm:$0xff]
        %v1821 = vld [vmem:[#allocation6 + $0xc00] sm:$0xff]
        %v1822 = vld [vmem:[#allocation6 + $0xc08] sm:$0xff]
        %v1823 = vld [vmem:[#allocation6 + $0xc10] sm:$0xff]
        %v1824 = vld [vmem:[#allocation6 + $0xc18] sm:$0xff]
        %v1825 = vld [vmem:[#allocation6 + $0xc20] sm:$0xff]
        %v1826 = vld [vmem:[#allocation6 + $0xc28] sm:$0xff]
        %v1827 = vld [vmem:[#allocation6 + $0xc30] sm:$0xff]
        %v1828 = vld [vmem:[#allocation6 + $0xc38] sm:$0xff]
        %v1829 = vld [vmem:[#allocation6 + $0xc40] sm:$0xff]
        %v1830 = vld [vmem:[#allocation6 + $0xc48] sm:$0xff]
        %v1831 = vld [vmem:[#allocation6 + $0xc50] sm:$0xff]
        %v1832 = vld [vmem:[#allocation6 + $0xc58] sm:$0xff]
        %v1833 = vld [vmem:[#allocation6 + $0xc60] sm:$0xff]
        %v1834 = vld [vmem:[#allocation6 + $0xc68] sm:$0xff]
        %v1835 = vld [vmem:[#allocation6 + $0xc70] sm:$0xff]
        %v1836 = vld [vmem:[#allocation6 + $0xc78] sm:$0xff]
        %v1837 = vld [vmem:[#allocation6 + $0xc80] sm:$0xff]
        %v1838 = vld [vmem:[#allocation6 + $0xc88] sm:$0xff]
        %v1839 = vld [vmem:[#allocation6 + $0xc90] sm:$0xff]
        %v1840 = vld [vmem:[#allocation6 + $0xc98] sm:$0xff]
        %v1841 = vld [vmem:[#allocation6 + $0xca0] sm:$0xff]
        %v1842 = vld [vmem:[#allocation6 + $0xca8] sm:$0xff]
        %v1843 = vld [vmem:[#allocation6 + $0xcb0] sm:$0xff]
        %v1844 = vld [vmem:[#allocation6 + $0xcb8] sm:$0xff]
        %v1845 = vld [vmem:[#allocation6 + $0xcc0] sm:$0xff]
        %v1846 = vld [vmem:[#allocation6 + $0xcc8] sm:$0xff]
        %v1847 = vld [vmem:[#allocation6 + $0xcd0] sm:$0xff]
        %v1848 = vld [vmem:[#allocation6 + $0xcd8] sm:$0xff]
        %v1849 = vld [vmem:[#allocation6 + $0xce0] sm:$0xff]
        %v1850 = vld [vmem:[#allocation6 + $0xce8] sm:$0xff]
        %v1851 = vld [vmem:[#allocation6 + $0xcf0] sm:$0xff]
        %v1852 = vld [vmem:[#allocation6 + $0xcf8] sm:$0xff]
        %v1853 = vld [vmem:[#allocation6 + $0xd00] sm:$0xff]
        %v1854 = vld [vmem:[#allocation6 + $0xd08] sm:$0xff]
        %v1855 = vld [vmem:[#allocation6 + $0xd10] sm:$0xff]
        %v1856 = vld [vmem:[#allocation6 + $0xd18] sm:$0xff]
        %v1857 = vld [vmem:[#allocation6 + $0xd20] sm:$0xff]
        %v1858 = vld [vmem:[#allocation6 + $0xd28] sm:$0xff]
        %v1859 = vld [vmem:[#allocation6 + $0xd30] sm:$0xff]
        %v1860 = vld [vmem:[#allocation6 + $0xd38] sm:$0xff]
        %v1861 = vld [vmem:[#allocation6 + $0xd40] sm:$0xff]
        %v1862 = vld [vmem:[#allocation6 + $0xd48] sm:$0xff]
        %v1863 = vld [vmem:[#allocation6 + $0xd50] sm:$0xff]
        %v1864 = vld [vmem:[#allocation6 + $0xd58] sm:$0xff]
        %v1865 = vld [vmem:[#allocation6 + $0xd60] sm:$0xff]
        %v1866 = vld [vmem:[#allocation6 + $0xd68] sm:$0xff]
        %v1867 = vld [vmem:[#allocation6 + $0xd70] sm:$0xff]
        %v1868 = vld [vmem:[#allocation6 + $0xd78] sm:$0xff]
        %v1869 = vld [vmem:[#allocation6 + $0xd80] sm:$0xff]
        %v1870 = vld [vmem:[#allocation6 + $0xd88] sm:$0xff]
        %v1871 = vld [vmem:[#allocation6 + $0xd90] sm:$0xff]
        %v1872 = vld [vmem:[#allocation6 + $0xd98] sm:$0xff]
        %v1873 = vld [vmem:[#allocation6 + $0xda0] sm:$0xff]
        %v1874 = vld [vmem:[#allocation6 + $0xda8] sm:$0xff]
        %v1875 = vld [vmem:[#allocation6 + $0xdb0] sm:$0xff]
        %v1876 = vld [vmem:[#allocation6 + $0xdb8] sm:$0xff]
        %v1877 = vld [vmem:[#allocation6 + $0xdc0] sm:$0xff]
        %v1878 = vld [vmem:[#allocation6 + $0xdc8] sm:$0xff]
        %v1879 = vld [vmem:[#allocation6 + $0xdd0] sm:$0xff]
        %v1880 = vld [vmem:[#allocation6 + $0xdd8] sm:$0xff]
        %v1881 = vld [vmem:[#allocation6 + $0xde0] sm:$0xff]
        %v1882 = vld [vmem:[#allocation6 + $0xde8] sm:$0xff]
        %v1883 = vld [vmem:[#allocation6 + $0xdf0] sm:$0xff]
        %v1884 = vld [vmem:[#allocation6 + $0xdf8] sm:$0xff]
        %v1885 = vld [vmem:[#allocation6 + $0xe00] sm:$0xff]
        %v1886 = vld [vmem:[#allocation6 + $0xe08] sm:$0xff]
        %v1887 = vld [vmem:[#allocation6 + $0xe10] sm:$0xff]
        %v1888 = vld [vmem:[#allocation6 + $0xe18] sm:$0xff]
        %v1889 = vld [vmem:[#allocation6 + $0xe20] sm:$0xff]
        %v1890 = vld [vmem:[#allocation6 + $0xe28] sm:$0xff]
        %v1891 = vld [vmem:[#allocation6 + $0xe30] sm:$0xff]
        %v1892 = vld [vmem:[#allocation6 + $0xe38] sm:$0xff]
        %v1893 = vld [vmem:[#allocation6 + $0xe40] sm:$0xff]
        %v1894 = vld [vmem:[#allocation6 + $0xe48] sm:$0xff]
        %v1895 = vld [vmem:[#allocation6 + $0xe50] sm:$0xff]
        %v1896 = vld [vmem:[#allocation6 + $0xe58] sm:$0xff]
        %v1897 = vld [vmem:[#allocation6 + $0xe60] sm:$0xff]
        %v1898 = vld [vmem:[#allocation6 + $0xe68] sm:$0xff]
        %v1899 = vld [vmem:[#allocation6 + $0xe70] sm:$0xff]
        %v1900 = vld [vmem:[#allocation6 + $0xe78] sm:$0xff]
        %v1901 = vld [vmem:[#allocation6 + $0xe80] sm:$0xff]
        %v1902 = vld [vmem:[#allocation6 + $0xe88] sm:$0xff]
        %v1903 = vld [vmem:[#allocation6 + $0xe90] sm:$0xff]
        %v1904 = vld [vmem:[#allocation6 + $0xe98] sm:$0xff]
        %v1905 = vld [vmem:[#allocation6 + $0xea0] sm:$0xff]
        %v1906 = vld [vmem:[#allocation6 + $0xea8] sm:$0xff]
        %v1907 = vld [vmem:[#allocation6 + $0xeb0] sm:$0xff]
        %v1908 = vld [vmem:[#allocation6 + $0xeb8] sm:$0xff]
        %v1909 = vld [vmem:[#allocation6 + $0xec0] sm:$0xff]
        %v1910 = vld [vmem:[#allocation6 + $0xec8] sm:$0xff]
        %v1911 = vld [vmem:[#allocation6 + $0xed0] sm:$0xff]
        %v1912 = vld [vmem:[#allocation6 + $0xed8] sm:$0xff]
        %v1913 = vld [vmem:[#allocation6 + $0xee0] sm:$0xff]
        %v1914 = vld [vmem:[#allocation6 + $0xee8] sm:$0xff]
        %v1915 = vld [vmem:[#allocation6 + $0xef0] sm:$0xff]
        %v1916 = vld [vmem:[#allocation6 + $0xef8] sm:$0xff]
        %v1917 = vld [vmem:[#allocation6 + $0xf00] sm:$0xff]
        %v1918 = vld [vmem:[#allocation6 + $0xf08] sm:$0xff]
        %v1919 = vld [vmem:[#allocation6 + $0xf10] sm:$0xff]
        %v1920 = vld [vmem:[#allocation6 + $0xf18] sm:$0xff]
        %v1921 = vld [vmem:[#allocation6 + $0xf20] sm:$0xff]
        %v1922 = vld [vmem:[#allocation6 + $0xf28] sm:$0xff]
        %v1923 = vld [vmem:[#allocation6 + $0xf30] sm:$0xff]
        %v1924 = vld [vmem:[#allocation6 + $0xf38] sm:$0xff]
        %v1925 = vld [vmem:[#allocation6 + $0xf40] sm:$0xff]
        %v1926 = vld [vmem:[#allocation6 + $0xf48] sm:$0xff]
        %v1927 = vld [vmem:[#allocation6 + $0xf50] sm:$0xff]
        %v1928 = vld [vmem:[#allocation6 + $0xf58] sm:$0xff]
        %v1929 = vld [vmem:[#allocation6 + $0xf60] sm:$0xff]
        %v1930 = vld [vmem:[#allocation6 + $0xf68] sm:$0xff]
        %v1931 = vld [vmem:[#allocation6 + $0xf70] sm:$0xff]
        %v1932 = vld [vmem:[#allocation6 + $0xf78] sm:$0xff]
        %v1933 = vld [vmem:[#allocation6 + $0xf80] sm:$0xff]
        %v1934 = vld [vmem:[#allocation6 + $0xf88] sm:$0xff]
        %v1935 = vld [vmem:[#allocation6 + $0xf90] sm:$0xff]
        %v1936 = vld [vmem:[#allocation6 + $0xf98] sm:$0xff]
        %v1937 = vld [vmem:[#allocation6 + $0xfa0] sm:$0xff]
        %v1938 = vld [vmem:[#allocation6 + $0xfa8] sm:$0xff]
        %v1939 = vld [vmem:[#allocation6 + $0xfb0] sm:$0xff]
        %v1940 = vld [vmem:[#allocation6 + $0xfb8] sm:$0xff]
        %v1941 = vld [vmem:[#allocation6 + $0xfc0] sm:$0xff]
        %v1942 = vld [vmem:[#allocation6 + $0xfc8] sm:$0xff]
        %v1943 = vld [vmem:[#allocation6 + $0xfd0] sm:$0xff]
        %v1944 = vld [vmem:[#allocation6 + $0xfd8] sm:$0xff]
        %v1945 = vld [vmem:[#allocation6 + $0xfe0] sm:$0xff]
        %v1946 = vld [vmem:[#allocation6 + $0xfe8] sm:$0xff]
        %v1947 = vld [vmem:[#allocation6 + $0xff0] sm:$0xff]
        %v1948 = vld [vmem:[#allocation6 + $0xff8] sm:$0xff]
        %1949 = vmatprep.subr.mxu0 %v1438
        %1950 = vmatpush1.msra.mxu0 %v1437
        %1951 = vmatprep.subr.mxu0 %v1446
        %1952 = vmatpush1.msra.mxu0 %v1445
        %1953 = vmatprep.subr.mxu0 %v1454
        %1954 = vmatpush1.msra.mxu0 %v1453
        %1955 = vmatprep.subr.mxu0 %v1462
        %1956 = vmatpush1.msra.mxu0 %v1461
        %1957 = vmatprep.subr.mxu0 %v1470
        %1958 = vmatpush1.msra.mxu0 %v1469
        %1959 = vmatprep.subr.mxu0 %v1478
        %1960 = vmatpush1.msra.mxu0 %v1477
        %1961 = vmatprep.subr.mxu0 %v1486
        %1962 = vmatpush1.msra.mxu0 %v1485
        %1963 = vmatprep.subr.mxu0 %v1494
        %1964 = vmatpush1.msra.mxu0 %v1493
        %1965 = vmatprep.subr.mxu0 %v1502
        %1966 = vmatpush1.msra.mxu0 %v1501
        %1967 = vmatprep.subr.mxu0 %v1510
        %1968 = vmatpush1.msra.mxu0 %v1509
        %1969 = vmatprep.subr.mxu0 %v1518
        %1970 = vmatpush1.msra.mxu0 %v1517
        %1971 = vmatprep.subr.mxu0 %v1526
        %1972 = vmatpush1.msra.mxu0 %v1525
        %1973 = vmatprep.subr.mxu0 %v1534
        %1974 = vmatpush1.msra.mxu0 %v1533
        %1975 = vmatprep.subr.mxu0 %v1542
        %1976 = vmatpush1.msra.mxu0 %v1541
        %1977 = vmatprep.subr.mxu0 %v1550
        %1978 = vmatpush1.msra.mxu0 %v1549
        %1979 = vmatprep.subr.mxu0 %v1558
        %1980 = vmatpush1.msra.mxu0 %v1557
        %1981 = vmatprep.subr.mxu0 %v1566
        %1982 = vmatpush1.msra.mxu0 %v1565
        %1983 = vmatprep.subr.mxu0 %v1574
        %1984 = vmatpush1.msra.mxu0 %v1573
        %1985 = vmatprep.subr.mxu0 %v1582
        %1986 = vmatpush1.msra.mxu0 %v1581
        %1987 = vmatprep.subr.mxu0 %v1590
        %1988 = vmatpush1.msra.mxu0 %v1589
        %1989 = vmatprep.subr.mxu0 %v1598
        %1990 = vmatpush1.msra.mxu0 %v1597
        %1991 = vmatprep.subr.mxu0 %v1606
        %1992 = vmatpush1.msra.mxu0 %v1605
        %1993 = vmatprep.subr.mxu0 %v1614
        %1994 = vmatpush1.msra.mxu0 %v1613
        %1995 = vmatprep.subr.mxu0 %v1622
        %1996 = vmatpush1.msra.mxu0 %v1621
        %1997 = vmatprep.subr.mxu0 %v1630
        %1998 = vmatpush1.msra.mxu0 %v1629
        %1999 = vmatprep.subr.mxu0 %v1638
        %2000 = vmatpush1.msra.mxu0 %v1637
        %2001 = vmatprep.subr.mxu0 %v1646
        %2002 = vmatpush1.msra.mxu0 %v1645
        %2003 = vmatprep.subr.mxu0 %v1654
        %2004 = vmatpush1.msra.mxu0 %v1653
        %2005 = vmatprep.subr.mxu0 %v1662
        %2006 = vmatpush1.msra.mxu0 %v1661
        %2007 = vmatprep.subr.mxu0 %v1670
        %2008 = vmatpush1.msra.mxu0 %v1669
        %2009 = vmatprep.subr.mxu0 %v1678
        %2010 = vmatpush1.msra.mxu0 %v1677
        %2011 = vmatprep.subr.mxu0 %v1686
        %2012 = vmatpush1.msra.mxu0 %v1685
        %2013 = vmatprep.mubr.f32.mxu0 %v1310
        %2014 = vmatmul.mubr.f32.gmra.mrb[0].mxu0 %v1309
        %v2015 = vpop.f32.mrb[0].mxu0
        %v2016 = vadd.f32 0.0, %v2015
        %v2017 = vpop.f32.mrb[0].mxu0
        %v2018 = vadd.f32 0.0, %v2017
        %2019 = vmatprep.mubr.f32.mxu0 %v1314
        %2020 = vmatmul.mubr.f32.gmra.mrb[0].mxu0 %v1313
        %v2021 = vpop.f32.mrb[0].mxu0
        %v2022 = vadd.f32 0.0, %v2021
        %v2023 = vpop.f32.mrb[0].mxu0
        %v2024 = vadd.f32 0.0, %v2023
        %2025 = vmatprep.mubr.f32.mxu0 %v1318
        %2026 = vmatmul.mubr.f32.gmra.mrb[0].mxu0 %v1317
        %v2027 = vpop.f32.mrb[0].mxu0
        %v2028 = vadd.f32 0.0, %v2027
        %v2029 = vpop.f32.mrb[0].mxu0
        %v2030 = vadd.f32 0.0, %v2029
        %2031 = vmatprep.mubr.f32.mxu0 %v1322
        %2032 = vmatmul.mubr.f32.gmra.mrb[0].mxu0 %v1321
        %v2033 = vpop.f32.mrb[0].mxu0
        %v2034 = vadd.f32 0.0, %v2033
        %v2035 = vpop.f32.mrb[0].mxu0
        %v2036 = vadd.f32 0.0, %v2035
        %2037 = vmatprep.mubr.f32.mxu0 %v1326
        %2038 = vmatmul.mubr.f32.gmra.mrb[0].mxu0 %v1325
        %v2039 = vpop.f32.mrb[0].mxu0
        %v2040 = vadd.f32 0.0, %v2039
        %v2041 = vpop.f32.mrb[0].mxu0
        %v2042 = vadd.f32 0.0, %v2041
        %2043 = vmatprep.mubr.f32.mxu0 %v1330
        %2044 = vmatmul.mubr.f32.gmra.mrb[0].mxu0 %v1329
        %v2045 = vpop.f32.mrb[0].mxu0
        %v2046 = vadd.f32 0.0, %v2045
        %v2047 = vpop.f32.mrb[0].mxu0
        %v2048 = vadd.f32 0.0, %v2047
        %2049 = vmatprep.mubr.f32.mxu0 %v1334
        %2050 = vmatmul.mubr.f32.gmra.mrb[0].mxu0 %v1333
        %v2051 = vpop.f32.mrb[0].mxu0
        %v2052 = vadd.f32 0.0, %v2051
        %v2053 = vpop.f32.mrb[0].mxu0
        %v2054 = vadd.f32 0.0, %v2053
        %2055 = vmatprep.mubr.f32.mxu0 %v1338
        %2056 = vmatmul.mubr.f32.gmra.mrb[0].mxu0 %v1337
        %v2057 = vpop.f32.mrb[0].mxu0
        %v2058 = vadd.f32 0.0, %v2057
        %v2059 = vpop.f32.mrb[0].mxu0
        %v2060 = vadd.f32 0.0, %v2059
        %2061 = vmatprep.mubr.f32.mxu0 %v1342
        %2062 = vmatmul.mubr.f32.gmra.mrb[0].mxu0 %v1341
        %v2063 = vpop.f32.mrb[0].mxu0
        %v2064 = vadd.f32 0.0, %v2063
        %v2065 = vpop.f32.mrb[0].mxu0
        %v2066 = vadd.f32 0.0, %v2065
        %2067 = vmatprep.mubr.f32.mxu0 %v1346
        %2068 = vmatmul.mubr.f32.gmra.mrb[0].mxu0 %v1345
        %v2069 = vpop.f32.mrb[0].mxu0
        %v2070 = vadd.f32 0.0, %v2069
        %v2071 = vpop.f32.mrb[0].mxu0
        %v2072 = vadd.f32 0.0, %v2071
        %2073 = vmatprep.mubr.f32.mxu0 %v1350
        %2074 = vmatmul.mubr.f32.gmra.mrb[0].mxu0 %v1349
        %v2075 = vpop.f32.mrb[0].mxu0
        %v2076 = vadd.f32 0.0, %v2075
        %v2077 = vpop.f32.mrb[0].mxu0
        %v2078 = vadd.f32 0.0, %v2077
        %2079 = vmatprep.mubr.f32.mxu0 %v1354
        %2080 = vmatmul.mubr.f32.gmra.mrb[0].mxu0 %v1353
        %v2081 = vpop.f32.mrb[0].mxu0
        %v2082 = vadd.f32 0.0, %v2081
        %v2083 = vpop.f32.mrb[0].mxu0
        %v2084 = vadd.f32 0.0, %v2083
        %2085 = vmatprep.mubr.f32.mxu0 %v1358
        %2086 = vmatmul.mubr.f32.gmra.mrb[0].mxu0 %v1357
        %v2087 = vpop.f32.mrb[0].mxu0
        %v2088 = vadd.f32 0.0, %v2087
        %v2089 = vpop.f32.mrb[0].mxu0
        %v2090 = vadd.f32 0.0, %v2089
        %2091 = vmatprep.mubr.f32.mxu0 %v1362
        %2092 = vmatmul.mubr.f32.gmra.mrb[0].mxu0 %v1361
        %v2093 = vpop.f32.mrb[0].mxu0
        %v2094 = vadd.f32 0.0, %v2093
        %v2095 = vpop.f32.mrb[0].mxu0
        %v2096 = vadd.f32 0.0, %v2095
        %2097 = vmatprep.mubr.f32.mxu0 %v1366
        %2098 = vmatmul.mubr.f32.gmra.mrb[0].mxu0 %v1365
        %v2099 = vpop.f32.mrb[0].mxu0
        %v2100 = vadd.f32 0.0, %v2099
        %v2101 = vpop.f32.mrb[0].mxu0
        %v2102 = vadd.f32 0.0, %v2101
        %2103 = vmatprep.mubr.f32.mxu0 %v1370
        %2104 = vmatmul.mubr.f32.gmra.mrb[0].mxu0 %v1369
        %v2105 = vpop.f32.mrb[0].mxu0
        %v2106 = vadd.f32 0.0, %v2105
        %v2107 = vpop.f32.mrb[0].mxu0
        %v2108 = vadd.f32 0.0, %v2107
        %2109 = vmatprep.mubr.f32.mxu0 %v1374
        %2110 = vmatmul.mubr.f32.gmra.mrb[0].mxu0 %v1373
        %v2111 = vpop.f32.mrb[0].mxu0
        %v2112 = vadd.f32 0.0, %v2111
        %v2113 = vpop.f32.mrb[0].mxu0
        %v2114 = vadd.f32 0.0, %v2113
        %2115 = vmatprep.mubr.f32.mxu0 %v1378
        %2116 = vmatmul.mubr.f32.gmra.mrb[0].mxu0 %v1377
        %v2117 = vpop.f32.mrb[0].mxu0
        %v2118 = vadd.f32 0.0, %v2117
        %v2119 = vpop.f32.mrb[0].mxu0
        %v2120 = vadd.f32 0.0, %v2119
        %2121 = vmatprep.mubr.f32.mxu0 %v1382
        %2122 = vmatmul.mubr.f32.gmra.mrb[0].mxu0 %v1381
        %v2123 = vpop.f32.mrb[0].mxu0
        %v2124 = vadd.f32 0.0, %v2123
        %v2125 = vpop.f32.mrb[0].mxu0
        %v2126 = vadd.f32 0.0, %v2125
        %2127 = vmatprep.mubr.f32.mxu0 %v1386
        %2128 = vmatmul.mubr.f32.gmra.mrb[0].mxu0 %v1385
        %v2129 = vpop.f32.mrb[0].mxu0
        %v2130 = vadd.f32 0.0, %v2129
        %v2131 = vpop.f32.mrb[0].mxu0
        %v2132 = vadd.f32 0.0, %v2131
        %2133 = vmatprep.mubr.f32.mxu0 %v1390
        %2134 = vmatmul.mubr.f32.gmra.mrb[0].mxu0 %v1389
        %v2135 = vpop.f32.mrb[0].mxu0
        %v2136 = vadd.f32 0.0, %v2135
        %v2137 = vpop.f32.mrb[0].mxu0
        %v2138 = vadd.f32 0.0, %v2137
        %2139 = vmatprep.mubr.f32.mxu0 %v1394
        %2140 = vmatmul.mubr.f32.gmra.mrb[0].mxu0 %v1393
        %v2141 = vpop.f32.mrb[0].mxu0
        %v2142 = vadd.f32 0.0, %v2141
        %v2143 = vpop.f32.mrb[0].mxu0
        %v2144 = vadd.f32 0.0, %v2143
        %2145 = vmatprep.mubr.f32.mxu0 %v1398
        %2146 = vmatmul.mubr.f32.gmra.mrb[0].mxu0 %v1397
        %v2147 = vpop.f32.mrb[0].mxu0
        %v2148 = vadd.f32 0.0, %v2147
        %v2149 = vpop.f32.mrb[0].mxu0
        %v2150 = vadd.f32 0.0, %v2149
        %2151 = vmatprep.mubr.f32.mxu0 %v1402
        %2152 = vmatmul.mubr.f32.gmra.mrb[0].mxu0 %v1401
        %v2153 = vpop.f32.mrb[0].mxu0
        %v2154 = vadd.f32 0.0, %v2153
        %v2155 = vpop.f32.mrb[0].mxu0
        %v2156 = vadd.f32 0.0, %v2155
        %2157 = vmatprep.mubr.f32.mxu0 %v1406
        %2158 = vmatmul.mubr.f32.gmra.mrb[0].mxu0 %v1405
        %v2159 = vpop.f32.mrb[0].mxu0
        %v2160 = vadd.f32 0.0, %v2159
        %v2161 = vpop.f32.mrb[0].mxu0
        %v2162 = vadd.f32 0.0, %v2161
        %2163 = vmatprep.mubr.f32.mxu0 %v1410
        %2164 = vmatmul.mubr.f32.gmra.mrb[0].mxu0 %v1409
        %v2165 = vpop.f32.mrb[0].mxu0
        %v2166 = vadd.f32 0.0, %v2165
        %v2167 = vpop.f32.mrb[0].mxu0
        %v2168 = vadd.f32 0.0, %v2167
        %2169 = vmatprep.mubr.f32.mxu0 %v1414
        %2170 = vmatmul.mubr.f32.gmra.mrb[0].mxu0 %v1413
        %v2171 = vpop.f32.mrb[0].mxu0
        %v2172 = vadd.f32 0.0, %v2171
        %v2173 = vpop.f32.mrb[0].mxu0
        %v2174 = vadd.f32 0.0, %v2173
        %2175 = vmatprep.mubr.f32.mxu0 %v1418
        %2176 = vmatmul.mubr.f32.gmra.mrb[0].mxu0 %v1417
        %v2177 = vpop.f32.mrb[0].mxu0
        %v2178 = vadd.f32 0.0, %v2177
        %v2179 = vpop.f32.mrb[0].mxu0
        %v2180 = vadd.f32 0.0, %v2179
        %2181 = vmatprep.mubr.f32.mxu0 %v1422
        %2182 = vmatmul.mubr.f32.gmra.mrb[0].mxu0 %v1421
        %v2183 = vpop.f32.mrb[0].mxu0
        %v2184 = vadd.f32 0.0, %v2183
        %v2185 = vpop.f32.mrb[0].mxu0
        %v2186 = vadd.f32 0.0, %v2185
        %2187 = vmatprep.mubr.f32.mxu0 %v1426
        %2188 = vmatmul.mubr.f32.gmra.mrb[0].mxu0 %v1425
        %v2189 = vpop.f32.mrb[0].mxu0
        %v2190 = vadd.f32 0.0, %v2189
        %v2191 = vpop.f32.mrb[0].mxu0
        %v2192 = vadd.f32 0.0, %v2191
        %2193 = vmatprep.mubr.f32.mxu0 %v1430
        %2194 = vmatmul.mubr.f32.gmra.mrb[0].mxu0 %v1429
        %v2195 = vpop.f32.mrb[0].mxu0
        %v2196 = vadd.f32 0.0, %v2195
        %v2197 = vpop.f32.mrb[0].mxu0
        %v2198 = vadd.f32 0.0, %v2197
        %2199 = vmatprep.mubr.f32.mxu0 %v1434
        %2200 = vmatmul.mubr.f32.gmra.mrb[0].mxu0 %v1433
        %v2201 = vpop.f32.mrb[0].mxu0
        %v2202 = vadd.f32 0.0, %v2201
        %v2203 = vpop.f32.mrb[0].mxu0
        %v2204 = vadd.f32 0.0, %v2203
        %2205 = vdwg.mxu0
        %2206 = vmatprep.subr.mxu0 %v1694
        %2207 = vmatpush1.msra.mxu0 %v1693
        %2208 = vmatprep.subr.mxu0 %v1702
        %2209 = vmatpush1.msra.mxu0 %v1701
        %2210 = vmatprep.subr.mxu0 %v1710
        %2211 = vmatpush1.msra.mxu0 %v1709
        %2212 = vmatprep.subr.mxu0 %v1718
        %2213 = vmatpush1.msra.mxu0 %v1717
        %2214 = vmatprep.subr.mxu0 %v1726
        %2215 = vmatpush1.msra.mxu0 %v1725
        %2216 = vmatprep.subr.mxu0 %v1734
        %2217 = vmatpush1.msra.mxu0 %v1733
        %2218 = vmatprep.subr.mxu0 %v1742
        %2219 = vmatpush1.msra.mxu0 %v1741
        %2220 = vmatprep.subr.mxu0 %v1750
        %2221 = vmatpush1.msra.mxu0 %v1749
        %2222 = vmatprep.subr.mxu0 %v1758
        %2223 = vmatpush1.msra.mxu0 %v1757
        %2224 = vmatprep.subr.mxu0 %v1766
        %2225 = vmatpush1.msra.mxu0 %v1765
        %2226 = vmatprep.subr.mxu0 %v1774
        %2227 = vmatpush1.msra.mxu0 %v1773
        %2228 = vmatprep.subr.mxu0 %v1782
        %2229 = vmatpush1.msra.mxu0 %v1781
        %2230 = vmatprep.subr.mxu0 %v1790
        %2231 = vmatpush1.msra.mxu0 %v1789
        %2232 = vmatprep.subr.mxu0 %v1798
        %2233 = vmatpush1.msra.mxu0 %v1797
        %2234 = vmatprep.subr.mxu0 %v1806
        %2235 = vmatpush1.msra.mxu0 %v1805
        %2236 = vmatprep.subr.mxu0 %v1814
        %2237 = vmatpush1.msra.mxu0 %v1813
        %2238 = vmatprep.subr.mxu0 %v1822
        %2239 = vmatpush1.msra.mxu0 %v1821
        %2240 = vmatprep.subr.mxu0 %v1830
        %2241 = vmatpush1.msra.mxu0 %v1829
        %2242 = vmatprep.subr.mxu0 %v1838
        %2243 = vmatpush1.msra.mxu0 %v1837
        %2244 = vmatprep.subr.mxu0 %v1846
        %2245 = vmatpush1.msra.mxu0 %v1845
        %2246 = vmatprep.subr.mxu0 %v1854
        %2247 = vmatpush1.msra.mxu0 %v1853
        %2248 = vmatprep.subr.mxu0 %v1862
        %2249 = vmatpush1.msra.mxu0 %v1861
        %2250 = vmatprep.subr.mxu0 %v1870
        %2251 = vmatpush1.msra.mxu0 %v1869
        %2252 = vmatprep.subr.mxu0 %v1878
        %2253 = vmatpush1.msra.mxu0 %v1877
        %2254 = vmatprep.subr.mxu0 %v1886
        %2255 = vmatpush1.msra.mxu0 %v1885
        %2256 = vmatprep.subr.mxu0 %v1894
        %2257 = vmatpush1.msra.mxu0 %v1893
        %2258 = vmatprep.subr.mxu0 %v1902
        %2259 = vmatpush1.msra.mxu0 %v1901
        %2260 = vmatprep.subr.mxu0 %v1910
        %2261 = vmatpush1.msra.mxu0 %v1909
        %2262 = vmatprep.subr.mxu0 %v1918
        %2263 = vmatpush1.msra.mxu0 %v1917
        %2264 = vmatprep.subr.mxu0 %v1926
        %2265 = vmatpush1.msra.mxu0 %v1925
        %2266 = vmatprep.subr.mxu0 %v1934
        %2267 = vmatpush1.msra.mxu0 %v1933
        %2268 = vmatprep.subr.mxu0 %v1942
        %2269 = vmatpush1.msra.mxu0 %v1941
        %2270 = vmatprep.mubr.f32.mxu0 %v1312
        %2271 = vmatmul.mubr.f32.gmra.mrb[0].mxu0 %v1311
        %v2272 = vpop.f32.mrb[0].mxu0
        %v2273 = vadd.f32 %v2016, %v2272
        %v2274 = vpop.f32.mrb[0].mxu0
        %v2275 = vadd.f32 %v2018, %v2274
        %2276 = vmatprep.mubr.f32.mxu0 %v1316
        %2277 = vmatmul.mubr.f32.gmra.mrb[0].mxu0 %v1315
        %v2278 = vpop.f32.mrb[0].mxu0
        %v2279 = vadd.f32 %v2022, %v2278
        %v2280 = vpop.f32.mrb[0].mxu0
        %v2281 = vadd.f32 %v2024, %v2280
        %2282 = vmatprep.mubr.f32.mxu0 %v1320
        %2283 = vmatmul.mubr.f32.gmra.mrb[0].mxu0 %v1319
        %v2284 = vpop.f32.mrb[0].mxu0
        %v2285 = vadd.f32 %v2028, %v2284
        %v2286 = vpop.f32.mrb[0].mxu0
        %v2287 = vadd.f32 %v2030, %v2286
        %2288 = vmatprep.mubr.f32.mxu0 %v1324
        %2289 = vmatmul.mubr.f32.gmra.mrb[0].mxu0 %v1323
        %v2290 = vpop.f32.mrb[0].mxu0
        %v2291 = vadd.f32 %v2034, %v2290
        %v2292 = vpop.f32.mrb[0].mxu0
        %v2293 = vadd.f32 %v2036, %v2292
        %2294 = vmatprep.mubr.f32.mxu0 %v1328
        %2295 = vmatmul.mubr.f32.gmra.mrb[0].mxu0 %v1327
        %v2296 = vpop.f32.mrb[0].mxu0
        %v2297 = vadd.f32 %v2040, %v2296
        %v2298 = vpop.f32.mrb[0].mxu0
        %v2299 = vadd.f32 %v2042, %v2298
        %2300 = vmatprep.mubr.f32.mxu0 %v1332
        %2301 = vmatmul.mubr.f32.gmra.mrb[0].mxu0 %v1331
        %v2302 = vpop.f32.mrb[0].mxu0
        %v2303 = vadd.f32 %v2046, %v2302
        %v2304 = vpop.f32.mrb[0].mxu0
        %v2305 = vadd.f32 %v2048, %v2304
        %2306 = vmatprep.mubr.f32.mxu0 %v1336
        %2307 = vmatmul.mubr.f32.gmra.mrb[0].mxu0 %v1335
        %v2308 = vpop.f32.mrb[0].mxu0
        %v2309 = vadd.f32 %v2052, %v2308
        %v2310 = vpop.f32.mrb[0].mxu0
        %v2311 = vadd.f32 %v2054, %v2310
        %2312 = vmatprep.mubr.f32.mxu0 %v1340
        %2313 = vmatmul.mubr.f32.gmra.mrb[0].mxu0 %v1339
        %v2314 = vpop.f32.mrb[0].mxu0
        %v2315 = vadd.f32 %v2058, %v2314
        %v2316 = vpop.f32.mrb[0].mxu0
        %v2317 = vadd.f32 %v2060, %v2316
        %2318 = vmatprep.mubr.f32.mxu0 %v1344
        %2319 = vmatmul.mubr.f32.gmra.mrb[0].mxu0 %v1343
        %v2320 = vpop.f32.mrb[0].mxu0
        %v2321 = vadd.f32 %v2064, %v2320
        %v2322 = vpop.f32.mrb[0].mxu0
        %v2323 = vadd.f32 %v2066, %v2322
        %2324 = vmatprep.mubr.f32.mxu0 %v1348
        %2325 = vmatmul.mubr.f32.gmra.mrb[0].mxu0 %v1347
        %v2326 = vpop.f32.mrb[0].mxu0
        %v2327 = vadd.f32 %v2070, %v2326
        %v2328 = vpop.f32.mrb[0].mxu0
        %v2329 = vadd.f32 %v2072, %v2328
        %2330 = vmatprep.mubr.f32.mxu0 %v1352
        %2331 = vmatmul.mubr.f32.gmra.mrb[0].mxu0 %v1351
        %v2332 = vpop.f32.mrb[0].mxu0
        %v2333 = vadd.f32 %v2076, %v2332
        %v2334 = vpop.f32.mrb[0].mxu0
        %v2335 = vadd.f32 %v2078, %v2334
        %2336 = vmatprep.mubr.f32.mxu0 %v1356
        %2337 = vmatmul.mubr.f32.gmra.mrb[0].mxu0 %v1355
        %v2338 = vpop.f32.mrb[0].mxu0
        %v2339 = vadd.f32 %v2082, %v2338
        %v2340 = vpop.f32.mrb[0].mxu0
        %v2341 = vadd.f32 %v2084, %v2340
        %2342 = vmatprep.mubr.f32.mxu0 %v1360
        %2343 = vmatmul.mubr.f32.gmra.mrb[0].mxu0 %v1359
        %v2344 = vpop.f32.mrb[0].mxu0
        %v2345 = vadd.f32 %v2088, %v2344
        %v2346 = vpop.f32.mrb[0].mxu0
        %v2347 = vadd.f32 %v2090, %v2346
        %2348 = vmatprep.mubr.f32.mxu0 %v1364
        %2349 = vmatmul.mubr.f32.gmra.mrb[0].mxu0 %v1363
        %v2350 = vpop.f32.mrb[0].mxu0
        %v2351 = vadd.f32 %v2094, %v2350
        %v2352 = vpop.f32.mrb[0].mxu0
        %v2353 = vadd.f32 %v2096, %v2352
        %2354 = vmatprep.mubr.f32.mxu0 %v1368
        %2355 = vmatmul.mubr.f32.gmra.mrb[0].mxu0 %v1367
        %v2356 = vpop.f32.mrb[0].mxu0
        %v2357 = vadd.f32 %v2100, %v2356
        %v2358 = vpop.f32.mrb[0].mxu0
        %v2359 = vadd.f32 %v2102, %v2358
        %2360 = vmatprep.mubr.f32.mxu0 %v1372
        %2361 = vmatmul.mubr.f32.gmra.mrb[0].mxu0 %v1371
        %v2362 = vpop.f32.mrb[0].mxu0
        %v2363 = vadd.f32 %v2106, %v2362
        %v2364 = vpop.f32.mrb[0].mxu0
        %v2365 = vadd.f32 %v2108, %v2364
        %2366 = vmatprep.mubr.f32.mxu0 %v1376
        %2367 = vmatmul.mubr.f32.gmra.mrb[0].mxu0 %v1375
        %v2368 = vpop.f32.mrb[0].mxu0
        %v2369 = vadd.f32 %v2112, %v2368
        %v2370 = vpop.f32.mrb[0].mxu0
        %v2371 = vadd.f32 %v2114, %v2370
        %2372 = vmatprep.mubr.f32.mxu0 %v1380
        %2373 = vmatmul.mubr.f32.gmra.mrb[0].mxu0 %v1379
        %v2374 = vpop.f32.mrb[0].mxu0
        %v2375 = vadd.f32 %v2118, %v2374
        %v2376 = vpop.f32.mrb[0].mxu0
        %v2377 = vadd.f32 %v2120, %v2376
        %2378 = vmatprep.mubr.f32.mxu0 %v1384
        %2379 = vmatmul.mubr.f32.gmra.mrb[0].mxu0 %v1383
        %v2380 = vpop.f32.mrb[0].mxu0
        %v2381 = vadd.f32 %v2124, %v2380
        %v2382 = vpop.f32.mrb[0].mxu0
        %v2383 = vadd.f32 %v2126, %v2382
        %2384 = vmatprep.mubr.f32.mxu0 %v1388
        %2385 = vmatmul.mubr.f32.gmra.mrb[0].mxu0 %v1387
        %v2386 = vpop.f32.mrb[0].mxu0
        %v2387 = vadd.f32 %v2130, %v2386
        %v2388 = vpop.f32.mrb[0].mxu0
        %v2389 = vadd.f32 %v2132, %v2388
        %2390 = vmatprep.mubr.f32.mxu0 %v1392
        %2391 = vmatmul.mubr.f32.gmra.mrb[0].mxu0 %v1391
        %v2392 = vpop.f32.mrb[0].mxu0
        %v2393 = vadd.f32 %v2136, %v2392
        %v2394 = vpop.f32.mrb[0].mxu0
        %v2395 = vadd.f32 %v2138, %v2394
        %2396 = vmatprep.mubr.f32.mxu0 %v1396
        %2397 = vmatmul.mubr.f32.gmra.mrb[0].mxu0 %v1395
        %v2398 = vpop.f32.mrb[0].mxu0
        %v2399 = vadd.f32 %v2142, %v2398
        %v2400 = vpop.f32.mrb[0].mxu0
        %v2401 = vadd.f32 %v2144, %v2400
        %2402 = vmatprep.mubr.f32.mxu0 %v1400
        %2403 = vmatmul.mubr.f32.gmra.mrb[0].mxu0 %v1399
        %v2404 = vpop.f32.mrb[0].mxu0
        %v2405 = vadd.f32 %v2148, %v2404
        %v2406 = vpop.f32.mrb[0].mxu0
        %v2407 = vadd.f32 %v2150, %v2406
        %2408 = vmatprep.mubr.f32.mxu0 %v1404
        %2409 = vmatmul.mubr.f32.gmra.mrb[0].mxu0 %v1403
        %v2410 = vpop.f32.mrb[0].mxu0
        %v2411 = vadd.f32 %v2154, %v2410
        %v2412 = vpop.f32.mrb[0].mxu0
        %v2413 = vadd.f32 %v2156, %v2412
        %2414 = vmatprep.mubr.f32.mxu0 %v1408
        %2415 = vmatmul.mubr.f32.gmra.mrb[0].mxu0 %v1407
        %v2416 = vpop.f32.mrb[0].mxu0
        %v2417 = vadd.f32 %v2160, %v2416
        %v2418 = vpop.f32.mrb[0].mxu0
        %v2419 = vadd.f32 %v2162, %v2418
        %2420 = vmatprep.mubr.f32.mxu0 %v1412
        %2421 = vmatmul.mubr.f32.gmra.mrb[0].mxu0 %v1411
        %v2422 = vpop.f32.mrb[0].mxu0
        %v2423 = vadd.f32 %v2166, %v2422
        %v2424 = vpop.f32.mrb[0].mxu0
        %v2425 = vadd.f32 %v2168, %v2424
        %2426 = vmatprep.mubr.f32.mxu0 %v1416
        %2427 = vmatmul.mubr.f32.gmra.mrb[0].mxu0 %v1415
        %v2428 = vpop.f32.mrb[0].mxu0
        %v2429 = vadd.f32 %v2172, %v2428
        %v2430 = vpop.f32.mrb[0].mxu0
        %v2431 = vadd.f32 %v2174, %v2430
        %2432 = vmatprep.mubr.f32.mxu0 %v1420
        %2433 = vmatmul.mubr.f32.gmra.mrb[0].mxu0 %v1419
        %v2434 = vpop.f32.mrb[0].mxu0
        %v2435 = vadd.f32 %v2178, %v2434
        %v2436 = vpop.f32.mrb[0].mxu0
        %v2437 = vadd.f32 %v2180, %v2436
        %2438 = vmatprep.mubr.f32.mxu0 %v1424
        %2439 = vmatmul.mubr.f32.gmra.mrb[0].mxu0 %v1423
        %v2440 = vpop.f32.mrb[0].mxu0
        %v2441 = vadd.f32 %v2184, %v2440
        %v2442 = vpop.f32.mrb[0].mxu0
        %v2443 = vadd.f32 %v2186, %v2442
        %2444 = vmatprep.mubr.f32.mxu0 %v1428
        %2445 = vmatmul.mubr.f32.gmra.mrb[0].mxu0 %v1427
        %v2446 = vpop.f32.mrb[0].mxu0
        %v2447 = vadd.f32 %v2190, %v2446
        %v2448 = vpop.f32.mrb[0].mxu0
        %v2449 = vadd.f32 %v2192, %v2448
        %2450 = vmatprep.mubr.f32.mxu0 %v1432
        %2451 = vmatmul.mubr.f32.gmra.mrb[0].mxu0 %v1431
        %v2452 = vpop.f32.mrb[0].mxu0
        %v2453 = vadd.f32 %v2196, %v2452
        %v2454 = vpop.f32.mrb[0].mxu0
        %v2455 = vadd.f32 %v2198, %v2454
        %2456 = vmatprep.mubr.f32.mxu0 %v1436
        %2457 = vmatmul.mubr.f32.gmra.mrb[0].mxu0 %v1435
        %v2458 = vpop.f32.mrb[0].mxu0
        %v2459 = vadd.f32 %v2202, %v2458
        %v2460 = vpop.f32.mrb[0].mxu0
        %v2461 = vadd.f32 %v2204, %v2460
        %2462 = vdwg.mxu0
        %2463 = vmatprep.subr.mxu0 %v1440
        %2464 = vmatpush1.msra.mxu0 %v1439
        %2465 = vmatprep.subr.mxu0 %v1448
        %2466 = vmatpush1.msra.mxu0 %v1447
        %2467 = vmatprep.subr.mxu0 %v1456
        %2468 = vmatpush1.msra.mxu0 %v1455
        %2469 = vmatprep.subr.mxu0 %v1464
        %2470 = vmatpush1.msra.mxu0 %v1463
        %2471 = vmatprep.subr.mxu0 %v1472
        %2472 = vmatpush1.msra.mxu0 %v1471
        %2473 = vmatprep.subr.mxu0 %v1480
        %2474 = vmatpush1.msra.mxu0 %v1479
        %2475 = vmatprep.subr.mxu0 %v1488
        %2476 = vmatpush1.msra.mxu0 %v1487
        %2477 = vmatprep.subr.mxu0 %v1496
        %2478 = vmatpush1.msra.mxu0 %v1495
        %2479 = vmatprep.subr.mxu0 %v1504
        %2480 = vmatpush1.msra.mxu0 %v1503
        %2481 = vmatprep.subr.mxu0 %v1512
        %2482 = vmatpush1.msra.mxu0 %v1511
        %2483 = vmatprep.subr.mxu0 %v1520
        %2484 = vmatpush1.msra.mxu0 %v1519
        %2485 = vmatprep.subr.mxu0 %v1528
        %2486 = vmatpush1.msra.mxu0 %v1527
        %2487 = vmatprep.subr.mxu0 %v1536
        %2488 = vmatpush1.msra.mxu0 %v1535
        %2489 = vmatprep.subr.mxu0 %v1544
        %2490 = vmatpush1.msra.mxu0 %v1543
        %2491 = vmatprep.subr.mxu0 %v1552
        %2492 = vmatpush1.msra.mxu0 %v1551
        %2493 = vmatprep.subr.mxu0 %v1560
        %2494 = vmatpush1.msra.mxu0 %v1559
        %2495 = vmatprep.subr.mxu0 %v1568
        %2496 = vmatpush1.msra.mxu0 %v1567
        %2497 = vmatprep.subr.mxu0 %v1576
        %2498 = vmatpush1.msra.mxu0 %v1575
        %2499 = vmatprep.subr.mxu0 %v1584
        %2500 = vmatpush1.msra.mxu0 %v1583
        %2501 = vmatprep.subr.mxu0 %v1592
        %2502 = vmatpush1.msra.mxu0 %v1591
        %2503 = vmatprep.subr.mxu0 %v1600
        %2504 = vmatpush1.msra.mxu0 %v1599
        %2505 = vmatprep.subr.mxu0 %v1608
        %2506 = vmatpush1.msra.mxu0 %v1607
        %2507 = vmatprep.subr.mxu0 %v1616
        %2508 = vmatpush1.msra.mxu0 %v1615
        %2509 = vmatprep.subr.mxu0 %v1624
        %2510 = vmatpush1.msra.mxu0 %v1623
        %2511 = vmatprep.subr.mxu0 %v1632
        %2512 = vmatpush1.msra.mxu0 %v1631
        %2513 = vmatprep.subr.mxu0 %v1640
        %2514 = vmatpush1.msra.mxu0 %v1639
        %2515 = vmatprep.subr.mxu0 %v1648
        %2516 = vmatpush1.msra.mxu0 %v1647
        %2517 = vmatprep.subr.mxu0 %v1656
        %2518 = vmatpush1.msra.mxu0 %v1655
        %2519 = vmatprep.subr.mxu0 %v1664
        %2520 = vmatpush1.msra.mxu0 %v1663
        %2521 = vmatprep.subr.mxu0 %v1672
        %2522 = vmatpush1.msra.mxu0 %v1671
        %2523 = vmatprep.subr.mxu0 %v1680
        %2524 = vmatpush1.msra.mxu0 %v1679
        %2525 = vmatprep.subr.mxu0 %v1688
        %2526 = vmatpush1.msra.mxu0 %v1687
        %2527 = vmatprep.mubr.f32.mxu0 %v1310
        %2528 = vmatmul.mubr.f32.gmra.mrb[0].mxu0 %v1309
        %v2529 = vpop.f32.mrb[0].mxu0
        %v2530 = vadd.f32 0.0, %v2529
        %v2531 = vpop.f32.mrb[0].mxu0
        %v2532 = vadd.f32 0.0, %v2531
        %2533 = vmatprep.mubr.f32.mxu0 %v1314
        %2534 = vmatmul.mubr.f32.gmra.mrb[0].mxu0 %v1313
        %v2535 = vpop.f32.mrb[0].mxu0
        %v2536 = vadd.f32 0.0, %v2535
        %v2537 = vpop.f32.mrb[0].mxu0
        %v2538 = vadd.f32 0.0, %v2537
        %2539 = vmatprep.mubr.f32.mxu0 %v1318
        %2540 = vmatmul.mubr.f32.gmra.mrb[0].mxu0 %v1317
        %v2541 = vpop.f32.mrb[0].mxu0
        %v2542 = vadd.f32 0.0, %v2541
        %v2543 = vpop.f32.mrb[0].mxu0
        %v2544 = vadd.f32 0.0, %v2543
        %2545 = vmatprep.mubr.f32.mxu0 %v1322
        %2546 = vmatmul.mubr.f32.gmra.mrb[0].mxu0 %v1321
        %v2547 = vpop.f32.mrb[0].mxu0
        %v2548 = vadd.f32 0.0, %v2547
        %v2549 = vpop.f32.mrb[0].mxu0
        %v2550 = vadd.f32 0.0, %v2549
        %2551 = vmatprep.mubr.f32.mxu0 %v1326
        %2552 = vmatmul.mubr.f32.gmra.mrb[0].mxu0 %v1325
        %v2553 = vpop.f32.mrb[0].mxu0
        %v2554 = vadd.f32 0.0, %v2553
        %v2555 = vpop.f32.mrb[0].mxu0
        %v2556 = vadd.f32 0.0, %v2555
        %2557 = vmatprep.mubr.f32.mxu0 %v1330
        %2558 = vmatmul.mubr.f32.gmra.mrb[0].mxu0 %v1329
        %v2559 = vpop.f32.mrb[0].mxu0
        %v2560 = vadd.f32 0.0, %v2559
        %v2561 = vpop.f32.mrb[0].mxu0
        %v2562 = vadd.f32 0.0, %v2561
        %2563 = vmatprep.mubr.f32.mxu0 %v1334
        %2564 = vmatmul.mubr.f32.gmra.mrb[0].mxu0 %v1333
        %v2565 = vpop.f32.mrb[0].mxu0
        %v2566 = vadd.f32 0.0, %v2565
        %v2567 = vpop.f32.mrb[0].mxu0
        %v2568 = vadd.f32 0.0, %v2567
        %2569 = vmatprep.mubr.f32.mxu0 %v1338
        %2570 = vmatmul.mubr.f32.gmra.mrb[0].mxu0 %v1337
        %v2571 = vpop.f32.mrb[0].mxu0
        %v2572 = vadd.f32 0.0, %v2571
        %v2573 = vpop.f32.mrb[0].mxu0
        %v2574 = vadd.f32 0.0, %v2573
        %2575 = vmatprep.mubr.f32.mxu0 %v1342
        %2576 = vmatmul.mubr.f32.gmra.mrb[0].mxu0 %v1341
        %v2577 = vpop.f32.mrb[0].mxu0
        %v2578 = vadd.f32 0.0, %v2577
        %v2579 = vpop.f32.mrb[0].mxu0
        %v2580 = vadd.f32 0.0, %v2579
        %2581 = vmatprep.mubr.f32.mxu0 %v1346
        %2582 = vmatmul.mubr.f32.gmra.mrb[0].mxu0 %v1345
        %v2583 = vpop.f32.mrb[0].mxu0
        %v2584 = vadd.f32 0.0, %v2583
        %v2585 = vpop.f32.mrb[0].mxu0
        %v2586 = vadd.f32 0.0, %v2585
        %2587 = vmatprep.mubr.f32.mxu0 %v1350
        %2588 = vmatmul.mubr.f32.gmra.mrb[0].mxu0 %v1349
        %v2589 = vpop.f32.mrb[0].mxu0
        %v2590 = vadd.f32 0.0, %v2589
        %v2591 = vpop.f32.mrb[0].mxu0
        %v2592 = vadd.f32 0.0, %v2591
        %2593 = vmatprep.mubr.f32.mxu0 %v1354
        %2594 = vmatmul.mubr.f32.gmra.mrb[0].mxu0 %v1353
        %v2595 = vpop.f32.mrb[0].mxu0
        %v2596 = vadd.f32 0.0, %v2595
        %v2597 = vpop.f32.mrb[0].mxu0
        %v2598 = vadd.f32 0.0, %v2597
        %2599 = vmatprep.mubr.f32.mxu0 %v1358
        %2600 = vmatmul.mubr.f32.gmra.mrb[0].mxu0 %v1357
        %v2601 = vpop.f32.mrb[0].mxu0
        %v2602 = vadd.f32 0.0, %v2601
        %v2603 = vpop.f32.mrb[0].mxu0
        %v2604 = vadd.f32 0.0, %v2603
        %2605 = vmatprep.mubr.f32.mxu0 %v1362
        %2606 = vmatmul.mubr.f32.gmra.mrb[0].mxu0 %v1361
        %v2607 = vpop.f32.mrb[0].mxu0
        %v2608 = vadd.f32 0.0, %v2607
        %v2609 = vpop.f32.mrb[0].mxu0
        %v2610 = vadd.f32 0.0, %v2609
        %2611 = vmatprep.mubr.f32.mxu0 %v1366
        %2612 = vmatmul.mubr.f32.gmra.mrb[0].mxu0 %v1365
        %v2613 = vpop.f32.mrb[0].mxu0
        %v2614 = vadd.f32 0.0, %v2613
        %v2615 = vpop.f32.mrb[0].mxu0
        %v2616 = vadd.f32 0.0, %v2615
        %2617 = vmatprep.mubr.f32.mxu0 %v1370
        %2618 = vmatmul.mubr.f32.gmra.mrb[0].mxu0 %v1369
        %v2619 = vpop.f32.mrb[0].mxu0
        %v2620 = vadd.f32 0.0, %v2619
        %v2621 = vpop.f32.mrb[0].mxu0
        %v2622 = vadd.f32 0.0, %v2621
        %2623 = vmatprep.mubr.f32.mxu0 %v1374
        %2624 = vmatmul.mubr.f32.gmra.mrb[0].mxu0 %v1373
        %v2625 = vpop.f32.mrb[0].mxu0
        %v2626 = vadd.f32 0.0, %v2625
        %v2627 = vpop.f32.mrb[0].mxu0
        %v2628 = vadd.f32 0.0, %v2627
        %2629 = vmatprep.mubr.f32.mxu0 %v1378
        %2630 = vmatmul.mubr.f32.gmra.mrb[0].mxu0 %v1377
        %v2631 = vpop.f32.mrb[0].mxu0
        %v2632 = vadd.f32 0.0, %v2631
        %v2633 = vpop.f32.mrb[0].mxu0
        %v2634 = vadd.f32 0.0, %v2633
        %2635 = vmatprep.mubr.f32.mxu0 %v1382
        %2636 = vmatmul.mubr.f32.gmra.mrb[0].mxu0 %v1381
        %v2637 = vpop.f32.mrb[0].mxu0
        %v2638 = vadd.f32 0.0, %v2637
        %v2639 = vpop.f32.mrb[0].mxu0
        %v2640 = vadd.f32 0.0, %v2639
        %2641 = vmatprep.mubr.f32.mxu0 %v1386
        %2642 = vmatmul.mubr.f32.gmra.mrb[0].mxu0 %v1385
        %v2643 = vpop.f32.mrb[0].mxu0
        %v2644 = vadd.f32 0.0, %v2643
        %v2645 = vpop.f32.mrb[0].mxu0
        %v2646 = vadd.f32 0.0, %v2645
        %2647 = vmatprep.mubr.f32.mxu0 %v1390
        %2648 = vmatmul.mubr.f32.gmra.mrb[0].mxu0 %v1389
        %v2649 = vpop.f32.mrb[0].mxu0
        %v2650 = vadd.f32 0.0, %v2649
        %v2651 = vpop.f32.mrb[0].mxu0
        %v2652 = vadd.f32 0.0, %v2651
        %2653 = vmatprep.mubr.f32.mxu0 %v1394
        %2654 = vmatmul.mubr.f32.gmra.mrb[0].mxu0 %v1393
        %v2655 = vpop.f32.mrb[0].mxu0
        %v2656 = vadd.f32 0.0, %v2655
        %v2657 = vpop.f32.mrb[0].mxu0
        %v2658 = vadd.f32 0.0, %v2657
        %2659 = vmatprep.mubr.f32.mxu0 %v1398
        %2660 = vmatmul.mubr.f32.gmra.mrb[0].mxu0 %v1397
        %v2661 = vpop.f32.mrb[0].mxu0
        %v2662 = vadd.f32 0.0, %v2661
        %v2663 = vpop.f32.mrb[0].mxu0
        %v2664 = vadd.f32 0.0, %v2663
        %2665 = vmatprep.mubr.f32.mxu0 %v1402
        %2666 = vmatmul.mubr.f32.gmra.mrb[0].mxu0 %v1401
        %v2667 = vpop.f32.mrb[0].mxu0
        %v2668 = vadd.f32 0.0, %v2667
        %v2669 = vpop.f32.mrb[0].mxu0
        %v2670 = vadd.f32 0.0, %v2669
        %2671 = vmatprep.mubr.f32.mxu0 %v1406
        %2672 = vmatmul.mubr.f32.gmra.mrb[0].mxu0 %v1405
        %v2673 = vpop.f32.mrb[0].mxu0
        %v2674 = vadd.f32 0.0, %v2673
        %v2675 = vpop.f32.mrb[0].mxu0
        %v2676 = vadd.f32 0.0, %v2675
        %2677 = vmatprep.mubr.f32.mxu0 %v1410
        %2678 = vmatmul.mubr.f32.gmra.mrb[0].mxu0 %v1409
        %v2679 = vpop.f32.mrb[0].mxu0
        %v2680 = vadd.f32 0.0, %v2679
        %v2681 = vpop.f32.mrb[0].mxu0
        %v2682 = vadd.f32 0.0, %v2681
        %2683 = vmatprep.mubr.f32.mxu0 %v1414
        %2684 = vmatmul.mubr.f32.gmra.mrb[0].mxu0 %v1413
        %v2685 = vpop.f32.mrb[0].mxu0
        %v2686 = vadd.f32 0.0, %v2685
        %v2687 = vpop.f32.mrb[0].mxu0
        %v2688 = vadd.f32 0.0, %v2687
        %2689 = vmatprep.mubr.f32.mxu0 %v1418
        %2690 = vmatmul.mubr.f32.gmra.mrb[0].mxu0 %v1417
        %v2691 = vpop.f32.mrb[0].mxu0
        %v2692 = vadd.f32 0.0, %v2691
        %v2693 = vpop.f32.mrb[0].mxu0
        %v2694 = vadd.f32 0.0, %v2693
        %2695 = vmatprep.mubr.f32.mxu0 %v1422
        %2696 = vmatmul.mubr.f32.gmra.mrb[0].mxu0 %v1421
        %v2697 = vpop.f32.mrb[0].mxu0
        %v2698 = vadd.f32 0.0, %v2697
        %v2699 = vpop.f32.mrb[0].mxu0
        %v2700 = vadd.f32 0.0, %v2699
        %2701 = vmatprep.mubr.f32.mxu0 %v1426
        %2702 = vmatmul.mubr.f32.gmra.mrb[0].mxu0 %v1425
        %v2703 = vpop.f32.mrb[0].mxu0
        %v2704 = vadd.f32 0.0, %v2703
        %v2705 = vpop.f32.mrb[0].mxu0
        %v2706 = vadd.f32 0.0, %v2705
        %2707 = vmatprep.mubr.f32.mxu0 %v1430
        %2708 = vmatmul.mubr.f32.gmra.mrb[0].mxu0 %v1429
        %v2709 = vpop.f32.mrb[0].mxu0
        %v2710 = vadd.f32 0.0, %v2709
        %v2711 = vpop.f32.mrb[0].mxu0
        %v2712 = vadd.f32 0.0, %v2711
        %2713 = vmatprep.mubr.f32.mxu0 %v1434
        %2714 = vmatmul.mubr.f32.gmra.mrb[0].mxu0 %v1433
        %v2715 = vpop.f32.mrb[0].mxu0
        %v2716 = vadd.f32 0.0, %v2715
        %v2717 = vpop.f32.mrb[0].mxu0
        %v2718 = vadd.f32 0.0, %v2717
        %2719 = vdwg.mxu0
        %2720 = vmatprep.subr.mxu0 %v1696
        %2721 = vmatpush1.msra.mxu0 %v1695
        %2722 = vmatprep.subr.mxu0 %v1704
        %2723 = vmatpush1.msra.mxu0 %v1703
        %2724 = vmatprep.subr.mxu0 %v1712
        %2725 = vmatpush1.msra.mxu0 %v1711
        %2726 = vmatprep.subr.mxu0 %v1720
        %2727 = vmatpush1.msra.mxu0 %v1719
        %2728 = vmatprep.subr.mxu0 %v1728
        %2729 = vmatpush1.msra.mxu0 %v1727
        %2730 = vmatprep.subr.mxu0 %v1736
        %2731 = vmatpush1.msra.mxu0 %v1735
        %2732 = vmatprep.subr.mxu0 %v1744
        %2733 = vmatpush1.msra.mxu0 %v1743
        %2734 = vmatprep.subr.mxu0 %v1752
        %2735 = vmatpush1.msra.mxu0 %v1751
        %2736 = vmatprep.subr.mxu0 %v1760
        %2737 = vmatpush1.msra.mxu0 %v1759
        %2738 = vmatprep.subr.mxu0 %v1768
        %2739 = vmatpush1.msra.mxu0 %v1767
        %2740 = vmatprep.subr.mxu0 %v1776
        %2741 = vmatpush1.msra.mxu0 %v1775
        %2742 = vmatprep.subr.mxu0 %v1784
        %2743 = vmatpush1.msra.mxu0 %v1783
        %2744 = vmatprep.subr.mxu0 %v1792
        %2745 = vmatpush1.msra.mxu0 %v1791
        %2746 = vmatprep.subr.mxu0 %v1800
        %2747 = vmatpush1.msra.mxu0 %v1799
        %2748 = vmatprep.subr.mxu0 %v1808
        %2749 = vmatpush1.msra.mxu0 %v1807
        %2750 = vmatprep.subr.mxu0 %v1816
        %2751 = vmatpush1.msra.mxu0 %v1815
        %2752 = vmatprep.subr.mxu0 %v1824
        %2753 = vmatpush1.msra.mxu0 %v1823
        %2754 = vmatprep.subr.mxu0 %v1832
        %2755 = vmatpush1.msra.mxu0 %v1831
        %2756 = vmatprep.subr.mxu0 %v1840
        %2757 = vmatpush1.msra.mxu0 %v1839
        %2758 = vmatprep.subr.mxu0 %v1848
        %2759 = vmatpush1.msra.mxu0 %v1847
        %2760 = vmatprep.subr.mxu0 %v1856
        %2761 = vmatpush1.msra.mxu0 %v1855
        %2762 = vmatprep.subr.mxu0 %v1864
        %2763 = vmatpush1.msra.mxu0 %v1863
        %2764 = vmatprep.subr.mxu0 %v1872
        %2765 = vmatpush1.msra.mxu0 %v1871
        %2766 = vmatprep.subr.mxu0 %v1880
        %2767 = vmatpush1.msra.mxu0 %v1879
        %2768 = vmatprep.subr.mxu0 %v1888
        %2769 = vmatpush1.msra.mxu0 %v1887
        %2770 = vmatprep.subr.mxu0 %v1896
        %2771 = vmatpush1.msra.mxu0 %v1895
        %2772 = vmatprep.subr.mxu0 %v1904
        %2773 = vmatpush1.msra.mxu0 %v1903
        %2774 = vmatprep.subr.mxu0 %v1912
        %2775 = vmatpush1.msra.mxu0 %v1911
        %2776 = vmatprep.subr.mxu0 %v1920
        %2777 = vmatpush1.msra.mxu0 %v1919
        %2778 = vmatprep.subr.mxu0 %v1928
        %2779 = vmatpush1.msra.mxu0 %v1927
        %2780 = vmatprep.subr.mxu0 %v1936
        %2781 = vmatpush1.msra.mxu0 %v1935
        %2782 = vmatprep.subr.mxu0 %v1944
        %2783 = vmatpush1.msra.mxu0 %v1943
        %2784 = vmatprep.mubr.f32.mxu0 %v1312
        %2785 = vmatmul.mubr.f32.gmra.mrb[0].mxu0 %v1311
        %v2786 = vpop.f32.mrb[0].mxu0
        %v2787 = vadd.f32 %v2530, %v2786
        %v2788 = vpop.f32.mrb[0].mxu0
        %v2789 = vadd.f32 %v2532, %v2788
        %2790 = vmatprep.mubr.f32.mxu0 %v1316
        %2791 = vmatmul.mubr.f32.gmra.mrb[0].mxu0 %v1315
        %v2792 = vpop.f32.mrb[0].mxu0
        %v2793 = vadd.f32 %v2536, %v2792
        %v2794 = vpop.f32.mrb[0].mxu0
        %v2795 = vadd.f32 %v2538, %v2794
        %2796 = vmatprep.mubr.f32.mxu0 %v1320
        %2797 = vmatmul.mubr.f32.gmra.mrb[0].mxu0 %v1319
        %v2798 = vpop.f32.mrb[0].mxu0
        %v2799 = vadd.f32 %v2542, %v2798
        %v2800 = vpop.f32.mrb[0].mxu0
        %v2801 = vadd.f32 %v2544, %v2800
        %2802 = vmatprep.mubr.f32.mxu0 %v1324
        %2803 = vmatmul.mubr.f32.gmra.mrb[0].mxu0 %v1323
        %v2804 = vpop.f32.mrb[0].mxu0
        %v2805 = vadd.f32 %v2548, %v2804
        %v2806 = vpop.f32.mrb[0].mxu0
        %v2807 = vadd.f32 %v2550, %v2806
        %2808 = vmatprep.mubr.f32.mxu0 %v1328
        %2809 = vmatmul.mubr.f32.gmra.mrb[0].mxu0 %v1327
        %v2810 = vpop.f32.mrb[0].mxu0
        %v2811 = vadd.f32 %v2554, %v2810
        %v2812 = vpop.f32.mrb[0].mxu0
        %v2813 = vadd.f32 %v2556, %v2812
        %2814 = vmatprep.mubr.f32.mxu0 %v1332
        %2815 = vmatmul.mubr.f32.gmra.mrb[0].mxu0 %v1331
        %v2816 = vpop.f32.mrb[0].mxu0
        %v2817 = vadd.f32 %v2560, %v2816
        %v2818 = vpop.f32.mrb[0].mxu0
        %v2819 = vadd.f32 %v2562, %v2818
        %2820 = vmatprep.mubr.f32.mxu0 %v1336
        %2821 = vmatmul.mubr.f32.gmra.mrb[0].mxu0 %v1335
        %v2822 = vpop.f32.mrb[0].mxu0
        %v2823 = vadd.f32 %v2566, %v2822
        %v2824 = vpop.f32.mrb[0].mxu0
        %v2825 = vadd.f32 %v2568, %v2824
        %2826 = vmatprep.mubr.f32.mxu0 %v1340
        %2827 = vmatmul.mubr.f32.gmra.mrb[0].mxu0 %v1339
        %v2828 = vpop.f32.mrb[0].mxu0
        %v2829 = vadd.f32 %v2572, %v2828
        %v2830 = vpop.f32.mrb[0].mxu0
        %v2831 = vadd.f32 %v2574, %v2830
        %2832 = vmatprep.mubr.f32.mxu0 %v1344
        %2833 = vmatmul.mubr.f32.gmra.mrb[0].mxu0 %v1343
        %v2834 = vpop.f32.mrb[0].mxu0
        %v2835 = vadd.f32 %v2578, %v2834
        %v2836 = vpop.f32.mrb[0].mxu0
        %v2837 = vadd.f32 %v2580, %v2836
        %2838 = vmatprep.mubr.f32.mxu0 %v1348
        %2839 = vmatmul.mubr.f32.gmra.mrb[0].mxu0 %v1347
        %v2840 = vpop.f32.mrb[0].mxu0
        %v2841 = vadd.f32 %v2584, %v2840
        %v2842 = vpop.f32.mrb[0].mxu0
        %v2843 = vadd.f32 %v2586, %v2842
        %2844 = vmatprep.mubr.f32.mxu0 %v1352
        %2845 = vmatmul.mubr.f32.gmra.mrb[0].mxu0 %v1351
        %v2846 = vpop.f32.mrb[0].mxu0
        %v2847 = vadd.f32 %v2590, %v2846
        %v2848 = vpop.f32.mrb[0].mxu0
        %v2849 = vadd.f32 %v2592, %v2848
        %2850 = vmatprep.mubr.f32.mxu0 %v1356
        %2851 = vmatmul.mubr.f32.gmra.mrb[0].mxu0 %v1355
        %v2852 = vpop.f32.mrb[0].mxu0
        %v2853 = vadd.f32 %v2596, %v2852
        %v2854 = vpop.f32.mrb[0].mxu0
        %v2855 = vadd.f32 %v2598, %v2854
        %2856 = vmatprep.mubr.f32.mxu0 %v1360
        %2857 = vmatmul.mubr.f32.gmra.mrb[0].mxu0 %v1359
        %v2858 = vpop.f32.mrb[0].mxu0
        %v2859 = vadd.f32 %v2602, %v2858
        %v2860 = vpop.f32.mrb[0].mxu0
        %v2861 = vadd.f32 %v2604, %v2860
        %2862 = vmatprep.mubr.f32.mxu0 %v1364
        %2863 = vmatmul.mubr.f32.gmra.mrb[0].mxu0 %v1363
        %v2864 = vpop.f32.mrb[0].mxu0
        %v2865 = vadd.f32 %v2608, %v2864
        %v2866 = vpop.f32.mrb[0].mxu0
        %v2867 = vadd.f32 %v2610, %v2866
        %2868 = vmatprep.mubr.f32.mxu0 %v1368
        %2869 = vmatmul.mubr.f32.gmra.mrb[0].mxu0 %v1367
        %v2870 = vpop.f32.mrb[0].mxu0
        %v2871 = vadd.f32 %v2614, %v2870
        %v2872 = vpop.f32.mrb[0].mxu0
        %v2873 = vadd.f32 %v2616, %v2872
        %2874 = vmatprep.mubr.f32.mxu0 %v1372
        %2875 = vmatmul.mubr.f32.gmra.mrb[0].mxu0 %v1371
        %v2876 = vpop.f32.mrb[0].mxu0
        %v2877 = vadd.f32 %v2620, %v2876
        %v2878 = vpop.f32.mrb[0].mxu0
        %v2879 = vadd.f32 %v2622, %v2878
        %2880 = vmatprep.mubr.f32.mxu0 %v1376
        %2881 = vmatmul.mubr.f32.gmra.mrb[0].mxu0 %v1375
        %v2882 = vpop.f32.mrb[0].mxu0
        %v2883 = vadd.f32 %v2626, %v2882
        %v2884 = vpop.f32.mrb[0].mxu0
        %v2885 = vadd.f32 %v2628, %v2884
        %2886 = vmatprep.mubr.f32.mxu0 %v1380
        %2887 = vmatmul.mubr.f32.gmra.mrb[0].mxu0 %v1379
        %v2888 = vpop.f32.mrb[0].mxu0
        %v2889 = vadd.f32 %v2632, %v2888
        %v2890 = vpop.f32.mrb[0].mxu0
        %v2891 = vadd.f32 %v2634, %v2890
        %2892 = vmatprep.mubr.f32.mxu0 %v1384
        %2893 = vmatmul.mubr.f32.gmra.mrb[0].mxu0 %v1383
        %v2894 = vpop.f32.mrb[0].mxu0
        %v2895 = vadd.f32 %v2638, %v2894
        %v2896 = vpop.f32.mrb[0].mxu0
        %v2897 = vadd.f32 %v2640, %v2896
        %2898 = vmatprep.mubr.f32.mxu0 %v1388
        %2899 = vmatmul.mubr.f32.gmra.mrb[0].mxu0 %v1387
        %v2900 = vpop.f32.mrb[0].mxu0
        %v2901 = vadd.f32 %v2644, %v2900
        %v2902 = vpop.f32.mrb[0].mxu0
        %v2903 = vadd.f32 %v2646, %v2902
        %2904 = vmatprep.mubr.f32.mxu0 %v1392
        %2905 = vmatmul.mubr.f32.gmra.mrb[0].mxu0 %v1391
        %v2906 = vpop.f32.mrb[0].mxu0
        %v2907 = vadd.f32 %v2650, %v2906
        %v2908 = vpop.f32.mrb[0].mxu0
        %v2909 = vadd.f32 %v2652, %v2908
        %2910 = vmatprep.mubr.f32.mxu0 %v1396
        %2911 = vmatmul.mubr.f32.gmra.mrb[0].mxu0 %v1395
        %v2912 = vpop.f32.mrb[0].mxu0
        %v2913 = vadd.f32 %v2656, %v2912
        %v2914 = vpop.f32.mrb[0].mxu0
        %v2915 = vadd.f32 %v2658, %v2914
        %2916 = vmatprep.mubr.f32.mxu0 %v1400
        %2917 = vmatmul.mubr.f32.gmra.mrb[0].mxu0 %v1399
        %v2918 = vpop.f32.mrb[0].mxu0
        %v2919 = vadd.f32 %v2662, %v2918
        %v2920 = vpop.f32.mrb[0].mxu0
        %v2921 = vadd.f32 %v2664, %v2920
        %2922 = vmatprep.mubr.f32.mxu0 %v1404
        %2923 = vmatmul.mubr.f32.gmra.mrb[0].mxu0 %v1403
        %v2924 = vpop.f32.mrb[0].mxu0
        %v2925 = vadd.f32 %v2668, %v2924
        %v2926 = vpop.f32.mrb[0].mxu0
        %v2927 = vadd.f32 %v2670, %v2926
        %2928 = vmatprep.mubr.f32.mxu0 %v1408
        %2929 = vmatmul.mubr.f32.gmra.mrb[0].mxu0 %v1407
        %v2930 = vpop.f32.mrb[0].mxu0
        %v2931 = vadd.f32 %v2674, %v2930
        %v2932 = vpop.f32.mrb[0].mxu0
        %v2933 = vadd.f32 %v2676, %v2932
        %2934 = vmatprep.mubr.f32.mxu0 %v1412
        %2935 = vmatmul.mubr.f32.gmra.mrb[0].mxu0 %v1411
        %v2936 = vpop.f32.mrb[0].mxu0
        %v2937 = vadd.f32 %v2680, %v2936
        %v2938 = vpop.f32.mrb[0].mxu0
        %v2939 = vadd.f32 %v2682, %v2938
        %2940 = vmatprep.mubr.f32.mxu0 %v1416
        %2941 = vmatmul.mubr.f32.gmra.mrb[0].mxu0 %v1415
        %v2942 = vpop.f32.mrb[0].mxu0
        %v2943 = vadd.f32 %v2686, %v2942
        %v2944 = vpop.f32.mrb[0].mxu0
        %v2945 = vadd.f32 %v2688, %v2944
        %2946 = vmatprep.mubr.f32.mxu0 %v1420
        %2947 = vmatmul.mubr.f32.gmra.mrb[0].mxu0 %v1419
        %v2948 = vpop.f32.mrb[0].mxu0
        %v2949 = vadd.f32 %v2692, %v2948
        %v2950 = vpop.f32.mrb[0].mxu0
        %v2951 = vadd.f32 %v2694, %v2950
        %2952 = vmatprep.mubr.f32.mxu0 %v1424
        %2953 = vmatmul.mubr.f32.gmra.mrb[0].mxu0 %v1423
        %v2954 = vpop.f32.mrb[0].mxu0
        %v2955 = vadd.f32 %v2698, %v2954
        %v2956 = vpop.f32.mrb[0].mxu0
        %v2957 = vadd.f32 %v2700, %v2956
        %2958 = vmatprep.mubr.f32.mxu0 %v1428
        %2959 = vmatmul.mubr.f32.gmra.mrb[0].mxu0 %v1427
        %v2960 = vpop.f32.mrb[0].mxu0
        %v2961 = vadd.f32 %v2704, %v2960
        %v2962 = vpop.f32.mrb[0].mxu0
        %v2963 = vadd.f32 %v2706, %v2962
        %2964 = vmatprep.mubr.f32.mxu0 %v1432
        %2965 = vmatmul.mubr.f32.gmra.mrb[0].mxu0 %v1431
        %v2966 = vpop.f32.mrb[0].mxu0
        %v2967 = vadd.f32 %v2710, %v2966
        %v2968 = vpop.f32.mrb[0].mxu0
        %v2969 = vadd.f32 %v2712, %v2968
        %2970 = vmatprep.mubr.f32.mxu0 %v1436
        %2971 = vmatmul.mubr.f32.gmra.mrb[0].mxu0 %v1435
        %v2972 = vpop.f32.mrb[0].mxu0
        %v2973 = vadd.f32 %v2716, %v2972
        %v2974 = vpop.f32.mrb[0].mxu0
        %v2975 = vadd.f32 %v2718, %v2974
        %2976 = vdwg.mxu0
        %2977 = vmatprep.subr.mxu0 %v1442
        %2978 = vmatpush1.msra.mxu0 %v1441
        %2979 = vmatprep.subr.mxu0 %v1450
        %2980 = vmatpush1.msra.mxu0 %v1449
        %2981 = vmatprep.subr.mxu0 %v1458
        %2982 = vmatpush1.msra.mxu0 %v1457
        %2983 = vmatprep.subr.mxu0 %v1466
        %2984 = vmatpush1.msra.mxu0 %v1465
        %2985 = vmatprep.subr.mxu0 %v1474
        %2986 = vmatpush1.msra.mxu0 %v1473
        %2987 = vmatprep.subr.mxu0 %v1482
        %2988 = vmatpush1.msra.mxu0 %v1481
        %2989 = vmatprep.subr.mxu0 %v1490
        %2990 = vmatpush1.msra.mxu0 %v1489
        %2991 = vmatprep.subr.mxu0 %v1498
        %2992 = vmatpush1.msra.mxu0 %v1497
        %2993 = vmatprep.subr.mxu0 %v1506
        %2994 = vmatpush1.msra.mxu0 %v1505
        %2995 = vmatprep.subr.mxu0 %v1514
        %2996 = vmatpush1.msra.mxu0 %v1513
        %2997 = vmatprep.subr.mxu0 %v1522
        %2998 = vmatpush1.msra.mxu0 %v1521
        %2999 = vmatprep.subr.mxu0 %v1530
        %3000 = vmatpush1.msra.mxu0 %v1529
        %3001 = vmatprep.subr.mxu0 %v1538
        %3002 = vmatpush1.msra.mxu0 %v1537
        %3003 = vmatprep.subr.mxu0 %v1546
        %3004 = vmatpush1.msra.mxu0 %v1545
        %3005 = vmatprep.subr.mxu0 %v1554
        %3006 = vmatpush1.msra.mxu0 %v1553
        %3007 = vmatprep.subr.mxu0 %v1562
        %3008 = vmatpush1.msra.mxu0 %v1561
        %3009 = vmatprep.subr.mxu0 %v1570
        %3010 = vmatpush1.msra.mxu0 %v1569
        %3011 = vmatprep.subr.mxu0 %v1578
        %3012 = vmatpush1.msra.mxu0 %v1577
        %3013 = vmatprep.subr.mxu0 %v1586
        %3014 = vmatpush1.msra.mxu0 %v1585
        %3015 = vmatprep.subr.mxu0 %v1594
        %3016 = vmatpush1.msra.mxu0 %v1593
        %3017 = vmatprep.subr.mxu0 %v1602
        %3018 = vmatpush1.msra.mxu0 %v1601
        %3019 = vmatprep.subr.mxu0 %v1610
        %3020 = vmatpush1.msra.mxu0 %v1609
        %3021 = vmatprep.subr.mxu0 %v1618
        %3022 = vmatpush1.msra.mxu0 %v1617
        %3023 = vmatprep.subr.mxu0 %v1626
        %3024 = vmatpush1.msra.mxu0 %v1625
        %3025 = vmatprep.subr.mxu0 %v1634
        %3026 = vmatpush1.msra.mxu0 %v1633
        %3027 = vmatprep.subr.mxu0 %v1642
        %3028 = vmatpush1.msra.mxu0 %v1641
        %3029 = vmatprep.subr.mxu0 %v1650
        %3030 = vmatpush1.msra.mxu0 %v1649
        %3031 = vmatprep.subr.mxu0 %v1658
        %3032 = vmatpush1.msra.mxu0 %v1657
        %3033 = vmatprep.subr.mxu0 %v1666
        %3034 = vmatpush1.msra.mxu0 %v1665
        %3035 = vmatprep.subr.mxu0 %v1674
        %3036 = vmatpush1.msra.mxu0 %v1673
        %3037 = vmatprep.subr.mxu0 %v1682
        %3038 = vmatpush1.msra.mxu0 %v1681
        %3039 = vmatprep.subr.mxu0 %v1690
        %3040 = vmatpush1.msra.mxu0 %v1689
        %3041 = vmatprep.mubr.f32.mxu0 %v1310
        %3042 = vmatmul.mubr.f32.gmra.mrb[0].mxu0 %v1309
        %v3043 = vpop.f32.mrb[0].mxu0
        %v3044 = vadd.f32 0.0, %v3043
        %v3045 = vpop.f32.mrb[0].mxu0
        %v3046 = vadd.f32 0.0, %v3045
        %3047 = vmatprep.mubr.f32.mxu0 %v1314
        %3048 = vmatmul.mubr.f32.gmra.mrb[0].mxu0 %v1313
        %v3049 = vpop.f32.mrb[0].mxu0
        %v3050 = vadd.f32 0.0, %v3049
        %v3051 = vpop.f32.mrb[0].mxu0
        %v3052 = vadd.f32 0.0, %v3051
        %3053 = vmatprep.mubr.f32.mxu0 %v1318
        %3054 = vmatmul.mubr.f32.gmra.mrb[0].mxu0 %v1317
        %v3055 = vpop.f32.mrb[0].mxu0
        %v3056 = vadd.f32 0.0, %v3055
        %v3057 = vpop.f32.mrb[0].mxu0
        %v3058 = vadd.f32 0.0, %v3057
        %3059 = vmatprep.mubr.f32.mxu0 %v1322
        %3060 = vmatmul.mubr.f32.gmra.mrb[0].mxu0 %v1321
        %v3061 = vpop.f32.mrb[0].mxu0
        %v3062 = vadd.f32 0.0, %v3061
        %v3063 = vpop.f32.mrb[0].mxu0
        %v3064 = vadd.f32 0.0, %v3063
        %3065 = vmatprep.mubr.f32.mxu0 %v1326
        %3066 = vmatmul.mubr.f32.gmra.mrb[0].mxu0 %v1325
        %v3067 = vpop.f32.mrb[0].mxu0
        %v3068 = vadd.f32 0.0, %v3067
        %v3069 = vpop.f32.mrb[0].mxu0
        %v3070 = vadd.f32 0.0, %v3069
        %3071 = vmatprep.mubr.f32.mxu0 %v1330
        %3072 = vmatmul.mubr.f32.gmra.mrb[0].mxu0 %v1329
        %v3073 = vpop.f32.mrb[0].mxu0
        %v3074 = vadd.f32 0.0, %v3073
        %v3075 = vpop.f32.mrb[0].mxu0
        %v3076 = vadd.f32 0.0, %v3075
        %3077 = vmatprep.mubr.f32.mxu0 %v1334
        %3078 = vmatmul.mubr.f32.gmra.mrb[0].mxu0 %v1333
        %v3079 = vpop.f32.mrb[0].mxu0
        %v3080 = vadd.f32 0.0, %v3079
        %v3081 = vpop.f32.mrb[0].mxu0
        %v3082 = vadd.f32 0.0, %v3081
        %3083 = vmatprep.mubr.f32.mxu0 %v1338
        %3084 = vmatmul.mubr.f32.gmra.mrb[0].mxu0 %v1337
        %v3085 = vpop.f32.mrb[0].mxu0
        %v3086 = vadd.f32 0.0, %v3085
        %v3087 = vpop.f32.mrb[0].mxu0
        %v3088 = vadd.f32 0.0, %v3087
        %3089 = vmatprep.mubr.f32.mxu0 %v1342
        %3090 = vmatmul.mubr.f32.gmra.mrb[0].mxu0 %v1341
        %v3091 = vpop.f32.mrb[0].mxu0
        %v3092 = vadd.f32 0.0, %v3091
        %v3093 = vpop.f32.mrb[0].mxu0
        %v3094 = vadd.f32 0.0, %v3093
        %3095 = vmatprep.mubr.f32.mxu0 %v1346
        %3096 = vmatmul.mubr.f32.gmra.mrb[0].mxu0 %v1345
        %v3097 = vpop.f32.mrb[0].mxu0
        %v3098 = vadd.f32 0.0, %v3097
        %v3099 = vpop.f32.mrb[0].mxu0
        %v3100 = vadd.f32 0.0, %v3099
        %3101 = vmatprep.mubr.f32.mxu0 %v1350
        %3102 = vmatmul.mubr.f32.gmra.mrb[0].mxu0 %v1349
        %v3103 = vpop.f32.mrb[0].mxu0
        %v3104 = vadd.f32 0.0, %v3103
        %v3105 = vpop.f32.mrb[0].mxu0
        %v3106 = vadd.f32 0.0, %v3105
        %3107 = vmatprep.mubr.f32.mxu0 %v1354
        %3108 = vmatmul.mubr.f32.gmra.mrb[0].mxu0 %v1353
        %v3109 = vpop.f32.mrb[0].mxu0
        %v3110 = vadd.f32 0.0, %v3109
        %v3111 = vpop.f32.mrb[0].mxu0
        %v3112 = vadd.f32 0.0, %v3111
        %3113 = vmatprep.mubr.f32.mxu0 %v1358
        %3114 = vmatmul.mubr.f32.gmra.mrb[0].mxu0 %v1357
        %v3115 = vpop.f32.mrb[0].mxu0
        %v3116 = vadd.f32 0.0, %v3115
        %v3117 = vpop.f32.mrb[0].mxu0
        %v3118 = vadd.f32 0.0, %v3117
        %3119 = vmatprep.mubr.f32.mxu0 %v1362
        %3120 = vmatmul.mubr.f32.gmra.mrb[0].mxu0 %v1361
        %v3121 = vpop.f32.mrb[0].mxu0
        %v3122 = vadd.f32 0.0, %v3121
        %v3123 = vpop.f32.mrb[0].mxu0
        %v3124 = vadd.f32 0.0, %v3123
        %3125 = vmatprep.mubr.f32.mxu0 %v1366
        %3126 = vmatmul.mubr.f32.gmra.mrb[0].mxu0 %v1365
        %v3127 = vpop.f32.mrb[0].mxu0
        %v3128 = vadd.f32 0.0, %v3127
        %v3129 = vpop.f32.mrb[0].mxu0
        %v3130 = vadd.f32 0.0, %v3129
        %3131 = vmatprep.mubr.f32.mxu0 %v1370
        %3132 = vmatmul.mubr.f32.gmra.mrb[0].mxu0 %v1369
        %v3133 = vpop.f32.mrb[0].mxu0
        %v3134 = vadd.f32 0.0, %v3133
        %v3135 = vpop.f32.mrb[0].mxu0
        %v3136 = vadd.f32 0.0, %v3135
        %3137 = vmatprep.mubr.f32.mxu0 %v1374
        %3138 = vmatmul.mubr.f32.gmra.mrb[0].mxu0 %v1373
        %v3139 = vpop.f32.mrb[0].mxu0
        %v3140 = vadd.f32 0.0, %v3139
        %v3141 = vpop.f32.mrb[0].mxu0
        %v3142 = vadd.f32 0.0, %v3141
        %3143 = vmatprep.mubr.f32.mxu0 %v1378
        %3144 = vmatmul.mubr.f32.gmra.mrb[0].mxu0 %v1377
        %v3145 = vpop.f32.mrb[0].mxu0
        %v3146 = vadd.f32 0.0, %v3145
        %v3147 = vpop.f32.mrb[0].mxu0
        %v3148 = vadd.f32 0.0, %v3147
        %3149 = vmatprep.mubr.f32.mxu0 %v1382
        %3150 = vmatmul.mubr.f32.gmra.mrb[0].mxu0 %v1381
        %v3151 = vpop.f32.mrb[0].mxu0
        %v3152 = vadd.f32 0.0, %v3151
        %v3153 = vpop.f32.mrb[0].mxu0
        %v3154 = vadd.f32 0.0, %v3153
        %3155 = vmatprep.mubr.f32.mxu0 %v1386
        %3156 = vmatmul.mubr.f32.gmra.mrb[0].mxu0 %v1385
        %v3157 = vpop.f32.mrb[0].mxu0
        %v3158 = vadd.f32 0.0, %v3157
        %v3159 = vpop.f32.mrb[0].mxu0
        %v3160 = vadd.f32 0.0, %v3159
        %3161 = vmatprep.mubr.f32.mxu0 %v1390
        %3162 = vmatmul.mubr.f32.gmra.mrb[0].mxu0 %v1389
        %v3163 = vpop.f32.mrb[0].mxu0
        %v3164 = vadd.f32 0.0, %v3163
        %v3165 = vpop.f32.mrb[0].mxu0
        %v3166 = vadd.f32 0.0, %v3165
        %3167 = vmatprep.mubr.f32.mxu0 %v1394
        %3168 = vmatmul.mubr.f32.gmra.mrb[0].mxu0 %v1393
        %v3169 = vpop.f32.mrb[0].mxu0
        %v3170 = vadd.f32 0.0, %v3169
        %v3171 = vpop.f32.mrb[0].mxu0
        %v3172 = vadd.f32 0.0, %v3171
        %3173 = vmatprep.mubr.f32.mxu0 %v1398
        %3174 = vmatmul.mubr.f32.gmra.mrb[0].mxu0 %v1397
        %v3175 = vpop.f32.mrb[0].mxu0
        %v3176 = vadd.f32 0.0, %v3175
        %v3177 = vpop.f32.mrb[0].mxu0
        %v3178 = vadd.f32 0.0, %v3177
        %3179 = vmatprep.mubr.f32.mxu0 %v1402
        %3180 = vmatmul.mubr.f32.gmra.mrb[0].mxu0 %v1401
        %v3181 = vpop.f32.mrb[0].mxu0
        %v3182 = vadd.f32 0.0, %v3181
        %v3183 = vpop.f32.mrb[0].mxu0
        %v3184 = vadd.f32 0.0, %v3183
        %3185 = vmatprep.mubr.f32.mxu0 %v1406
        %3186 = vmatmul.mubr.f32.gmra.mrb[0].mxu0 %v1405
        %v3187 = vpop.f32.mrb[0].mxu0
        %v3188 = vadd.f32 0.0, %v3187
        %v3189 = vpop.f32.mrb[0].mxu0
        %v3190 = vadd.f32 0.0, %v3189
        %3191 = vmatprep.mubr.f32.mxu0 %v1410
        %3192 = vmatmul.mubr.f32.gmra.mrb[0].mxu0 %v1409
        %v3193 = vpop.f32.mrb[0].mxu0
        %v3194 = vadd.f32 0.0, %v3193
        %v3195 = vpop.f32.mrb[0].mxu0
        %v3196 = vadd.f32 0.0, %v3195
        %3197 = vmatprep.mubr.f32.mxu0 %v1414
        %3198 = vmatmul.mubr.f32.gmra.mrb[0].mxu0 %v1413
        %v3199 = vpop.f32.mrb[0].mxu0
        %v3200 = vadd.f32 0.0, %v3199
        %v3201 = vpop.f32.mrb[0].mxu0
        %v3202 = vadd.f32 0.0, %v3201
        %3203 = vmatprep.mubr.f32.mxu0 %v1418
        %3204 = vmatmul.mubr.f32.gmra.mrb[0].mxu0 %v1417
        %v3205 = vpop.f32.mrb[0].mxu0
        %v3206 = vadd.f32 0.0, %v3205
        %v3207 = vpop.f32.mrb[0].mxu0
        %v3208 = vadd.f32 0.0, %v3207
        %3209 = vmatprep.mubr.f32.mxu0 %v1422
        %3210 = vmatmul.mubr.f32.gmra.mrb[0].mxu0 %v1421
        %v3211 = vpop.f32.mrb[0].mxu0
        %v3212 = vadd.f32 0.0, %v3211
        %v3213 = vpop.f32.mrb[0].mxu0
        %v3214 = vadd.f32 0.0, %v3213
        %3215 = vmatprep.mubr.f32.mxu0 %v1426
        %3216 = vmatmul.mubr.f32.gmra.mrb[0].mxu0 %v1425
        %v3217 = vpop.f32.mrb[0].mxu0
        %v3218 = vadd.f32 0.0, %v3217
        %v3219 = vpop.f32.mrb[0].mxu0
        %v3220 = vadd.f32 0.0, %v3219
        %3221 = vmatprep.mubr.f32.mxu0 %v1430
        %3222 = vmatmul.mubr.f32.gmra.mrb[0].mxu0 %v1429
        %v3223 = vpop.f32.mrb[0].mxu0
        %v3224 = vadd.f32 0.0, %v3223
        %v3225 = vpop.f32.mrb[0].mxu0
        %v3226 = vadd.f32 0.0, %v3225
        %3227 = vmatprep.mubr.f32.mxu0 %v1434
        %3228 = vmatmul.mubr.f32.gmra.mrb[0].mxu0 %v1433
        %v3229 = vpop.f32.mrb[0].mxu0
        %v3230 = vadd.f32 0.0, %v3229
        %v3231 = vpop.f32.mrb[0].mxu0
        %v3232 = vadd.f32 0.0, %v3231
        %3233 = vdwg.mxu0
        %3234 = vmatprep.subr.mxu0 %v1698
        %3235 = vmatpush1.msra.mxu0 %v1697
        %3236 = vmatprep.subr.mxu0 %v1706
        %3237 = vmatpush1.msra.mxu0 %v1705
        %3238 = vmatprep.subr.mxu0 %v1714
        %3239 = vmatpush1.msra.mxu0 %v1713
        %3240 = vmatprep.subr.mxu0 %v1722
        %3241 = vmatpush1.msra.mxu0 %v1721
        %3242 = vmatprep.subr.mxu0 %v1730
        %3243 = vmatpush1.msra.mxu0 %v1729
        %3244 = vmatprep.subr.mxu0 %v1738
        %3245 = vmatpush1.msra.mxu0 %v1737
        %3246 = vmatprep.subr.mxu0 %v1746
        %3247 = vmatpush1.msra.mxu0 %v1745
        %3248 = vmatprep.subr.mxu0 %v1754
        %3249 = vmatpush1.msra.mxu0 %v1753
        %3250 = vmatprep.subr.mxu0 %v1762
        %3251 = vmatpush1.msra.mxu0 %v1761
        %3252 = vmatprep.subr.mxu0 %v1770
        %3253 = vmatpush1.msra.mxu0 %v1769
        %3254 = vmatprep.subr.mxu0 %v1778
        %3255 = vmatpush1.msra.mxu0 %v1777
        %3256 = vmatprep.subr.mxu0 %v1786
        %3257 = vmatpush1.msra.mxu0 %v1785
        %3258 = vmatprep.subr.mxu0 %v1794
        %3259 = vmatpush1.msra.mxu0 %v1793
        %3260 = vmatprep.subr.mxu0 %v1802
        %3261 = vmatpush1.msra.mxu0 %v1801
        %3262 = vmatprep.subr.mxu0 %v1810
        %3263 = vmatpush1.msra.mxu0 %v1809
        %3264 = vmatprep.subr.mxu0 %v1818
        %3265 = vmatpush1.msra.mxu0 %v1817
        %3266 = vmatprep.subr.mxu0 %v1826
        %3267 = vmatpush1.msra.mxu0 %v1825
        %3268 = vmatprep.subr.mxu0 %v1834
        %3269 = vmatpush1.msra.mxu0 %v1833
        %3270 = vmatprep.subr.mxu0 %v1842
        %3271 = vmatpush1.msra.mxu0 %v1841
        %3272 = vmatprep.subr.mxu0 %v1850
        %3273 = vmatpush1.msra.mxu0 %v1849
        %3274 = vmatprep.subr.mxu0 %v1858
        %3275 = vmatpush1.msra.mxu0 %v1857
        %3276 = vmatprep.subr.mxu0 %v1866
        %3277 = vmatpush1.msra.mxu0 %v1865
        %3278 = vmatprep.subr.mxu0 %v1874
        %3279 = vmatpush1.msra.mxu0 %v1873
        %3280 = vmatprep.subr.mxu0 %v1882
        %3281 = vmatpush1.msra.mxu0 %v1881
        %3282 = vmatprep.subr.mxu0 %v1890
        %3283 = vmatpush1.msra.mxu0 %v1889
        %3284 = vmatprep.subr.mxu0 %v1898
        %3285 = vmatpush1.msra.mxu0 %v1897
        %3286 = vmatprep.subr.mxu0 %v1906
        %3287 = vmatpush1.msra.mxu0 %v1905
        %3288 = vmatprep.subr.mxu0 %v1914
        %3289 = vmatpush1.msra.mxu0 %v1913
        %3290 = vmatprep.subr.mxu0 %v1922
        %3291 = vmatpush1.msra.mxu0 %v1921
        %3292 = vmatprep.subr.mxu0 %v1930
        %3293 = vmatpush1.msra.mxu0 %v1929
        %3294 = vmatprep.subr.mxu0 %v1938
        %3295 = vmatpush1.msra.mxu0 %v1937
        %3296 = vmatprep.subr.mxu0 %v1946
        %3297 = vmatpush1.msra.mxu0 %v1945
        %3298 = vmatprep.mubr.f32.mxu0 %v1312
        %3299 = vmatmul.mubr.f32.gmra.mrb[0].mxu0 %v1311
        %v3300 = vpop.f32.mrb[0].mxu0
        %v3301 = vadd.f32 %v3044, %v3300
        %v3302 = vpop.f32.mrb[0].mxu0
        %v3303 = vadd.f32 %v3046, %v3302
        %3304 = vmatprep.mubr.f32.mxu0 %v1316
        %3305 = vmatmul.mubr.f32.gmra.mrb[0].mxu0 %v1315
        %v3306 = vpop.f32.mrb[0].mxu0
        %v3307 = vadd.f32 %v3050, %v3306
        %v3308 = vpop.f32.mrb[0].mxu0
        %v3309 = vadd.f32 %v3052, %v3308
        %3310 = vmatprep.mubr.f32.mxu0 %v1320
        %3311 = vmatmul.mubr.f32.gmra.mrb[0].mxu0 %v1319
        %v3312 = vpop.f32.mrb[0].mxu0
        %v3313 = vadd.f32 %v3056, %v3312
        %v3314 = vpop.f32.mrb[0].mxu0
        %v3315 = vadd.f32 %v3058, %v3314
        %3316 = vmatprep.mubr.f32.mxu0 %v1324
        %3317 = vmatmul.mubr.f32.gmra.mrb[0].mxu0 %v1323
        %v3318 = vpop.f32.mrb[0].mxu0
        %v3319 = vadd.f32 %v3062, %v3318
        %v3320 = vpop.f32.mrb[0].mxu0
        %v3321 = vadd.f32 %v3064, %v3320
        %3322 = vmatprep.mubr.f32.mxu0 %v1328
        %3323 = vmatmul.mubr.f32.gmra.mrb[0].mxu0 %v1327
        %v3324 = vpop.f32.mrb[0].mxu0
        %v3325 = vadd.f32 %v3068, %v3324
        %v3326 = vpop.f32.mrb[0].mxu0
        %v3327 = vadd.f32 %v3070, %v3326
        %3328 = vmatprep.mubr.f32.mxu0 %v1332
        %3329 = vmatmul.mubr.f32.gmra.mrb[0].mxu0 %v1331
        %v3330 = vpop.f32.mrb[0].mxu0
        %v3331 = vadd.f32 %v3074, %v3330
        %v3332 = vpop.f32.mrb[0].mxu0
        %v3333 = vadd.f32 %v3076, %v3332
        %3334 = vmatprep.mubr.f32.mxu0 %v1336
        %3335 = vmatmul.mubr.f32.gmra.mrb[0].mxu0 %v1335
        %v3336 = vpop.f32.mrb[0].mxu0
        %v3337 = vadd.f32 %v3080, %v3336
        %v3338 = vpop.f32.mrb[0].mxu0
        %v3339 = vadd.f32 %v3082, %v3338
        %3340 = vmatprep.mubr.f32.mxu0 %v1340
        %3341 = vmatmul.mubr.f32.gmra.mrb[0].mxu0 %v1339
        %v3342 = vpop.f32.mrb[0].mxu0
        %v3343 = vadd.f32 %v3086, %v3342
        %v3344 = vpop.f32.mrb[0].mxu0
        %v3345 = vadd.f32 %v3088, %v3344
        %3346 = vmatprep.mubr.f32.mxu0 %v1344
        %3347 = vmatmul.mubr.f32.gmra.mrb[0].mxu0 %v1343
        %v3348 = vpop.f32.mrb[0].mxu0
        %v3349 = vadd.f32 %v3092, %v3348
        %v3350 = vpop.f32.mrb[0].mxu0
        %v3351 = vadd.f32 %v3094, %v3350
        %3352 = vmatprep.mubr.f32.mxu0 %v1348
        %3353 = vmatmul.mubr.f32.gmra.mrb[0].mxu0 %v1347
        %v3354 = vpop.f32.mrb[0].mxu0
        %v3355 = vadd.f32 %v3098, %v3354
        %v3356 = vpop.f32.mrb[0].mxu0
        %v3357 = vadd.f32 %v3100, %v3356
        %3358 = vmatprep.mubr.f32.mxu0 %v1352
        %3359 = vmatmul.mubr.f32.gmra.mrb[0].mxu0 %v1351
        %v3360 = vpop.f32.mrb[0].mxu0
        %v3361 = vadd.f32 %v3104, %v3360
        %v3362 = vpop.f32.mrb[0].mxu0
        %v3363 = vadd.f32 %v3106, %v3362
        %3364 = vmatprep.mubr.f32.mxu0 %v1356
        %3365 = vmatmul.mubr.f32.gmra.mrb[0].mxu0 %v1355
        %v3366 = vpop.f32.mrb[0].mxu0
        %v3367 = vadd.f32 %v3110, %v3366
        %v3368 = vpop.f32.mrb[0].mxu0
        %v3369 = vadd.f32 %v3112, %v3368
        %3370 = vmatprep.mubr.f32.mxu0 %v1360
        %3371 = vmatmul.mubr.f32.gmra.mrb[0].mxu0 %v1359
        %v3372 = vpop.f32.mrb[0].mxu0
        %v3373 = vadd.f32 %v3116, %v3372
        %v3374 = vpop.f32.mrb[0].mxu0
        %v3375 = vadd.f32 %v3118, %v3374
        %3376 = vmatprep.mubr.f32.mxu0 %v1364
        %3377 = vmatmul.mubr.f32.gmra.mrb[0].mxu0 %v1363
        %v3378 = vpop.f32.mrb[0].mxu0
        %v3379 = vadd.f32 %v3122, %v3378
        %v3380 = vpop.f32.mrb[0].mxu0
        %v3381 = vadd.f32 %v3124, %v3380
        %3382 = vmatprep.mubr.f32.mxu0 %v1368
        %3383 = vmatmul.mubr.f32.gmra.mrb[0].mxu0 %v1367
        %v3384 = vpop.f32.mrb[0].mxu0
        %v3385 = vadd.f32 %v3128, %v3384
        %v3386 = vpop.f32.mrb[0].mxu0
        %v3387 = vadd.f32 %v3130, %v3386
        %3388 = vmatprep.mubr.f32.mxu0 %v1372
        %3389 = vmatmul.mubr.f32.gmra.mrb[0].mxu0 %v1371
        %v3390 = vpop.f32.mrb[0].mxu0
        %v3391 = vadd.f32 %v3134, %v3390
        %v3392 = vpop.f32.mrb[0].mxu0
        %v3393 = vadd.f32 %v3136, %v3392
        %3394 = vmatprep.mubr.f32.mxu0 %v1376
        %3395 = vmatmul.mubr.f32.gmra.mrb[0].mxu0 %v1375
        %v3396 = vpop.f32.mrb[0].mxu0
        %v3397 = vadd.f32 %v3140, %v3396
        %v3398 = vpop.f32.mrb[0].mxu0
        %v3399 = vadd.f32 %v3142, %v3398
        %3400 = vmatprep.mubr.f32.mxu0 %v1380
        %3401 = vmatmul.mubr.f32.gmra.mrb[0].mxu0 %v1379
        %v3402 = vpop.f32.mrb[0].mxu0
        %v3403 = vadd.f32 %v3146, %v3402
        %v3404 = vpop.f32.mrb[0].mxu0
        %v3405 = vadd.f32 %v3148, %v3404
        %3406 = vmatprep.mubr.f32.mxu0 %v1384
        %3407 = vmatmul.mubr.f32.gmra.mrb[0].mxu0 %v1383
        %v3408 = vpop.f32.mrb[0].mxu0
        %v3409 = vadd.f32 %v3152, %v3408
        %v3410 = vpop.f32.mrb[0].mxu0
        %v3411 = vadd.f32 %v3154, %v3410
        %3412 = vmatprep.mubr.f32.mxu0 %v1388
        %3413 = vmatmul.mubr.f32.gmra.mrb[0].mxu0 %v1387
        %v3414 = vpop.f32.mrb[0].mxu0
        %v3415 = vadd.f32 %v3158, %v3414
        %v3416 = vpop.f32.mrb[0].mxu0
        %v3417 = vadd.f32 %v3160, %v3416
        %3418 = vmatprep.mubr.f32.mxu0 %v1392
        %3419 = vmatmul.mubr.f32.gmra.mrb[0].mxu0 %v1391
        %v3420 = vpop.f32.mrb[0].mxu0
        %v3421 = vadd.f32 %v3164, %v3420
        %v3422 = vpop.f32.mrb[0].mxu0
        %v3423 = vadd.f32 %v3166, %v3422
        %3424 = vmatprep.mubr.f32.mxu0 %v1396
        %3425 = vmatmul.mubr.f32.gmra.mrb[0].mxu0 %v1395
        %v3426 = vpop.f32.mrb[0].mxu0
        %v3427 = vadd.f32 %v3170, %v3426
        %v3428 = vpop.f32.mrb[0].mxu0
        %v3429 = vadd.f32 %v3172, %v3428
        %3430 = vmatprep.mubr.f32.mxu0 %v1400
        %3431 = vmatmul.mubr.f32.gmra.mrb[0].mxu0 %v1399
        %v3432 = vpop.f32.mrb[0].mxu0
        %v3433 = vadd.f32 %v3176, %v3432
        %v3434 = vpop.f32.mrb[0].mxu0
        %v3435 = vadd.f32 %v3178, %v3434
        %3436 = vmatprep.mubr.f32.mxu0 %v1404
        %3437 = vmatmul.mubr.f32.gmra.mrb[0].mxu0 %v1403
        %v3438 = vpop.f32.mrb[0].mxu0
        %v3439 = vadd.f32 %v3182, %v3438
        %v3440 = vpop.f32.mrb[0].mxu0
        %v3441 = vadd.f32 %v3184, %v3440
        %3442 = vmatprep.mubr.f32.mxu0 %v1408
        %3443 = vmatmul.mubr.f32.gmra.mrb[0].mxu0 %v1407
        %v3444 = vpop.f32.mrb[0].mxu0
        %v3445 = vadd.f32 %v3188, %v3444
        %v3446 = vpop.f32.mrb[0].mxu0
        %v3447 = vadd.f32 %v3190, %v3446
        %3448 = vmatprep.mubr.f32.mxu0 %v1412
        %3449 = vmatmul.mubr.f32.gmra.mrb[0].mxu0 %v1411
        %v3450 = vpop.f32.mrb[0].mxu0
        %v3451 = vadd.f32 %v3194, %v3450
        %v3452 = vpop.f32.mrb[0].mxu0
        %v3453 = vadd.f32 %v3196, %v3452
        %3454 = vmatprep.mubr.f32.mxu0 %v1416
        %3455 = vmatmul.mubr.f32.gmra.mrb[0].mxu0 %v1415
        %v3456 = vpop.f32.mrb[0].mxu0
        %v3457 = vadd.f32 %v3200, %v3456
        %v3458 = vpop.f32.mrb[0].mxu0
        %v3459 = vadd.f32 %v3202, %v3458
        %3460 = vmatprep.mubr.f32.mxu0 %v1420
        %3461 = vmatmul.mubr.f32.gmra.mrb[0].mxu0 %v1419
        %v3462 = vpop.f32.mrb[0].mxu0
        %v3463 = vadd.f32 %v3206, %v3462
        %v3464 = vpop.f32.mrb[0].mxu0
        %v3465 = vadd.f32 %v3208, %v3464
        %3466 = vmatprep.mubr.f32.mxu0 %v1424
        %3467 = vmatmul.mubr.f32.gmra.mrb[0].mxu0 %v1423
        %v3468 = vpop.f32.mrb[0].mxu0
        %v3469 = vadd.f32 %v3212, %v3468
        %v3470 = vpop.f32.mrb[0].mxu0
        %v3471 = vadd.f32 %v3214, %v3470
        %3472 = vmatprep.mubr.f32.mxu0 %v1428
        %3473 = vmatmul.mubr.f32.gmra.mrb[0].mxu0 %v1427
        %v3474 = vpop.f32.mrb[0].mxu0
        %v3475 = vadd.f32 %v3218, %v3474
        %v3476 = vpop.f32.mrb[0].mxu0
        %v3477 = vadd.f32 %v3220, %v3476
        %3478 = vmatprep.mubr.f32.mxu0 %v1432
        %3479 = vmatmul.mubr.f32.gmra.mrb[0].mxu0 %v1431
        %v3480 = vpop.f32.mrb[0].mxu0
        %v3481 = vadd.f32 %v3224, %v3480
        %v3482 = vpop.f32.mrb[0].mxu0
        %v3483 = vadd.f32 %v3226, %v3482
        %3484 = vmatprep.mubr.f32.mxu0 %v1436
        %3485 = vmatmul.mubr.f32.gmra.mrb[0].mxu0 %v1435
        %v3486 = vpop.f32.mrb[0].mxu0
        %v3487 = vadd.f32 %v3230, %v3486
        %v3488 = vpop.f32.mrb[0].mxu0
        %v3489 = vadd.f32 %v3232, %v3488
        %3490 = vdwg.mxu0
        %3491 = vmatprep.subr.mxu0 %v1444
        %3492 = vmatpush1.msra.mxu0 %v1443
        %3493 = vmatprep.subr.mxu0 %v1452
        %3494 = vmatpush1.msra.mxu0 %v1451
        %3495 = vmatprep.subr.mxu0 %v1460
        %3496 = vmatpush1.msra.mxu0 %v1459
        %3497 = vmatprep.subr.mxu0 %v1468
        %3498 = vmatpush1.msra.mxu0 %v1467
        %3499 = vmatprep.subr.mxu0 %v1476
        %3500 = vmatpush1.msra.mxu0 %v1475
        %3501 = vmatprep.subr.mxu0 %v1484
        %3502 = vmatpush1.msra.mxu0 %v1483
        %3503 = vmatprep.subr.mxu0 %v1492
        %3504 = vmatpush1.msra.mxu0 %v1491
        %3505 = vmatprep.subr.mxu0 %v1500
        %3506 = vmatpush1.msra.mxu0 %v1499
        %3507 = vmatprep.subr.mxu0 %v1508
        %3508 = vmatpush1.msra.mxu0 %v1507
        %3509 = vmatprep.subr.mxu0 %v1516
        %3510 = vmatpush1.msra.mxu0 %v1515
        %3511 = vmatprep.subr.mxu0 %v1524
        %3512 = vmatpush1.msra.mxu0 %v1523
        %3513 = vmatprep.subr.mxu0 %v1532
        %3514 = vmatpush1.msra.mxu0 %v1531
        %3515 = vmatprep.subr.mxu0 %v1540
        %3516 = vmatpush1.msra.mxu0 %v1539
        %3517 = vmatprep.subr.mxu0 %v1548
        %3518 = vmatpush1.msra.mxu0 %v1547
        %3519 = vmatprep.subr.mxu0 %v1556
        %3520 = vmatpush1.msra.mxu0 %v1555
        %3521 = vmatprep.subr.mxu0 %v1564
        %3522 = vmatpush1.msra.mxu0 %v1563
        %3523 = vmatprep.subr.mxu0 %v1572
        %3524 = vmatpush1.msra.mxu0 %v1571
        %3525 = vmatprep.subr.mxu0 %v1580
        %3526 = vmatpush1.msra.mxu0 %v1579
        %3527 = vmatprep.subr.mxu0 %v1588
        %3528 = vmatpush1.msra.mxu0 %v1587
        %3529 = vmatprep.subr.mxu0 %v1596
        %3530 = vmatpush1.msra.mxu0 %v1595
        %3531 = vmatprep.subr.mxu0 %v1604
        %3532 = vmatpush1.msra.mxu0 %v1603
        %3533 = vmatprep.subr.mxu0 %v1612
        %3534 = vmatpush1.msra.mxu0 %v1611
        %3535 = vmatprep.subr.mxu0 %v1620
        %3536 = vmatpush1.msra.mxu0 %v1619
        %3537 = vmatprep.subr.mxu0 %v1628
        %3538 = vmatpush1.msra.mxu0 %v1627
        %3539 = vmatprep.subr.mxu0 %v1636
        %3540 = vmatpush1.msra.mxu0 %v1635
        %3541 = vmatprep.subr.mxu0 %v1644
        %3542 = vmatpush1.msra.mxu0 %v1643
        %3543 = vmatprep.subr.mxu0 %v1652
        %3544 = vmatpush1.msra.mxu0 %v1651
        %3545 = vmatprep.subr.mxu0 %v1660
        %3546 = vmatpush1.msra.mxu0 %v1659
        %3547 = vmatprep.subr.mxu0 %v1668
        %3548 = vmatpush1.msra.mxu0 %v1667
        %3549 = vmatprep.subr.mxu0 %v1676
        %3550 = vmatpush1.msra.mxu0 %v1675
        %3551 = vmatprep.subr.mxu0 %v1684
        %3552 = vmatpush1.msra.mxu0 %v1683
        %3553 = vmatprep.subr.mxu0 %v1692
        %3554 = vmatpush1.msra.mxu0 %v1691
        %3555 = vmatprep.mubr.f32.mxu0 %v1310
        %3556 = vmatmul.mubr.f32.gmra.mrb[0].mxu0 %v1309
        %v3557 = vpop.f32.mrb[0].mxu0
        %v3558 = vadd.f32 0.0, %v3557
        %v3559 = vpop.f32.mrb[0].mxu0
        %v3560 = vadd.f32 0.0, %v3559
        %3561 = vmatprep.mubr.f32.mxu0 %v1314
        %3562 = vmatmul.mubr.f32.gmra.mrb[0].mxu0 %v1313
        %v3563 = vpop.f32.mrb[0].mxu0
        %v3564 = vadd.f32 0.0, %v3563
        %v3565 = vpop.f32.mrb[0].mxu0
        %v3566 = vadd.f32 0.0, %v3565
        %3567 = vmatprep.mubr.f32.mxu0 %v1318
        %3568 = vmatmul.mubr.f32.gmra.mrb[0].mxu0 %v1317
        %v3569 = vpop.f32.mrb[0].mxu0
        %v3570 = vadd.f32 0.0, %v3569
        %v3571 = vpop.f32.mrb[0].mxu0
        %v3572 = vadd.f32 0.0, %v3571
        %3573 = vmatprep.mubr.f32.mxu0 %v1322
        %3574 = vmatmul.mubr.f32.gmra.mrb[0].mxu0 %v1321
        %v3575 = vpop.f32.mrb[0].mxu0
        %v3576 = vadd.f32 0.0, %v3575
        %v3577 = vpop.f32.mrb[0].mxu0
        %v3578 = vadd.f32 0.0, %v3577
        %3579 = vmatprep.mubr.f32.mxu0 %v1326
        %3580 = vmatmul.mubr.f32.gmra.mrb[0].mxu0 %v1325
        %v3581 = vpop.f32.mrb[0].mxu0
        %v3582 = vadd.f32 0.0, %v3581
        %v3583 = vpop.f32.mrb[0].mxu0
        %v3584 = vadd.f32 0.0, %v3583
        %3585 = vmatprep.mubr.f32.mxu0 %v1330
        %3586 = vmatmul.mubr.f32.gmra.mrb[0].mxu0 %v1329
        %v3587 = vpop.f32.mrb[0].mxu0
        %v3588 = vadd.f32 0.0, %v3587
        %v3589 = vpop.f32.mrb[0].mxu0
        %v3590 = vadd.f32 0.0, %v3589
        %3591 = vmatprep.mubr.f32.mxu0 %v1334
        %3592 = vmatmul.mubr.f32.gmra.mrb[0].mxu0 %v1333
        %v3593 = vpop.f32.mrb[0].mxu0
        %v3594 = vadd.f32 0.0, %v3593
        %v3595 = vpop.f32.mrb[0].mxu0
        %v3596 = vadd.f32 0.0, %v3595
        %3597 = vmatprep.mubr.f32.mxu0 %v1338
        %3598 = vmatmul.mubr.f32.gmra.mrb[0].mxu0 %v1337
        %v3599 = vpop.f32.mrb[0].mxu0
        %v3600 = vadd.f32 0.0, %v3599
        %v3601 = vpop.f32.mrb[0].mxu0
        %v3602 = vadd.f32 0.0, %v3601
        %3603 = vmatprep.mubr.f32.mxu0 %v1342
        %3604 = vmatmul.mubr.f32.gmra.mrb[0].mxu0 %v1341
        %v3605 = vpop.f32.mrb[0].mxu0
        %v3606 = vadd.f32 0.0, %v3605
        %v3607 = vpop.f32.mrb[0].mxu0
        %v3608 = vadd.f32 0.0, %v3607
        %3609 = vmatprep.mubr.f32.mxu0 %v1346
        %3610 = vmatmul.mubr.f32.gmra.mrb[0].mxu0 %v1345
        %v3611 = vpop.f32.mrb[0].mxu0
        %v3612 = vadd.f32 0.0, %v3611
        %v3613 = vpop.f32.mrb[0].mxu0
        %v3614 = vadd.f32 0.0, %v3613
        %3615 = vmatprep.mubr.f32.mxu0 %v1350
        %3616 = vmatmul.mubr.f32.gmra.mrb[0].mxu0 %v1349
        %v3617 = vpop.f32.mrb[0].mxu0
        %v3618 = vadd.f32 0.0, %v3617
        %v3619 = vpop.f32.mrb[0].mxu0
        %v3620 = vadd.f32 0.0, %v3619
        %3621 = vmatprep.mubr.f32.mxu0 %v1354
        %3622 = vmatmul.mubr.f32.gmra.mrb[0].mxu0 %v1353
        %v3623 = vpop.f32.mrb[0].mxu0
        %v3624 = vadd.f32 0.0, %v3623
        %v3625 = vpop.f32.mrb[0].mxu0
        %v3626 = vadd.f32 0.0, %v3625
        %3627 = vmatprep.mubr.f32.mxu0 %v1358
        %3628 = vmatmul.mubr.f32.gmra.mrb[0].mxu0 %v1357
        %v3629 = vpop.f32.mrb[0].mxu0
        %v3630 = vadd.f32 0.0, %v3629
        %v3631 = vpop.f32.mrb[0].mxu0
        %v3632 = vadd.f32 0.0, %v3631
        %3633 = vmatprep.mubr.f32.mxu0 %v1362
        %3634 = vmatmul.mubr.f32.gmra.mrb[0].mxu0 %v1361
        %v3635 = vpop.f32.mrb[0].mxu0
        %v3636 = vadd.f32 0.0, %v3635
        %v3637 = vpop.f32.mrb[0].mxu0
        %v3638 = vadd.f32 0.0, %v3637
        %3639 = vmatprep.mubr.f32.mxu0 %v1366
        %3640 = vmatmul.mubr.f32.gmra.mrb[0].mxu0 %v1365
        %v3641 = vpop.f32.mrb[0].mxu0
        %v3642 = vadd.f32 0.0, %v3641
        %v3643 = vpop.f32.mrb[0].mxu0
        %v3644 = vadd.f32 0.0, %v3643
        %3645 = vmatprep.mubr.f32.mxu0 %v1370
        %3646 = vmatmul.mubr.f32.gmra.mrb[0].mxu0 %v1369
        %v3647 = vpop.f32.mrb[0].mxu0
        %v3648 = vadd.f32 0.0, %v3647
        %v3649 = vpop.f32.mrb[0].mxu0
        %v3650 = vadd.f32 0.0, %v3649
        %3651 = vmatprep.mubr.f32.mxu0 %v1374
        %3652 = vmatmul.mubr.f32.gmra.mrb[0].mxu0 %v1373
        %v3653 = vpop.f32.mrb[0].mxu0
        %v3654 = vadd.f32 0.0, %v3653
        %v3655 = vpop.f32.mrb[0].mxu0
        %v3656 = vadd.f32 0.0, %v3655
        %3657 = vmatprep.mubr.f32.mxu0 %v1378
        %3658 = vmatmul.mubr.f32.gmra.mrb[0].mxu0 %v1377
        %v3659 = vpop.f32.mrb[0].mxu0
        %v3660 = vadd.f32 0.0, %v3659
        %v3661 = vpop.f32.mrb[0].mxu0
        %v3662 = vadd.f32 0.0, %v3661
        %3663 = vmatprep.mubr.f32.mxu0 %v1382
        %3664 = vmatmul.mubr.f32.gmra.mrb[0].mxu0 %v1381
        %v3665 = vpop.f32.mrb[0].mxu0
        %v3666 = vadd.f32 0.0, %v3665
        %v3667 = vpop.f32.mrb[0].mxu0
        %v3668 = vadd.f32 0.0, %v3667
        %3669 = vmatprep.mubr.f32.mxu0 %v1386
        %3670 = vmatmul.mubr.f32.gmra.mrb[0].mxu0 %v1385
        %v3671 = vpop.f32.mrb[0].mxu0
        %v3672 = vadd.f32 0.0, %v3671
        %v3673 = vpop.f32.mrb[0].mxu0
        %v3674 = vadd.f32 0.0, %v3673
        %3675 = vmatprep.mubr.f32.mxu0 %v1390
        %3676 = vmatmul.mubr.f32.gmra.mrb[0].mxu0 %v1389
        %v3677 = vpop.f32.mrb[0].mxu0
        %v3678 = vadd.f32 0.0, %v3677
        %v3679 = vpop.f32.mrb[0].mxu0
        %v3680 = vadd.f32 0.0, %v3679
        %3681 = vmatprep.mubr.f32.mxu0 %v1394
        %3682 = vmatmul.mubr.f32.gmra.mrb[0].mxu0 %v1393
        %v3683 = vpop.f32.mrb[0].mxu0
        %v3684 = vadd.f32 0.0, %v3683
        %v3685 = vpop.f32.mrb[0].mxu0
        %v3686 = vadd.f32 0.0, %v3685
        %3687 = vmatprep.mubr.f32.mxu0 %v1398
        %3688 = vmatmul.mubr.f32.gmra.mrb[0].mxu0 %v1397
        %v3689 = vpop.f32.mrb[0].mxu0
        %v3690 = vadd.f32 0.0, %v3689
        %v3691 = vpop.f32.mrb[0].mxu0
        %v3692 = vadd.f32 0.0, %v3691
        %3693 = vmatprep.mubr.f32.mxu0 %v1402
        %3694 = vmatmul.mubr.f32.gmra.mrb[0].mxu0 %v1401
        %v3695 = vpop.f32.mrb[0].mxu0
        %v3696 = vadd.f32 0.0, %v3695
        %v3697 = vpop.f32.mrb[0].mxu0
        %v3698 = vadd.f32 0.0, %v3697
        %3699 = vmatprep.mubr.f32.mxu0 %v1406
        %3700 = vmatmul.mubr.f32.gmra.mrb[0].mxu0 %v1405
        %v3701 = vpop.f32.mrb[0].mxu0
        %v3702 = vadd.f32 0.0, %v3701
        %v3703 = vpop.f32.mrb[0].mxu0
        %v3704 = vadd.f32 0.0, %v3703
        %3705 = vmatprep.mubr.f32.mxu0 %v1410
        %3706 = vmatmul.mubr.f32.gmra.mrb[0].mxu0 %v1409
        %v3707 = vpop.f32.mrb[0].mxu0
        %v3708 = vadd.f32 0.0, %v3707
        %v3709 = vpop.f32.mrb[0].mxu0
        %v3710 = vadd.f32 0.0, %v3709
        %3711 = vmatprep.mubr.f32.mxu0 %v1414
        %3712 = vmatmul.mubr.f32.gmra.mrb[0].mxu0 %v1413
        %v3713 = vpop.f32.mrb[0].mxu0
        %v3714 = vadd.f32 0.0, %v3713
        %v3715 = vpop.f32.mrb[0].mxu0
        %v3716 = vadd.f32 0.0, %v3715
        %3717 = vmatprep.mubr.f32.mxu0 %v1418
        %3718 = vmatmul.mubr.f32.gmra.mrb[0].mxu0 %v1417
        %v3719 = vpop.f32.mrb[0].mxu0
        %v3720 = vadd.f32 0.0, %v3719
        %v3721 = vpop.f32.mrb[0].mxu0
        %v3722 = vadd.f32 0.0, %v3721
        %3723 = vmatprep.mubr.f32.mxu0 %v1422
        %3724 = vmatmul.mubr.f32.gmra.mrb[0].mxu0 %v1421
        %v3725 = vpop.f32.mrb[0].mxu0
        %v3726 = vadd.f32 0.0, %v3725
        %v3727 = vpop.f32.mrb[0].mxu0
        %v3728 = vadd.f32 0.0, %v3727
        %3729 = vmatprep.mubr.f32.mxu0 %v1426
        %3730 = vmatmul.mubr.f32.gmra.mrb[0].mxu0 %v1425
        %v3731 = vpop.f32.mrb[0].mxu0
        %v3732 = vadd.f32 0.0, %v3731
        %v3733 = vpop.f32.mrb[0].mxu0
        %v3734 = vadd.f32 0.0, %v3733
        %3735 = vmatprep.mubr.f32.mxu0 %v1430
        %3736 = vmatmul.mubr.f32.gmra.mrb[0].mxu0 %v1429
        %v3737 = vpop.f32.mrb[0].mxu0
        %v3738 = vadd.f32 0.0, %v3737
        %v3739 = vpop.f32.mrb[0].mxu0
        %v3740 = vadd.f32 0.0, %v3739
        %3741 = vmatprep.mubr.f32.mxu0 %v1434
        %3742 = vmatmul.mubr.f32.gmra.mrb[0].mxu0 %v1433
        %v3743 = vpop.f32.mrb[0].mxu0
        %v3744 = vadd.f32 0.0, %v3743
        %v3745 = vpop.f32.mrb[0].mxu0
        %v3746 = vadd.f32 0.0, %v3745
        %3747 = vdwg.mxu0
        %3748 = vmatprep.subr.mxu0 %v1700
        %3749 = vmatpush1.msra.mxu0 %v1699
        %3750 = vmatprep.subr.mxu0 %v1708
        %3751 = vmatpush1.msra.mxu0 %v1707
        %3752 = vmatprep.subr.mxu0 %v1716
        %3753 = vmatpush1.msra.mxu0 %v1715
        %3754 = vmatprep.subr.mxu0 %v1724
        %3755 = vmatpush1.msra.mxu0 %v1723
        %3756 = vmatprep.subr.mxu0 %v1732
        %3757 = vmatpush1.msra.mxu0 %v1731
        %3758 = vmatprep.subr.mxu0 %v1740
        %3759 = vmatpush1.msra.mxu0 %v1739
        %3760 = vmatprep.subr.mxu0 %v1748
        %3761 = vmatpush1.msra.mxu0 %v1747
        %3762 = vmatprep.subr.mxu0 %v1756
        %3763 = vmatpush1.msra.mxu0 %v1755
        %3764 = vmatprep.subr.mxu0 %v1764
        %3765 = vmatpush1.msra.mxu0 %v1763
        %3766 = vmatprep.subr.mxu0 %v1772
        %3767 = vmatpush1.msra.mxu0 %v1771
        %3768 = vmatprep.subr.mxu0 %v1780
        %3769 = vmatpush1.msra.mxu0 %v1779
        %3770 = vmatprep.subr.mxu0 %v1788
        %3771 = vmatpush1.msra.mxu0 %v1787
        %3772 = vmatprep.subr.mxu0 %v1796
        %3773 = vmatpush1.msra.mxu0 %v1795
        %3774 = vmatprep.subr.mxu0 %v1804
        %3775 = vmatpush1.msra.mxu0 %v1803
        %3776 = vmatprep.subr.mxu0 %v1812
        %3777 = vmatpush1.msra.mxu0 %v1811
        %3778 = vmatprep.subr.mxu0 %v1820
        %3779 = vmatpush1.msra.mxu0 %v1819
        %3780 = vmatprep.subr.mxu0 %v1828
        %3781 = vmatpush1.msra.mxu0 %v1827
        %3782 = vmatprep.subr.mxu0 %v1836
        %3783 = vmatpush1.msra.mxu0 %v1835
        %3784 = vmatprep.subr.mxu0 %v1844
        %3785 = vmatpush1.msra.mxu0 %v1843
        %3786 = vmatprep.subr.mxu0 %v1852
        %3787 = vmatpush1.msra.mxu0 %v1851
        %3788 = vmatprep.subr.mxu0 %v1860
        %3789 = vmatpush1.msra.mxu0 %v1859
        %3790 = vmatprep.subr.mxu0 %v1868
        %3791 = vmatpush1.msra.mxu0 %v1867
        %3792 = vmatprep.subr.mxu0 %v1876
        %3793 = vmatpush1.msra.mxu0 %v1875
        %3794 = vmatprep.subr.mxu0 %v1884
        %3795 = vmatpush1.msra.mxu0 %v1883
        %3796 = vmatprep.subr.mxu0 %v1892
        %3797 = vmatpush1.msra.mxu0 %v1891
        %3798 = vmatprep.subr.mxu0 %v1900
        %3799 = vmatpush1.msra.mxu0 %v1899
        %3800 = vmatprep.subr.mxu0 %v1908
        %3801 = vmatpush1.msra.mxu0 %v1907
        %3802 = vmatprep.subr.mxu0 %v1916
        %3803 = vmatpush1.msra.mxu0 %v1915
        %3804 = vmatprep.subr.mxu0 %v1924
        %3805 = vmatpush1.msra.mxu0 %v1923
        %3806 = vmatprep.subr.mxu0 %v1932
        %3807 = vmatpush1.msra.mxu0 %v1931
        %3808 = vmatprep.subr.mxu0 %v1940
        %3809 = vmatpush1.msra.mxu0 %v1939
        %3810 = vmatprep.subr.mxu0 %v1948
        %3811 = vmatpush1.msra.mxu0 %v1947
        %3812 = vmatprep.mubr.f32.mxu0 %v1312
        %3813 = vmatmul.mubr.f32.gmra.mrb[0].mxu0 %v1311
        %v3814 = vpop.f32.mrb[0].mxu0
        %v3815 = vadd.f32 %v3558, %v3814
        %v3816 = vpop.f32.mrb[0].mxu0
        %v3817 = vadd.f32 %v3560, %v3816
        %3818 = vmatprep.mubr.f32.mxu0 %v1316
        %3819 = vmatmul.mubr.f32.gmra.mrb[0].mxu0 %v1315
        %v3820 = vpop.f32.mrb[0].mxu0
        %v3821 = vadd.f32 %v3564, %v3820
        %v3822 = vpop.f32.mrb[0].mxu0
        %v3823 = vadd.f32 %v3566, %v3822
        %3824 = vmatprep.mubr.f32.mxu0 %v1320
        %3825 = vmatmul.mubr.f32.gmra.mrb[0].mxu0 %v1319
        %v3826 = vpop.f32.mrb[0].mxu0
        %v3827 = vadd.f32 %v3570, %v3826
        %v3828 = vpop.f32.mrb[0].mxu0
        %v3829 = vadd.f32 %v3572, %v3828
        %3830 = vmatprep.mubr.f32.mxu0 %v1324
        %3831 = vmatmul.mubr.f32.gmra.mrb[0].mxu0 %v1323
        %v3832 = vpop.f32.mrb[0].mxu0
        %v3833 = vadd.f32 %v3576, %v3832
        %v3834 = vpop.f32.mrb[0].mxu0
        %v3835 = vadd.f32 %v3578, %v3834
        %3836 = vmatprep.mubr.f32.mxu0 %v1328
        %3837 = vmatmul.mubr.f32.gmra.mrb[0].mxu0 %v1327
        %v3838 = vpop.f32.mrb[0].mxu0
        %v3839 = vadd.f32 %v3582, %v3838
        %v3840 = vpop.f32.mrb[0].mxu0
        %v3841 = vadd.f32 %v3584, %v3840
        %3842 = vmatprep.mubr.f32.mxu0 %v1332
        %3843 = vmatmul.mubr.f32.gmra.mrb[0].mxu0 %v1331
        %v3844 = vpop.f32.mrb[0].mxu0
        %v3845 = vadd.f32 %v3588, %v3844
        %v3846 = vpop.f32.mrb[0].mxu0
        %v3847 = vadd.f32 %v3590, %v3846
        %3848 = vmatprep.mubr.f32.mxu0 %v1336
        %3849 = vmatmul.mubr.f32.gmra.mrb[0].mxu0 %v1335
        %v3850 = vpop.f32.mrb[0].mxu0
        %v3851 = vadd.f32 %v3594, %v3850
        %v3852 = vpop.f32.mrb[0].mxu0
        %v3853 = vadd.f32 %v3596, %v3852
        %3854 = vmatprep.mubr.f32.mxu0 %v1340
        %3855 = vmatmul.mubr.f32.gmra.mrb[0].mxu0 %v1339
        %v3856 = vpop.f32.mrb[0].mxu0
        %v3857 = vadd.f32 %v3600, %v3856
        %v3858 = vpop.f32.mrb[0].mxu0
        %v3859 = vadd.f32 %v3602, %v3858
        %3860 = vmatprep.mubr.f32.mxu0 %v1344
        %3861 = vmatmul.mubr.f32.gmra.mrb[0].mxu0 %v1343
        %v3862 = vpop.f32.mrb[0].mxu0
        %v3863 = vadd.f32 %v3606, %v3862
        %v3864 = vpop.f32.mrb[0].mxu0
        %v3865 = vadd.f32 %v3608, %v3864
        %3866 = vmatprep.mubr.f32.mxu0 %v1348
        %3867 = vmatmul.mubr.f32.gmra.mrb[0].mxu0 %v1347
        %v3868 = vpop.f32.mrb[0].mxu0
        %v3869 = vadd.f32 %v3612, %v3868
        %v3870 = vpop.f32.mrb[0].mxu0
        %v3871 = vadd.f32 %v3614, %v3870
        %3872 = vmatprep.mubr.f32.mxu0 %v1352
        %3873 = vmatmul.mubr.f32.gmra.mrb[0].mxu0 %v1351
        %v3874 = vpop.f32.mrb[0].mxu0
        %v3875 = vadd.f32 %v3618, %v3874
        %v3876 = vpop.f32.mrb[0].mxu0
        %v3877 = vadd.f32 %v3620, %v3876
        %3878 = vmatprep.mubr.f32.mxu0 %v1356
        %3879 = vmatmul.mubr.f32.gmra.mrb[0].mxu0 %v1355
        %v3880 = vpop.f32.mrb[0].mxu0
        %v3881 = vadd.f32 %v3624, %v3880
        %v3882 = vpop.f32.mrb[0].mxu0
        %v3883 = vadd.f32 %v3626, %v3882
        %3884 = vmatprep.mubr.f32.mxu0 %v1360
        %3885 = vmatmul.mubr.f32.gmra.mrb[0].mxu0 %v1359
        %v3886 = vpop.f32.mrb[0].mxu0
        %v3887 = vadd.f32 %v3630, %v3886
        %v3888 = vpop.f32.mrb[0].mxu0
        %v3889 = vadd.f32 %v3632, %v3888
        %3890 = vmatprep.mubr.f32.mxu0 %v1364
        %3891 = vmatmul.mubr.f32.gmra.mrb[0].mxu0 %v1363
        %v3892 = vpop.f32.mrb[0].mxu0
        %v3893 = vadd.f32 %v3636, %v3892
        %v3894 = vpop.f32.mrb[0].mxu0
        %v3895 = vadd.f32 %v3638, %v3894
        %3896 = vmatprep.mubr.f32.mxu0 %v1368
        %3897 = vmatmul.mubr.f32.gmra.mrb[0].mxu0 %v1367
        %v3898 = vpop.f32.mrb[0].mxu0
        %v3899 = vadd.f32 %v3642, %v3898
        %v3900 = vpop.f32.mrb[0].mxu0
        %v3901 = vadd.f32 %v3644, %v3900
        %3902 = vmatprep.mubr.f32.mxu0 %v1372
        %3903 = vmatmul.mubr.f32.gmra.mrb[0].mxu0 %v1371
        %v3904 = vpop.f32.mrb[0].mxu0
        %v3905 = vadd.f32 %v3648, %v3904
        %v3906 = vpop.f32.mrb[0].mxu0
        %v3907 = vadd.f32 %v3650, %v3906
        %3908 = vmatprep.mubr.f32.mxu0 %v1376
        %3909 = vmatmul.mubr.f32.gmra.mrb[0].mxu0 %v1375
        %v3910 = vpop.f32.mrb[0].mxu0
        %v3911 = vadd.f32 %v3654, %v3910
        %v3912 = vpop.f32.mrb[0].mxu0
        %v3913 = vadd.f32 %v3656, %v3912
        %3914 = vmatprep.mubr.f32.mxu0 %v1380
        %3915 = vmatmul.mubr.f32.gmra.mrb[0].mxu0 %v1379
        %v3916 = vpop.f32.mrb[0].mxu0
        %v3917 = vadd.f32 %v3660, %v3916
        %v3918 = vpop.f32.mrb[0].mxu0
        %v3919 = vadd.f32 %v3662, %v3918
        %3920 = vmatprep.mubr.f32.mxu0 %v1384
        %3921 = vmatmul.mubr.f32.gmra.mrb[0].mxu0 %v1383
        %v3922 = vpop.f32.mrb[0].mxu0
        %v3923 = vadd.f32 %v3666, %v3922
        %v3924 = vpop.f32.mrb[0].mxu0
        %v3925 = vadd.f32 %v3668, %v3924
        %3926 = vmatprep.mubr.f32.mxu0 %v1388
        %3927 = vmatmul.mubr.f32.gmra.mrb[0].mxu0 %v1387
        %v3928 = vpop.f32.mrb[0].mxu0
        %v3929 = vadd.f32 %v3672, %v3928
        %v3930 = vpop.f32.mrb[0].mxu0
        %v3931 = vadd.f32 %v3674, %v3930
        %3932 = vmatprep.mubr.f32.mxu0 %v1392
        %3933 = vmatmul.mubr.f32.gmra.mrb[0].mxu0 %v1391
        %v3934 = vpop.f32.mrb[0].mxu0
        %v3935 = vadd.f32 %v3678, %v3934
        %v3936 = vpop.f32.mrb[0].mxu0
        %v3937 = vadd.f32 %v3680, %v3936
        %3938 = vmatprep.mubr.f32.mxu0 %v1396
        %3939 = vmatmul.mubr.f32.gmra.mrb[0].mxu0 %v1395
        %v3940 = vpop.f32.mrb[0].mxu0
        %v3941 = vadd.f32 %v3684, %v3940
        %v3942 = vpop.f32.mrb[0].mxu0
        %v3943 = vadd.f32 %v3686, %v3942
        %3944 = vmatprep.mubr.f32.mxu0 %v1400
        %3945 = vmatmul.mubr.f32.gmra.mrb[0].mxu0 %v1399
        %v3946 = vpop.f32.mrb[0].mxu0
        %v3947 = vadd.f32 %v3690, %v3946
        %v3948 = vpop.f32.mrb[0].mxu0
        %v3949 = vadd.f32 %v3692, %v3948
        %3950 = vmatprep.mubr.f32.mxu0 %v1404
        %3951 = vmatmul.mubr.f32.gmra.mrb[0].mxu0 %v1403
        %v3952 = vpop.f32.mrb[0].mxu0
        %v3953 = vadd.f32 %v3696, %v3952
        %v3954 = vpop.f32.mrb[0].mxu0
        %v3955 = vadd.f32 %v3698, %v3954
        %3956 = vmatprep.mubr.f32.mxu0 %v1408
        %3957 = vmatmul.mubr.f32.gmra.mrb[0].mxu0 %v1407
        %v3958 = vpop.f32.mrb[0].mxu0
        %v3959 = vadd.f32 %v3702, %v3958
        %v3960 = vpop.f32.mrb[0].mxu0
        %v3961 = vadd.f32 %v3704, %v3960
        %3962 = vmatprep.mubr.f32.mxu0 %v1412
        %3963 = vmatmul.mubr.f32.gmra.mrb[0].mxu0 %v1411
        %v3964 = vpop.f32.mrb[0].mxu0
        %v3965 = vadd.f32 %v3708, %v3964
        %v3966 = vpop.f32.mrb[0].mxu0
        %v3967 = vadd.f32 %v3710, %v3966
        %3968 = vmatprep.mubr.f32.mxu0 %v1416
        %3969 = vmatmul.mubr.f32.gmra.mrb[0].mxu0 %v1415
        %v3970 = vpop.f32.mrb[0].mxu0
        %v3971 = vadd.f32 %v3714, %v3970
        %v3972 = vpop.f32.mrb[0].mxu0
        %v3973 = vadd.f32 %v3716, %v3972
        %3974 = vmatprep.mubr.f32.mxu0 %v1420
        %3975 = vmatmul.mubr.f32.gmra.mrb[0].mxu0 %v1419
        %v3976 = vpop.f32.mrb[0].mxu0
        %v3977 = vadd.f32 %v3720, %v3976
        %v3978 = vpop.f32.mrb[0].mxu0
        %v3979 = vadd.f32 %v3722, %v3978
        %3980 = vmatprep.mubr.f32.mxu0 %v1424
        %3981 = vmatmul.mubr.f32.gmra.mrb[0].mxu0 %v1423
        %v3982 = vpop.f32.mrb[0].mxu0
        %v3983 = vadd.f32 %v3726, %v3982
        %v3984 = vpop.f32.mrb[0].mxu0
        %v3985 = vadd.f32 %v3728, %v3984
        %3986 = vmatprep.mubr.f32.mxu0 %v1428
        %3987 = vmatmul.mubr.f32.gmra.mrb[0].mxu0 %v1427
        %v3988 = vpop.f32.mrb[0].mxu0
        %v3989 = vadd.f32 %v3732, %v3988
        %v3990 = vpop.f32.mrb[0].mxu0
        %v3991 = vadd.f32 %v3734, %v3990
        %3992 = vmatprep.mubr.f32.mxu0 %v1432
        %3993 = vmatmul.mubr.f32.gmra.mrb[0].mxu0 %v1431
        %v3994 = vpop.f32.mrb[0].mxu0
        %v3995 = vadd.f32 %v3738, %v3994
        %v3996 = vpop.f32.mrb[0].mxu0
        %v3997 = vadd.f32 %v3740, %v3996
        %3998 = vmatprep.mubr.f32.mxu0 %v1436
        %3999 = vmatmul.mubr.f32.gmra.mrb[0].mxu0 %v1435
        %v4000 = vpop.f32.mrb[0].mxu0
        %v4001 = vadd.f32 %v3744, %v4000
        %v4002 = vpop.f32.mrb[0].mxu0
        %v4003 = vadd.f32 %v3746, %v4002
        %4004 = vdwg.mxu0
        %v4006 = vlaneseq
        %v4007 = vshrl.u32 %v4006, 7
        %v4008 = vsub.s32 0, %v4007
        %v4009 = vrot.slane %v364, %v4008
        %v4010 = vlaneseq
        %v4011 = vshrl.u32 %v4010, 7
        %v4012 = vsub.s32 1, %v4011
        %v4013 = vrot.slane %v364, %v4012
        %v4014 = vlaneseq
        %v4015 = vshrl.u32 %v4014, 7
        %v4016 = vsub.s32 2, %v4015
        %v4017 = vrot.slane %v364, %v4016
        %v4018 = vlaneseq
        %v4019 = vshrl.u32 %v4018, 7
        %v4020 = vsub.s32 3, %v4019
        %v4021 = vrot.slane %v364, %v4020
        %v4022 = vlaneseq
        %v4023 = vshrl.u32 %v4022, 7
        %v4024 = vsub.s32 4, %v4023
        %v4025 = vrot.slane %v364, %v4024
        %v4026 = vlaneseq
        %v4027 = vshrl.u32 %v4026, 7
        %v4028 = vsub.s32 5, %v4027
        %v4029 = vrot.slane %v364, %v4028
        %v4030 = vlaneseq
        %v4031 = vshrl.u32 %v4030, 7
        %v4032 = vsub.s32 6, %v4031
        %v4033 = vrot.slane %v364, %v4032
        %v4034 = vlaneseq
        %v4035 = vshrl.u32 %v4034, 7
        %v4036 = vsub.s32 7, %v4035
        %v4037 = vrot.slane %v364, %v4036
        %v4046 = vmul.f32 %v2273, %v4009
        %v4047 = vmul.f32 %v2275, %v4013
        %v4048 = vmul.f32 %v2787, %v4017
        %v4049 = vmul.f32 %v2789, %v4021
        %v4050 = vmul.f32 %v3301, %v4025
        %v4051 = vmul.f32 %v3303, %v4029
        %v4052 = vmul.f32 %v3815, %v4033
        %v4053 = vmul.f32 %v3817, %v4037
        %v4054 = vmul.f32 %v2279, %v4009
        %v4055 = vmul.f32 %v2281, %v4013
        %v4056 = vmul.f32 %v2793, %v4017
        %v4057 = vmul.f32 %v2795, %v4021
        %v4058 = vmul.f32 %v3307, %v4025
        %v4059 = vmul.f32 %v3309, %v4029
        %v4060 = vmul.f32 %v3821, %v4033
        %v4061 = vmul.f32 %v3823, %v4037
        %v4062 = vmul.f32 %v2285, %v4009
        %v4063 = vmul.f32 %v2287, %v4013
        %v4064 = vmul.f32 %v2799, %v4017
        %v4065 = vmul.f32 %v2801, %v4021
        %v4066 = vmul.f32 %v3313, %v4025
        %v4067 = vmul.f32 %v3315, %v4029
        %v4068 = vmul.f32 %v3827, %v4033
        %v4069 = vmul.f32 %v3829, %v4037
        %v4070 = vmul.f32 %v2291, %v4009
        %v4071 = vmul.f32 %v2293, %v4013
        %v4072 = vmul.f32 %v2805, %v4017
        %v4073 = vmul.f32 %v2807, %v4021
        %v4074 = vmul.f32 %v3319, %v4025
        %v4075 = vmul.f32 %v3321, %v4029
        %v4076 = vmul.f32 %v3833, %v4033
        %v4077 = vmul.f32 %v3835, %v4037
        %v4078 = vmul.f32 %v2297, %v4009
        %v4079 = vmul.f32 %v2299, %v4013
        %v4080 = vmul.f32 %v2811, %v4017
        %v4081 = vmul.f32 %v2813, %v4021
        %v4082 = vmul.f32 %v3325, %v4025
        %v4083 = vmul.f32 %v3327, %v4029
        %v4084 = vmul.f32 %v3839, %v4033
        %v4085 = vmul.f32 %v3841, %v4037
        %v4086 = vmul.f32 %v2303, %v4009
        %v4087 = vmul.f32 %v2305, %v4013
        %v4088 = vmul.f32 %v2817, %v4017
        %v4089 = vmul.f32 %v2819, %v4021
        %v4090 = vmul.f32 %v3331, %v4025
        %v4091 = vmul.f32 %v3333, %v4029
        %v4092 = vmul.f32 %v3845, %v4033
        %v4093 = vmul.f32 %v3847, %v4037
        %v4094 = vmul.f32 %v2309, %v4009
        %v4095 = vmul.f32 %v2311, %v4013
        %v4096 = vmul.f32 %v2823, %v4017
        %v4097 = vmul.f32 %v2825, %v4021
        %v4098 = vmul.f32 %v3337, %v4025
        %v4099 = vmul.f32 %v3339, %v4029
        %v4100 = vmul.f32 %v3851, %v4033
        %v4101 = vmul.f32 %v3853, %v4037
        %v4102 = vmul.f32 %v2315, %v4009
        %v4103 = vmul.f32 %v2317, %v4013
        %v4104 = vmul.f32 %v2829, %v4017
        %v4105 = vmul.f32 %v2831, %v4021
        %v4106 = vmul.f32 %v3343, %v4025
        %v4107 = vmul.f32 %v3345, %v4029
        %v4108 = vmul.f32 %v3857, %v4033
        %v4109 = vmul.f32 %v3859, %v4037
        %v4110 = vmul.f32 %v2321, %v4009
        %v4111 = vmul.f32 %v2323, %v4013
        %v4112 = vmul.f32 %v2835, %v4017
        %v4113 = vmul.f32 %v2837, %v4021
        %v4114 = vmul.f32 %v3349, %v4025
        %v4115 = vmul.f32 %v3351, %v4029
        %v4116 = vmul.f32 %v3863, %v4033
        %v4117 = vmul.f32 %v3865, %v4037
        %v4118 = vmul.f32 %v2327, %v4009
        %v4119 = vmul.f32 %v2329, %v4013
        %v4120 = vmul.f32 %v2841, %v4017
        %v4121 = vmul.f32 %v2843, %v4021
        %v4122 = vmul.f32 %v3355, %v4025
        %v4123 = vmul.f32 %v3357, %v4029
        %v4124 = vmul.f32 %v3869, %v4033
        %v4125 = vmul.f32 %v3871, %v4037
        %v4126 = vmul.f32 %v2333, %v4009
        %v4127 = vmul.f32 %v2335, %v4013
        %v4128 = vmul.f32 %v2847, %v4017
        %v4129 = vmul.f32 %v2849, %v4021
        %v4130 = vmul.f32 %v3361, %v4025
        %v4131 = vmul.f32 %v3363, %v4029
        %v4132 = vmul.f32 %v3875, %v4033
        %v4133 = vmul.f32 %v3877, %v4037
        %v4134 = vmul.f32 %v2339, %v4009
        %v4135 = vmul.f32 %v2341, %v4013
        %v4136 = vmul.f32 %v2853, %v4017
        %v4137 = vmul.f32 %v2855, %v4021
        %v4138 = vmul.f32 %v3367, %v4025
        %v4139 = vmul.f32 %v3369, %v4029
        %v4140 = vmul.f32 %v3881, %v4033
        %v4141 = vmul.f32 %v3883, %v4037
        %v4142 = vmul.f32 %v2345, %v4009
        %v4143 = vmul.f32 %v2347, %v4013
        %v4144 = vmul.f32 %v2859, %v4017
        %v4145 = vmul.f32 %v2861, %v4021
        %v4146 = vmul.f32 %v3373, %v4025
        %v4147 = vmul.f32 %v3375, %v4029
        %v4148 = vmul.f32 %v3887, %v4033
        %v4149 = vmul.f32 %v3889, %v4037
        %v4150 = vmul.f32 %v2351, %v4009
        %v4151 = vmul.f32 %v2353, %v4013
        %v4152 = vmul.f32 %v2865, %v4017
        %v4153 = vmul.f32 %v2867, %v4021
        %v4154 = vmul.f32 %v3379, %v4025
        %v4155 = vmul.f32 %v3381, %v4029
        %v4156 = vmul.f32 %v3893, %v4033
        %v4157 = vmul.f32 %v3895, %v4037
        %v4158 = vmul.f32 %v2357, %v4009
        %v4159 = vmul.f32 %v2359, %v4013
        %v4160 = vmul.f32 %v2871, %v4017
        %v4161 = vmul.f32 %v2873, %v4021
        %v4162 = vmul.f32 %v3385, %v4025
        %v4163 = vmul.f32 %v3387, %v4029
        %v4164 = vmul.f32 %v3899, %v4033
        %v4165 = vmul.f32 %v3901, %v4037
        %v4166 = vmul.f32 %v2363, %v4009
        %v4167 = vmul.f32 %v2365, %v4013
        %v4168 = vmul.f32 %v2877, %v4017
        %v4169 = vmul.f32 %v2879, %v4021
        %v4170 = vmul.f32 %v3391, %v4025
        %v4171 = vmul.f32 %v3393, %v4029
        %v4172 = vmul.f32 %v3905, %v4033
        %v4173 = vmul.f32 %v3907, %v4037
        %v4174 = vmul.f32 %v2369, %v4009
        %v4175 = vmul.f32 %v2371, %v4013
        %v4176 = vmul.f32 %v2883, %v4017
        %v4177 = vmul.f32 %v2885, %v4021
        %v4178 = vmul.f32 %v3397, %v4025
        %v4179 = vmul.f32 %v3399, %v4029
        %v4180 = vmul.f32 %v3911, %v4033
        %v4181 = vmul.f32 %v3913, %v4037
        %v4182 = vmul.f32 %v2375, %v4009
        %v4183 = vmul.f32 %v2377, %v4013
        %v4184 = vmul.f32 %v2889, %v4017
        %v4185 = vmul.f32 %v2891, %v4021
        %v4186 = vmul.f32 %v3403, %v4025
        %v4187 = vmul.f32 %v3405, %v4029
        %v4188 = vmul.f32 %v3917, %v4033
        %v4189 = vmul.f32 %v3919, %v4037
        %v4190 = vmul.f32 %v2381, %v4009
        %v4191 = vmul.f32 %v2383, %v4013
        %v4192 = vmul.f32 %v2895, %v4017
        %v4193 = vmul.f32 %v2897, %v4021
        %v4194 = vmul.f32 %v3409, %v4025
        %v4195 = vmul.f32 %v3411, %v4029
        %v4196 = vmul.f32 %v3923, %v4033
        %v4197 = vmul.f32 %v3925, %v4037
        %v4198 = vmul.f32 %v2387, %v4009
        %v4199 = vmul.f32 %v2389, %v4013
        %v4200 = vmul.f32 %v2901, %v4017
        %v4201 = vmul.f32 %v2903, %v4021
        %v4202 = vmul.f32 %v3415, %v4025
        %v4203 = vmul.f32 %v3417, %v4029
        %v4204 = vmul.f32 %v3929, %v4033
        %v4205 = vmul.f32 %v3931, %v4037
        %v4206 = vmul.f32 %v2393, %v4009
        %v4207 = vmul.f32 %v2395, %v4013
        %v4208 = vmul.f32 %v2907, %v4017
        %v4209 = vmul.f32 %v2909, %v4021
        %v4210 = vmul.f32 %v3421, %v4025
        %v4211 = vmul.f32 %v3423, %v4029
        %v4212 = vmul.f32 %v3935, %v4033
        %v4213 = vmul.f32 %v3937, %v4037
        %v4214 = vmul.f32 %v2399, %v4009
        %v4215 = vmul.f32 %v2401, %v4013
        %v4216 = vmul.f32 %v2913, %v4017
        %v4217 = vmul.f32 %v2915, %v4021
        %v4218 = vmul.f32 %v3427, %v4025
        %v4219 = vmul.f32 %v3429, %v4029
        %v4220 = vmul.f32 %v3941, %v4033
        %v4221 = vmul.f32 %v3943, %v4037
        %v4222 = vmul.f32 %v2405, %v4009
        %v4223 = vmul.f32 %v2407, %v4013
        %v4224 = vmul.f32 %v2919, %v4017
        %v4225 = vmul.f32 %v2921, %v4021
        %v4226 = vmul.f32 %v3433, %v4025
        %v4227 = vmul.f32 %v3435, %v4029
        %v4228 = vmul.f32 %v3947, %v4033
        %v4229 = vmul.f32 %v3949, %v4037
        %v4230 = vmul.f32 %v2411, %v4009
        %v4231 = vmul.f32 %v2413, %v4013
        %v4232 = vmul.f32 %v2925, %v4017
        %v4233 = vmul.f32 %v2927, %v4021
        %v4234 = vmul.f32 %v3439, %v4025
        %v4235 = vmul.f32 %v3441, %v4029
        %v4236 = vmul.f32 %v3953, %v4033
        %v4237 = vmul.f32 %v3955, %v4037
        %v4238 = vmul.f32 %v2417, %v4009
        %v4239 = vmul.f32 %v2419, %v4013
        %v4240 = vmul.f32 %v2931, %v4017
        %v4241 = vmul.f32 %v2933, %v4021
        %v4242 = vmul.f32 %v3445, %v4025
        %v4243 = vmul.f32 %v3447, %v4029
        %v4244 = vmul.f32 %v3959, %v4033
        %v4245 = vmul.f32 %v3961, %v4037
        %v4246 = vmul.f32 %v2423, %v4009
        %v4247 = vmul.f32 %v2425, %v4013
        %v4248 = vmul.f32 %v2937, %v4017
        %v4249 = vmul.f32 %v2939, %v4021
        %v4250 = vmul.f32 %v3451, %v4025
        %v4251 = vmul.f32 %v3453, %v4029
        %v4252 = vmul.f32 %v3965, %v4033
        %v4253 = vmul.f32 %v3967, %v4037
        %v4254 = vmul.f32 %v2429, %v4009
        %v4255 = vmul.f32 %v2431, %v4013
        %v4256 = vmul.f32 %v2943, %v4017
        %v4257 = vmul.f32 %v2945, %v4021
        %v4258 = vmul.f32 %v3457, %v4025
        %v4259 = vmul.f32 %v3459, %v4029
        %v4260 = vmul.f32 %v3971, %v4033
        %v4261 = vmul.f32 %v3973, %v4037
        %v4262 = vmul.f32 %v2435, %v4009
        %v4263 = vmul.f32 %v2437, %v4013
        %v4264 = vmul.f32 %v2949, %v4017
        %v4265 = vmul.f32 %v2951, %v4021
        %v4266 = vmul.f32 %v3463, %v4025
        %v4267 = vmul.f32 %v3465, %v4029
        %v4268 = vmul.f32 %v3977, %v4033
        %v4269 = vmul.f32 %v3979, %v4037
        %v4270 = vmul.f32 %v2441, %v4009
        %v4271 = vmul.f32 %v2443, %v4013
        %v4272 = vmul.f32 %v2955, %v4017
        %v4273 = vmul.f32 %v2957, %v4021
        %v4274 = vmul.f32 %v3469, %v4025
        %v4275 = vmul.f32 %v3471, %v4029
        %v4276 = vmul.f32 %v3983, %v4033
        %v4277 = vmul.f32 %v3985, %v4037
        %v4278 = vmul.f32 %v2447, %v4009
        %v4279 = vmul.f32 %v2449, %v4013
        %v4280 = vmul.f32 %v2961, %v4017
        %v4281 = vmul.f32 %v2963, %v4021
        %v4282 = vmul.f32 %v3475, %v4025
        %v4283 = vmul.f32 %v3477, %v4029
        %v4284 = vmul.f32 %v3989, %v4033
        %v4285 = vmul.f32 %v3991, %v4037
        %v4286 = vmul.f32 %v2453, %v4009
        %v4287 = vmul.f32 %v2455, %v4013
        %v4288 = vmul.f32 %v2967, %v4017
        %v4289 = vmul.f32 %v2969, %v4021
        %v4290 = vmul.f32 %v3481, %v4025
        %v4291 = vmul.f32 %v3483, %v4029
        %v4292 = vmul.f32 %v3995, %v4033
        %v4293 = vmul.f32 %v3997, %v4037
        %v4294 = vmul.f32 %v2459, %v4009
        %v4295 = vmul.f32 %v2461, %v4013
        %v4296 = vmul.f32 %v2973, %v4017
        %v4297 = vmul.f32 %v2975, %v4021
        %v4298 = vmul.f32 %v3487, %v4025
        %v4299 = vmul.f32 %v3489, %v4029
        %v4300 = vmul.f32 %v4001, %v4033
        %v4301 = vmul.f32 %v4003, %v4037
        %v4303 = vlaneseq
        %v4304 = vshrl.u32 %v4303, 7
        %v4305 = vsub.s32 0, %v4304
        %v4306 = vrot.slane %v368, %v4305
        %v4307 = vlaneseq
        %v4308 = vshrl.u32 %v4307, 7
        %v4309 = vsub.s32 1, %v4308
        %v4310 = vrot.slane %v368, %v4309
        %v4311 = vlaneseq
        %v4312 = vshrl.u32 %v4311, 7
        %v4313 = vsub.s32 2, %v4312
        %v4314 = vrot.slane %v368, %v4313
        %v4315 = vlaneseq
        %v4316 = vshrl.u32 %v4315, 7
        %v4317 = vsub.s32 3, %v4316
        %v4318 = vrot.slane %v368, %v4317
        %v4319 = vlaneseq
        %v4320 = vshrl.u32 %v4319, 7
        %v4321 = vsub.s32 4, %v4320
        %v4322 = vrot.slane %v368, %v4321
        %v4323 = vlaneseq
        %v4324 = vshrl.u32 %v4323, 7
        %v4325 = vsub.s32 5, %v4324
        %v4326 = vrot.slane %v368, %v4325
        %v4327 = vlaneseq
        %v4328 = vshrl.u32 %v4327, 7
        %v4329 = vsub.s32 6, %v4328
        %v4330 = vrot.slane %v368, %v4329
        %v4331 = vlaneseq
        %v4332 = vshrl.u32 %v4331, 7
        %v4333 = vsub.s32 7, %v4332
        %v4334 = vrot.slane %v368, %v4333
        %v4343 = vadd.f32 %v4046, %v4306
        %v4344 = vadd.f32 %v4047, %v4310
        %v4345 = vadd.f32 %v4048, %v4314
        %v4346 = vadd.f32 %v4049, %v4318
        %v4347 = vadd.f32 %v4050, %v4322
        %v4348 = vadd.f32 %v4051, %v4326
        %v4349 = vadd.f32 %v4052, %v4330
        %v4350 = vadd.f32 %v4053, %v4334
        %v4351 = vadd.f32 %v4054, %v4306
        %v4352 = vadd.f32 %v4055, %v4310
        %v4353 = vadd.f32 %v4056, %v4314
        %v4354 = vadd.f32 %v4057, %v4318
        %v4355 = vadd.f32 %v4058, %v4322
        %v4356 = vadd.f32 %v4059, %v4326
        %v4357 = vadd.f32 %v4060, %v4330
        %v4358 = vadd.f32 %v4061, %v4334
        %v4359 = vadd.f32 %v4062, %v4306
        %v4360 = vadd.f32 %v4063, %v4310
        %v4361 = vadd.f32 %v4064, %v4314
        %v4362 = vadd.f32 %v4065, %v4318
        %v4363 = vadd.f32 %v4066, %v4322
        %v4364 = vadd.f32 %v4067, %v4326
        %v4365 = vadd.f32 %v4068, %v4330
        %v4366 = vadd.f32 %v4069, %v4334
        %v4367 = vadd.f32 %v4070, %v4306
        %v4368 = vadd.f32 %v4071, %v4310
        %v4369 = vadd.f32 %v4072, %v4314
        %v4370 = vadd.f32 %v4073, %v4318
        %v4371 = vadd.f32 %v4074, %v4322
        %v4372 = vadd.f32 %v4075, %v4326
        %v4373 = vadd.f32 %v4076, %v4330
        %v4374 = vadd.f32 %v4077, %v4334
        %v4375 = vadd.f32 %v4078, %v4306
        %v4376 = vadd.f32 %v4079, %v4310
        %v4377 = vadd.f32 %v4080, %v4314
        %v4378 = vadd.f32 %v4081, %v4318
        %v4379 = vadd.f32 %v4082, %v4322
        %v4380 = vadd.f32 %v4083, %v4326
        %v4381 = vadd.f32 %v4084, %v4330
        %v4382 = vadd.f32 %v4085, %v4334
        %v4383 = vadd.f32 %v4086, %v4306
        %v4384 = vadd.f32 %v4087, %v4310
        %v4385 = vadd.f32 %v4088, %v4314
        %v4386 = vadd.f32 %v4089, %v4318
        %v4387 = vadd.f32 %v4090, %v4322
        %v4388 = vadd.f32 %v4091, %v4326
        %v4389 = vadd.f32 %v4092, %v4330
        %v4390 = vadd.f32 %v4093, %v4334
        %v4391 = vadd.f32 %v4094, %v4306
        %v4392 = vadd.f32 %v4095, %v4310
        %v4393 = vadd.f32 %v4096, %v4314
        %v4394 = vadd.f32 %v4097, %v4318
        %v4395 = vadd.f32 %v4098, %v4322
        %v4396 = vadd.f32 %v4099, %v4326
        %v4397 = vadd.f32 %v4100, %v4330
        %v4398 = vadd.f32 %v4101, %v4334
        %v4399 = vadd.f32 %v4102, %v4306
        %v4400 = vadd.f32 %v4103, %v4310
        %v4401 = vadd.f32 %v4104, %v4314
        %v4402 = vadd.f32 %v4105, %v4318
        %v4403 = vadd.f32 %v4106, %v4322
        %v4404 = vadd.f32 %v4107, %v4326
        %v4405 = vadd.f32 %v4108, %v4330
        %v4406 = vadd.f32 %v4109, %v4334
        %v4407 = vadd.f32 %v4110, %v4306
        %v4408 = vadd.f32 %v4111, %v4310
        %v4409 = vadd.f32 %v4112, %v4314
        %v4410 = vadd.f32 %v4113, %v4318
        %v4411 = vadd.f32 %v4114, %v4322
        %v4412 = vadd.f32 %v4115, %v4326
        %v4413 = vadd.f32 %v4116, %v4330
        %v4414 = vadd.f32 %v4117, %v4334
        %v4415 = vadd.f32 %v4118, %v4306
        %v4416 = vadd.f32 %v4119, %v4310
        %v4417 = vadd.f32 %v4120, %v4314
        %v4418 = vadd.f32 %v4121, %v4318
        %v4419 = vadd.f32 %v4122, %v4322
        %v4420 = vadd.f32 %v4123, %v4326
        %v4421 = vadd.f32 %v4124, %v4330
        %v4422 = vadd.f32 %v4125, %v4334
        %v4423 = vadd.f32 %v4126, %v4306
        %v4424 = vadd.f32 %v4127, %v4310
        %v4425 = vadd.f32 %v4128, %v4314
        %v4426 = vadd.f32 %v4129, %v4318
        %v4427 = vadd.f32 %v4130, %v4322
        %v4428 = vadd.f32 %v4131, %v4326
        %v4429 = vadd.f32 %v4132, %v4330
        %v4430 = vadd.f32 %v4133, %v4334
        %v4431 = vadd.f32 %v4134, %v4306
        %v4432 = vadd.f32 %v4135, %v4310
        %v4433 = vadd.f32 %v4136, %v4314
        %v4434 = vadd.f32 %v4137, %v4318
        %v4435 = vadd.f32 %v4138, %v4322
        %v4436 = vadd.f32 %v4139, %v4326
        %v4437 = vadd.f32 %v4140, %v4330
        %v4438 = vadd.f32 %v4141, %v4334
        %v4439 = vadd.f32 %v4142, %v4306
        %v4440 = vadd.f32 %v4143, %v4310
        %v4441 = vadd.f32 %v4144, %v4314
        %v4442 = vadd.f32 %v4145, %v4318
        %v4443 = vadd.f32 %v4146, %v4322
        %v4444 = vadd.f32 %v4147, %v4326
        %v4445 = vadd.f32 %v4148, %v4330
        %v4446 = vadd.f32 %v4149, %v4334
        %v4447 = vadd.f32 %v4150, %v4306
        %v4448 = vadd.f32 %v4151, %v4310
        %v4449 = vadd.f32 %v4152, %v4314
        %v4450 = vadd.f32 %v4153, %v4318
        %v4451 = vadd.f32 %v4154, %v4322
        %v4452 = vadd.f32 %v4155, %v4326
        %v4453 = vadd.f32 %v4156, %v4330
        %v4454 = vadd.f32 %v4157, %v4334
        %v4455 = vadd.f32 %v4158, %v4306
        %v4456 = vadd.f32 %v4159, %v4310
        %v4457 = vadd.f32 %v4160, %v4314
        %v4458 = vadd.f32 %v4161, %v4318
        %v4459 = vadd.f32 %v4162, %v4322
        %v4460 = vadd.f32 %v4163, %v4326
        %v4461 = vadd.f32 %v4164, %v4330
        %v4462 = vadd.f32 %v4165, %v4334
        %v4463 = vadd.f32 %v4166, %v4306
        %v4464 = vadd.f32 %v4167, %v4310
        %v4465 = vadd.f32 %v4168, %v4314
        %v4466 = vadd.f32 %v4169, %v4318
        %v4467 = vadd.f32 %v4170, %v4322
        %v4468 = vadd.f32 %v4171, %v4326
        %v4469 = vadd.f32 %v4172, %v4330
        %v4470 = vadd.f32 %v4173, %v4334
        %v4471 = vadd.f32 %v4174, %v4306
        %v4472 = vadd.f32 %v4175, %v4310
        %v4473 = vadd.f32 %v4176, %v4314
        %v4474 = vadd.f32 %v4177, %v4318
        %v4475 = vadd.f32 %v4178, %v4322
        %v4476 = vadd.f32 %v4179, %v4326
        %v4477 = vadd.f32 %v4180, %v4330
        %v4478 = vadd.f32 %v4181, %v4334
        %v4479 = vadd.f32 %v4182, %v4306
        %v4480 = vadd.f32 %v4183, %v4310
        %v4481 = vadd.f32 %v4184, %v4314
        %v4482 = vadd.f32 %v4185, %v4318
        %v4483 = vadd.f32 %v4186, %v4322
        %v4484 = vadd.f32 %v4187, %v4326
        %v4485 = vadd.f32 %v4188, %v4330
        %v4486 = vadd.f32 %v4189, %v4334
        %v4487 = vadd.f32 %v4190, %v4306
        %v4488 = vadd.f32 %v4191, %v4310
        %v4489 = vadd.f32 %v4192, %v4314
        %v4490 = vadd.f32 %v4193, %v4318
        %v4491 = vadd.f32 %v4194, %v4322
        %v4492 = vadd.f32 %v4195, %v4326
        %v4493 = vadd.f32 %v4196, %v4330
        %v4494 = vadd.f32 %v4197, %v4334
        %v4495 = vadd.f32 %v4198, %v4306
        %v4496 = vadd.f32 %v4199, %v4310
        %v4497 = vadd.f32 %v4200, %v4314
        %v4498 = vadd.f32 %v4201, %v4318
        %v4499 = vadd.f32 %v4202, %v4322
        %v4500 = vadd.f32 %v4203, %v4326
        %v4501 = vadd.f32 %v4204, %v4330
        %v4502 = vadd.f32 %v4205, %v4334
        %v4503 = vadd.f32 %v4206, %v4306
        %v4504 = vadd.f32 %v4207, %v4310
        %v4505 = vadd.f32 %v4208, %v4314
        %v4506 = vadd.f32 %v4209, %v4318
        %v4507 = vadd.f32 %v4210, %v4322
        %v4508 = vadd.f32 %v4211, %v4326
        %v4509 = vadd.f32 %v4212, %v4330
        %v4510 = vadd.f32 %v4213, %v4334
        %v4511 = vadd.f32 %v4214, %v4306
        %v4512 = vadd.f32 %v4215, %v4310
        %v4513 = vadd.f32 %v4216, %v4314
        %v4514 = vadd.f32 %v4217, %v4318
        %v4515 = vadd.f32 %v4218, %v4322
        %v4516 = vadd.f32 %v4219, %v4326
        %v4517 = vadd.f32 %v4220, %v4330
        %v4518 = vadd.f32 %v4221, %v4334
        %v4519 = vadd.f32 %v4222, %v4306
        %v4520 = vadd.f32 %v4223, %v4310
        %v4521 = vadd.f32 %v4224, %v4314
        %v4522 = vadd.f32 %v4225, %v4318
        %v4523 = vadd.f32 %v4226, %v4322
        %v4524 = vadd.f32 %v4227, %v4326
        %v4525 = vadd.f32 %v4228, %v4330
        %v4526 = vadd.f32 %v4229, %v4334
        %v4527 = vadd.f32 %v4230, %v4306
        %v4528 = vadd.f32 %v4231, %v4310
        %v4529 = vadd.f32 %v4232, %v4314
        %v4530 = vadd.f32 %v4233, %v4318
        %v4531 = vadd.f32 %v4234, %v4322
        %v4532 = vadd.f32 %v4235, %v4326
        %v4533 = vadd.f32 %v4236, %v4330
        %v4534 = vadd.f32 %v4237, %v4334
        %v4535 = vadd.f32 %v4238, %v4306
        %v4536 = vadd.f32 %v4239, %v4310
        %v4537 = vadd.f32 %v4240, %v4314
        %v4538 = vadd.f32 %v4241, %v4318
        %v4539 = vadd.f32 %v4242, %v4322
        %v4540 = vadd.f32 %v4243, %v4326
        %v4541 = vadd.f32 %v4244, %v4330
        %v4542 = vadd.f32 %v4245, %v4334
        %v4543 = vadd.f32 %v4246, %v4306
        %v4544 = vadd.f32 %v4247, %v4310
        %v4545 = vadd.f32 %v4248, %v4314
        %v4546 = vadd.f32 %v4249, %v4318
        %v4547 = vadd.f32 %v4250, %v4322
        %v4548 = vadd.f32 %v4251, %v4326
        %v4549 = vadd.f32 %v4252, %v4330
        %v4550 = vadd.f32 %v4253, %v4334
        %v4551 = vadd.f32 %v4254, %v4306
        %v4552 = vadd.f32 %v4255, %v4310
        %v4553 = vadd.f32 %v4256, %v4314
        %v4554 = vadd.f32 %v4257, %v4318
        %v4555 = vadd.f32 %v4258, %v4322
        %v4556 = vadd.f32 %v4259, %v4326
        %v4557 = vadd.f32 %v4260, %v4330
        %v4558 = vadd.f32 %v4261, %v4334
        %v4559 = vadd.f32 %v4262, %v4306
        %v4560 = vadd.f32 %v4263, %v4310
        %v4561 = vadd.f32 %v4264, %v4314
        %v4562 = vadd.f32 %v4265, %v4318
        %v4563 = vadd.f32 %v4266, %v4322
        %v4564 = vadd.f32 %v4267, %v4326
        %v4565 = vadd.f32 %v4268, %v4330
        %v4566 = vadd.f32 %v4269, %v4334
        %v4567 = vadd.f32 %v4270, %v4306
        %v4568 = vadd.f32 %v4271, %v4310
        %v4569 = vadd.f32 %v4272, %v4314
        %v4570 = vadd.f32 %v4273, %v4318
        %v4571 = vadd.f32 %v4274, %v4322
        %v4572 = vadd.f32 %v4275, %v4326
        %v4573 = vadd.f32 %v4276, %v4330
        %v4574 = vadd.f32 %v4277, %v4334
        %v4575 = vadd.f32 %v4278, %v4306
        %v4576 = vadd.f32 %v4279, %v4310
        %v4577 = vadd.f32 %v4280, %v4314
        %v4578 = vadd.f32 %v4281, %v4318
        %v4579 = vadd.f32 %v4282, %v4322
        %v4580 = vadd.f32 %v4283, %v4326
        %v4581 = vadd.f32 %v4284, %v4330
        %v4582 = vadd.f32 %v4285, %v4334
        %v4583 = vadd.f32 %v4286, %v4306
        %v4584 = vadd.f32 %v4287, %v4310
        %v4585 = vadd.f32 %v4288, %v4314
        %v4586 = vadd.f32 %v4289, %v4318
        %v4587 = vadd.f32 %v4290, %v4322
        %v4588 = vadd.f32 %v4291, %v4326
        %v4589 = vadd.f32 %v4292, %v4330
        %v4590 = vadd.f32 %v4293, %v4334
        %v4591 = vadd.f32 %v4294, %v4306
        %v4592 = vadd.f32 %v4295, %v4310
        %v4593 = vadd.f32 %v4296, %v4314
        %v4594 = vadd.f32 %v4297, %v4318
        %v4595 = vadd.f32 %v4298, %v4322
        %v4596 = vadd.f32 %v4299, %v4326
        %v4597 = vadd.f32 %v4300, %v4330
        %v4598 = vadd.f32 %v4301, %v4334
        %v4599 = vmax.f32 %v4343, 0.0
        %v4600 = vmax.f32 %v4344, 0.0
        %v4601 = vmax.f32 %v4345, 0.0
        %v4602 = vmax.f32 %v4346, 0.0
        %v4603 = vmax.f32 %v4347, 0.0
        %v4604 = vmax.f32 %v4348, 0.0
        %v4605 = vmax.f32 %v4349, 0.0
        %v4606 = vmax.f32 %v4350, 0.0
        %v4607 = vmax.f32 %v4351, 0.0
        %v4608 = vmax.f32 %v4352, 0.0
        %v4609 = vmax.f32 %v4353, 0.0
        %v4610 = vmax.f32 %v4354, 0.0
        %v4611 = vmax.f32 %v4355, 0.0
        %v4612 = vmax.f32 %v4356, 0.0
        %v4613 = vmax.f32 %v4357, 0.0
        %v4614 = vmax.f32 %v4358, 0.0
        %v4615 = vmax.f32 %v4359, 0.0
        %v4616 = vmax.f32 %v4360, 0.0
        %v4617 = vmax.f32 %v4361, 0.0
        %v4618 = vmax.f32 %v4362, 0.0
        %v4619 = vmax.f32 %v4363, 0.0
        %v4620 = vmax.f32 %v4364, 0.0
        %v4621 = vmax.f32 %v4365, 0.0
        %v4622 = vmax.f32 %v4366, 0.0
        %v4623 = vmax.f32 %v4367, 0.0
        %v4624 = vmax.f32 %v4368, 0.0
        %v4625 = vmax.f32 %v4369, 0.0
        %v4626 = vmax.f32 %v4370, 0.0
        %v4627 = vmax.f32 %v4371, 0.0
        %v4628 = vmax.f32 %v4372, 0.0
        %v4629 = vmax.f32 %v4373, 0.0
        %v4630 = vmax.f32 %v4374, 0.0
        %v4631 = vmax.f32 %v4375, 0.0
        %v4632 = vmax.f32 %v4376, 0.0
        %v4633 = vmax.f32 %v4377, 0.0
        %v4634 = vmax.f32 %v4378, 0.0
        %v4635 = vmax.f32 %v4379, 0.0
        %v4636 = vmax.f32 %v4380, 0.0
        %v4637 = vmax.f32 %v4381, 0.0
        %v4638 = vmax.f32 %v4382, 0.0
        %v4639 = vmax.f32 %v4383, 0.0
        %v4640 = vmax.f32 %v4384, 0.0
        %v4641 = vmax.f32 %v4385, 0.0
        %v4642 = vmax.f32 %v4386, 0.0
        %v4643 = vmax.f32 %v4387, 0.0
        %v4644 = vmax.f32 %v4388, 0.0
        %v4645 = vmax.f32 %v4389, 0.0
        %v4646 = vmax.f32 %v4390, 0.0
        %v4647 = vmax.f32 %v4391, 0.0
        %v4648 = vmax.f32 %v4392, 0.0
        %v4649 = vmax.f32 %v4393, 0.0
        %v4650 = vmax.f32 %v4394, 0.0
        %v4651 = vmax.f32 %v4395, 0.0
        %v4652 = vmax.f32 %v4396, 0.0
        %v4653 = vmax.f32 %v4397, 0.0
        %v4654 = vmax.f32 %v4398, 0.0
        %v4655 = vmax.f32 %v4399, 0.0
        %v4656 = vmax.f32 %v4400, 0.0
        %v4657 = vmax.f32 %v4401, 0.0
        %v4658 = vmax.f32 %v4402, 0.0
        %v4659 = vmax.f32 %v4403, 0.0
        %v4660 = vmax.f32 %v4404, 0.0
        %v4661 = vmax.f32 %v4405, 0.0
        %v4662 = vmax.f32 %v4406, 0.0
        %v4663 = vmax.f32 %v4407, 0.0
        %v4664 = vmax.f32 %v4408, 0.0
        %v4665 = vmax.f32 %v4409, 0.0
        %v4666 = vmax.f32 %v4410, 0.0
        %v4667 = vmax.f32 %v4411, 0.0
        %v4668 = vmax.f32 %v4412, 0.0
        %v4669 = vmax.f32 %v4413, 0.0
        %v4670 = vmax.f32 %v4414, 0.0
        %v4671 = vmax.f32 %v4415, 0.0
        %v4672 = vmax.f32 %v4416, 0.0
        %v4673 = vmax.f32 %v4417, 0.0
        %v4674 = vmax.f32 %v4418, 0.0
        %v4675 = vmax.f32 %v4419, 0.0
        %v4676 = vmax.f32 %v4420, 0.0
        %v4677 = vmax.f32 %v4421, 0.0
        %v4678 = vmax.f32 %v4422, 0.0
        %v4679 = vmax.f32 %v4423, 0.0
        %v4680 = vmax.f32 %v4424, 0.0
        %v4681 = vmax.f32 %v4425, 0.0
        %v4682 = vmax.f32 %v4426, 0.0
        %v4683 = vmax.f32 %v4427, 0.0
        %v4684 = vmax.f32 %v4428, 0.0
        %v4685 = vmax.f32 %v4429, 0.0
        %v4686 = vmax.f32 %v4430, 0.0
        %v4687 = vmax.f32 %v4431, 0.0
        %v4688 = vmax.f32 %v4432, 0.0
        %v4689 = vmax.f32 %v4433, 0.0
        %v4690 = vmax.f32 %v4434, 0.0
        %v4691 = vmax.f32 %v4435, 0.0
        %v4692 = vmax.f32 %v4436, 0.0
        %v4693 = vmax.f32 %v4437, 0.0
        %v4694 = vmax.f32 %v4438, 0.0
        %v4695 = vmax.f32 %v4439, 0.0
        %v4696 = vmax.f32 %v4440, 0.0
        %v4697 = vmax.f32 %v4441, 0.0
        %v4698 = vmax.f32 %v4442, 0.0
        %v4699 = vmax.f32 %v4443, 0.0
        %v4700 = vmax.f32 %v4444, 0.0
        %v4701 = vmax.f32 %v4445, 0.0
        %v4702 = vmax.f32 %v4446, 0.0
        %v4703 = vmax.f32 %v4447, 0.0
        %v4704 = vmax.f32 %v4448, 0.0
        %v4705 = vmax.f32 %v4449, 0.0
        %v4706 = vmax.f32 %v4450, 0.0
        %v4707 = vmax.f32 %v4451, 0.0
        %v4708 = vmax.f32 %v4452, 0.0
        %v4709 = vmax.f32 %v4453, 0.0
        %v4710 = vmax.f32 %v4454, 0.0
        %v4711 = vmax.f32 %v4455, 0.0
        %v4712 = vmax.f32 %v4456, 0.0
        %v4713 = vmax.f32 %v4457, 0.0
        %v4714 = vmax.f32 %v4458, 0.0
        %v4715 = vmax.f32 %v4459, 0.0
        %v4716 = vmax.f32 %v4460, 0.0
        %v4717 = vmax.f32 %v4461, 0.0
        %v4718 = vmax.f32 %v4462, 0.0
        %v4719 = vmax.f32 %v4463, 0.0
        %v4720 = vmax.f32 %v4464, 0.0
        %v4721 = vmax.f32 %v4465, 0.0
        %v4722 = vmax.f32 %v4466, 0.0
        %v4723 = vmax.f32 %v4467, 0.0
        %v4724 = vmax.f32 %v4468, 0.0
        %v4725 = vmax.f32 %v4469, 0.0
        %v4726 = vmax.f32 %v4470, 0.0
        %v4727 = vmax.f32 %v4471, 0.0
        %v4728 = vmax.f32 %v4472, 0.0
        %v4729 = vmax.f32 %v4473, 0.0
        %v4730 = vmax.f32 %v4474, 0.0
        %v4731 = vmax.f32 %v4475, 0.0
        %v4732 = vmax.f32 %v4476, 0.0
        %v4733 = vmax.f32 %v4477, 0.0
        %v4734 = vmax.f32 %v4478, 0.0
        %v4735 = vmax.f32 %v4479, 0.0
        %v4736 = vmax.f32 %v4480, 0.0
        %v4737 = vmax.f32 %v4481, 0.0
        %v4738 = vmax.f32 %v4482, 0.0
        %v4739 = vmax.f32 %v4483, 0.0
        %v4740 = vmax.f32 %v4484, 0.0
        %v4741 = vmax.f32 %v4485, 0.0
        %v4742 = vmax.f32 %v4486, 0.0
        %v4743 = vmax.f32 %v4487, 0.0
        %v4744 = vmax.f32 %v4488, 0.0
        %v4745 = vmax.f32 %v4489, 0.0
        %v4746 = vmax.f32 %v4490, 0.0
        %v4747 = vmax.f32 %v4491, 0.0
        %v4748 = vmax.f32 %v4492, 0.0
        %v4749 = vmax.f32 %v4493, 0.0
        %v4750 = vmax.f32 %v4494, 0.0
        %v4751 = vmax.f32 %v4495, 0.0
        %v4752 = vmax.f32 %v4496, 0.0
        %v4753 = vmax.f32 %v4497, 0.0
        %v4754 = vmax.f32 %v4498, 0.0
        %v4755 = vmax.f32 %v4499, 0.0
        %v4756 = vmax.f32 %v4500, 0.0
        %v4757 = vmax.f32 %v4501, 0.0
        %v4758 = vmax.f32 %v4502, 0.0
        %v4759 = vmax.f32 %v4503, 0.0
        %v4760 = vmax.f32 %v4504, 0.0
        %v4761 = vmax.f32 %v4505, 0.0
        %v4762 = vmax.f32 %v4506, 0.0
        %v4763 = vmax.f32 %v4507, 0.0
        %v4764 = vmax.f32 %v4508, 0.0
        %v4765 = vmax.f32 %v4509, 0.0
        %v4766 = vmax.f32 %v4510, 0.0
        %v4767 = vmax.f32 %v4511, 0.0
        %v4768 = vmax.f32 %v4512, 0.0
        %v4769 = vmax.f32 %v4513, 0.0
        %v4770 = vmax.f32 %v4514, 0.0
        %v4771 = vmax.f32 %v4515, 0.0
        %v4772 = vmax.f32 %v4516, 0.0
        %v4773 = vmax.f32 %v4517, 0.0
        %v4774 = vmax.f32 %v4518, 0.0
        %v4775 = vmax.f32 %v4519, 0.0
        %v4776 = vmax.f32 %v4520, 0.0
        %v4777 = vmax.f32 %v4521, 0.0
        %v4778 = vmax.f32 %v4522, 0.0
        %v4779 = vmax.f32 %v4523, 0.0
        %v4780 = vmax.f32 %v4524, 0.0
        %v4781 = vmax.f32 %v4525, 0.0
        %v4782 = vmax.f32 %v4526, 0.0
        %v4783 = vmax.f32 %v4527, 0.0
        %v4784 = vmax.f32 %v4528, 0.0
        %v4785 = vmax.f32 %v4529, 0.0
        %v4786 = vmax.f32 %v4530, 0.0
        %v4787 = vmax.f32 %v4531, 0.0
        %v4788 = vmax.f32 %v4532, 0.0
        %v4789 = vmax.f32 %v4533, 0.0
        %v4790 = vmax.f32 %v4534, 0.0
        %v4791 = vmax.f32 %v4535, 0.0
        %v4792 = vmax.f32 %v4536, 0.0
        %v4793 = vmax.f32 %v4537, 0.0
        %v4794 = vmax.f32 %v4538, 0.0
        %v4795 = vmax.f32 %v4539, 0.0
        %v4796 = vmax.f32 %v4540, 0.0
        %v4797 = vmax.f32 %v4541, 0.0
        %v4798 = vmax.f32 %v4542, 0.0
        %v4799 = vmax.f32 %v4543, 0.0
        %v4800 = vmax.f32 %v4544, 0.0
        %v4801 = vmax.f32 %v4545, 0.0
        %v4802 = vmax.f32 %v4546, 0.0
        %v4803 = vmax.f32 %v4547, 0.0
        %v4804 = vmax.f32 %v4548, 0.0
        %v4805 = vmax.f32 %v4549, 0.0
        %v4806 = vmax.f32 %v4550, 0.0
        %v4807 = vmax.f32 %v4551, 0.0
        %v4808 = vmax.f32 %v4552, 0.0
        %v4809 = vmax.f32 %v4553, 0.0
        %v4810 = vmax.f32 %v4554, 0.0
        %v4811 = vmax.f32 %v4555, 0.0
        %v4812 = vmax.f32 %v4556, 0.0
        %v4813 = vmax.f32 %v4557, 0.0
        %v4814 = vmax.f32 %v4558, 0.0
        %v4815 = vmax.f32 %v4559, 0.0
        %v4816 = vmax.f32 %v4560, 0.0
        %v4817 = vmax.f32 %v4561, 0.0
        %v4818 = vmax.f32 %v4562, 0.0
        %v4819 = vmax.f32 %v4563, 0.0
        %v4820 = vmax.f32 %v4564, 0.0
        %v4821 = vmax.f32 %v4565, 0.0
        %v4822 = vmax.f32 %v4566, 0.0
        %v4823 = vmax.f32 %v4567, 0.0
        %v4824 = vmax.f32 %v4568, 0.0
        %v4825 = vmax.f32 %v4569, 0.0
        %v4826 = vmax.f32 %v4570, 0.0
        %v4827 = vmax.f32 %v4571, 0.0
        %v4828 = vmax.f32 %v4572, 0.0
        %v4829 = vmax.f32 %v4573, 0.0
        %v4830 = vmax.f32 %v4574, 0.0
        %v4831 = vmax.f32 %v4575, 0.0
        %v4832 = vmax.f32 %v4576, 0.0
        %v4833 = vmax.f32 %v4577, 0.0
        %v4834 = vmax.f32 %v4578, 0.0
        %v4835 = vmax.f32 %v4579, 0.0
        %v4836 = vmax.f32 %v4580, 0.0
        %v4837 = vmax.f32 %v4581, 0.0
        %v4838 = vmax.f32 %v4582, 0.0
        %v4839 = vmax.f32 %v4583, 0.0
        %v4840 = vmax.f32 %v4584, 0.0
        %v4841 = vmax.f32 %v4585, 0.0
        %v4842 = vmax.f32 %v4586, 0.0
        %v4843 = vmax.f32 %v4587, 0.0
        %v4844 = vmax.f32 %v4588, 0.0
        %v4845 = vmax.f32 %v4589, 0.0
        %v4846 = vmax.f32 %v4590, 0.0
        %v4847 = vmax.f32 %v4591, 0.0
        %v4848 = vmax.f32 %v4592, 0.0
        %v4849 = vmax.f32 %v4593, 0.0
        %v4850 = vmax.f32 %v4594, 0.0
        %v4851 = vmax.f32 %v4595, 0.0
        %v4852 = vmax.f32 %v4596, 0.0
        %v4853 = vmax.f32 %v4597, 0.0
        %v4854 = vmax.f32 %v4598, 0.0
        %v4855 = vld [vmem:[#allocation7] sm:$0xff]
        %v4856 = vld [vmem:[#allocation7 + $0x8] sm:$0xff]
        %v4857 = vld [vmem:[#allocation7 + $0x10] sm:$0xff]
        %v4858 = vld [vmem:[#allocation7 + $0x18] sm:$0xff]
        %v4859 = vld [vmem:[#allocation7 + $0x20] sm:$0xff]
        %v4860 = vld [vmem:[#allocation7 + $0x28] sm:$0xff]
        %v4861 = vld [vmem:[#allocation7 + $0x30] sm:$0xff]
        %v4862 = vld [vmem:[#allocation7 + $0x38] sm:$0xff]
        %v4863 = vld [vmem:[#allocation7 + $0x40] sm:$0xff]
        %v4864 = vld [vmem:[#allocation7 + $0x48] sm:$0xff]
        %v4865 = vld [vmem:[#allocation7 + $0x50] sm:$0xff]
        %v4866 = vld [vmem:[#allocation7 + $0x58] sm:$0xff]
        %v4867 = vld [vmem:[#allocation7 + $0x60] sm:$0xff]
        %v4868 = vld [vmem:[#allocation7 + $0x68] sm:$0xff]
        %v4869 = vld [vmem:[#allocation7 + $0x70] sm:$0xff]
        %v4870 = vld [vmem:[#allocation7 + $0x78] sm:$0xff]
        %v4871 = vld [vmem:[#allocation7 + $0x80] sm:$0xff]
        %v4872 = vld [vmem:[#allocation7 + $0x88] sm:$0xff]
        %v4873 = vld [vmem:[#allocation7 + $0x90] sm:$0xff]
        %v4874 = vld [vmem:[#allocation7 + $0x98] sm:$0xff]
        %v4875 = vld [vmem:[#allocation7 + $0xa0] sm:$0xff]
        %v4876 = vld [vmem:[#allocation7 + $0xa8] sm:$0xff]
        %v4877 = vld [vmem:[#allocation7 + $0xb0] sm:$0xff]
        %v4878 = vld [vmem:[#allocation7 + $0xb8] sm:$0xff]
        %v4879 = vld [vmem:[#allocation7 + $0xc0] sm:$0xff]
        %v4880 = vld [vmem:[#allocation7 + $0xc8] sm:$0xff]
        %v4881 = vld [vmem:[#allocation7 + $0xd0] sm:$0xff]
        %v4882 = vld [vmem:[#allocation7 + $0xd8] sm:$0xff]
        %v4883 = vld [vmem:[#allocation7 + $0xe0] sm:$0xff]
        %v4884 = vld [vmem:[#allocation7 + $0xe8] sm:$0xff]
        %v4885 = vld [vmem:[#allocation7 + $0xf0] sm:$0xff]
        %v4886 = vld [vmem:[#allocation7 + $0xf8] sm:$0xff]
        %v4887 = vld [vmem:[#allocation7 + $0x100] sm:$0xff]
        %v4888 = vld [vmem:[#allocation7 + $0x108] sm:$0xff]
        %v4889 = vld [vmem:[#allocation7 + $0x110] sm:$0xff]
        %v4890 = vld [vmem:[#allocation7 + $0x118] sm:$0xff]
        %v4891 = vld [vmem:[#allocation7 + $0x120] sm:$0xff]
        %v4892 = vld [vmem:[#allocation7 + $0x128] sm:$0xff]
        %v4893 = vld [vmem:[#allocation7 + $0x130] sm:$0xff]
        %v4894 = vld [vmem:[#allocation7 + $0x138] sm:$0xff]
        %v4895 = vld [vmem:[#allocation7 + $0x140] sm:$0xff]
        %v4896 = vld [vmem:[#allocation7 + $0x148] sm:$0xff]
        %v4897 = vld [vmem:[#allocation7 + $0x150] sm:$0xff]
        %v4898 = vld [vmem:[#allocation7 + $0x158] sm:$0xff]
        %v4899 = vld [vmem:[#allocation7 + $0x160] sm:$0xff]
        %v4900 = vld [vmem:[#allocation7 + $0x168] sm:$0xff]
        %v4901 = vld [vmem:[#allocation7 + $0x170] sm:$0xff]
        %v4902 = vld [vmem:[#allocation7 + $0x178] sm:$0xff]
        %v4903 = vld [vmem:[#allocation7 + $0x180] sm:$0xff]
        %v4904 = vld [vmem:[#allocation7 + $0x188] sm:$0xff]
        %v4905 = vld [vmem:[#allocation7 + $0x190] sm:$0xff]
        %v4906 = vld [vmem:[#allocation7 + $0x198] sm:$0xff]
        %v4907 = vld [vmem:[#allocation7 + $0x1a0] sm:$0xff]
        %v4908 = vld [vmem:[#allocation7 + $0x1a8] sm:$0xff]
        %v4909 = vld [vmem:[#allocation7 + $0x1b0] sm:$0xff]
        %v4910 = vld [vmem:[#allocation7 + $0x1b8] sm:$0xff]
        %v4911 = vld [vmem:[#allocation7 + $0x1c0] sm:$0xff]
        %v4912 = vld [vmem:[#allocation7 + $0x1c8] sm:$0xff]
        %v4913 = vld [vmem:[#allocation7 + $0x1d0] sm:$0xff]
        %v4914 = vld [vmem:[#allocation7 + $0x1d8] sm:$0xff]
        %v4915 = vld [vmem:[#allocation7 + $0x1e0] sm:$0xff]
        %v4916 = vld [vmem:[#allocation7 + $0x1e8] sm:$0xff]
        %v4917 = vld [vmem:[#allocation7 + $0x1f0] sm:$0xff]
        %v4918 = vld [vmem:[#allocation7 + $0x1f8] sm:$0xff]
        %v4919 = vld [vmem:[#allocation7 + $0x200] sm:$0xff]
        %v4920 = vld [vmem:[#allocation7 + $0x208] sm:$0xff]
        %v4921 = vld [vmem:[#allocation7 + $0x210] sm:$0xff]
        %v4922 = vld [vmem:[#allocation7 + $0x218] sm:$0xff]
        %v4923 = vld [vmem:[#allocation7 + $0x220] sm:$0xff]
        %v4924 = vld [vmem:[#allocation7 + $0x228] sm:$0xff]
        %v4925 = vld [vmem:[#allocation7 + $0x230] sm:$0xff]
        %v4926 = vld [vmem:[#allocation7 + $0x238] sm:$0xff]
        %v4927 = vld [vmem:[#allocation7 + $0x240] sm:$0xff]
        %v4928 = vld [vmem:[#allocation7 + $0x248] sm:$0xff]
        %v4929 = vld [vmem:[#allocation7 + $0x250] sm:$0xff]
        %v4930 = vld [vmem:[#allocation7 + $0x258] sm:$0xff]
        %v4931 = vld [vmem:[#allocation7 + $0x260] sm:$0xff]
        %v4932 = vld [vmem:[#allocation7 + $0x268] sm:$0xff]
        %v4933 = vld [vmem:[#allocation7 + $0x270] sm:$0xff]
        %v4934 = vld [vmem:[#allocation7 + $0x278] sm:$0xff]
        %v4935 = vld [vmem:[#allocation7 + $0x280] sm:$0xff]
        %v4936 = vld [vmem:[#allocation7 + $0x288] sm:$0xff]
        %v4937 = vld [vmem:[#allocation7 + $0x290] sm:$0xff]
        %v4938 = vld [vmem:[#allocation7 + $0x298] sm:$0xff]
        %v4939 = vld [vmem:[#allocation7 + $0x2a0] sm:$0xff]
        %v4940 = vld [vmem:[#allocation7 + $0x2a8] sm:$0xff]
        %v4941 = vld [vmem:[#allocation7 + $0x2b0] sm:$0xff]
        %v4942 = vld [vmem:[#allocation7 + $0x2b8] sm:$0xff]
        %v4943 = vld [vmem:[#allocation7 + $0x2c0] sm:$0xff]
        %v4944 = vld [vmem:[#allocation7 + $0x2c8] sm:$0xff]
        %v4945 = vld [vmem:[#allocation7 + $0x2d0] sm:$0xff]
        %v4946 = vld [vmem:[#allocation7 + $0x2d8] sm:$0xff]
        %v4947 = vld [vmem:[#allocation7 + $0x2e0] sm:$0xff]
        %v4948 = vld [vmem:[#allocation7 + $0x2e8] sm:$0xff]
        %v4949 = vld [vmem:[#allocation7 + $0x2f0] sm:$0xff]
        %v4950 = vld [vmem:[#allocation7 + $0x2f8] sm:$0xff]
        %v4951 = vld [vmem:[#allocation7 + $0x300] sm:$0xff]
        %v4952 = vld [vmem:[#allocation7 + $0x308] sm:$0xff]
        %v4953 = vld [vmem:[#allocation7 + $0x310] sm:$0xff]
        %v4954 = vld [vmem:[#allocation7 + $0x318] sm:$0xff]
        %v4955 = vld [vmem:[#allocation7 + $0x320] sm:$0xff]
        %v4956 = vld [vmem:[#allocation7 + $0x328] sm:$0xff]
        %v4957 = vld [vmem:[#allocation7 + $0x330] sm:$0xff]
        %v4958 = vld [vmem:[#allocation7 + $0x338] sm:$0xff]
        %v4959 = vld [vmem:[#allocation7 + $0x340] sm:$0xff]
        %v4960 = vld [vmem:[#allocation7 + $0x348] sm:$0xff]
        %v4961 = vld [vmem:[#allocation7 + $0x350] sm:$0xff]
        %v4962 = vld [vmem:[#allocation7 + $0x358] sm:$0xff]
        %v4963 = vld [vmem:[#allocation7 + $0x360] sm:$0xff]
        %v4964 = vld [vmem:[#allocation7 + $0x368] sm:$0xff]
        %v4965 = vld [vmem:[#allocation7 + $0x370] sm:$0xff]
        %v4966 = vld [vmem:[#allocation7 + $0x378] sm:$0xff]
        %v4967 = vld [vmem:[#allocation7 + $0x380] sm:$0xff]
        %v4968 = vld [vmem:[#allocation7 + $0x388] sm:$0xff]
        %v4969 = vld [vmem:[#allocation7 + $0x390] sm:$0xff]
        %v4970 = vld [vmem:[#allocation7 + $0x398] sm:$0xff]
        %v4971 = vld [vmem:[#allocation7 + $0x3a0] sm:$0xff]
        %v4972 = vld [vmem:[#allocation7 + $0x3a8] sm:$0xff]
        %v4973 = vld [vmem:[#allocation7 + $0x3b0] sm:$0xff]
        %v4974 = vld [vmem:[#allocation7 + $0x3b8] sm:$0xff]
        %v4975 = vld [vmem:[#allocation7 + $0x3c0] sm:$0xff]
        %v4976 = vld [vmem:[#allocation7 + $0x3c8] sm:$0xff]
        %v4977 = vld [vmem:[#allocation7 + $0x3d0] sm:$0xff]
        %v4978 = vld [vmem:[#allocation7 + $0x3d8] sm:$0xff]
        %v4979 = vld [vmem:[#allocation7 + $0x3e0] sm:$0xff]
        %v4980 = vld [vmem:[#allocation7 + $0x3e8] sm:$0xff]
        %v4981 = vld [vmem:[#allocation7 + $0x3f0] sm:$0xff]
        %v4982 = vld [vmem:[#allocation7 + $0x3f8] sm:$0xff]
        %4983 = vmatprep.subr.mxu0 0.0
        %4984 = vmatpush1.msra.mxu0 %v4855
        %4985 = vmatprep.subr.mxu0 0.0
        %4986 = vmatpush1.msra.mxu0 %v4856
        %4987 = vmatprep.subr.mxu0 0.0
        %4988 = vmatpush1.msra.mxu0 %v4857
        %4989 = vmatprep.subr.mxu0 0.0
        %4990 = vmatpush1.msra.mxu0 %v4858
        %4991 = vmatprep.subr.mxu0 0.0
        %4992 = vmatpush1.msra.mxu0 %v4859
        %4993 = vmatprep.subr.mxu0 0.0
        %4994 = vmatpush1.msra.mxu0 %v4860
        %4995 = vmatprep.subr.mxu0 0.0
        %4996 = vmatpush1.msra.mxu0 %v4861
        %4997 = vmatprep.subr.mxu0 0.0
        %4998 = vmatpush1.msra.mxu0 %v4862
        %4999 = vmatprep.subr.mxu0 0.0
        %5000 = vmatpush1.msra.mxu0 %v4863
        %5001 = vmatprep.subr.mxu0 0.0
        %5002 = vmatpush1.msra.mxu0 %v4864
        %5003 = vmatprep.subr.mxu0 0.0
        %5004 = vmatpush1.msra.mxu0 %v4865
        %5005 = vmatprep.subr.mxu0 0.0
        %5006 = vmatpush1.msra.mxu0 %v4866
        %5007 = vmatprep.subr.mxu0 0.0
        %5008 = vmatpush1.msra.mxu0 %v4867
        %5009 = vmatprep.subr.mxu0 0.0
        %5010 = vmatpush1.msra.mxu0 %v4868
        %5011 = vmatprep.subr.mxu0 0.0
        %5012 = vmatpush1.msra.mxu0 %v4869
        %5013 = vmatprep.subr.mxu0 0.0
        %5014 = vmatpush1.msra.mxu0 %v4870
        %5015 = vmatprep.subr.mxu0 0.0
        %5016 = vmatpush1.msra.mxu0 %v4871
        %5017 = vmatprep.subr.mxu0 0.0
        %5018 = vmatpush1.msra.mxu0 %v4872
        %5019 = vmatprep.subr.mxu0 0.0
        %5020 = vmatpush1.msra.mxu0 %v4873
        %5021 = vmatprep.subr.mxu0 0.0
        %5022 = vmatpush1.msra.mxu0 %v4874
        %5023 = vmatprep.subr.mxu0 0.0
        %5024 = vmatpush1.msra.mxu0 %v4875
        %5025 = vmatprep.subr.mxu0 0.0
        %5026 = vmatpush1.msra.mxu0 %v4876
        %5027 = vmatprep.subr.mxu0 0.0
        %5028 = vmatpush1.msra.mxu0 %v4877
        %5029 = vmatprep.subr.mxu0 0.0
        %5030 = vmatpush1.msra.mxu0 %v4878
        %5031 = vmatprep.subr.mxu0 0.0
        %5032 = vmatpush1.msra.mxu0 %v4879
        %5033 = vmatprep.subr.mxu0 0.0
        %5034 = vmatpush1.msra.mxu0 %v4880
        %5035 = vmatprep.subr.mxu0 0.0
        %5036 = vmatpush1.msra.mxu0 %v4881
        %5037 = vmatprep.subr.mxu0 0.0
        %5038 = vmatpush1.msra.mxu0 %v4882
        %5039 = vmatprep.subr.mxu0 0.0
        %5040 = vmatpush1.msra.mxu0 %v4883
        %5041 = vmatprep.subr.mxu0 0.0
        %5042 = vmatpush1.msra.mxu0 %v4884
        %5043 = vmatprep.subr.mxu0 0.0
        %5044 = vmatpush1.msra.mxu0 %v4885
        %5045 = vmatprep.subr.mxu0 0.0
        %5046 = vmatpush1.msra.mxu0 %v4886
        %5047 = vmatprep.mubr.f32.mxu0 %v4600
        %5048 = vmatmul.mubr.f32.gmra.mrb[0].mxu0 %v4599
        %v5049 = vpop.f32.mrb[0].mxu0
        %v5050 = vadd.f32 %v369, %v5049
        %v5051 = vpop.f32.mrb[0].mxu0
        %5052 = vmatprep.mubr.f32.mxu0 %v4608
        %5053 = vmatmul.mubr.f32.gmra.mrb[0].mxu0 %v4607
        %v5054 = vpop.f32.mrb[0].mxu0
        %v5055 = vadd.f32 %v369, %v5054
        %v5056 = vpop.f32.mrb[0].mxu0
        %5057 = vmatprep.mubr.f32.mxu0 %v4616
        %5058 = vmatmul.mubr.f32.gmra.mrb[0].mxu0 %v4615
        %v5059 = vpop.f32.mrb[0].mxu0
        %v5060 = vadd.f32 %v369, %v5059
        %v5061 = vpop.f32.mrb[0].mxu0
        %5062 = vmatprep.mubr.f32.mxu0 %v4624
        %5063 = vmatmul.mubr.f32.gmra.mrb[0].mxu0 %v4623
        %v5064 = vpop.f32.mrb[0].mxu0
        %v5065 = vadd.f32 %v369, %v5064
        %v5066 = vpop.f32.mrb[0].mxu0
        %5067 = vmatprep.mubr.f32.mxu0 %v4632
        %5068 = vmatmul.mubr.f32.gmra.mrb[0].mxu0 %v4631
        %v5069 = vpop.f32.mrb[0].mxu0
        %v5070 = vadd.f32 %v369, %v5069
        %v5071 = vpop.f32.mrb[0].mxu0
        %5072 = vmatprep.mubr.f32.mxu0 %v4640
        %5073 = vmatmul.mubr.f32.gmra.mrb[0].mxu0 %v4639
        %v5074 = vpop.f32.mrb[0].mxu0
        %v5075 = vadd.f32 %v369, %v5074
        %v5076 = vpop.f32.mrb[0].mxu0
        %5077 = vmatprep.mubr.f32.mxu0 %v4648
        %5078 = vmatmul.mubr.f32.gmra.mrb[0].mxu0 %v4647
        %v5079 = vpop.f32.mrb[0].mxu0
        %v5080 = vadd.f32 %v369, %v5079
        %v5081 = vpop.f32.mrb[0].mxu0
        %5082 = vmatprep.mubr.f32.mxu0 %v4656
        %5083 = vmatmul.mubr.f32.gmra.mrb[0].mxu0 %v4655
        %v5084 = vpop.f32.mrb[0].mxu0
        %v5085 = vadd.f32 %v369, %v5084
        %v5086 = vpop.f32.mrb[0].mxu0
        %5087 = vmatprep.mubr.f32.mxu0 %v4664
        %5088 = vmatmul.mubr.f32.gmra.mrb[0].mxu0 %v4663
        %v5089 = vpop.f32.mrb[0].mxu0
        %v5090 = vadd.f32 %v369, %v5089
        %v5091 = vpop.f32.mrb[0].mxu0
        %5092 = vmatprep.mubr.f32.mxu0 %v4672
        %5093 = vmatmul.mubr.f32.gmra.mrb[0].mxu0 %v4671
        %v5094 = vpop.f32.mrb[0].mxu0
        %v5095 = vadd.f32 %v369, %v5094
        %v5096 = vpop.f32.mrb[0].mxu0
        %5097 = vmatprep.mubr.f32.mxu0 %v4680
        %5098 = vmatmul.mubr.f32.gmra.mrb[0].mxu0 %v4679
        %v5099 = vpop.f32.mrb[0].mxu0
        %v5100 = vadd.f32 %v369, %v5099
        %v5101 = vpop.f32.mrb[0].mxu0
        %5102 = vmatprep.mubr.f32.mxu0 %v4688
        %5103 = vmatmul.mubr.f32.gmra.mrb[0].mxu0 %v4687
        %v5104 = vpop.f32.mrb[0].mxu0
        %v5105 = vadd.f32 %v369, %v5104
        %v5106 = vpop.f32.mrb[0].mxu0
        %5107 = vmatprep.mubr.f32.mxu0 %v4696
        %5108 = vmatmul.mubr.f32.gmra.mrb[0].mxu0 %v4695
        %v5109 = vpop.f32.mrb[0].mxu0
        %v5110 = vadd.f32 %v369, %v5109
        %v5111 = vpop.f32.mrb[0].mxu0
        %5112 = vmatprep.mubr.f32.mxu0 %v4704
        %5113 = vmatmul.mubr.f32.gmra.mrb[0].mxu0 %v4703
        %v5114 = vpop.f32.mrb[0].mxu0
        %v5115 = vadd.f32 %v369, %v5114
        %v5116 = vpop.f32.mrb[0].mxu0
        %5117 = vmatprep.mubr.f32.mxu0 %v4712
        %5118 = vmatmul.mubr.f32.gmra.mrb[0].mxu0 %v4711
        %v5119 = vpop.f32.mrb[0].mxu0
        %v5120 = vadd.f32 %v369, %v5119
        %v5121 = vpop.f32.mrb[0].mxu0
        %5122 = vmatprep.mubr.f32.mxu0 %v4720
        %5123 = vmatmul.mubr.f32.gmra.mrb[0].mxu0 %v4719
        %v5124 = vpop.f32.mrb[0].mxu0
        %v5125 = vadd.f32 %v369, %v5124
        %v5126 = vpop.f32.mrb[0].mxu0
        %5127 = vmatprep.mubr.f32.mxu0 %v4728
        %5128 = vmatmul.mubr.f32.gmra.mrb[0].mxu0 %v4727
        %v5129 = vpop.f32.mrb[0].mxu0
        %v5130 = vadd.f32 %v369, %v5129
        %v5131 = vpop.f32.mrb[0].mxu0
        %5132 = vmatprep.mubr.f32.mxu0 %v4736
        %5133 = vmatmul.mubr.f32.gmra.mrb[0].mxu0 %v4735
        %v5134 = vpop.f32.mrb[0].mxu0
        %v5135 = vadd.f32 %v369, %v5134
        %v5136 = vpop.f32.mrb[0].mxu0
        %5137 = vmatprep.mubr.f32.mxu0 %v4744
        %5138 = vmatmul.mubr.f32.gmra.mrb[0].mxu0 %v4743
        %v5139 = vpop.f32.mrb[0].mxu0
        %v5140 = vadd.f32 %v369, %v5139
        %v5141 = vpop.f32.mrb[0].mxu0
        %5142 = vmatprep.mubr.f32.mxu0 %v4752
        %5143 = vmatmul.mubr.f32.gmra.mrb[0].mxu0 %v4751
        %v5144 = vpop.f32.mrb[0].mxu0
        %v5145 = vadd.f32 %v369, %v5144
        %v5146 = vpop.f32.mrb[0].mxu0
        %5147 = vmatprep.mubr.f32.mxu0 %v4760
        %5148 = vmatmul.mubr.f32.gmra.mrb[0].mxu0 %v4759
        %v5149 = vpop.f32.mrb[0].mxu0
        %v5150 = vadd.f32 %v369, %v5149
        %v5151 = vpop.f32.mrb[0].mxu0
        %5152 = vmatprep.mubr.f32.mxu0 %v4768
        %5153 = vmatmul.mubr.f32.gmra.mrb[0].mxu0 %v4767
        %v5154 = vpop.f32.mrb[0].mxu0
        %v5155 = vadd.f32 %v369, %v5154
        %v5156 = vpop.f32.mrb[0].mxu0
        %5157 = vmatprep.mubr.f32.mxu0 %v4776
        %5158 = vmatmul.mubr.f32.gmra.mrb[0].mxu0 %v4775
        %v5159 = vpop.f32.mrb[0].mxu0
        %v5160 = vadd.f32 %v369, %v5159
        %v5161 = vpop.f32.mrb[0].mxu0
        %5162 = vmatprep.mubr.f32.mxu0 %v4784
        %5163 = vmatmul.mubr.f32.gmra.mrb[0].mxu0 %v4783
        %v5164 = vpop.f32.mrb[0].mxu0
        %v5165 = vadd.f32 %v369, %v5164
        %v5166 = vpop.f32.mrb[0].mxu0
        %5167 = vmatprep.mubr.f32.mxu0 %v4792
        %5168 = vmatmul.mubr.f32.gmra.mrb[0].mxu0 %v4791
        %v5169 = vpop.f32.mrb[0].mxu0
        %v5170 = vadd.f32 %v369, %v5169
        %v5171 = vpop.f32.mrb[0].mxu0
        %5172 = vmatprep.mubr.f32.mxu0 %v4800
        %5173 = vmatmul.mubr.f32.gmra.mrb[0].mxu0 %v4799
        %v5174 = vpop.f32.mrb[0].mxu0
        %v5175 = vadd.f32 %v369, %v5174
        %v5176 = vpop.f32.mrb[0].mxu0
        %5177 = vmatprep.mubr.f32.mxu0 %v4808
        %5178 = vmatmul.mubr.f32.gmra.mrb[0].mxu0 %v4807
        %v5179 = vpop.f32.mrb[0].mxu0
        %v5180 = vadd.f32 %v369, %v5179
        %v5181 = vpop.f32.mrb[0].mxu0
        %5182 = vmatprep.mubr.f32.mxu0 %v4816
        %5183 = vmatmul.mubr.f32.gmra.mrb[0].mxu0 %v4815
        %v5184 = vpop.f32.mrb[0].mxu0
        %v5185 = vadd.f32 %v369, %v5184
        %v5186 = vpop.f32.mrb[0].mxu0
        %5187 = vmatprep.mubr.f32.mxu0 %v4824
        %5188 = vmatmul.mubr.f32.gmra.mrb[0].mxu0 %v4823
        %v5189 = vpop.f32.mrb[0].mxu0
        %v5190 = vadd.f32 %v369, %v5189
        %v5191 = vpop.f32.mrb[0].mxu0
        %5192 = vmatprep.mubr.f32.mxu0 %v4832
        %5193 = vmatmul.mubr.f32.gmra.mrb[0].mxu0 %v4831
        %v5194 = vpop.f32.mrb[0].mxu0
        %v5195 = vadd.f32 %v369, %v5194
        %v5196 = vpop.f32.mrb[0].mxu0
        %5197 = vmatprep.mubr.f32.mxu0 %v4840
        %5198 = vmatmul.mubr.f32.gmra.mrb[0].mxu0 %v4839
        %v5199 = vpop.f32.mrb[0].mxu0
        %v5200 = vadd.f32 %v369, %v5199
        %v5201 = vpop.f32.mrb[0].mxu0
        %5202 = vmatprep.mubr.f32.mxu0 %v4848
        %5203 = vmatmul.mubr.f32.gmra.mrb[0].mxu0 %v4847
        %v5204 = vpop.f32.mrb[0].mxu0
        %v5205 = vadd.f32 %v369, %v5204
        %v5206 = vpop.f32.mrb[0].mxu0
        %5207 = vdwg.mxu0
        %5208 = vmatprep.subr.mxu0 0.0
        %5209 = vmatpush1.msra.mxu0 %v4887
        %5210 = vmatprep.subr.mxu0 0.0
        %5211 = vmatpush1.msra.mxu0 %v4888
        %5212 = vmatprep.subr.mxu0 0.0
        %5213 = vmatpush1.msra.mxu0 %v4889
        %5214 = vmatprep.subr.mxu0 0.0
        %5215 = vmatpush1.msra.mxu0 %v4890
        %5216 = vmatprep.subr.mxu0 0.0
        %5217 = vmatpush1.msra.mxu0 %v4891
        %5218 = vmatprep.subr.mxu0 0.0
        %5219 = vmatpush1.msra.mxu0 %v4892
        %5220 = vmatprep.subr.mxu0 0.0
        %5221 = vmatpush1.msra.mxu0 %v4893
        %5222 = vmatprep.subr.mxu0 0.0
        %5223 = vmatpush1.msra.mxu0 %v4894
        %5224 = vmatprep.subr.mxu0 0.0
        %5225 = vmatpush1.msra.mxu0 %v4895
        %5226 = vmatprep.subr.mxu0 0.0
        %5227 = vmatpush1.msra.mxu0 %v4896
        %5228 = vmatprep.subr.mxu0 0.0
        %5229 = vmatpush1.msra.mxu0 %v4897
        %5230 = vmatprep.subr.mxu0 0.0
        %5231 = vmatpush1.msra.mxu0 %v4898
        %5232 = vmatprep.subr.mxu0 0.0
        %5233 = vmatpush1.msra.mxu0 %v4899
        %5234 = vmatprep.subr.mxu0 0.0
        %5235 = vmatpush1.msra.mxu0 %v4900
        %5236 = vmatprep.subr.mxu0 0.0
        %5237 = vmatpush1.msra.mxu0 %v4901
        %5238 = vmatprep.subr.mxu0 0.0
        %5239 = vmatpush1.msra.mxu0 %v4902
        %5240 = vmatprep.subr.mxu0 0.0
        %5241 = vmatpush1.msra.mxu0 %v4903
        %5242 = vmatprep.subr.mxu0 0.0
        %5243 = vmatpush1.msra.mxu0 %v4904
        %5244 = vmatprep.subr.mxu0 0.0
        %5245 = vmatpush1.msra.mxu0 %v4905
        %5246 = vmatprep.subr.mxu0 0.0
        %5247 = vmatpush1.msra.mxu0 %v4906
        %5248 = vmatprep.subr.mxu0 0.0
        %5249 = vmatpush1.msra.mxu0 %v4907
        %5250 = vmatprep.subr.mxu0 0.0
        %5251 = vmatpush1.msra.mxu0 %v4908
        %5252 = vmatprep.subr.mxu0 0.0
        %5253 = vmatpush1.msra.mxu0 %v4909
        %5254 = vmatprep.subr.mxu0 0.0
        %5255 = vmatpush1.msra.mxu0 %v4910
        %5256 = vmatprep.subr.mxu0 0.0
        %5257 = vmatpush1.msra.mxu0 %v4911
        %5258 = vmatprep.subr.mxu0 0.0
        %5259 = vmatpush1.msra.mxu0 %v4912
        %5260 = vmatprep.subr.mxu0 0.0
        %5261 = vmatpush1.msra.mxu0 %v4913
        %5262 = vmatprep.subr.mxu0 0.0
        %5263 = vmatpush1.msra.mxu0 %v4914
        %5264 = vmatprep.subr.mxu0 0.0
        %5265 = vmatpush1.msra.mxu0 %v4915
        %5266 = vmatprep.subr.mxu0 0.0
        %5267 = vmatpush1.msra.mxu0 %v4916
        %5268 = vmatprep.subr.mxu0 0.0
        %5269 = vmatpush1.msra.mxu0 %v4917
        %5270 = vmatprep.subr.mxu0 0.0
        %5271 = vmatpush1.msra.mxu0 %v4918
        %5272 = vmatprep.mubr.f32.mxu0 %v4602
        %5273 = vmatmul.mubr.f32.gmra.mrb[0].mxu0 %v4601
        %v5274 = vpop.f32.mrb[0].mxu0
        %v5275 = vadd.f32 %v5050, %v5274
        %v5276 = vpop.f32.mrb[0].mxu0
        %5277 = vmatprep.mubr.f32.mxu0 %v4610
        %5278 = vmatmul.mubr.f32.gmra.mrb[0].mxu0 %v4609
        %v5279 = vpop.f32.mrb[0].mxu0
        %v5280 = vadd.f32 %v5055, %v5279
        %v5281 = vpop.f32.mrb[0].mxu0
        %5282 = vmatprep.mubr.f32.mxu0 %v4618
        %5283 = vmatmul.mubr.f32.gmra.mrb[0].mxu0 %v4617
        %v5284 = vpop.f32.mrb[0].mxu0
        %v5285 = vadd.f32 %v5060, %v5284
        %v5286 = vpop.f32.mrb[0].mxu0
        %5287 = vmatprep.mubr.f32.mxu0 %v4626
        %5288 = vmatmul.mubr.f32.gmra.mrb[0].mxu0 %v4625
        %v5289 = vpop.f32.mrb[0].mxu0
        %v5290 = vadd.f32 %v5065, %v5289
        %v5291 = vpop.f32.mrb[0].mxu0
        %5292 = vmatprep.mubr.f32.mxu0 %v4634
        %5293 = vmatmul.mubr.f32.gmra.mrb[0].mxu0 %v4633
        %v5294 = vpop.f32.mrb[0].mxu0
        %v5295 = vadd.f32 %v5070, %v5294
        %v5296 = vpop.f32.mrb[0].mxu0
        %5297 = vmatprep.mubr.f32.mxu0 %v4642
        %5298 = vmatmul.mubr.f32.gmra.mrb[0].mxu0 %v4641
        %v5299 = vpop.f32.mrb[0].mxu0
        %v5300 = vadd.f32 %v5075, %v5299
        %v5301 = vpop.f32.mrb[0].mxu0
        %5302 = vmatprep.mubr.f32.mxu0 %v4650
        %5303 = vmatmul.mubr.f32.gmra.mrb[0].mxu0 %v4649
        %v5304 = vpop.f32.mrb[0].mxu0
        %v5305 = vadd.f32 %v5080, %v5304
        %v5306 = vpop.f32.mrb[0].mxu0
        %5307 = vmatprep.mubr.f32.mxu0 %v4658
        %5308 = vmatmul.mubr.f32.gmra.mrb[0].mxu0 %v4657
        %v5309 = vpop.f32.mrb[0].mxu0
        %v5310 = vadd.f32 %v5085, %v5309
        %v5311 = vpop.f32.mrb[0].mxu0
        %5312 = vmatprep.mubr.f32.mxu0 %v4666
        %5313 = vmatmul.mubr.f32.gmra.mrb[0].mxu0 %v4665
        %v5314 = vpop.f32.mrb[0].mxu0
        %v5315 = vadd.f32 %v5090, %v5314
        %v5316 = vpop.f32.mrb[0].mxu0
        %5317 = vmatprep.mubr.f32.mxu0 %v4674
        %5318 = vmatmul.mubr.f32.gmra.mrb[0].mxu0 %v4673
        %v5319 = vpop.f32.mrb[0].mxu0
        %v5320 = vadd.f32 %v5095, %v5319
        %v5321 = vpop.f32.mrb[0].mxu0
        %5322 = vmatprep.mubr.f32.mxu0 %v4682
        %5323 = vmatmul.mubr.f32.gmra.mrb[0].mxu0 %v4681
        %v5324 = vpop.f32.mrb[0].mxu0
        %v5325 = vadd.f32 %v5100, %v5324
        %v5326 = vpop.f32.mrb[0].mxu0
        %5327 = vmatprep.mubr.f32.mxu0 %v4690
        %5328 = vmatmul.mubr.f32.gmra.mrb[0].mxu0 %v4689
        %v5329 = vpop.f32.mrb[0].mxu0
        %v5330 = vadd.f32 %v5105, %v5329
        %v5331 = vpop.f32.mrb[0].mxu0
        %5332 = vmatprep.mubr.f32.mxu0 %v4698
        %5333 = vmatmul.mubr.f32.gmra.mrb[0].mxu0 %v4697
        %v5334 = vpop.f32.mrb[0].mxu0
        %v5335 = vadd.f32 %v5110, %v5334
        %v5336 = vpop.f32.mrb[0].mxu0
        %5337 = vmatprep.mubr.f32.mxu0 %v4706
        %5338 = vmatmul.mubr.f32.gmra.mrb[0].mxu0 %v4705
        %v5339 = vpop.f32.mrb[0].mxu0
        %v5340 = vadd.f32 %v5115, %v5339
        %v5341 = vpop.f32.mrb[0].mxu0
        %5342 = vmatprep.mubr.f32.mxu0 %v4714
        %5343 = vmatmul.mubr.f32.gmra.mrb[0].mxu0 %v4713
        %v5344 = vpop.f32.mrb[0].mxu0
        %v5345 = vadd.f32 %v5120, %v5344
        %v5346 = vpop.f32.mrb[0].mxu0
        %5347 = vmatprep.mubr.f32.mxu0 %v4722
        %5348 = vmatmul.mubr.f32.gmra.mrb[0].mxu0 %v4721
        %v5349 = vpop.f32.mrb[0].mxu0
        %v5350 = vadd.f32 %v5125, %v5349
        %v5351 = vpop.f32.mrb[0].mxu0
        %5352 = vmatprep.mubr.f32.mxu0 %v4730
        %5353 = vmatmul.mubr.f32.gmra.mrb[0].mxu0 %v4729
        %v5354 = vpop.f32.mrb[0].mxu0
        %v5355 = vadd.f32 %v5130, %v5354
        %v5356 = vpop.f32.mrb[0].mxu0
        %5357 = vmatprep.mubr.f32.mxu0 %v4738
        %5358 = vmatmul.mubr.f32.gmra.mrb[0].mxu0 %v4737
        %v5359 = vpop.f32.mrb[0].mxu0
        %v5360 = vadd.f32 %v5135, %v5359
        %v5361 = vpop.f32.mrb[0].mxu0
        %5362 = vmatprep.mubr.f32.mxu0 %v4746
        %5363 = vmatmul.mubr.f32.gmra.mrb[0].mxu0 %v4745
        %v5364 = vpop.f32.mrb[0].mxu0
        %v5365 = vadd.f32 %v5140, %v5364
        %v5366 = vpop.f32.mrb[0].mxu0
        %5367 = vmatprep.mubr.f32.mxu0 %v4754
        %5368 = vmatmul.mubr.f32.gmra.mrb[0].mxu0 %v4753
        %v5369 = vpop.f32.mrb[0].mxu0
        %v5370 = vadd.f32 %v5145, %v5369
        %v5371 = vpop.f32.mrb[0].mxu0
        %5372 = vmatprep.mubr.f32.mxu0 %v4762
        %5373 = vmatmul.mubr.f32.gmra.mrb[0].mxu0 %v4761
        %v5374 = vpop.f32.mrb[0].mxu0
        %v5375 = vadd.f32 %v5150, %v5374
        %v5376 = vpop.f32.mrb[0].mxu0
        %5377 = vmatprep.mubr.f32.mxu0 %v4770
        %5378 = vmatmul.mubr.f32.gmra.mrb[0].mxu0 %v4769
        %v5379 = vpop.f32.mrb[0].mxu0
        %v5380 = vadd.f32 %v5155, %v5379
        %v5381 = vpop.f32.mrb[0].mxu0
        %5382 = vmatprep.mubr.f32.mxu0 %v4778
        %5383 = vmatmul.mubr.f32.gmra.mrb[0].mxu0 %v4777
        %v5384 = vpop.f32.mrb[0].mxu0
        %v5385 = vadd.f32 %v5160, %v5384
        %v5386 = vpop.f32.mrb[0].mxu0
        %5387 = vmatprep.mubr.f32.mxu0 %v4786
        %5388 = vmatmul.mubr.f32.gmra.mrb[0].mxu0 %v4785
        %v5389 = vpop.f32.mrb[0].mxu0
        %v5390 = vadd.f32 %v5165, %v5389
        %v5391 = vpop.f32.mrb[0].mxu0
        %5392 = vmatprep.mubr.f32.mxu0 %v4794
        %5393 = vmatmul.mubr.f32.gmra.mrb[0].mxu0 %v4793
        %v5394 = vpop.f32.mrb[0].mxu0
        %v5395 = vadd.f32 %v5170, %v5394
        %v5396 = vpop.f32.mrb[0].mxu0
        %5397 = vmatprep.mubr.f32.mxu0 %v4802
        %5398 = vmatmul.mubr.f32.gmra.mrb[0].mxu0 %v4801
        %v5399 = vpop.f32.mrb[0].mxu0
        %v5400 = vadd.f32 %v5175, %v5399
        %v5401 = vpop.f32.mrb[0].mxu0
        %5402 = vmatprep.mubr.f32.mxu0 %v4810
        %5403 = vmatmul.mubr.f32.gmra.mrb[0].mxu0 %v4809
        %v5404 = vpop.f32.mrb[0].mxu0
        %v5405 = vadd.f32 %v5180, %v5404
        %v5406 = vpop.f32.mrb[0].mxu0
        %5407 = vmatprep.mubr.f32.mxu0 %v4818
        %5408 = vmatmul.mubr.f32.gmra.mrb[0].mxu0 %v4817
        %v5409 = vpop.f32.mrb[0].mxu0
        %v5410 = vadd.f32 %v5185, %v5409
        %v5411 = vpop.f32.mrb[0].mxu0
        %5412 = vmatprep.mubr.f32.mxu0 %v4826
        %5413 = vmatmul.mubr.f32.gmra.mrb[0].mxu0 %v4825
        %v5414 = vpop.f32.mrb[0].mxu0
        %v5415 = vadd.f32 %v5190, %v5414
        %v5416 = vpop.f32.mrb[0].mxu0
        %5417 = vmatprep.mubr.f32.mxu0 %v4834
        %5418 = vmatmul.mubr.f32.gmra.mrb[0].mxu0 %v4833
        %v5419 = vpop.f32.mrb[0].mxu0
        %v5420 = vadd.f32 %v5195, %v5419
        %v5421 = vpop.f32.mrb[0].mxu0
        %5422 = vmatprep.mubr.f32.mxu0 %v4842
        %5423 = vmatmul.mubr.f32.gmra.mrb[0].mxu0 %v4841
        %v5424 = vpop.f32.mrb[0].mxu0
        %v5425 = vadd.f32 %v5200, %v5424
        %v5426 = vpop.f32.mrb[0].mxu0
        %5427 = vmatprep.mubr.f32.mxu0 %v4850
        %5428 = vmatmul.mubr.f32.gmra.mrb[0].mxu0 %v4849
        %v5429 = vpop.f32.mrb[0].mxu0
        %v5430 = vadd.f32 %v5205, %v5429
        %v5431 = vpop.f32.mrb[0].mxu0
        %5432 = vdwg.mxu0
        %5433 = vmatprep.subr.mxu0 0.0
        %5434 = vmatpush1.msra.mxu0 %v4919
        %5435 = vmatprep.subr.mxu0 0.0
        %5436 = vmatpush1.msra.mxu0 %v4920
        %5437 = vmatprep.subr.mxu0 0.0
        %5438 = vmatpush1.msra.mxu0 %v4921
        %5439 = vmatprep.subr.mxu0 0.0
        %5440 = vmatpush1.msra.mxu0 %v4922
        %5441 = vmatprep.subr.mxu0 0.0
        %5442 = vmatpush1.msra.mxu0 %v4923
        %5443 = vmatprep.subr.mxu0 0.0
        %5444 = vmatpush1.msra.mxu0 %v4924
        %5445 = vmatprep.subr.mxu0 0.0
        %5446 = vmatpush1.msra.mxu0 %v4925
        %5447 = vmatprep.subr.mxu0 0.0
        %5448 = vmatpush1.msra.mxu0 %v4926
        %5449 = vmatprep.subr.mxu0 0.0
        %5450 = vmatpush1.msra.mxu0 %v4927
        %5451 = vmatprep.subr.mxu0 0.0
        %5452 = vmatpush1.msra.mxu0 %v4928
        %5453 = vmatprep.subr.mxu0 0.0
        %5454 = vmatpush1.msra.mxu0 %v4929
        %5455 = vmatprep.subr.mxu0 0.0
        %5456 = vmatpush1.msra.mxu0 %v4930
        %5457 = vmatprep.subr.mxu0 0.0
        %5458 = vmatpush1.msra.mxu0 %v4931
        %5459 = vmatprep.subr.mxu0 0.0
        %5460 = vmatpush1.msra.mxu0 %v4932
        %5461 = vmatprep.subr.mxu0 0.0
        %5462 = vmatpush1.msra.mxu0 %v4933
        %5463 = vmatprep.subr.mxu0 0.0
        %5464 = vmatpush1.msra.mxu0 %v4934
        %5465 = vmatprep.subr.mxu0 0.0
        %5466 = vmatpush1.msra.mxu0 %v4935
        %5467 = vmatprep.subr.mxu0 0.0
        %5468 = vmatpush1.msra.mxu0 %v4936
        %5469 = vmatprep.subr.mxu0 0.0
        %5470 = vmatpush1.msra.mxu0 %v4937
        %5471 = vmatprep.subr.mxu0 0.0
        %5472 = vmatpush1.msra.mxu0 %v4938
        %5473 = vmatprep.subr.mxu0 0.0
        %5474 = vmatpush1.msra.mxu0 %v4939
        %5475 = vmatprep.subr.mxu0 0.0
        %5476 = vmatpush1.msra.mxu0 %v4940
        %5477 = vmatprep.subr.mxu0 0.0
        %5478 = vmatpush1.msra.mxu0 %v4941
        %5479 = vmatprep.subr.mxu0 0.0
        %5480 = vmatpush1.msra.mxu0 %v4942
        %5481 = vmatprep.subr.mxu0 0.0
        %5482 = vmatpush1.msra.mxu0 %v4943
        %5483 = vmatprep.subr.mxu0 0.0
        %5484 = vmatpush1.msra.mxu0 %v4944
        %5485 = vmatprep.subr.mxu0 0.0
        %5486 = vmatpush1.msra.mxu0 %v4945
        %5487 = vmatprep.subr.mxu0 0.0
        %5488 = vmatpush1.msra.mxu0 %v4946
        %5489 = vmatprep.subr.mxu0 0.0
        %5490 = vmatpush1.msra.mxu0 %v4947
        %5491 = vmatprep.subr.mxu0 0.0
        %5492 = vmatpush1.msra.mxu0 %v4948
        %5493 = vmatprep.subr.mxu0 0.0
        %5494 = vmatpush1.msra.mxu0 %v4949
        %5495 = vmatprep.subr.mxu0 0.0
        %5496 = vmatpush1.msra.mxu0 %v4950
        %5497 = vmatprep.mubr.f32.mxu0 %v4604
        %5498 = vmatmul.mubr.f32.gmra.mrb[0].mxu0 %v4603
        %v5499 = vpop.f32.mrb[0].mxu0
        %v5500 = vadd.f32 %v5275, %v5499
        %v5501 = vpop.f32.mrb[0].mxu0
        %5502 = vmatprep.mubr.f32.mxu0 %v4612
        %5503 = vmatmul.mubr.f32.gmra.mrb[0].mxu0 %v4611
        %v5504 = vpop.f32.mrb[0].mxu0
        %v5505 = vadd.f32 %v5280, %v5504
        %v5506 = vpop.f32.mrb[0].mxu0
        %5507 = vmatprep.mubr.f32.mxu0 %v4620
        %5508 = vmatmul.mubr.f32.gmra.mrb[0].mxu0 %v4619
        %v5509 = vpop.f32.mrb[0].mxu0
        %v5510 = vadd.f32 %v5285, %v5509
        %v5511 = vpop.f32.mrb[0].mxu0
        %5512 = vmatprep.mubr.f32.mxu0 %v4628
        %5513 = vmatmul.mubr.f32.gmra.mrb[0].mxu0 %v4627
        %v5514 = vpop.f32.mrb[0].mxu0
        %v5515 = vadd.f32 %v5290, %v5514
        %v5516 = vpop.f32.mrb[0].mxu0
        %5517 = vmatprep.mubr.f32.mxu0 %v4636
        %5518 = vmatmul.mubr.f32.gmra.mrb[0].mxu0 %v4635
        %v5519 = vpop.f32.mrb[0].mxu0
        %v5520 = vadd.f32 %v5295, %v5519
        %v5521 = vpop.f32.mrb[0].mxu0
        %5522 = vmatprep.mubr.f32.mxu0 %v4644
        %5523 = vmatmul.mubr.f32.gmra.mrb[0].mxu0 %v4643
        %v5524 = vpop.f32.mrb[0].mxu0
        %v5525 = vadd.f32 %v5300, %v5524
        %v5526 = vpop.f32.mrb[0].mxu0
        %5527 = vmatprep.mubr.f32.mxu0 %v4652
        %5528 = vmatmul.mubr.f32.gmra.mrb[0].mxu0 %v4651
        %v5529 = vpop.f32.mrb[0].mxu0
        %v5530 = vadd.f32 %v5305, %v5529
        %v5531 = vpop.f32.mrb[0].mxu0
        %5532 = vmatprep.mubr.f32.mxu0 %v4660
        %5533 = vmatmul.mubr.f32.gmra.mrb[0].mxu0 %v4659
        %v5534 = vpop.f32.mrb[0].mxu0
        %v5535 = vadd.f32 %v5310, %v5534
        %v5536 = vpop.f32.mrb[0].mxu0
        %5537 = vmatprep.mubr.f32.mxu0 %v4668
        %5538 = vmatmul.mubr.f32.gmra.mrb[0].mxu0 %v4667
        %v5539 = vpop.f32.mrb[0].mxu0
        %v5540 = vadd.f32 %v5315, %v5539
        %v5541 = vpop.f32.mrb[0].mxu0
        %5542 = vmatprep.mubr.f32.mxu0 %v4676
        %5543 = vmatmul.mubr.f32.gmra.mrb[0].mxu0 %v4675
        %v5544 = vpop.f32.mrb[0].mxu0
        %v5545 = vadd.f32 %v5320, %v5544
        %v5546 = vpop.f32.mrb[0].mxu0
        %5547 = vmatprep.mubr.f32.mxu0 %v4684
        %5548 = vmatmul.mubr.f32.gmra.mrb[0].mxu0 %v4683
        %v5549 = vpop.f32.mrb[0].mxu0
        %v5550 = vadd.f32 %v5325, %v5549
        %v5551 = vpop.f32.mrb[0].mxu0
        %5552 = vmatprep.mubr.f32.mxu0 %v4692
        %5553 = vmatmul.mubr.f32.gmra.mrb[0].mxu0 %v4691
        %v5554 = vpop.f32.mrb[0].mxu0
        %v5555 = vadd.f32 %v5330, %v5554
        %v5556 = vpop.f32.mrb[0].mxu0
        %5557 = vmatprep.mubr.f32.mxu0 %v4700
        %5558 = vmatmul.mubr.f32.gmra.mrb[0].mxu0 %v4699
        %v5559 = vpop.f32.mrb[0].mxu0
        %v5560 = vadd.f32 %v5335, %v5559
        %v5561 = vpop.f32.mrb[0].mxu0
        %5562 = vmatprep.mubr.f32.mxu0 %v4708
        %5563 = vmatmul.mubr.f32.gmra.mrb[0].mxu0 %v4707
        %v5564 = vpop.f32.mrb[0].mxu0
        %v5565 = vadd.f32 %v5340, %v5564
        %v5566 = vpop.f32.mrb[0].mxu0
        %5567 = vmatprep.mubr.f32.mxu0 %v4716
        %5568 = vmatmul.mubr.f32.gmra.mrb[0].mxu0 %v4715
        %v5569 = vpop.f32.mrb[0].mxu0
        %v5570 = vadd.f32 %v5345, %v5569
        %v5571 = vpop.f32.mrb[0].mxu0
        %5572 = vmatprep.mubr.f32.mxu0 %v4724
        %5573 = vmatmul.mubr.f32.gmra.mrb[0].mxu0 %v4723
        %v5574 = vpop.f32.mrb[0].mxu0
        %v5575 = vadd.f32 %v5350, %v5574
        %v5576 = vpop.f32.mrb[0].mxu0
        %5577 = vmatprep.mubr.f32.mxu0 %v4732
        %5578 = vmatmul.mubr.f32.gmra.mrb[0].mxu0 %v4731
        %v5579 = vpop.f32.mrb[0].mxu0
        %v5580 = vadd.f32 %v5355, %v5579
        %v5581 = vpop.f32.mrb[0].mxu0
        %5582 = vmatprep.mubr.f32.mxu0 %v4740
        %5583 = vmatmul.mubr.f32.gmra.mrb[0].mxu0 %v4739
        %v5584 = vpop.f32.mrb[0].mxu0
        %v5585 = vadd.f32 %v5360, %v5584
        %v5586 = vpop.f32.mrb[0].mxu0
        %5587 = vmatprep.mubr.f32.mxu0 %v4748
        %5588 = vmatmul.mubr.f32.gmra.mrb[0].mxu0 %v4747
        %v5589 = vpop.f32.mrb[0].mxu0
        %v5590 = vadd.f32 %v5365, %v5589
        %v5591 = vpop.f32.mrb[0].mxu0
        %5592 = vmatprep.mubr.f32.mxu0 %v4756
        %5593 = vmatmul.mubr.f32.gmra.mrb[0].mxu0 %v4755
        %v5594 = vpop.f32.mrb[0].mxu0
        %v5595 = vadd.f32 %v5370, %v5594
        %v5596 = vpop.f32.mrb[0].mxu0
        %5597 = vmatprep.mubr.f32.mxu0 %v4764
        %5598 = vmatmul.mubr.f32.gmra.mrb[0].mxu0 %v4763
        %v5599 = vpop.f32.mrb[0].mxu0
        %v5600 = vadd.f32 %v5375, %v5599
        %v5601 = vpop.f32.mrb[0].mxu0
        %5602 = vmatprep.mubr.f32.mxu0 %v4772
        %5603 = vmatmul.mubr.f32.gmra.mrb[0].mxu0 %v4771
        %v5604 = vpop.f32.mrb[0].mxu0
        %v5605 = vadd.f32 %v5380, %v5604
        %v5606 = vpop.f32.mrb[0].mxu0
        %5607 = vmatprep.mubr.f32.mxu0 %v4780
        %5608 = vmatmul.mubr.f32.gmra.mrb[0].mxu0 %v4779
        %v5609 = vpop.f32.mrb[0].mxu0
        %v5610 = vadd.f32 %v5385, %v5609
        %v5611 = vpop.f32.mrb[0].mxu0
        %5612 = vmatprep.mubr.f32.mxu0 %v4788
        %5613 = vmatmul.mubr.f32.gmra.mrb[0].mxu0 %v4787
        %v5614 = vpop.f32.mrb[0].mxu0
        %v5615 = vadd.f32 %v5390, %v5614
        %v5616 = vpop.f32.mrb[0].mxu0
        %5617 = vmatprep.mubr.f32.mxu0 %v4796
        %5618 = vmatmul.mubr.f32.gmra.mrb[0].mxu0 %v4795
        %v5619 = vpop.f32.mrb[0].mxu0
        %v5620 = vadd.f32 %v5395, %v5619
        %v5621 = vpop.f32.mrb[0].mxu0
        %5622 = vmatprep.mubr.f32.mxu0 %v4804
        %5623 = vmatmul.mubr.f32.gmra.mrb[0].mxu0 %v4803
        %v5624 = vpop.f32.mrb[0].mxu0
        %v5625 = vadd.f32 %v5400, %v5624
        %v5626 = vpop.f32.mrb[0].mxu0
        %5627 = vmatprep.mubr.f32.mxu0 %v4812
        %5628 = vmatmul.mubr.f32.gmra.mrb[0].mxu0 %v4811
        %v5629 = vpop.f32.mrb[0].mxu0
        %v5630 = vadd.f32 %v5405, %v5629
        %v5631 = vpop.f32.mrb[0].mxu0
        %5632 = vmatprep.mubr.f32.mxu0 %v4820
        %5633 = vmatmul.mubr.f32.gmra.mrb[0].mxu0 %v4819
        %v5634 = vpop.f32.mrb[0].mxu0
        %v5635 = vadd.f32 %v5410, %v5634
        %v5636 = vpop.f32.mrb[0].mxu0
        %5637 = vmatprep.mubr.f32.mxu0 %v4828
        %5638 = vmatmul.mubr.f32.gmra.mrb[0].mxu0 %v4827
        %v5639 = vpop.f32.mrb[0].mxu0
        %v5640 = vadd.f32 %v5415, %v5639
        %v5641 = vpop.f32.mrb[0].mxu0
        %5642 = vmatprep.mubr.f32.mxu0 %v4836
        %5643 = vmatmul.mubr.f32.gmra.mrb[0].mxu0 %v4835
        %v5644 = vpop.f32.mrb[0].mxu0
        %v5645 = vadd.f32 %v5420, %v5644
        %v5646 = vpop.f32.mrb[0].mxu0
        %5647 = vmatprep.mubr.f32.mxu0 %v4844
        %5648 = vmatmul.mubr.f32.gmra.mrb[0].mxu0 %v4843
        %v5649 = vpop.f32.mrb[0].mxu0
        %v5650 = vadd.f32 %v5425, %v5649
        %v5651 = vpop.f32.mrb[0].mxu0
        %5652 = vmatprep.mubr.f32.mxu0 %v4852
        %5653 = vmatmul.mubr.f32.gmra.mrb[0].mxu0 %v4851
        %v5654 = vpop.f32.mrb[0].mxu0
        %v5655 = vadd.f32 %v5430, %v5654
        %v5656 = vpop.f32.mrb[0].mxu0
        %5657 = vdwg.mxu0
        %5658 = vmatprep.subr.mxu0 0.0
        %5659 = vmatpush1.msra.mxu0 %v4951
        %5660 = vmatprep.subr.mxu0 0.0
        %5661 = vmatpush1.msra.mxu0 %v4952
        %5662 = vmatprep.subr.mxu0 0.0
        %5663 = vmatpush1.msra.mxu0 %v4953
        %5664 = vmatprep.subr.mxu0 0.0
        %5665 = vmatpush1.msra.mxu0 %v4954
        %5666 = vmatprep.subr.mxu0 0.0
        %5667 = vmatpush1.msra.mxu0 %v4955
        %5668 = vmatprep.subr.mxu0 0.0
        %5669 = vmatpush1.msra.mxu0 %v4956
        %5670 = vmatprep.subr.mxu0 0.0
        %5671 = vmatpush1.msra.mxu0 %v4957
        %5672 = vmatprep.subr.mxu0 0.0
        %5673 = vmatpush1.msra.mxu0 %v4958
        %5674 = vmatprep.subr.mxu0 0.0
        %5675 = vmatpush1.msra.mxu0 %v4959
        %5676 = vmatprep.subr.mxu0 0.0
        %5677 = vmatpush1.msra.mxu0 %v4960
        %5678 = vmatprep.subr.mxu0 0.0
        %5679 = vmatpush1.msra.mxu0 %v4961
        %5680 = vmatprep.subr.mxu0 0.0
        %5681 = vmatpush1.msra.mxu0 %v4962
        %5682 = vmatprep.subr.mxu0 0.0
        %5683 = vmatpush1.msra.mxu0 %v4963
        %5684 = vmatprep.subr.mxu0 0.0
        %5685 = vmatpush1.msra.mxu0 %v4964
        %5686 = vmatprep.subr.mxu0 0.0
        %5687 = vmatpush1.msra.mxu0 %v4965
        %5688 = vmatprep.subr.mxu0 0.0
        %5689 = vmatpush1.msra.mxu0 %v4966
        %5690 = vmatprep.subr.mxu0 0.0
        %5691 = vmatpush1.msra.mxu0 %v4967
        %5692 = vmatprep.subr.mxu0 0.0
        %5693 = vmatpush1.msra.mxu0 %v4968
        %5694 = vmatprep.subr.mxu0 0.0
        %5695 = vmatpush1.msra.mxu0 %v4969
        %5696 = vmatprep.subr.mxu0 0.0
        %5697 = vmatpush1.msra.mxu0 %v4970
        %5698 = vmatprep.subr.mxu0 0.0
        %5699 = vmatpush1.msra.mxu0 %v4971
        %5700 = vmatprep.subr.mxu0 0.0
        %5701 = vmatpush1.msra.mxu0 %v4972
        %5702 = vmatprep.subr.mxu0 0.0
        %5703 = vmatpush1.msra.mxu0 %v4973
        %5704 = vmatprep.subr.mxu0 0.0
        %5705 = vmatpush1.msra.mxu0 %v4974
        %5706 = vmatprep.subr.mxu0 0.0
        %5707 = vmatpush1.msra.mxu0 %v4975
        %5708 = vmatprep.subr.mxu0 0.0
        %5709 = vmatpush1.msra.mxu0 %v4976
        %5710 = vmatprep.subr.mxu0 0.0
        %5711 = vmatpush1.msra.mxu0 %v4977
        %5712 = vmatprep.subr.mxu0 0.0
        %5713 = vmatpush1.msra.mxu0 %v4978
        %5714 = vmatprep.subr.mxu0 0.0
        %5715 = vmatpush1.msra.mxu0 %v4979
        %5716 = vmatprep.subr.mxu0 0.0
        %5717 = vmatpush1.msra.mxu0 %v4980
        %5718 = vmatprep.subr.mxu0 0.0
        %5719 = vmatpush1.msra.mxu0 %v4981
        %5720 = vmatprep.subr.mxu0 0.0
        %5721 = vmatpush1.msra.mxu0 %v4982
        %5722 = vmatprep.mubr.f32.mxu0 %v4606
        %5723 = vmatmul.mubr.f32.gmra.mrb[0].mxu0 %v4605
        %v5724 = vpop.f32.mrb[0].mxu0
        %v5725 = vadd.f32 %v5500, %v5724
        %v5726 = vpop.f32.mrb[0].mxu0
        %5727 = vmatprep.mubr.f32.mxu0 %v4614
        %5728 = vmatmul.mubr.f32.gmra.mrb[0].mxu0 %v4613
        %v5729 = vpop.f32.mrb[0].mxu0
        %v5730 = vadd.f32 %v5505, %v5729
        %v5731 = vpop.f32.mrb[0].mxu0
        %5732 = vmatprep.mubr.f32.mxu0 %v4622
        %5733 = vmatmul.mubr.f32.gmra.mrb[0].mxu0 %v4621
        %v5734 = vpop.f32.mrb[0].mxu0
        %v5735 = vadd.f32 %v5510, %v5734
        %v5736 = vpop.f32.mrb[0].mxu0
        %5737 = vmatprep.mubr.f32.mxu0 %v4630
        %5738 = vmatmul.mubr.f32.gmra.mrb[0].mxu0 %v4629
        %v5739 = vpop.f32.mrb[0].mxu0
        %v5740 = vadd.f32 %v5515, %v5739
        %v5741 = vpop.f32.mrb[0].mxu0
        %5742 = vmatprep.mubr.f32.mxu0 %v4638
        %5743 = vmatmul.mubr.f32.gmra.mrb[0].mxu0 %v4637
        %v5744 = vpop.f32.mrb[0].mxu0
        %v5745 = vadd.f32 %v5520, %v5744
        %v5746 = vpop.f32.mrb[0].mxu0
        %5747 = vmatprep.mubr.f32.mxu0 %v4646
        %5748 = vmatmul.mubr.f32.gmra.mrb[0].mxu0 %v4645
        %v5749 = vpop.f32.mrb[0].mxu0
        %v5750 = vadd.f32 %v5525, %v5749
        %v5751 = vpop.f32.mrb[0].mxu0
        %5752 = vmatprep.mubr.f32.mxu0 %v4654
        %5753 = vmatmul.mubr.f32.gmra.mrb[0].mxu0 %v4653
        %v5754 = vpop.f32.mrb[0].mxu0
        %v5755 = vadd.f32 %v5530, %v5754
        %v5756 = vpop.f32.mrb[0].mxu0
        %5757 = vmatprep.mubr.f32.mxu0 %v4662
        %5758 = vmatmul.mubr.f32.gmra.mrb[0].mxu0 %v4661
        %v5759 = vpop.f32.mrb[0].mxu0
        %v5760 = vadd.f32 %v5535, %v5759
        %v5761 = vpop.f32.mrb[0].mxu0
        %5762 = vmatprep.mubr.f32.mxu0 %v4670
        %5763 = vmatmul.mubr.f32.gmra.mrb[0].mxu0 %v4669
        %v5764 = vpop.f32.mrb[0].mxu0
        %v5765 = vadd.f32 %v5540, %v5764
        %v5766 = vpop.f32.mrb[0].mxu0
        %5767 = vmatprep.mubr.f32.mxu0 %v4678
        %5768 = vmatmul.mubr.f32.gmra.mrb[0].mxu0 %v4677
        %v5769 = vpop.f32.mrb[0].mxu0
        %v5770 = vadd.f32 %v5545, %v5769
        %v5771 = vpop.f32.mrb[0].mxu0
        %5772 = vmatprep.mubr.f32.mxu0 %v4686
        %5773 = vmatmul.mubr.f32.gmra.mrb[0].mxu0 %v4685
        %v5774 = vpop.f32.mrb[0].mxu0
        %v5775 = vadd.f32 %v5550, %v5774
        %v5776 = vpop.f32.mrb[0].mxu0
        %5777 = vmatprep.mubr.f32.mxu0 %v4694
        %5778 = vmatmul.mubr.f32.gmra.mrb[0].mxu0 %v4693
        %v5779 = vpop.f32.mrb[0].mxu0
        %v5780 = vadd.f32 %v5555, %v5779
        %v5781 = vpop.f32.mrb[0].mxu0
        %5782 = vmatprep.mubr.f32.mxu0 %v4702
        %5783 = vmatmul.mubr.f32.gmra.mrb[0].mxu0 %v4701
        %v5784 = vpop.f32.mrb[0].mxu0
        %v5785 = vadd.f32 %v5560, %v5784
        %v5786 = vpop.f32.mrb[0].mxu0
        %5787 = vmatprep.mubr.f32.mxu0 %v4710
        %5788 = vmatmul.mubr.f32.gmra.mrb[0].mxu0 %v4709
        %v5789 = vpop.f32.mrb[0].mxu0
        %v5790 = vadd.f32 %v5565, %v5789
        %v5791 = vpop.f32.mrb[0].mxu0
        %5792 = vmatprep.mubr.f32.mxu0 %v4718
        %5793 = vmatmul.mubr.f32.gmra.mrb[0].mxu0 %v4717
        %v5794 = vpop.f32.mrb[0].mxu0
        %v5795 = vadd.f32 %v5570, %v5794
        %v5796 = vpop.f32.mrb[0].mxu0
        %5797 = vmatprep.mubr.f32.mxu0 %v4726
        %5798 = vmatmul.mubr.f32.gmra.mrb[0].mxu0 %v4725
        %v5799 = vpop.f32.mrb[0].mxu0
        %v5800 = vadd.f32 %v5575, %v5799
        %v5801 = vpop.f32.mrb[0].mxu0
        %5802 = vmatprep.mubr.f32.mxu0 %v4734
        %5803 = vmatmul.mubr.f32.gmra.mrb[0].mxu0 %v4733
        %v5804 = vpop.f32.mrb[0].mxu0
        %v5805 = vadd.f32 %v5580, %v5804
        %v5806 = vpop.f32.mrb[0].mxu0
        %5807 = vmatprep.mubr.f32.mxu0 %v4742
        %5808 = vmatmul.mubr.f32.gmra.mrb[0].mxu0 %v4741
        %v5809 = vpop.f32.mrb[0].mxu0
        %v5810 = vadd.f32 %v5585, %v5809
        %v5811 = vpop.f32.mrb[0].mxu0
        %5812 = vmatprep.mubr.f32.mxu0 %v4750
        %5813 = vmatmul.mubr.f32.gmra.mrb[0].mxu0 %v4749
        %v5814 = vpop.f32.mrb[0].mxu0
        %v5815 = vadd.f32 %v5590, %v5814
        %v5816 = vpop.f32.mrb[0].mxu0
        %5817 = vmatprep.mubr.f32.mxu0 %v4758
        %5818 = vmatmul.mubr.f32.gmra.mrb[0].mxu0 %v4757
        %v5819 = vpop.f32.mrb[0].mxu0
        %v5820 = vadd.f32 %v5595, %v5819
        %v5821 = vpop.f32.mrb[0].mxu0
        %5822 = vmatprep.mubr.f32.mxu0 %v4766
        %5823 = vmatmul.mubr.f32.gmra.mrb[0].mxu0 %v4765
        %v5824 = vpop.f32.mrb[0].mxu0
        %v5825 = vadd.f32 %v5600, %v5824
        %v5826 = vpop.f32.mrb[0].mxu0
        %5827 = vmatprep.mubr.f32.mxu0 %v4774
        %5828 = vmatmul.mubr.f32.gmra.mrb[0].mxu0 %v4773
        %v5829 = vpop.f32.mrb[0].mxu0
        %v5830 = vadd.f32 %v5605, %v5829
        %v5831 = vpop.f32.mrb[0].mxu0
        %5832 = vmatprep.mubr.f32.mxu0 %v4782
        %5833 = vmatmul.mubr.f32.gmra.mrb[0].mxu0 %v4781
        %v5834 = vpop.f32.mrb[0].mxu0
        %v5835 = vadd.f32 %v5610, %v5834
        %v5836 = vpop.f32.mrb[0].mxu0
        %5837 = vmatprep.mubr.f32.mxu0 %v4790
        %5838 = vmatmul.mubr.f32.gmra.mrb[0].mxu0 %v4789
        %v5839 = vpop.f32.mrb[0].mxu0
        %v5840 = vadd.f32 %v5615, %v5839
        %v5841 = vpop.f32.mrb[0].mxu0
        %5842 = vmatprep.mubr.f32.mxu0 %v4798
        %5843 = vmatmul.mubr.f32.gmra.mrb[0].mxu0 %v4797
        %v5844 = vpop.f32.mrb[0].mxu0
        %v5845 = vadd.f32 %v5620, %v5844
        %v5846 = vpop.f32.mrb[0].mxu0
        %5847 = vmatprep.mubr.f32.mxu0 %v4806
        %5848 = vmatmul.mubr.f32.gmra.mrb[0].mxu0 %v4805
        %v5849 = vpop.f32.mrb[0].mxu0
        %v5850 = vadd.f32 %v5625, %v5849
        %v5851 = vpop.f32.mrb[0].mxu0
        %5852 = vmatprep.mubr.f32.mxu0 %v4814
        %5853 = vmatmul.mubr.f32.gmra.mrb[0].mxu0 %v4813
        %v5854 = vpop.f32.mrb[0].mxu0
        %v5855 = vadd.f32 %v5630, %v5854
        %v5856 = vpop.f32.mrb[0].mxu0
        %5857 = vmatprep.mubr.f32.mxu0 %v4822
        %5858 = vmatmul.mubr.f32.gmra.mrb[0].mxu0 %v4821
        %v5859 = vpop.f32.mrb[0].mxu0
        %v5860 = vadd.f32 %v5635, %v5859
        %v5861 = vpop.f32.mrb[0].mxu0
        %5862 = vmatprep.mubr.f32.mxu0 %v4830
        %5863 = vmatmul.mubr.f32.gmra.mrb[0].mxu0 %v4829
        %v5864 = vpop.f32.mrb[0].mxu0
        %v5865 = vadd.f32 %v5640, %v5864
        %v5866 = vpop.f32.mrb[0].mxu0
        %5867 = vmatprep.mubr.f32.mxu0 %v4838
        %5868 = vmatmul.mubr.f32.gmra.mrb[0].mxu0 %v4837
        %v5869 = vpop.f32.mrb[0].mxu0
        %v5870 = vadd.f32 %v5645, %v5869
        %v5871 = vpop.f32.mrb[0].mxu0
        %5872 = vmatprep.mubr.f32.mxu0 %v4846
        %5873 = vmatmul.mubr.f32.gmra.mrb[0].mxu0 %v4845
        %v5874 = vpop.f32.mrb[0].mxu0
        %v5875 = vadd.f32 %v5650, %v5874
        %v5876 = vpop.f32.mrb[0].mxu0
        %5877 = vmatprep.mubr.f32.mxu0 %v4854
        %5878 = vmatmul.mubr.f32.gmra.mrb[0].mxu0 %v4853
        %v5879 = vpop.f32.mrb[0].mxu0
        %v5880 = vadd.f32 %v5655, %v5879
        %v5881 = vpop.f32.mrb[0].mxu0
        %5882 = vdwg.mxu0
        %v5883 = vmax.f32 %v5725, 0.0
        %v5884 = vmax.f32 %v5730, 0.0
        %v5885 = vmax.f32 %v5735, 0.0
        %v5886 = vmax.f32 %v5740, 0.0
        %v5887 = vmax.f32 %v5745, 0.0
        %v5888 = vmax.f32 %v5750, 0.0
        %v5889 = vmax.f32 %v5755, 0.0
        %v5890 = vmax.f32 %v5760, 0.0
        %v5891 = vmax.f32 %v5765, 0.0
        %v5892 = vmax.f32 %v5770, 0.0
        %v5893 = vmax.f32 %v5775, 0.0
        %v5894 = vmax.f32 %v5780, 0.0
        %v5895 = vmax.f32 %v5785, 0.0
        %v5896 = vmax.f32 %v5790, 0.0
        %v5897 = vmax.f32 %v5795, 0.0
        %v5898 = vmax.f32 %v5800, 0.0
        %v5899 = vmax.f32 %v5805, 0.0
        %v5900 = vmax.f32 %v5810, 0.0
        %v5901 = vmax.f32 %v5815, 0.0
        %v5902 = vmax.f32 %v5820, 0.0
        %v5903 = vmax.f32 %v5825, 0.0
        %v5904 = vmax.f32 %v5830, 0.0
        %v5905 = vmax.f32 %v5835, 0.0
        %v5906 = vmax.f32 %v5840, 0.0
        %v5907 = vmax.f32 %v5845, 0.0
        %v5908 = vmax.f32 %v5850, 0.0
        %v5909 = vmax.f32 %v5855, 0.0
        %v5910 = vmax.f32 %v5860, 0.0
        %v5911 = vmax.f32 %v5865, 0.0
        %v5912 = vmax.f32 %v5870, 0.0
        %v5913 = vmax.f32 %v5875, 0.0
        %v5914 = vmax.f32 %v5880, 0.0
        %v5915 = vld [vmem:[#allocation9] sm:$0xff]
        %v5916 = vld [vmem:[#allocation9 + $0x8] sm:$0xff]
        %v5917 = vld [vmem:[#allocation9 + $0x10] sm:$0xff]
        %v5918 = vld [vmem:[#allocation9 + $0x18] sm:$0xff]
        %v5919 = vld [vmem:[#allocation9 + $0x20] sm:$0xff]
        %v5920 = vld [vmem:[#allocation9 + $0x28] sm:$0xff]
        %v5921 = vld [vmem:[#allocation9 + $0x30] sm:$0xff]
        %v5922 = vld [vmem:[#allocation9 + $0x38] sm:$0xff]
        %v5923 = vld [vmem:[#allocation9 + $0x40] sm:$0xff]
        %v5924 = vld [vmem:[#allocation9 + $0x48] sm:$0xff]
        %v5925 = vld [vmem:[#allocation9 + $0x50] sm:$0xff]
        %v5926 = vld [vmem:[#allocation9 + $0x58] sm:$0xff]
        %v5927 = vld [vmem:[#allocation9 + $0x60] sm:$0xff]
        %v5928 = vld [vmem:[#allocation9 + $0x68] sm:$0xff]
        %v5929 = vld [vmem:[#allocation9 + $0x70] sm:$0xff]
        %v5930 = vld [vmem:[#allocation9 + $0x78] sm:$0xff]
        %5931 = vmatprep.subr.mxu0 0.0
        %5932 = vmatpush1.msra.mxu0 %v5915
        %5933 = vmatprep.subr.mxu0 0.0
        %5934 = vmatpush1.msra.mxu0 %v5916
        %5935 = vmatprep.subr.mxu0 0.0
        %5936 = vmatpush1.msra.mxu0 %v5917
        %5937 = vmatprep.subr.mxu0 0.0
        %5938 = vmatpush1.msra.mxu0 %v5918
        %5939 = vmatprep.subr.mxu0 0.0
        %5940 = vmatpush1.msra.mxu0 %v5919
        %5941 = vmatprep.subr.mxu0 0.0
        %5942 = vmatpush1.msra.mxu0 %v5920
        %5943 = vmatprep.subr.mxu0 0.0
        %5944 = vmatpush1.msra.mxu0 %v5921
        %5945 = vmatprep.subr.mxu0 0.0
        %5946 = vmatpush1.msra.mxu0 %v5922
        %5947 = vmatprep.subr.mxu0 0.0
        %5948 = vmatpush1.msra.mxu0 %v5923
        %5949 = vmatprep.subr.mxu0 0.0
        %5950 = vmatpush1.msra.mxu0 %v5924
        %5951 = vmatprep.subr.mxu0 0.0
        %5952 = vmatpush1.msra.mxu0 %v5925
        %5953 = vmatprep.subr.mxu0 0.0
        %5954 = vmatpush1.msra.mxu0 %v5926
        %5955 = vmatprep.subr.mxu0 0.0
        %5956 = vmatpush1.msra.mxu0 %v5927
        %5957 = vmatprep.subr.mxu0 0.0
        %5958 = vmatpush1.msra.mxu0 %v5928
        %5959 = vmatprep.subr.mxu0 0.0
        %5960 = vmatpush1.msra.mxu0 %v5929
        %5961 = vmatprep.subr.mxu0 0.0
        %5962 = vmatpush1.msra.mxu0 %v5930
        %5963 = vmatprep.subr.mxu0 0.0
        %5964 = vmatpush1.msra.mxu0 0.0
        %5965 = vmatprep.subr.mxu0 0.0
        %5966 = vmatpush1.msra.mxu0 0.0
        %5967 = vmatprep.subr.mxu0 0.0
        %5968 = vmatpush1.msra.mxu0 0.0
        %5969 = vmatprep.subr.mxu0 0.0
        %5970 = vmatpush1.msra.mxu0 0.0
        %5971 = vmatprep.subr.mxu0 0.0
        %5972 = vmatpush1.msra.mxu0 0.0
        %5973 = vmatprep.subr.mxu0 0.0
        %5974 = vmatpush1.msra.mxu0 0.0
        %5975 = vmatprep.subr.mxu0 0.0
        %5976 = vmatpush1.msra.mxu0 0.0
        %5977 = vmatprep.subr.mxu0 0.0
        %5978 = vmatpush1.msra.mxu0 0.0
        %5979 = vmatprep.subr.mxu0 0.0
        %5980 = vmatpush1.msra.mxu0 0.0
        %5981 = vmatprep.subr.mxu0 0.0
        %5982 = vmatpush1.msra.mxu0 0.0
        %5983 = vmatprep.subr.mxu0 0.0
        %5984 = vmatpush1.msra.mxu0 0.0
        %5985 = vmatprep.subr.mxu0 0.0
        %5986 = vmatpush1.msra.mxu0 0.0
        %5987 = vmatprep.subr.mxu0 0.0
        %5988 = vmatpush1.msra.mxu0 0.0
        %5989 = vmatprep.subr.mxu0 0.0
        %5990 = vmatpush1.msra.mxu0 0.0
        %5991 = vmatprep.subr.mxu0 0.0
        %5992 = vmatpush1.msra.mxu0 0.0
        %5993 = vmatprep.subr.mxu0 0.0
        %5994 = vmatpush1.msra.mxu0 0.0
        %5995 = vmatprep.mubr.f32.mxu0 0.0
        %5996 = vmatmul.mubr.f32.gmra.mrb[0].mxu0 %v5883
        %v5997 = vpop.f32.mrb[0].mxu0
        %v5998 = vadd.f32 %v370, %v5997
        %v5999 = vpop.f32.mrb[0].mxu0
        %6000 = vmatprep.mubr.f32.mxu0 0.0
        %6001 = vmatmul.mubr.f32.gmra.mrb[0].mxu0 %v5884
        %v6002 = vpop.f32.mrb[0].mxu0
        %v6003 = vadd.f32 %v370, %v6002
        %v6004 = vpop.f32.mrb[0].mxu0
        %6005 = vmatprep.mubr.f32.mxu0 0.0
        %6006 = vmatmul.mubr.f32.gmra.mrb[0].mxu0 %v5885
        %v6007 = vpop.f32.mrb[0].mxu0
        %v6008 = vadd.f32 %v370, %v6007
        %v6009 = vpop.f32.mrb[0].mxu0
        %6010 = vmatprep.mubr.f32.mxu0 0.0
        %6011 = vmatmul.mubr.f32.gmra.mrb[0].mxu0 %v5886
        %v6012 = vpop.f32.mrb[0].mxu0
        %v6013 = vadd.f32 %v370, %v6012
        %v6014 = vpop.f32.mrb[0].mxu0
        %6015 = vmatprep.mubr.f32.mxu0 0.0
        %6016 = vmatmul.mubr.f32.gmra.mrb[0].mxu0 %v5887
        %v6017 = vpop.f32.mrb[0].mxu0
        %v6018 = vadd.f32 %v370, %v6017
        %v6019 = vpop.f32.mrb[0].mxu0
        %6020 = vmatprep.mubr.f32.mxu0 0.0
        %6021 = vmatmul.mubr.f32.gmra.mrb[0].mxu0 %v5888
        %v6022 = vpop.f32.mrb[0].mxu0
        %v6023 = vadd.f32 %v370, %v6022
        %v6024 = vpop.f32.mrb[0].mxu0
        %6025 = vmatprep.mubr.f32.mxu0 0.0
        %6026 = vmatmul.mubr.f32.gmra.mrb[0].mxu0 %v5889
        %v6027 = vpop.f32.mrb[0].mxu0
        %v6028 = vadd.f32 %v370, %v6027
        %v6029 = vpop.f32.mrb[0].mxu0
        %6030 = vmatprep.mubr.f32.mxu0 0.0
        %6031 = vmatmul.mubr.f32.gmra.mrb[0].mxu0 %v5890
        %v6032 = vpop.f32.mrb[0].mxu0
        %v6033 = vadd.f32 %v370, %v6032
        %v6034 = vpop.f32.mrb[0].mxu0
        %6035 = vmatprep.mubr.f32.mxu0 0.0
        %6036 = vmatmul.mubr.f32.gmra.mrb[0].mxu0 %v5891
        %v6037 = vpop.f32.mrb[0].mxu0
        %v6038 = vadd.f32 %v370, %v6037
        %v6039 = vpop.f32.mrb[0].mxu0
        %6040 = vmatprep.mubr.f32.mxu0 0.0
        %6041 = vmatmul.mubr.f32.gmra.mrb[0].mxu0 %v5892
        %v6042 = vpop.f32.mrb[0].mxu0
        %v6043 = vadd.f32 %v370, %v6042
        %v6044 = vpop.f32.mrb[0].mxu0
        %6045 = vmatprep.mubr.f32.mxu0 0.0
        %6046 = vmatmul.mubr.f32.gmra.mrb[0].mxu0 %v5893
        %v6047 = vpop.f32.mrb[0].mxu0
        %v6048 = vadd.f32 %v370, %v6047
        %v6049 = vpop.f32.mrb[0].mxu0
        %6050 = vmatprep.mubr.f32.mxu0 0.0
        %6051 = vmatmul.mubr.f32.gmra.mrb[0].mxu0 %v5894
        %v6052 = vpop.f32.mrb[0].mxu0
        %v6053 = vadd.f32 %v370, %v6052
        %v6054 = vpop.f32.mrb[0].mxu0
        %6055 = vmatprep.mubr.f32.mxu0 0.0
        %6056 = vmatmul.mubr.f32.gmra.mrb[0].mxu0 %v5895
        %v6057 = vpop.f32.mrb[0].mxu0
        %v6058 = vadd.f32 %v370, %v6057
        %v6059 = vpop.f32.mrb[0].mxu0
        %6060 = vmatprep.mubr.f32.mxu0 0.0
        %6061 = vmatmul.mubr.f32.gmra.mrb[0].mxu0 %v5896
        %v6062 = vpop.f32.mrb[0].mxu0
        %v6063 = vadd.f32 %v370, %v6062
        %v6064 = vpop.f32.mrb[0].mxu0
        %6065 = vmatprep.mubr.f32.mxu0 0.0
        %6066 = vmatmul.mubr.f32.gmra.mrb[0].mxu0 %v5897
        %v6067 = vpop.f32.mrb[0].mxu0
        %v6068 = vadd.f32 %v370, %v6067
        %v6069 = vpop.f32.mrb[0].mxu0
        %6070 = vmatprep.mubr.f32.mxu0 0.0
        %6071 = vmatmul.mubr.f32.gmra.mrb[0].mxu0 %v5898
        %v6072 = vpop.f32.mrb[0].mxu0
        %v6073 = vadd.f32 %v370, %v6072
        %v6074 = vpop.f32.mrb[0].mxu0
        %6075 = vmatprep.mubr.f32.mxu0 0.0
        %6076 = vmatmul.mubr.f32.gmra.mrb[0].mxu0 %v5899
        %v6077 = vpop.f32.mrb[0].mxu0
        %v6078 = vadd.f32 %v370, %v6077
        %v6079 = vpop.f32.mrb[0].mxu0
        %6080 = vmatprep.mubr.f32.mxu0 0.0
        %6081 = vmatmul.mubr.f32.gmra.mrb[0].mxu0 %v5900
        %v6082 = vpop.f32.mrb[0].mxu0
        %v6083 = vadd.f32 %v370, %v6082
        %v6084 = vpop.f32.mrb[0].mxu0
        %6085 = vmatprep.mubr.f32.mxu0 0.0
        %6086 = vmatmul.mubr.f32.gmra.mrb[0].mxu0 %v5901
        %v6087 = vpop.f32.mrb[0].mxu0
        %v6088 = vadd.f32 %v370, %v6087
        %v6089 = vpop.f32.mrb[0].mxu0
        %6090 = vmatprep.mubr.f32.mxu0 0.0
        %6091 = vmatmul.mubr.f32.gmra.mrb[0].mxu0 %v5902
        %v6092 = vpop.f32.mrb[0].mxu0
        %v6093 = vadd.f32 %v370, %v6092
        %v6094 = vpop.f32.mrb[0].mxu0
        %6095 = vmatprep.mubr.f32.mxu0 0.0
        %6096 = vmatmul.mubr.f32.gmra.mrb[0].mxu0 %v5903
        %v6097 = vpop.f32.mrb[0].mxu0
        %v6098 = vadd.f32 %v370, %v6097
        %v6099 = vpop.f32.mrb[0].mxu0
        %6100 = vmatprep.mubr.f32.mxu0 0.0
        %6101 = vmatmul.mubr.f32.gmra.mrb[0].mxu0 %v5904
        %v6102 = vpop.f32.mrb[0].mxu0
        %v6103 = vadd.f32 %v370, %v6102
        %v6104 = vpop.f32.mrb[0].mxu0
        %6105 = vmatprep.mubr.f32.mxu0 0.0
        %6106 = vmatmul.mubr.f32.gmra.mrb[0].mxu0 %v5905
        %v6107 = vpop.f32.mrb[0].mxu0
        %v6108 = vadd.f32 %v370, %v6107
        %v6109 = vpop.f32.mrb[0].mxu0
        %6110 = vmatprep.mubr.f32.mxu0 0.0
        %6111 = vmatmul.mubr.f32.gmra.mrb[0].mxu0 %v5906
        %v6112 = vpop.f32.mrb[0].mxu0
        %v6113 = vadd.f32 %v370, %v6112
        %v6114 = vpop.f32.mrb[0].mxu0
        %6115 = vmatprep.mubr.f32.mxu0 0.0
        %6116 = vmatmul.mubr.f32.gmra.mrb[0].mxu0 %v5907
        %v6117 = vpop.f32.mrb[0].mxu0
        %v6118 = vadd.f32 %v370, %v6117
        %v6119 = vpop.f32.mrb[0].mxu0
        %6120 = vmatprep.mubr.f32.mxu0 0.0
        %6121 = vmatmul.mubr.f32.gmra.mrb[0].mxu0 %v5908
        %v6122 = vpop.f32.mrb[0].mxu0
        %v6123 = vadd.f32 %v370, %v6122
        %v6124 = vpop.f32.mrb[0].mxu0
        %6125 = vmatprep.mubr.f32.mxu0 0.0
        %6126 = vmatmul.mubr.f32.gmra.mrb[0].mxu0 %v5909
        %v6127 = vpop.f32.mrb[0].mxu0
        %v6128 = vadd.f32 %v370, %v6127
        %v6129 = vpop.f32.mrb[0].mxu0
        %6130 = vmatprep.mubr.f32.mxu0 0.0
        %6131 = vmatmul.mubr.f32.gmra.mrb[0].mxu0 %v5910
        %v6132 = vpop.f32.mrb[0].mxu0
        %v6133 = vadd.f32 %v370, %v6132
        %v6134 = vpop.f32.mrb[0].mxu0
        %6135 = vmatprep.mubr.f32.mxu0 0.0
        %6136 = vmatmul.mubr.f32.gmra.mrb[0].mxu0 %v5911
        %v6137 = vpop.f32.mrb[0].mxu0
        %v6138 = vadd.f32 %v370, %v6137
        %v6139 = vpop.f32.mrb[0].mxu0
        %6140 = vmatprep.mubr.f32.mxu0 0.0
        %6141 = vmatmul.mubr.f32.gmra.mrb[0].mxu0 %v5912
        %v6142 = vpop.f32.mrb[0].mxu0
        %v6143 = vadd.f32 %v370, %v6142
        %v6144 = vpop.f32.mrb[0].mxu0
        %6145 = vmatprep.mubr.f32.mxu0 0.0
        %6146 = vmatmul.mubr.f32.gmra.mrb[0].mxu0 %v5913
        %v6147 = vpop.f32.mrb[0].mxu0
        %v6148 = vadd.f32 %v370, %v6147
        %v6149 = vpop.f32.mrb[0].mxu0
        %6150 = vmatprep.mubr.f32.mxu0 0.0
        %6151 = vmatmul.mubr.f32.gmra.mrb[0].mxu0 %v5914
        %v6152 = vpop.f32.mrb[0].mxu0
        %v6153 = vadd.f32 %v370, %v6152
        %v6154 = vpop.f32.mrb[0].mxu0
        %6155 = vdwg.mxu0
        %6156 = vst [vmem:[%s324] sm:$0xff] %v5998
        %6157 = vst [vmem:[%s324 + $0x8] sm:$0xff] %v6003
        %6158 = vst [vmem:[%s324 + $0x10] sm:$0xff] %v6008
        %6159 = vst [vmem:[%s324 + $0x18] sm:$0xff] %v6013
        %6160 = vst [vmem:[%s324 + $0x20] sm:$0xff] %v6018
        %6161 = vst [vmem:[%s324 + $0x28] sm:$0xff] %v6023
        %6162 = vst [vmem:[%s324 + $0x30] sm:$0xff] %v6028
        %6163 = vst [vmem:[%s324 + $0x38] sm:$0xff] %v6033
        %6164 = vst [vmem:[%s324 + $0x40] sm:$0xff] %v6038
        %6165 = vst [vmem:[%s324 + $0x48] sm:$0xff] %v6043
        %6166 = vst [vmem:[%s324 + $0x50] sm:$0xff] %v6048
        %6167 = vst [vmem:[%s324 + $0x58] sm:$0xff] %v6053
        %6168 = vst [vmem:[%s324 + $0x60] sm:$0xff] %v6058
        %6169 = vst [vmem:[%s324 + $0x68] sm:$0xff] %v6063
        %6170 = vst [vmem:[%s324 + $0x70] sm:$0xff] %v6068
        %6171 = vst [vmem:[%s324 + $0x78] sm:$0xff] %v6073
        %6172 = vst [vmem:[%s324 + $0x80] sm:$0xff] %v6078
        %6173 = vst [vmem:[%s324 + $0x88] sm:$0xff] %v6083
        %6174 = vst [vmem:[%s324 + $0x90] sm:$0xff] %v6088
        %6175 = vst [vmem:[%s324 + $0x98] sm:$0xff] %v6093
        %6176 = vst [vmem:[%s324 + $0xa0] sm:$0xff] %v6098
        %6177 = vst [vmem:[%s324 + $0xa8] sm:$0xff] %v6103
        %6178 = vst [vmem:[%s324 + $0xb0] sm:$0xff] %v6108
        %6179 = vst [vmem:[%s324 + $0xb8] sm:$0xff] %v6113
        %6180 = vst [vmem:[%s324 + $0xc0] sm:$0xff] %v6118
        %6181 = vst [vmem:[%s324 + $0xc8] sm:$0xff] %v6123
        %6182 = vst [vmem:[%s324 + $0xd0] sm:$0xff] %v6128
        %6183 = vst [vmem:[%s324 + $0xd8] sm:$0xff] %v6133
        %6184 = vst [vmem:[%s324 + $0xe0] sm:$0xff] %v6138
        %6185 = vst [vmem:[%s324 + $0xe8] sm:$0xff] %v6143
        %6186 = vst [vmem:[%s324 + $0xf0] sm:$0xff] %v6148
        %6187 = vst [vmem:[%s324 + $0xf8] sm:$0xff] %v6153
        %s6188 = smul.u32 32, %s20
        %p6189 = scmp.lt.s32.totalorder %s6188, 63
        %s6190 = scalar_select %p6189, %s6188, 63
        %s6191 = smul.addr %s6190, 8
        %s6192 = scalar_lea.vmem %s6, %s6191
        // Predicated region
        $region65: #{net_pallas.1} parent=43 // pred_check
          %p6193 = pneg %p169
        $region66: #{net_pallas.1} parent=43 // pred_check_branch
          %6195 = sbr.rel (%p6193) target = $region68
        $region67: #{net_pallas.1} parent=43 // pred_region
          %s6196 = smul.u32 32, %s20
        $region68: #{net_pallas.1} parent=43 // pred_fallthru
          _
      $region44: #{net_pallas.1} parent=5 // pred_fallthru
        _
      %p6197 = scmp.le.s32.totalorder 2, %s15
      // Predicated region
      $region69: #{net_pallas.1} parent=5 // pred_check
        %p6198 = pneg %p6197
      $region70: #{net_pallas.1} parent=5 // pred_check_branch
        %6200 = sbr.rel (%p6198) target = $region72
      $region71: #{net_pallas.1} parent=5 // pred_region
        %s6201 = ssub.s32 %s15, 2
        // Predicated region
        $region73: #{net_pallas.1} parent=71 // pred_check
          %p6202 = pneg %p175
        $region74: #{net_pallas.1} parent=71 // pred_check_branch
          %6204 = sbr.rel (%p6202) target = $region76
        $region75: #{net_pallas.1} parent=71 // pred_region
          %s6205 = smul.u32 32, %s21
          %p6206 = scmp.lt.s32.totalorder %s6205, 63
          %s6207 = scalar_select %p6206, %s6205, 63
          %s6208 = smul.addr %s6207, 8
          %s6209 = scalar_lea.vmem %s6, %s6208
        $region76: #{net_pallas.1} parent=71 // pred_fallthru
          _
      $region72: #{net_pallas.1} parent=5 // pred_fallthru
        _
    $region6: #{net_pallas.1} parent=1 // loop_footer
      %s19 = sadd.s32 1, %s15
    $region7: #{net_pallas.1} parent=1 // loop_footer_branch
      %14 = sbr.rel target = $region3
    $region8: #{net_pallas.1} parent=1 // loop_exit
      _
    %6210 = vsyncpa [#allocation3], 1
    %s6211 = scalar_lea.sflag [#allocation3], 1
    %6212 = vsyncpa %s6211, 1
    %6213 = vsyncpa [#allocation5], 1
    %6214 = vsyncpa [#allocation8], 1

</llo_original>
